<compile_context>
chip_gen: v7x
topology: tpu7x:2x2x1
jax: 0.10.0
libtpu: 0.0.40
codegen_flags: <defaults>
</compile_context>

<pallas_src>
import functools

import jax
import jax.numpy as jnp
from jax import lax
from jax.experimental import pallas as pl
from jax.experimental.pallas import tpu as pltpu

EPS = 1e-5       # PyTorch BatchNorm default eps
W_HALO = 8       # left/right column halo -> sublane-aligned interior columns


def _round_up(x, m):
    return (x + m - 1) // m * m


def _cdiv(a, b):
    return (a + b - 1) // b


def _vmem_capacity_bytes():
    """Physical VMEM per TensorCore; conservative fallback = v7x (64 MiB)."""
    try:
        info = pltpu.get_tpu_info()
        cap = getattr(info, "vmem_capacity_bytes", None)
        if cap:
            return int(cap)
    except Exception:
        pass
    return 64 * 1024 * 1024


def _step_vmem_bytes(th, W, L, c_pad, g):
    """Conservative per-grid-step VMEM estimate (all live buffers)."""
    R = th + 2 * L
    wp = W + 2 * W_HALO
    M = (R - 2) * W
    g_sub = max(_round_up(g, 8), 8)
    feat = R * wp * c_pad * 4                    # resident f32 feature slab
    out_blk = 2 * th * W * c_pad * 4             # double-buffered output block
    wts = 2 * (L * 9) * g_sub * c_pad * 2        # double-buffered bf16 weights
    bn = 4 * max(L, 8) * c_pad * 4               # scale/shift (x2 buffers)
    h = R * wp * c_pad * 2                       # bf16 BN/ReLU activations
    taps = 2 * M * c_pad * 2                     # materialized shifted taps
    acc = 2 * M * 128 * 4                        # f32 accumulator + y (padded)
    return feat + out_blk + wts + bn + h + taps + acc


def _pick_tile_h(H, W, N, L, c_pad, g, budget_bytes):
    """Largest TH (<= H) whose per-step VMEM estimate fits the budget."""
    th = 1
    for cand in range(H, 0, -1):
        if _step_vmem_bytes(cand, W, L, c_pad, g) <= budget_bytes:
            th = cand
            break
    # Keep >=2 total grid steps only when batch alone would not provide them,
    # so a 2-TensorCore chip (v7x) does not idle one core.
    if N * _cdiv(H, th) < 2 and H >= 2:
        th = _cdiv(H, 2)
    return th


def _dense_block_kernel(x_hbm, scale_ref, shift_ref, w_ref, out_ref, feat, sem,
                        *, W, TH, HT, REM, C0, C_pad, G, L):
    """Fused dense block for one (batch, H-tile) grid step.

    x_hbm    : (N, HT*TH+2L, W+16, C_pad) f32 HBM ref (pre-padded), manual DMA
    scale_ref: (L, C_pad) f32      folded BN scale (zero beyond layer's Cin)
    shift_ref: (L, C_pad) f32      folded BN shift (zero beyond layer's Cin)
    w_ref    : (L*9, G, C_pad) bf16  lane-dense conv weights (tap = dh*3+dw)
    out_ref  : (1, TH, W, C_pad) f32 lane-dense output block
    feat     : VMEM (TH+2L, W+16, C_pad) f32 resident feature slab
    sem      : DMA semaphores, one per 128-channel input group
    """
    R = TH + 2 * L
    Wp = W + 2 * W_HALO
    n = pl.program_id(0)
    t = pl.program_id(1)
    row0 = t * TH

    # ---- input DMA(s): fill the whole slab from the pre-padded HBM input ---
    # (zero channel padding in HBM means no in-kernel zero-init is needed).
    # Split per 128-channel group so higher groups overlap the early layers.
    NG = C_pad // 128
    copies = []
    if NG == 1:
        copies.append(pltpu.make_async_copy(
            x_hbm.at[n, pl.ds(row0, R)], feat, sem.at[0]))
    else:
        for g in range(NG):
            copies.append(pltpu.make_async_copy(
                x_hbm.at[n, pl.ds(row0, R), :, pl.ds(g * 128, 128)],
                feat.at[:, :, pl.ds(g * 128, 128)], sem.at[g]))
    for cp in copies:
        cp.start()
    waited = [False] * NG

    def _wait_channels(k):            # ensure channels [0, k) have landed
        for g in range(NG):
            if not waited[g] and (NG == 1 or g * 128 < k):
                copies[g].wait()
                waited[g] = True

    # ---- statically unrolled layers; each appends G channels to the slab ---
    c_cur = C0
    for l in range(L):
        k_pad = min(_round_up(c_cur, 128), C_pad)    # lane-aligned read width
        _wait_channels(max(k_pad, c_cur + G))        # read + write ranges

        # Folded BatchNorm + ReLU on the valid channel prefix only, f32->bf16.
        scale = scale_ref[l:l + 1, :k_pad].reshape(1, 1, k_pad)
        shift = shift_ref[l:l + 1, :k_pad].reshape(1, 1, k_pad)
        h = jnp.maximum(feat[:, :, :k_pad] * scale + shift,
                        0.0).astype(jnp.bfloat16)

        # 3x3 conv as 9 accumulated MXU contractions over shifted slab views
        # (no im2col slab).  Weights are lane-dense (G, k_pad); transposed RHS.
        M = (R - 2) * W
        acc = None
        for dh in range(3):
            for dw in range(3):
                col = W_HALO - 1 + dw
                lhs = h[dh:dh + R - 2, col:col + W, :].reshape(M, k_pad)
                rhs = w_ref[l * 9 + dh * 3 + dw, :, :k_pad]      # (G, k_pad)
                d = lax.dot_general(lhs, rhs, (((1,), (1,)), ((), ())),
                                    preferred_element_type=jnp.float32)
                acc = d if acc is None else acc + d
        y = acc.reshape(R - 2, W, G).astype(feat.dtype)

        # Append into this layer's channel slice (interior is sublane-aligned)
        feat[1:R - 1, W_HALO:W_HALO + W, c_cur:c_cur + G] = y
        # Refresh the replicate halo columns (true W boundary).
        feat[1:R - 1, W_HALO - 1:W_HALO, c_cur:c_cur + G] = y[:, 0:1, :]
        feat[1:R - 1, W_HALO + W:W_HALO + W + 1, c_cur:c_cur + G] = (
            y[:, W - 1:W, :])

        # Replicate fix-up of the H halo rows at the true image boundary so
        # deeper layers read correct replicate-padded values of THIS layer.
        @pl.when(t == 0)
        def _(c_cur=c_cur):
            edge = feat[L:L + 1, :, c_cur:c_cur + G]
            feat[0:L, :, c_cur:c_cur + G] = jnp.broadcast_to(edge, (L, Wp, G))

        @pl.when(t == HT - 1)
        def _(c_cur=c_cur):
            br = L + REM - 1                  # last true image row in the slab
            edge = feat[br:br + 1, :, c_cur:c_cur + G]
            feat[br + 1:R, :, c_cur:c_cur + G] = jnp.broadcast_to(
                edge, (R - br - 1, Wp, G))

        c_cur += G

    # ---- single lane-dense, sublane-aligned store of the whole tile --------
    _wait_channels(C_pad)
    out_ref[0] = feat[L:L + TH, W_HALO:W_HALO + W, :]


def dense_block_forward(x_nchw, params, upsample=False):
    """DenseBlock.forward.  x_nchw: (N, C, H, W) f32, params: list of dicts."""
    x = jnp.transpose(x_nchw, (0, 2, 3, 1)).astype(jnp.float32)  # NCHW -> NHWC
    N, H, W, C0 = x.shape
    L = len(params)
    G = params[0]["weight"].shape[-1]            # weights are HWIO: (3,3,Cin,G)
    C_total = C0 + L * G
    C_pad = _round_up(C_total, 128)

    cap = _vmem_capacity_bytes()
    budget = min(int(cap * 0.40), 64 * 2 ** 20)
    vmem_limit = min(int(cap * 0.75), 100 * 2 ** 20)
    TH = _pick_tile_h(H, W, N, L, C_pad, G, budget_bytes=budget)
    HT = _cdiv(H, TH)
    H_grid = HT * TH
    REM = H - (HT - 1) * TH                      # valid rows in the last tile
    R = TH + 2 * L
    Wp = W + 2 * W_HALO
    assert 1 <= REM <= TH and H_grid >= H

    # Replicate (edge) pad spatially once (L halo rows on top, L + remainder
    # rows at the bottom, W_HALO columns each side), then zero-pad channels to
    # the lane-dense C_pad so one DMA fills the whole slab each grid step.
    x_sp = jnp.pad(x, ((0, 0), (L, L + H_grid - H), (W_HALO, W_HALO), (0, 0)),
                   mode="edge")
    x_pad = jnp.pad(x_sp, ((0, 0), (0, 0), (0, 0), (0, C_pad - C0)))

    # Fold BN into per-layer scale/shift; lay conv weights out lane-dense as
    # (L*9, G, C_pad) bf16, zero beyond each layer's valid input channels.
    scales, shifts, weights = [], [], []
    cin = C0
    for p in params:
        s = p["gamma"].reshape(-1) * lax.rsqrt(p["var"].reshape(-1) + EPS)
        b = p["beta"].reshape(-1) - p["mean"].reshape(-1) * s
        scales.append(jnp.zeros((C_pad,), jnp.float32).at[:cin].set(s))
        shifts.append(jnp.zeros((C_pad,), jnp.float32).at[:cin].set(b))
        w = jnp.zeros((9, G, C_pad), jnp.float32)
        w = w.at[:, :, :cin].set(
            jnp.transpose(p["weight"].reshape(9, cin, G), (0, 2, 1)))
        weights.append(w)
        cin += G
    scale_all = jnp.stack(scales)                              # (L, C_pad) f32
    shift_all = jnp.stack(shifts)                              # (L, C_pad) f32
    w_all = jnp.concatenate(weights, 0).astype(jnp.bfloat16)   # (L*9, G, C_pad)

    kernel = functools.partial(_dense_block_kernel, W=W, TH=TH, HT=HT, REM=REM,
                               C0=C0, C_pad=C_pad, G=G, L=L)

    out = pl.pallas_call(
        kernel,
        out_shape=jax.ShapeDtypeStruct((N, H_grid, W, C_pad), jnp.float32),
        grid=(N, HT),
        in_specs=[
            pl.BlockSpec(memory_space=pl.ANY),                         # input
            pl.BlockSpec((L, C_pad), lambda n, t: (0, 0)),             # scale
            pl.BlockSpec((L, C_pad), lambda n, t: (0, 0)),             # shift
            pl.BlockSpec((L * 9, G, C_pad), lambda n, t: (0, 0, 0)),   # weights
        ],
        out_specs=pl.BlockSpec((1, TH, W, C_pad), lambda n, t: (n, t, 0, 0)),
        scratch_shapes=[
            pltpu.VMEM((R, Wp, C_pad), jnp.float32),   # resident feature slab
            pltpu.SemaphoreType.DMA((C_pad // 128,)),  # per-128-ch input DMAs
        ],
        compiler_params=pltpu.CompilerParams(
            dimension_semantics=("parallel", "parallel"),
            vmem_limit_bytes=vmem_limit),
    )(x_pad, scale_all, shift_all, w_all)

    lo = C0 if upsample else 0
    y = out[:, :H, :, lo:C_total]
    return jnp.transpose(y, (0, 3, 1, 2))        # NHWC -> NCHW


def init_dense_block_params(key, in_channels, growth_rate, n_layers):
    """Deterministic synthetic params matching the PyTorch module's shapes."""
    params = []
    ic = in_channels
    for i in range(n_layers):
        kw, kg, kb, km, kv = jax.random.split(jax.random.fold_in(key, i), 5)
        fan_in = ic * 3 * 3
        bound = 1.0 / (fan_in ** 0.5)
        # PyTorch Conv2d weight is (Cout, Cin, kh, kw); transpose to HWIO.
        w_torch = jax.random.uniform(kw, (growth_rate, ic, 3, 3),
                                     jnp.float32, -bound, bound)
        params.append({
            "weight": jnp.transpose(w_torch, (2, 3, 1, 0)),
            "gamma": jax.random.uniform(kg, (ic,), jnp.float32, 0.5, 1.5),
            "beta": jax.random.uniform(kb, (ic,), jnp.float32, -0.5, 0.5),
            "mean": jax.random.uniform(km, (ic,), jnp.float32, -0.5, 0.5),
            "var": jax.random.uniform(kv, (ic,), jnp.float32, 0.5, 1.5),
        })
        ic += growth_rate
    return params


# ---------------- pure-JAX reference (mirrors the bf16 matmul inputs) -------
def _ref_dense_block(x_nchw, params, upsample=False):
    x = jnp.transpose(x_nchw, (0, 2, 3, 1)).astype(jnp.float32)
    feats = []
    for p in params:
        s = (p["gamma"] * lax.rsqrt(p["var"] + EPS)).reshape(1, 1, 1, -1)
        b = (p["beta"].reshape(1, 1, 1, -1)
             - p["mean"].reshape(1, 1, 1, -1) * s)
        h = jnp.maximum(x * s + b, 0.0)
        h = jnp.pad(h, ((0, 0), (1, 1), (1, 1), (0, 0)), mode="edge")
        out = lax.conv_general_dilated(
            h.astype(jnp.bfloat16), p["weight"].astype(jnp.bfloat16),
            window_strides=(1, 1), padding="VALID",
            dimension_numbers=("NHWC", "HWIO", "NHWC"),
            preferred_element_type=jnp.float32)
        x = jnp.concatenate([x, out], axis=-1)
        feats.append(out)
    y = jnp.concatenate(feats, axis=-1) if upsample else x
    return jnp.transpose(y, (0, 3, 1, 2))


if __name__ == "__main__":
    key = jax.random.PRNGKey(0)
    kx, kp = jax.random.split(key)

    N, C, H, W = 2, 4, 16, 16
    growth_rate, n_layers = 4, 3

    x = jax.random.normal(kx, (N, C, H, W), jnp.float32)   # NCHW like PyTorch
    params = init_dense_block_params(kp, C, growth_rate, n_layers)

    fwd = jax.jit(functools.partial(dense_block_forward, upsample=False))
    out = jax.block_until_ready(fwd(x, params))
    assert out.shape == (N, C + n_layers * growth_rate, H, W), out.shape

    ref = jax.block_until_ready(_ref_dense_block(x, params, upsample=False))
    max_err = float(jnp.max(jnp.abs(out - ref)))
    assert jnp.allclose(out, ref, atol=1e-2, rtol=1e-2), max_err

    # upsample=True path: returns only the newly grown channels.
    fwd_up = jax.jit(functools.partial(dense_block_forward, upsample=True))
    out_up = jax.block_until_ready(fwd_up(x, params))
    ref_up = jax.block_until_ready(_ref_dense_block(x, params, upsample=True))
    assert out_up.shape == (N, n_layers * growth_rate, H, W), out_up.shape
    assert jnp.allclose(out_up, ref_up, atol=1e-2, rtol=1e-2)

    print("KERNEL_OK")
</pallas_src>

<mosaic_0001>
module attributes {stable_mosaic.version = 11 : i64} {
  func.func @_dense_block_kernel(%arg0: i32, %arg1: i32, %arg2: memref<2x22x32x128xf32, #tpu.memory_space<any>>, %arg3: memref<3x128xf32, #tpu.memory_space<vmem>>, %arg4: memref<3x128xf32, #tpu.memory_space<vmem>>, %arg5: memref<27x4x128xbf16, #tpu.memory_space<vmem>>, %arg6: memref<1x16x16x128xf32, #tpu.memory_space<vmem>>, %arg7: memref<22x32x128xf32, #tpu.memory_space<vmem>>, %arg8: memref<1x!tpu.dma_semaphore, #tpu.memory_space<semaphore_mem>>) attributes {dimension_semantics = [#tpu.dimension_semantics<parallel>, #tpu.dimension_semantics<parallel>], iteration_bounds = array<i64: 2, 1>, scalar_prefetch = 0 : i64, scratch_operands = 2 : i64, tpu.core_type = #tpu.core_type<tc>, window_params = [{}, {pipeline_mode = #tpu.pipeline_mode<synchronous>, transform_indices = @transform_1, window_bounds = array<i64: 3, 128>}, {pipeline_mode = #tpu.pipeline_mode<synchronous>, transform_indices = @transform_2, window_bounds = array<i64: 3, 128>}, {pipeline_mode = #tpu.pipeline_mode<synchronous>, transform_indices = @transform_3, window_bounds = array<i64: 27, 4, 128>}, {transform_indices = @transform_4, window_bounds = array<i64: 1, 16, 16, 128>}]} {
    %c16_i32 = arith.constant 16 : i32
    %0 = arith.muli %arg1, %c16_i32 : i32
    %c0_i32 = arith.constant 0 : i32
    %c0_i32_0 = arith.constant 0 : i32
    %c0_i32_1 = arith.constant 0 : i32
    %1 = tpu.memref_slice %arg2[%arg0, %0, %c0_i32_0, %c0_i32_1] : memref<2x22x32x128xf32, #tpu.memory_space<any>> -> memref<1x22x32x128xf32, #tpu.memory_space<any>>
    %2 = tpu.memref_squeeze %1 : memref<1x22x32x128xf32, #tpu.memory_space<any>> -> memref<22x32x128xf32, #tpu.memory_space<any>>
    %3 = tpu.memref_slice %arg8[%c0_i32] : memref<1x!tpu.dma_semaphore, #tpu.memory_space<semaphore_mem>> -> memref<1x!tpu.dma_semaphore, #tpu.memory_space<semaphore_mem>>
    %4 = tpu.memref_squeeze %3 : memref<1x!tpu.dma_semaphore, #tpu.memory_space<semaphore_mem>> -> memref<!tpu.dma_semaphore, #tpu.memory_space<semaphore_mem>>
    tpu.enqueue_dma source(%2 : memref<22x32x128xf32, #tpu.memory_space<any>>) target(%arg7 : memref<22x32x128xf32, #tpu.memory_space<vmem>>) target_semaphore(%4 : memref<!tpu.dma_semaphore, #tpu.memory_space<semaphore_mem>>)
    %c0_i32_2 = arith.constant 0 : i32
    %c0_i32_3 = arith.constant 0 : i32
    %c0_i32_4 = arith.constant 0 : i32
    %5 = tpu.memref_slice %arg2[%arg0, %0, %c0_i32_3, %c0_i32_4] : memref<2x22x32x128xf32, #tpu.memory_space<any>> -> memref<1x22x32x128xf32, #tpu.memory_space<any>>
    %6 = tpu.memref_squeeze %5 : memref<1x22x32x128xf32, #tpu.memory_space<any>> -> memref<22x32x128xf32, #tpu.memory_space<any>>
    %7 = tpu.memref_slice %arg8[%c0_i32_2] : memref<1x!tpu.dma_semaphore, #tpu.memory_space<semaphore_mem>> -> memref<1x!tpu.dma_semaphore, #tpu.memory_space<semaphore_mem>>
    %8 = tpu.memref_squeeze %7 : memref<1x!tpu.dma_semaphore, #tpu.memory_space<semaphore_mem>> -> memref<!tpu.dma_semaphore, #tpu.memory_space<semaphore_mem>>
    tpu.wait_dma2 semaphore(%8 : memref<!tpu.dma_semaphore, #tpu.memory_space<semaphore_mem>>) src(%6 : memref<22x32x128xf32, #tpu.memory_space<any>>) dst(%arg7 : memref<22x32x128xf32, #tpu.memory_space<vmem>>)
    %c0 = arith.constant 0 : index
    %c0_5 = arith.constant 0 : index
    %9 = vector.load %arg3[%c0, %c0_5] : memref<3x128xf32, #tpu.memory_space<vmem>>, vector<1x128xf32>
    %10 = vector.shape_cast %9 : vector<1x128xf32> to vector<1x1x128xf32>
    %c0_6 = arith.constant 0 : index
    %c0_7 = arith.constant 0 : index
    %11 = vector.load %arg4[%c0_6, %c0_7] : memref<3x128xf32, #tpu.memory_space<vmem>>, vector<1x128xf32>
    %12 = vector.shape_cast %11 : vector<1x128xf32> to vector<1x1x128xf32>
    %c0_8 = arith.constant 0 : index
    %c0_9 = arith.constant 0 : index
    %c0_10 = arith.constant 0 : index
    %13 = vector.load %arg7[%c0_8, %c0_9, %c0_10] : memref<22x32x128xf32, #tpu.memory_space<vmem>>, vector<22x32x128xf32>
    %14 = vector.broadcast %10 : vector<1x1x128xf32> to vector<22x32x128xf32>
    %15 = arith.mulf %13, %14 : vector<22x32x128xf32>
    %16 = vector.broadcast %12 : vector<1x1x128xf32> to vector<22x32x128xf32>
    %17 = arith.addf %15, %16 : vector<22x32x128xf32>
    %cst = arith.constant 0.000000e+00 : f32
    %18 = vector.broadcast %cst : f32 to vector<22x32x128xf32>
    %19 = arith.maximumf %17, %18 : vector<22x32x128xf32>
    %20 = arith.truncf %19 : vector<22x32x128xf32> to vector<22x32x128xbf16>
    %21 = vector.extract_strided_slice %20 {offsets = [0, 7, 0], sizes = [20, 16, 128], strides = [1, 1, 1]} : vector<22x32x128xbf16> to vector<20x16x128xbf16>
    %22 = vector.shape_cast %21 : vector<20x16x128xbf16> to vector<320x128xbf16>
    %c0_11 = arith.constant 0 : index
    %c0_12 = arith.constant 0 : index
    %c0_13 = arith.constant 0 : index
    %23 = vector.load %arg5[%c0_11, %c0_12, %c0_13] : memref<27x4x128xbf16, #tpu.memory_space<vmem>>, vector<1x4x128xbf16>
    %24 = vector.shape_cast %23 : vector<1x4x128xbf16> to vector<4x128xbf16>
    %cst_14 = arith.constant dense<0.000000e+00> : vector<320x4xf32>
    %25 = tpu.matmul %22, %24, %cst_14 {dimension_numbers = #tpu.dot_dimension_numbers<[1], [1], [0], [0], [0, 0, 1, 0], [], []>} : vector<320x128xbf16>, vector<4x128xbf16>, vector<320x4xf32> -> vector<320x4xf32>
    %26 = vector.extract_strided_slice %20 {offsets = [0, 8, 0], sizes = [20, 16, 128], strides = [1, 1, 1]} : vector<22x32x128xbf16> to vector<20x16x128xbf16>
    %27 = vector.shape_cast %26 : vector<20x16x128xbf16> to vector<320x128xbf16>
    %c1 = arith.constant 1 : index
    %c0_15 = arith.constant 0 : index
    %c0_16 = arith.constant 0 : index
    %28 = vector.load %arg5[%c1, %c0_15, %c0_16] : memref<27x4x128xbf16, #tpu.memory_space<vmem>>, vector<1x4x128xbf16>
    %29 = vector.shape_cast %28 : vector<1x4x128xbf16> to vector<4x128xbf16>
    %cst_17 = arith.constant dense<0.000000e+00> : vector<320x4xf32>
    %30 = tpu.matmul %27, %29, %cst_17 {dimension_numbers = #tpu.dot_dimension_numbers<[1], [1], [0], [0], [0, 0, 1, 0], [], []>} : vector<320x128xbf16>, vector<4x128xbf16>, vector<320x4xf32> -> vector<320x4xf32>
    %31 = arith.addf %25, %30 : vector<320x4xf32>
    %32 = vector.extract_strided_slice %20 {offsets = [0, 9, 0], sizes = [20, 16, 128], strides = [1, 1, 1]} : vector<22x32x128xbf16> to vector<20x16x128xbf16>
    %33 = vector.shape_cast %32 : vector<20x16x128xbf16> to vector<320x128xbf16>
    %c2 = arith.constant 2 : index
    %c0_18 = arith.constant 0 : index
    %c0_19 = arith.constant 0 : index
    %34 = vector.load %arg5[%c2, %c0_18, %c0_19] : memref<27x4x128xbf16, #tpu.memory_space<vmem>>, vector<1x4x128xbf16>
    %35 = vector.shape_cast %34 : vector<1x4x128xbf16> to vector<4x128xbf16>
    %cst_20 = arith.constant dense<0.000000e+00> : vector<320x4xf32>
    %36 = tpu.matmul %33, %35, %cst_20 {dimension_numbers = #tpu.dot_dimension_numbers<[1], [1], [0], [0], [0, 0, 1, 0], [], []>} : vector<320x128xbf16>, vector<4x128xbf16>, vector<320x4xf32> -> vector<320x4xf32>
    %37 = arith.addf %31, %36 : vector<320x4xf32>
    %38 = vector.extract_strided_slice %20 {offsets = [1, 7, 0], sizes = [20, 16, 128], strides = [1, 1, 1]} : vector<22x32x128xbf16> to vector<20x16x128xbf16>
    %39 = vector.shape_cast %38 : vector<20x16x128xbf16> to vector<320x128xbf16>
    %c3 = arith.constant 3 : index
    %c0_21 = arith.constant 0 : index
    %c0_22 = arith.constant 0 : index
    %40 = vector.load %arg5[%c3, %c0_21, %c0_22] : memref<27x4x128xbf16, #tpu.memory_space<vmem>>, vector<1x4x128xbf16>
    %41 = vector.shape_cast %40 : vector<1x4x128xbf16> to vector<4x128xbf16>
    %cst_23 = arith.constant dense<0.000000e+00> : vector<320x4xf32>
    %42 = tpu.matmul %39, %41, %cst_23 {dimension_numbers = #tpu.dot_dimension_numbers<[1], [1], [0], [0], [0, 0, 1, 0], [], []>} : vector<320x128xbf16>, vector<4x128xbf16>, vector<320x4xf32> -> vector<320x4xf32>
    %43 = arith.addf %37, %42 : vector<320x4xf32>
    %44 = vector.extract_strided_slice %20 {offsets = [1, 8, 0], sizes = [20, 16, 128], strides = [1, 1, 1]} : vector<22x32x128xbf16> to vector<20x16x128xbf16>
    %45 = vector.shape_cast %44 : vector<20x16x128xbf16> to vector<320x128xbf16>
    %c4 = arith.constant 4 : index
    %c0_24 = arith.constant 0 : index
    %c0_25 = arith.constant 0 : index
    %46 = vector.load %arg5[%c4, %c0_24, %c0_25] : memref<27x4x128xbf16, #tpu.memory_space<vmem>>, vector<1x4x128xbf16>
    %47 = vector.shape_cast %46 : vector<1x4x128xbf16> to vector<4x128xbf16>
    %cst_26 = arith.constant dense<0.000000e+00> : vector<320x4xf32>
    %48 = tpu.matmul %45, %47, %cst_26 {dimension_numbers = #tpu.dot_dimension_numbers<[1], [1], [0], [0], [0, 0, 1, 0], [], []>} : vector<320x128xbf16>, vector<4x128xbf16>, vector<320x4xf32> -> vector<320x4xf32>
    %49 = arith.addf %43, %48 : vector<320x4xf32>
    %50 = vector.extract_strided_slice %20 {offsets = [1, 9, 0], sizes = [20, 16, 128], strides = [1, 1, 1]} : vector<22x32x128xbf16> to vector<20x16x128xbf16>
    %51 = vector.shape_cast %50 : vector<20x16x128xbf16> to vector<320x128xbf16>
    %c5 = arith.constant 5 : index
    %c0_27 = arith.constant 0 : index
    %c0_28 = arith.constant 0 : index
    %52 = vector.load %arg5[%c5, %c0_27, %c0_28] : memref<27x4x128xbf16, #tpu.memory_space<vmem>>, vector<1x4x128xbf16>
    %53 = vector.shape_cast %52 : vector<1x4x128xbf16> to vector<4x128xbf16>
    %cst_29 = arith.constant dense<0.000000e+00> : vector<320x4xf32>
    %54 = tpu.matmul %51, %53, %cst_29 {dimension_numbers = #tpu.dot_dimension_numbers<[1], [1], [0], [0], [0, 0, 1, 0], [], []>} : vector<320x128xbf16>, vector<4x128xbf16>, vector<320x4xf32> -> vector<320x4xf32>
    %55 = arith.addf %49, %54 : vector<320x4xf32>
    %56 = vector.extract_strided_slice %20 {offsets = [2, 7, 0], sizes = [20, 16, 128], strides = [1, 1, 1]} : vector<22x32x128xbf16> to vector<20x16x128xbf16>
    %57 = vector.shape_cast %56 : vector<20x16x128xbf16> to vector<320x128xbf16>
    %c6 = arith.constant 6 : index
    %c0_30 = arith.constant 0 : index
    %c0_31 = arith.constant 0 : index
    %58 = vector.load %arg5[%c6, %c0_30, %c0_31] : memref<27x4x128xbf16, #tpu.memory_space<vmem>>, vector<1x4x128xbf16>
    %59 = vector.shape_cast %58 : vector<1x4x128xbf16> to vector<4x128xbf16>
    %cst_32 = arith.constant dense<0.000000e+00> : vector<320x4xf32>
    %60 = tpu.matmul %57, %59, %cst_32 {dimension_numbers = #tpu.dot_dimension_numbers<[1], [1], [0], [0], [0, 0, 1, 0], [], []>} : vector<320x128xbf16>, vector<4x128xbf16>, vector<320x4xf32> -> vector<320x4xf32>
    %61 = arith.addf %55, %60 : vector<320x4xf32>
    %62 = vector.extract_strided_slice %20 {offsets = [2, 8, 0], sizes = [20, 16, 128], strides = [1, 1, 1]} : vector<22x32x128xbf16> to vector<20x16x128xbf16>
    %63 = vector.shape_cast %62 : vector<20x16x128xbf16> to vector<320x128xbf16>
    %c7 = arith.constant 7 : index
    %c0_33 = arith.constant 0 : index
    %c0_34 = arith.constant 0 : index
    %64 = vector.load %arg5[%c7, %c0_33, %c0_34] : memref<27x4x128xbf16, #tpu.memory_space<vmem>>, vector<1x4x128xbf16>
    %65 = vector.shape_cast %64 : vector<1x4x128xbf16> to vector<4x128xbf16>
    %cst_35 = arith.constant dense<0.000000e+00> : vector<320x4xf32>
    %66 = tpu.matmul %63, %65, %cst_35 {dimension_numbers = #tpu.dot_dimension_numbers<[1], [1], [0], [0], [0, 0, 1, 0], [], []>} : vector<320x128xbf16>, vector<4x128xbf16>, vector<320x4xf32> -> vector<320x4xf32>
    %67 = arith.addf %61, %66 : vector<320x4xf32>
    %68 = vector.extract_strided_slice %20 {offsets = [2, 9, 0], sizes = [20, 16, 128], strides = [1, 1, 1]} : vector<22x32x128xbf16> to vector<20x16x128xbf16>
    %69 = vector.shape_cast %68 : vector<20x16x128xbf16> to vector<320x128xbf16>
    %c8 = arith.constant 8 : index
    %c0_36 = arith.constant 0 : index
    %c0_37 = arith.constant 0 : index
    %70 = vector.load %arg5[%c8, %c0_36, %c0_37] : memref<27x4x128xbf16, #tpu.memory_space<vmem>>, vector<1x4x128xbf16>
    %71 = vector.shape_cast %70 : vector<1x4x128xbf16> to vector<4x128xbf16>
    %cst_38 = arith.constant dense<0.000000e+00> : vector<320x4xf32>
    %72 = tpu.matmul %69, %71, %cst_38 {dimension_numbers = #tpu.dot_dimension_numbers<[1], [1], [0], [0], [0, 0, 1, 0], [], []>} : vector<320x128xbf16>, vector<4x128xbf16>, vector<320x4xf32> -> vector<320x4xf32>
    %73 = arith.addf %67, %72 : vector<320x4xf32>
    %74 = vector.shape_cast %73 : vector<320x4xf32> to vector<20x16x4xf32>
    %c1_39 = arith.constant 1 : index
    %c8_40 = arith.constant 8 : index
    %c4_41 = arith.constant 4 : index
    %75 = vector.load %arg7[%c1_39, %c8_40, %c4_41] : memref<22x32x128xf32, #tpu.memory_space<vmem>>, vector<20x16x4xf32>
    tpu.vector_store %arg7[%c1_39, %c8_40, %c4_41], %74 {strides = array<i32>} : memref<22x32x128xf32, #tpu.memory_space<vmem>>, vector<20x16x4xf32>,
    %76 = vector.extract_strided_slice %74 {offsets = [0, 0, 0], sizes = [20, 1, 4], strides = [1, 1, 1]} : vector<20x16x4xf32> to vector<20x1x4xf32>
    %c1_42 = arith.constant 1 : index
    %c7_43 = arith.constant 7 : index
    %c4_44 = arith.constant 4 : index
    %77 = vector.load %arg7[%c1_42, %c7_43, %c4_44] : memref<22x32x128xf32, #tpu.memory_space<vmem>>, vector<20x1x4xf32>
    tpu.vector_store %arg7[%c1_42, %c7_43, %c4_44], %76 {strides = array<i32>} : memref<22x32x128xf32, #tpu.memory_space<vmem>>, vector<20x1x4xf32>,
    %78 = vector.extract_strided_slice %74 {offsets = [0, 15, 0], sizes = [20, 1, 4], strides = [1, 1, 1]} : vector<20x16x4xf32> to vector<20x1x4xf32>
    %c1_45 = arith.constant 1 : index
    %c24 = arith.constant 24 : index
    %c4_46 = arith.constant 4 : index
    %79 = vector.load %arg7[%c1_45, %c24, %c4_46] : memref<22x32x128xf32, #tpu.memory_space<vmem>>, vector<20x1x4xf32>
    tpu.vector_store %arg7[%c1_45, %c24, %c4_46], %78 {strides = array<i32>} : memref<22x32x128xf32, #tpu.memory_space<vmem>>, vector<20x1x4xf32>,
    %c0_i32_47 = arith.constant 0 : i32
    %80 = arith.cmpi eq, %arg1, %c0_i32_47 : i32
    %81 = arith.extui %80 : i1 to i32
    %c0_i32_48 = arith.constant 0 : i32
    %82 = arith.cmpi ne, %81, %c0_i32_48 : i32
    scf.if %82 {
      %c3_155 = arith.constant 3 : index
      %c0_156 = arith.constant 0 : index
      %c4_157 = arith.constant 4 : index
      %244 = vector.load %arg7[%c3_155, %c0_156, %c4_157] : memref<22x32x128xf32, #tpu.memory_space<vmem>>, vector<1x32x4xf32>
      %245 = vector.shape_cast %244 : vector<1x32x4xf32> to vector<1x32x4xf32>
      %246 = vector.broadcast %245 : vector<1x32x4xf32> to vector<3x32x4xf32>
      %c0_158 = arith.constant 0 : index
      %c0_159 = arith.constant 0 : index
      %c4_160 = arith.constant 4 : index
      %247 = vector.load %arg7[%c0_158, %c0_159, %c4_160] : memref<22x32x128xf32, #tpu.memory_space<vmem>>, vector<3x32x4xf32>
      tpu.vector_store %arg7[%c0_158, %c0_159, %c4_160], %246 {strides = array<i32>} : memref<22x32x128xf32, #tpu.memory_space<vmem>>, vector<3x32x4xf32>,
    } else {
    }
    %c0_i32_49 = arith.constant 0 : i32
    %83 = arith.cmpi eq, %arg1, %c0_i32_49 : i32
    %84 = arith.extui %83 : i1 to i32
    %c0_i32_50 = arith.constant 0 : i32
    %85 = arith.cmpi ne, %84, %c0_i32_50 : i32
    scf.if %85 {
      %c18_155 = arith.constant 18 : index
      %c0_156 = arith.constant 0 : index
      %c4_157 = arith.constant 4 : index
      %244 = vector.load %arg7[%c18_155, %c0_156, %c4_157] : memref<22x32x128xf32, #tpu.memory_space<vmem>>, vector<1x32x4xf32>
      %245 = vector.shape_cast %244 : vector<1x32x4xf32> to vector<1x32x4xf32>
      %246 = vector.broadcast %245 : vector<1x32x4xf32> to vector<3x32x4xf32>
      %c19_158 = arith.constant 19 : index
      %c0_159 = arith.constant 0 : index
      %c4_160 = arith.constant 4 : index
      %247 = vector.load %arg7[%c19_158, %c0_159, %c4_160] : memref<22x32x128xf32, #tpu.memory_space<vmem>>, vector<3x32x4xf32>
      tpu.vector_store %arg7[%c19_158, %c0_159, %c4_160], %246 {strides = array<i32>} : memref<22x32x128xf32, #tpu.memory_space<vmem>>, vector<3x32x4xf32>,
    } else {
    }
    %c1_51 = arith.constant 1 : index
    %c0_52 = arith.constant 0 : index
    %86 = vector.load %arg3[%c1_51, %c0_52] : memref<3x128xf32, #tpu.memory_space<vmem>>, vector<1x128xf32>
    %87 = vector.shape_cast %86 : vector<1x128xf32> to vector<1x1x128xf32>
    %c1_53 = arith.constant 1 : index
    %c0_54 = arith.constant 0 : index
    %88 = vector.load %arg4[%c1_53, %c0_54] : memref<3x128xf32, #tpu.memory_space<vmem>>, vector<1x128xf32>
    %89 = vector.shape_cast %88 : vector<1x128xf32> to vector<1x1x128xf32>
    %c0_55 = arith.constant 0 : index
    %c0_56 = arith.constant 0 : index
    %c0_57 = arith.constant 0 : index
    %90 = vector.load %arg7[%c0_55, %c0_56, %c0_57] : memref<22x32x128xf32, #tpu.memory_space<vmem>>, vector<22x32x128xf32>
    %91 = vector.broadcast %87 : vector<1x1x128xf32> to vector<22x32x128xf32>
    %92 = arith.mulf %90, %91 : vector<22x32x128xf32>
    %93 = vector.broadcast %89 : vector<1x1x128xf32> to vector<22x32x128xf32>
    %94 = arith.addf %92, %93 : vector<22x32x128xf32>
    %cst_58 = arith.constant 0.000000e+00 : f32
    %95 = vector.broadcast %cst_58 : f32 to vector<22x32x128xf32>
    %96 = arith.maximumf %94, %95 : vector<22x32x128xf32>
    %97 = arith.truncf %96 : vector<22x32x128xf32> to vector<22x32x128xbf16>
    %98 = vector.extract_strided_slice %97 {offsets = [0, 7, 0], sizes = [20, 16, 128], strides = [1, 1, 1]} : vector<22x32x128xbf16> to vector<20x16x128xbf16>
    %99 = vector.shape_cast %98 : vector<20x16x128xbf16> to vector<320x128xbf16>
    %c9 = arith.constant 9 : index
    %c0_59 = arith.constant 0 : index
    %c0_60 = arith.constant 0 : index
    %100 = vector.load %arg5[%c9, %c0_59, %c0_60] : memref<27x4x128xbf16, #tpu.memory_space<vmem>>, vector<1x4x128xbf16>
    %101 = vector.shape_cast %100 : vector<1x4x128xbf16> to vector<4x128xbf16>
    %cst_61 = arith.constant dense<0.000000e+00> : vector<320x4xf32>
    %102 = tpu.matmul %99, %101, %cst_61 {dimension_numbers = #tpu.dot_dimension_numbers<[1], [1], [0], [0], [0, 0, 1, 0], [], []>} : vector<320x128xbf16>, vector<4x128xbf16>, vector<320x4xf32> -> vector<320x4xf32>
    %103 = vector.extract_strided_slice %97 {offsets = [0, 8, 0], sizes = [20, 16, 128], strides = [1, 1, 1]} : vector<22x32x128xbf16> to vector<20x16x128xbf16>
    %104 = vector.shape_cast %103 : vector<20x16x128xbf16> to vector<320x128xbf16>
    %c10 = arith.constant 10 : index
    %c0_62 = arith.constant 0 : index
    %c0_63 = arith.constant 0 : index
    %105 = vector.load %arg5[%c10, %c0_62, %c0_63] : memref<27x4x128xbf16, #tpu.memory_space<vmem>>, vector<1x4x128xbf16>
    %106 = vector.shape_cast %105 : vector<1x4x128xbf16> to vector<4x128xbf16>
    %cst_64 = arith.constant dense<0.000000e+00> : vector<320x4xf32>
    %107 = tpu.matmul %104, %106, %cst_64 {dimension_numbers = #tpu.dot_dimension_numbers<[1], [1], [0], [0], [0, 0, 1, 0], [], []>} : vector<320x128xbf16>, vector<4x128xbf16>, vector<320x4xf32> -> vector<320x4xf32>
    %108 = arith.addf %102, %107 : vector<320x4xf32>
    %109 = vector.extract_strided_slice %97 {offsets = [0, 9, 0], sizes = [20, 16, 128], strides = [1, 1, 1]} : vector<22x32x128xbf16> to vector<20x16x128xbf16>
    %110 = vector.shape_cast %109 : vector<20x16x128xbf16> to vector<320x128xbf16>
    %c11 = arith.constant 11 : index
    %c0_65 = arith.constant 0 : index
    %c0_66 = arith.constant 0 : index
    %111 = vector.load %arg5[%c11, %c0_65, %c0_66] : memref<27x4x128xbf16, #tpu.memory_space<vmem>>, vector<1x4x128xbf16>
    %112 = vector.shape_cast %111 : vector<1x4x128xbf16> to vector<4x128xbf16>
    %cst_67 = arith.constant dense<0.000000e+00> : vector<320x4xf32>
    %113 = tpu.matmul %110, %112, %cst_67 {dimension_numbers = #tpu.dot_dimension_numbers<[1], [1], [0], [0], [0, 0, 1, 0], [], []>} : vector<320x128xbf16>, vector<4x128xbf16>, vector<320x4xf32> -> vector<320x4xf32>
    %114 = arith.addf %108, %113 : vector<320x4xf32>
    %115 = vector.extract_strided_slice %97 {offsets = [1, 7, 0], sizes = [20, 16, 128], strides = [1, 1, 1]} : vector<22x32x128xbf16> to vector<20x16x128xbf16>
    %116 = vector.shape_cast %115 : vector<20x16x128xbf16> to vector<320x128xbf16>
    %c12 = arith.constant 12 : index
    %c0_68 = arith.constant 0 : index
    %c0_69 = arith.constant 0 : index
    %117 = vector.load %arg5[%c12, %c0_68, %c0_69] : memref<27x4x128xbf16, #tpu.memory_space<vmem>>, vector<1x4x128xbf16>
    %118 = vector.shape_cast %117 : vector<1x4x128xbf16> to vector<4x128xbf16>
    %cst_70 = arith.constant dense<0.000000e+00> : vector<320x4xf32>
    %119 = tpu.matmul %116, %118, %cst_70 {dimension_numbers = #tpu.dot_dimension_numbers<[1], [1], [0], [0], [0, 0, 1, 0], [], []>} : vector<320x128xbf16>, vector<4x128xbf16>, vector<320x4xf32> -> vector<320x4xf32>
    %120 = arith.addf %114, %119 : vector<320x4xf32>
    %121 = vector.extract_strided_slice %97 {offsets = [1, 8, 0], sizes = [20, 16, 128], strides = [1, 1, 1]} : vector<22x32x128xbf16> to vector<20x16x128xbf16>
    %122 = vector.shape_cast %121 : vector<20x16x128xbf16> to vector<320x128xbf16>
    %c13 = arith.constant 13 : index
    %c0_71 = arith.constant 0 : index
    %c0_72 = arith.constant 0 : index
    %123 = vector.load %arg5[%c13, %c0_71, %c0_72] : memref<27x4x128xbf16, #tpu.memory_space<vmem>>, vector<1x4x128xbf16>
    %124 = vector.shape_cast %123 : vector<1x4x128xbf16> to vector<4x128xbf16>
    %cst_73 = arith.constant dense<0.000000e+00> : vector<320x4xf32>
    %125 = tpu.matmul %122, %124, %cst_73 {dimension_numbers = #tpu.dot_dimension_numbers<[1], [1], [0], [0], [0, 0, 1, 0], [], []>} : vector<320x128xbf16>, vector<4x128xbf16>, vector<320x4xf32> -> vector<320x4xf32>
    %126 = arith.addf %120, %125 : vector<320x4xf32>
    %127 = vector.extract_strided_slice %97 {offsets = [1, 9, 0], sizes = [20, 16, 128], strides = [1, 1, 1]} : vector<22x32x128xbf16> to vector<20x16x128xbf16>
    %128 = vector.shape_cast %127 : vector<20x16x128xbf16> to vector<320x128xbf16>
    %c14 = arith.constant 14 : index
    %c0_74 = arith.constant 0 : index
    %c0_75 = arith.constant 0 : index
    %129 = vector.load %arg5[%c14, %c0_74, %c0_75] : memref<27x4x128xbf16, #tpu.memory_space<vmem>>, vector<1x4x128xbf16>
    %130 = vector.shape_cast %129 : vector<1x4x128xbf16> to vector<4x128xbf16>
    %cst_76 = arith.constant dense<0.000000e+00> : vector<320x4xf32>
    %131 = tpu.matmul %128, %130, %cst_76 {dimension_numbers = #tpu.dot_dimension_numbers<[1], [1], [0], [0], [0, 0, 1, 0], [], []>} : vector<320x128xbf16>, vector<4x128xbf16>, vector<320x4xf32> -> vector<320x4xf32>
    %132 = arith.addf %126, %131 : vector<320x4xf32>
    %133 = vector.extract_strided_slice %97 {offsets = [2, 7, 0], sizes = [20, 16, 128], strides = [1, 1, 1]} : vector<22x32x128xbf16> to vector<20x16x128xbf16>
    %134 = vector.shape_cast %133 : vector<20x16x128xbf16> to vector<320x128xbf16>
    %c15 = arith.constant 15 : index
    %c0_77 = arith.constant 0 : index
    %c0_78 = arith.constant 0 : index
    %135 = vector.load %arg5[%c15, %c0_77, %c0_78] : memref<27x4x128xbf16, #tpu.memory_space<vmem>>, vector<1x4x128xbf16>
    %136 = vector.shape_cast %135 : vector<1x4x128xbf16> to vector<4x128xbf16>
    %cst_79 = arith.constant dense<0.000000e+00> : vector<320x4xf32>
    %137 = tpu.matmul %134, %136, %cst_79 {dimension_numbers = #tpu.dot_dimension_numbers<[1], [1], [0], [0], [0, 0, 1, 0], [], []>} : vector<320x128xbf16>, vector<4x128xbf16>, vector<320x4xf32> -> vector<320x4xf32>
    %138 = arith.addf %132, %137 : vector<320x4xf32>
    %139 = vector.extract_strided_slice %97 {offsets = [2, 8, 0], sizes = [20, 16, 128], strides = [1, 1, 1]} : vector<22x32x128xbf16> to vector<20x16x128xbf16>
    %140 = vector.shape_cast %139 : vector<20x16x128xbf16> to vector<320x128xbf16>
    %c16 = arith.constant 16 : index
    %c0_80 = arith.constant 0 : index
    %c0_81 = arith.constant 0 : index
    %141 = vector.load %arg5[%c16, %c0_80, %c0_81] : memref<27x4x128xbf16, #tpu.memory_space<vmem>>, vector<1x4x128xbf16>
    %142 = vector.shape_cast %141 : vector<1x4x128xbf16> to vector<4x128xbf16>
    %cst_82 = arith.constant dense<0.000000e+00> : vector<320x4xf32>
    %143 = tpu.matmul %140, %142, %cst_82 {dimension_numbers = #tpu.dot_dimension_numbers<[1], [1], [0], [0], [0, 0, 1, 0], [], []>} : vector<320x128xbf16>, vector<4x128xbf16>, vector<320x4xf32> -> vector<320x4xf32>
    %144 = arith.addf %138, %143 : vector<320x4xf32>
    %145 = vector.extract_strided_slice %97 {offsets = [2, 9, 0], sizes = [20, 16, 128], strides = [1, 1, 1]} : vector<22x32x128xbf16> to vector<20x16x128xbf16>
    %146 = vector.shape_cast %145 : vector<20x16x128xbf16> to vector<320x128xbf16>
    %c17 = arith.constant 17 : index
    %c0_83 = arith.constant 0 : index
    %c0_84 = arith.constant 0 : index
    %147 = vector.load %arg5[%c17, %c0_83, %c0_84] : memref<27x4x128xbf16, #tpu.memory_space<vmem>>, vector<1x4x128xbf16>
    %148 = vector.shape_cast %147 : vector<1x4x128xbf16> to vector<4x128xbf16>
    %cst_85 = arith.constant dense<0.000000e+00> : vector<320x4xf32>
    %149 = tpu.matmul %146, %148, %cst_85 {dimension_numbers = #tpu.dot_dimension_numbers<[1], [1], [0], [0], [0, 0, 1, 0], [], []>} : vector<320x128xbf16>, vector<4x128xbf16>, vector<320x4xf32> -> vector<320x4xf32>
    %150 = arith.addf %144, %149 : vector<320x4xf32>
    %151 = vector.shape_cast %150 : vector<320x4xf32> to vector<20x16x4xf32>
    %c1_86 = arith.constant 1 : index
    %c8_87 = arith.constant 8 : index
    %c8_88 = arith.constant 8 : index
    %152 = vector.load %arg7[%c1_86, %c8_87, %c8_88] : memref<22x32x128xf32, #tpu.memory_space<vmem>>, vector<20x16x4xf32>
    tpu.vector_store %arg7[%c1_86, %c8_87, %c8_88], %151 {strides = array<i32>} : memref<22x32x128xf32, #tpu.memory_space<vmem>>, vector<20x16x4xf32>,
    %153 = vector.extract_strided_slice %151 {offsets = [0, 0, 0], sizes = [20, 1, 4], strides = [1, 1, 1]} : vector<20x16x4xf32> to vector<20x1x4xf32>
    %c1_89 = arith.constant 1 : index
    %c7_90 = arith.constant 7 : index
    %c8_91 = arith.constant 8 : index
    %154 = vector.load %arg7[%c1_89, %c7_90, %c8_91] : memref<22x32x128xf32, #tpu.memory_space<vmem>>, vector<20x1x4xf32>
    tpu.vector_store %arg7[%c1_89, %c7_90, %c8_91], %153 {strides = array<i32>} : memref<22x32x128xf32, #tpu.memory_space<vmem>>, vector<20x1x4xf32>,
    %155 = vector.extract_strided_slice %151 {offsets = [0, 15, 0], sizes = [20, 1, 4], strides = [1, 1, 1]} : vector<20x16x4xf32> to vector<20x1x4xf32>
    %c1_92 = arith.constant 1 : index
    %c24_93 = arith.constant 24 : index
    %c8_94 = arith.constant 8 : index
    %156 = vector.load %arg7[%c1_92, %c24_93, %c8_94] : memref<22x32x128xf32, #tpu.memory_space<vmem>>, vector<20x1x4xf32>
    tpu.vector_store %arg7[%c1_92, %c24_93, %c8_94], %155 {strides = array<i32>} : memref<22x32x128xf32, #tpu.memory_space<vmem>>, vector<20x1x4xf32>,
    %c0_i32_95 = arith.constant 0 : i32
    %157 = arith.cmpi eq, %arg1, %c0_i32_95 : i32
    %158 = arith.extui %157 : i1 to i32
    %c0_i32_96 = arith.constant 0 : i32
    %159 = arith.cmpi ne, %158, %c0_i32_96 : i32
    scf.if %159 {
      %c3_155 = arith.constant 3 : index
      %c0_156 = arith.constant 0 : index
      %c8_157 = arith.constant 8 : index
      %244 = vector.load %arg7[%c3_155, %c0_156, %c8_157] : memref<22x32x128xf32, #tpu.memory_space<vmem>>, vector<1x32x4xf32>
      %245 = vector.shape_cast %244 : vector<1x32x4xf32> to vector<1x32x4xf32>
      %246 = vector.broadcast %245 : vector<1x32x4xf32> to vector<3x32x4xf32>
      %c0_158 = arith.constant 0 : index
      %c0_159 = arith.constant 0 : index
      %c8_160 = arith.constant 8 : index
      %247 = vector.load %arg7[%c0_158, %c0_159, %c8_160] : memref<22x32x128xf32, #tpu.memory_space<vmem>>, vector<3x32x4xf32>
      tpu.vector_store %arg7[%c0_158, %c0_159, %c8_160], %246 {strides = array<i32>} : memref<22x32x128xf32, #tpu.memory_space<vmem>>, vector<3x32x4xf32>,
    } else {
    }
    %c0_i32_97 = arith.constant 0 : i32
    %160 = arith.cmpi eq, %arg1, %c0_i32_97 : i32
    %161 = arith.extui %160 : i1 to i32
    %c0_i32_98 = arith.constant 0 : i32
    %162 = arith.cmpi ne, %161, %c0_i32_98 : i32
    scf.if %162 {
      %c18_155 = arith.constant 18 : index
      %c0_156 = arith.constant 0 : index
      %c8_157 = arith.constant 8 : index
      %244 = vector.load %arg7[%c18_155, %c0_156, %c8_157] : memref<22x32x128xf32, #tpu.memory_space<vmem>>, vector<1x32x4xf32>
      %245 = vector.shape_cast %244 : vector<1x32x4xf32> to vector<1x32x4xf32>
      %246 = vector.broadcast %245 : vector<1x32x4xf32> to vector<3x32x4xf32>
      %c19_158 = arith.constant 19 : index
      %c0_159 = arith.constant 0 : index
      %c8_160 = arith.constant 8 : index
      %247 = vector.load %arg7[%c19_158, %c0_159, %c8_160] : memref<22x32x128xf32, #tpu.memory_space<vmem>>, vector<3x32x4xf32>
      tpu.vector_store %arg7[%c19_158, %c0_159, %c8_160], %246 {strides = array<i32>} : memref<22x32x128xf32, #tpu.memory_space<vmem>>, vector<3x32x4xf32>,
    } else {
    }
    %c2_99 = arith.constant 2 : index
    %c0_100 = arith.constant 0 : index
    %163 = vector.load %arg3[%c2_99, %c0_100] : memref<3x128xf32, #tpu.memory_space<vmem>>, vector<1x128xf32>
    %164 = vector.shape_cast %163 : vector<1x128xf32> to vector<1x1x128xf32>
    %c2_101 = arith.constant 2 : index
    %c0_102 = arith.constant 0 : index
    %165 = vector.load %arg4[%c2_101, %c0_102] : memref<3x128xf32, #tpu.memory_space<vmem>>, vector<1x128xf32>
    %166 = vector.shape_cast %165 : vector<1x128xf32> to vector<1x1x128xf32>
    %c0_103 = arith.constant 0 : index
    %c0_104 = arith.constant 0 : index
    %c0_105 = arith.constant 0 : index
    %167 = vector.load %arg7[%c0_103, %c0_104, %c0_105] : memref<22x32x128xf32, #tpu.memory_space<vmem>>, vector<22x32x128xf32>
    %168 = vector.broadcast %164 : vector<1x1x128xf32> to vector<22x32x128xf32>
    %169 = arith.mulf %167, %168 : vector<22x32x128xf32>
    %170 = vector.broadcast %166 : vector<1x1x128xf32> to vector<22x32x128xf32>
    %171 = arith.addf %169, %170 : vector<22x32x128xf32>
    %cst_106 = arith.constant 0.000000e+00 : f32
    %172 = vector.broadcast %cst_106 : f32 to vector<22x32x128xf32>
    %173 = arith.maximumf %171, %172 : vector<22x32x128xf32>
    %174 = arith.truncf %173 : vector<22x32x128xf32> to vector<22x32x128xbf16>
    %175 = vector.extract_strided_slice %174 {offsets = [0, 7, 0], sizes = [20, 16, 128], strides = [1, 1, 1]} : vector<22x32x128xbf16> to vector<20x16x128xbf16>
    %176 = vector.shape_cast %175 : vector<20x16x128xbf16> to vector<320x128xbf16>
    %c18 = arith.constant 18 : index
    %c0_107 = arith.constant 0 : index
    %c0_108 = arith.constant 0 : index
    %177 = vector.load %arg5[%c18, %c0_107, %c0_108] : memref<27x4x128xbf16, #tpu.memory_space<vmem>>, vector<1x4x128xbf16>
    %178 = vector.shape_cast %177 : vector<1x4x128xbf16> to vector<4x128xbf16>
    %cst_109 = arith.constant dense<0.000000e+00> : vector<320x4xf32>
    %179 = tpu.matmul %176, %178, %cst_109 {dimension_numbers = #tpu.dot_dimension_numbers<[1], [1], [0], [0], [0, 0, 1, 0], [], []>} : vector<320x128xbf16>, vector<4x128xbf16>, vector<320x4xf32> -> vector<320x4xf32>
    %180 = vector.extract_strided_slice %174 {offsets = [0, 8, 0], sizes = [20, 16, 128], strides = [1, 1, 1]} : vector<22x32x128xbf16> to vector<20x16x128xbf16>
    %181 = vector.shape_cast %180 : vector<20x16x128xbf16> to vector<320x128xbf16>
    %c19 = arith.constant 19 : index
    %c0_110 = arith.constant 0 : index
    %c0_111 = arith.constant 0 : index
    %182 = vector.load %arg5[%c19, %c0_110, %c0_111] : memref<27x4x128xbf16, #tpu.memory_space<vmem>>, vector<1x4x128xbf16>
    %183 = vector.shape_cast %182 : vector<1x4x128xbf16> to vector<4x128xbf16>
    %cst_112 = arith.constant dense<0.000000e+00> : vector<320x4xf32>
    %184 = tpu.matmul %181, %183, %cst_112 {dimension_numbers = #tpu.dot_dimension_numbers<[1], [1], [0], [0], [0, 0, 1, 0], [], []>} : vector<320x128xbf16>, vector<4x128xbf16>, vector<320x4xf32> -> vector<320x4xf32>
    %185 = arith.addf %179, %184 : vector<320x4xf32>
    %186 = vector.extract_strided_slice %174 {offsets = [0, 9, 0], sizes = [20, 16, 128], strides = [1, 1, 1]} : vector<22x32x128xbf16> to vector<20x16x128xbf16>
    %187 = vector.shape_cast %186 : vector<20x16x128xbf16> to vector<320x128xbf16>
    %c20 = arith.constant 20 : index
    %c0_113 = arith.constant 0 : index
    %c0_114 = arith.constant 0 : index
    %188 = vector.load %arg5[%c20, %c0_113, %c0_114] : memref<27x4x128xbf16, #tpu.memory_space<vmem>>, vector<1x4x128xbf16>
    %189 = vector.shape_cast %188 : vector<1x4x128xbf16> to vector<4x128xbf16>
    %cst_115 = arith.constant dense<0.000000e+00> : vector<320x4xf32>
    %190 = tpu.matmul %187, %189, %cst_115 {dimension_numbers = #tpu.dot_dimension_numbers<[1], [1], [0], [0], [0, 0, 1, 0], [], []>} : vector<320x128xbf16>, vector<4x128xbf16>, vector<320x4xf32> -> vector<320x4xf32>
    %191 = arith.addf %185, %190 : vector<320x4xf32>
    %192 = vector.extract_strided_slice %174 {offsets = [1, 7, 0], sizes = [20, 16, 128], strides = [1, 1, 1]} : vector<22x32x128xbf16> to vector<20x16x128xbf16>
    %193 = vector.shape_cast %192 : vector<20x16x128xbf16> to vector<320x128xbf16>
    %c21 = arith.constant 21 : index
    %c0_116 = arith.constant 0 : index
    %c0_117 = arith.constant 0 : index
    %194 = vector.load %arg5[%c21, %c0_116, %c0_117] : memref<27x4x128xbf16, #tpu.memory_space<vmem>>, vector<1x4x128xbf16>
    %195 = vector.shape_cast %194 : vector<1x4x128xbf16> to vector<4x128xbf16>
    %cst_118 = arith.constant dense<0.000000e+00> : vector<320x4xf32>
    %196 = tpu.matmul %193, %195, %cst_118 {dimension_numbers = #tpu.dot_dimension_numbers<[1], [1], [0], [0], [0, 0, 1, 0], [], []>} : vector<320x128xbf16>, vector<4x128xbf16>, vector<320x4xf32> -> vector<320x4xf32>
    %197 = arith.addf %191, %196 : vector<320x4xf32>
    %198 = vector.extract_strided_slice %174 {offsets = [1, 8, 0], sizes = [20, 16, 128], strides = [1, 1, 1]} : vector<22x32x128xbf16> to vector<20x16x128xbf16>
    %199 = vector.shape_cast %198 : vector<20x16x128xbf16> to vector<320x128xbf16>
    %c22 = arith.constant 22 : index
    %c0_119 = arith.constant 0 : index
    %c0_120 = arith.constant 0 : index
    %200 = vector.load %arg5[%c22, %c0_119, %c0_120] : memref<27x4x128xbf16, #tpu.memory_space<vmem>>, vector<1x4x128xbf16>
    %201 = vector.shape_cast %200 : vector<1x4x128xbf16> to vector<4x128xbf16>
    %cst_121 = arith.constant dense<0.000000e+00> : vector<320x4xf32>
    %202 = tpu.matmul %199, %201, %cst_121 {dimension_numbers = #tpu.dot_dimension_numbers<[1], [1], [0], [0], [0, 0, 1, 0], [], []>} : vector<320x128xbf16>, vector<4x128xbf16>, vector<320x4xf32> -> vector<320x4xf32>
    %203 = arith.addf %197, %202 : vector<320x4xf32>
    %204 = vector.extract_strided_slice %174 {offsets = [1, 9, 0], sizes = [20, 16, 128], strides = [1, 1, 1]} : vector<22x32x128xbf16> to vector<20x16x128xbf16>
    %205 = vector.shape_cast %204 : vector<20x16x128xbf16> to vector<320x128xbf16>
    %c23 = arith.constant 23 : index
    %c0_122 = arith.constant 0 : index
    %c0_123 = arith.constant 0 : index
    %206 = vector.load %arg5[%c23, %c0_122, %c0_123] : memref<27x4x128xbf16, #tpu.memory_space<vmem>>, vector<1x4x128xbf16>
    %207 = vector.shape_cast %206 : vector<1x4x128xbf16> to vector<4x128xbf16>
    %cst_124 = arith.constant dense<0.000000e+00> : vector<320x4xf32>
    %208 = tpu.matmul %205, %207, %cst_124 {dimension_numbers = #tpu.dot_dimension_numbers<[1], [1], [0], [0], [0, 0, 1, 0], [], []>} : vector<320x128xbf16>, vector<4x128xbf16>, vector<320x4xf32> -> vector<320x4xf32>
    %209 = arith.addf %203, %208 : vector<320x4xf32>
    %210 = vector.extract_strided_slice %174 {offsets = [2, 7, 0], sizes = [20, 16, 128], strides = [1, 1, 1]} : vector<22x32x128xbf16> to vector<20x16x128xbf16>
    %211 = vector.shape_cast %210 : vector<20x16x128xbf16> to vector<320x128xbf16>
    %c24_125 = arith.constant 24 : index
    %c0_126 = arith.constant 0 : index
    %c0_127 = arith.constant 0 : index
    %212 = vector.load %arg5[%c24_125, %c0_126, %c0_127] : memref<27x4x128xbf16, #tpu.memory_space<vmem>>, vector<1x4x128xbf16>
    %213 = vector.shape_cast %212 : vector<1x4x128xbf16> to vector<4x128xbf16>
    %cst_128 = arith.constant dense<0.000000e+00> : vector<320x4xf32>
    %214 = tpu.matmul %211, %213, %cst_128 {dimension_numbers = #tpu.dot_dimension_numbers<[1], [1], [0], [0], [0, 0, 1, 0], [], []>} : vector<320x128xbf16>, vector<4x128xbf16>, vector<320x4xf32> -> vector<320x4xf32>
    %215 = arith.addf %209, %214 : vector<320x4xf32>
    %216 = vector.extract_strided_slice %174 {offsets = [2, 8, 0], sizes = [20, 16, 128], strides = [1, 1, 1]} : vector<22x32x128xbf16> to vector<20x16x128xbf16>
    %217 = vector.shape_cast %216 : vector<20x16x128xbf16> to vector<320x128xbf16>
    %c25 = arith.constant 25 : index
    %c0_129 = arith.constant 0 : index
    %c0_130 = arith.constant 0 : index
    %218 = vector.load %arg5[%c25, %c0_129, %c0_130] : memref<27x4x128xbf16, #tpu.memory_space<vmem>>, vector<1x4x128xbf16>
    %219 = vector.shape_cast %218 : vector<1x4x128xbf16> to vector<4x128xbf16>
    %cst_131 = arith.constant dense<0.000000e+00> : vector<320x4xf32>
    %220 = tpu.matmul %217, %219, %cst_131 {dimension_numbers = #tpu.dot_dimension_numbers<[1], [1], [0], [0], [0, 0, 1, 0], [], []>} : vector<320x128xbf16>, vector<4x128xbf16>, vector<320x4xf32> -> vector<320x4xf32>
    %221 = arith.addf %215, %220 : vector<320x4xf32>
    %222 = vector.extract_strided_slice %174 {offsets = [2, 9, 0], sizes = [20, 16, 128], strides = [1, 1, 1]} : vector<22x32x128xbf16> to vector<20x16x128xbf16>
    %223 = vector.shape_cast %222 : vector<20x16x128xbf16> to vector<320x128xbf16>
    %c26 = arith.constant 26 : index
    %c0_132 = arith.constant 0 : index
    %c0_133 = arith.constant 0 : index
    %224 = vector.load %arg5[%c26, %c0_132, %c0_133] : memref<27x4x128xbf16, #tpu.memory_space<vmem>>, vector<1x4x128xbf16>
    %225 = vector.shape_cast %224 : vector<1x4x128xbf16> to vector<4x128xbf16>
    %cst_134 = arith.constant dense<0.000000e+00> : vector<320x4xf32>
    %226 = tpu.matmul %223, %225, %cst_134 {dimension_numbers = #tpu.dot_dimension_numbers<[1], [1], [0], [0], [0, 0, 1, 0], [], []>} : vector<320x128xbf16>, vector<4x128xbf16>, vector<320x4xf32> -> vector<320x4xf32>
    %227 = arith.addf %221, %226 : vector<320x4xf32>
    %228 = vector.shape_cast %227 : vector<320x4xf32> to vector<20x16x4xf32>
    %c1_135 = arith.constant 1 : index
    %c8_136 = arith.constant 8 : index
    %c12_137 = arith.constant 12 : index
    %229 = vector.load %arg7[%c1_135, %c8_136, %c12_137] : memref<22x32x128xf32, #tpu.memory_space<vmem>>, vector<20x16x4xf32>
    tpu.vector_store %arg7[%c1_135, %c8_136, %c12_137], %228 {strides = array<i32>} : memref<22x32x128xf32, #tpu.memory_space<vmem>>, vector<20x16x4xf32>,
    %230 = vector.extract_strided_slice %228 {offsets = [0, 0, 0], sizes = [20, 1, 4], strides = [1, 1, 1]} : vector<20x16x4xf32> to vector<20x1x4xf32>
    %c1_138 = arith.constant 1 : index
    %c7_139 = arith.constant 7 : index
    %c12_140 = arith.constant 12 : index
    %231 = vector.load %arg7[%c1_138, %c7_139, %c12_140] : memref<22x32x128xf32, #tpu.memory_space<vmem>>, vector<20x1x4xf32>
    tpu.vector_store %arg7[%c1_138, %c7_139, %c12_140], %230 {strides = array<i32>} : memref<22x32x128xf32, #tpu.memory_space<vmem>>, vector<20x1x4xf32>,
    %232 = vector.extract_strided_slice %228 {offsets = [0, 15, 0], sizes = [20, 1, 4], strides = [1, 1, 1]} : vector<20x16x4xf32> to vector<20x1x4xf32>
    %c1_141 = arith.constant 1 : index
    %c24_142 = arith.constant 24 : index
    %c12_143 = arith.constant 12 : index
    %233 = vector.load %arg7[%c1_141, %c24_142, %c12_143] : memref<22x32x128xf32, #tpu.memory_space<vmem>>, vector<20x1x4xf32>
    tpu.vector_store %arg7[%c1_141, %c24_142, %c12_143], %232 {strides = array<i32>} : memref<22x32x128xf32, #tpu.memory_space<vmem>>, vector<20x1x4xf32>,
    %c0_i32_144 = arith.constant 0 : i32
    %234 = arith.cmpi eq, %arg1, %c0_i32_144 : i32
    %235 = arith.extui %234 : i1 to i32
    %c0_i32_145 = arith.constant 0 : i32
    %236 = arith.cmpi ne, %235, %c0_i32_145 : i32
    scf.if %236 {
      %c3_155 = arith.constant 3 : index
      %c0_156 = arith.constant 0 : index
      %c12_157 = arith.constant 12 : index
      %244 = vector.load %arg7[%c3_155, %c0_156, %c12_157] : memref<22x32x128xf32, #tpu.memory_space<vmem>>, vector<1x32x4xf32>
      %245 = vector.shape_cast %244 : vector<1x32x4xf32> to vector<1x32x4xf32>
      %246 = vector.broadcast %245 : vector<1x32x4xf32> to vector<3x32x4xf32>
      %c0_158 = arith.constant 0 : index
      %c0_159 = arith.constant 0 : index
      %c12_160 = arith.constant 12 : index
      %247 = vector.load %arg7[%c0_158, %c0_159, %c12_160] : memref<22x32x128xf32, #tpu.memory_space<vmem>>, vector<3x32x4xf32>
      tpu.vector_store %arg7[%c0_158, %c0_159, %c12_160], %246 {strides = array<i32>} : memref<22x32x128xf32, #tpu.memory_space<vmem>>, vector<3x32x4xf32>,
    } else {
    }
    %c0_i32_146 = arith.constant 0 : i32
    %237 = arith.cmpi eq, %arg1, %c0_i32_146 : i32
    %238 = arith.extui %237 : i1 to i32
    %c0_i32_147 = arith.constant 0 : i32
    %239 = arith.cmpi ne, %238, %c0_i32_147 : i32
    scf.if %239 {
      %c18_155 = arith.constant 18 : index
      %c0_156 = arith.constant 0 : index
      %c12_157 = arith.constant 12 : index
      %244 = vector.load %arg7[%c18_155, %c0_156, %c12_157] : memref<22x32x128xf32, #tpu.memory_space<vmem>>, vector<1x32x4xf32>
      %245 = vector.shape_cast %244 : vector<1x32x4xf32> to vector<1x32x4xf32>
      %246 = vector.broadcast %245 : vector<1x32x4xf32> to vector<3x32x4xf32>
      %c19_158 = arith.constant 19 : index
      %c0_159 = arith.constant 0 : index
      %c12_160 = arith.constant 12 : index
      %247 = vector.load %arg7[%c19_158, %c0_159, %c12_160] : memref<22x32x128xf32, #tpu.memory_space<vmem>>, vector<3x32x4xf32>
      tpu.vector_store %arg7[%c19_158, %c0_159, %c12_160], %246 {strides = array<i32>} : memref<22x32x128xf32, #tpu.memory_space<vmem>>, vector<3x32x4xf32>,
    } else {
    }
    %c3_148 = arith.constant 3 : index
    %c8_149 = arith.constant 8 : index
    %c0_150 = arith.constant 0 : index
    %240 = vector.load %arg7[%c3_148, %c8_149, %c0_150] : memref<22x32x128xf32, #tpu.memory_space<vmem>>, vector<16x16x128xf32>
    %c0_151 = arith.constant 0 : index
    %c0_152 = arith.constant 0 : index
    %c0_153 = arith.constant 0 : index
    %c0_154 = arith.constant 0 : index
    %241 = vector.load %arg6[%c0_151, %c0_152, %c0_153, %c0_154] : memref<1x16x16x128xf32, #tpu.memory_space<vmem>>, vector<1x16x16x128xf32>
    %242 = vector.shape_cast %241 : vector<1x16x16x128xf32> to vector<16x16x128xf32>
    %243 = vector.shape_cast %240 : vector<16x16x128xf32> to vector<1x16x16x128xf32>
    tpu.vector_store %arg6[%c0_151, %c0_152, %c0_153, %c0_154], %243 {strides = array<i32>} : memref<1x16x16x128xf32, #tpu.memory_space<vmem>>, vector<1x16x16x128xf32>,
    return
  }
  func.func @transform_1(%arg0: i32, %arg1: i32) -> (i32, i32) {
    %c0_i32 = arith.constant 0 : i32
    %c0_i32_0 = arith.constant 0 : i32
    %c0_i32_1 = arith.constant 0 : i32
    return %c0_i32, %c0_i32_0 : i32, i32
  }
  func.func @transform_2(%arg0: i32, %arg1: i32) -> (i32, i32) {
    %c0_i32 = arith.constant 0 : i32
    %c0_i32_0 = arith.constant 0 : i32
    %c0_i32_1 = arith.constant 0 : i32
    return %c0_i32, %c0_i32_0 : i32, i32
  }
  func.func @transform_3(%arg0: i32, %arg1: i32) -> (i32, i32, i32) {
    %c0_i32 = arith.constant 0 : i32
    %c0_i32_0 = arith.constant 0 : i32
    %c0_i32_1 = arith.constant 0 : i32
    %c0_i32_2 = arith.constant 0 : i32
    return %c0_i32, %c0_i32_0, %c0_i32_1 : i32, i32, i32
  }
  func.func @transform_4(%arg0: i32, %arg1: i32) -> (i32, i32, i32, i32) {
    %c0_i32 = arith.constant 0 : i32
    %c0_i32_0 = arith.constant 0 : i32
    %c0_i32_1 = arith.constant 0 : i32
    return %arg0, %arg1, %c0_i32, %c0_i32_0 : i32, i32, i32, i32
  }
}

</mosaic_0001>

<llo_original>
// kernel: dense_block_forward.1
$region0: #{dense_block_forward.1}
  #allocation0 [shape = 'u32[]', space=smem, size = 0x4, offset = 0x4, fixed_abs, tag = 'smem constant byte address 0x4 - core index']
  #allocation1 [shape = 'u32[144,128]{1,0:T(1,128)}', space=vmem, size = 0x12000, scoped, tag = 'internal scratch']
  #allocation2 [shape = 'f32[22,32,128]{2,1,0:T(8,128)}', space=vmem, size = 0x58000, scoped, tag = 'scratch operand']
  #allocation3 [shape = 's32[1]{0}', space=sflag, size = 0x4, scoped, tag = 'scratch operand']
  #allocation4 [shape = 's32[]', space=sflag, size = 0x4, offset = 0, fixed_abs, tag = 'sflag constant byte address 0x0 - dummy sync flag']
  %s0 = inlined_call_operand.vmem [shape: f32[2,22,32,128], index: 0, kind: input, shape index: {}]
  %s1 = inlined_call_operand.vmem [shape: f32[3,128], index: 1, kind: input, shape index: {}]
  %s2 = inlined_call_operand.vmem [shape: f32[3,128], index: 2, kind: input, shape index: {}]
  %s3 = inlined_call_operand.vmem [shape: bf16[27,4,128], index: 3, kind: input, shape index: {}]
  %s4 = inlined_call_operand.vmem [shape: f32[2,16,16,128], index: 4, kind: output, shape index: {}]
  %s5 = sld [smem:[#allocation0]]
  $region91: #{dense_block_forward.1} parent=0
    _
  %s7 = ssub.s32 1, %s5
  %s8 = scalar_select 0, %s7, %s5
  loop: start=0, step=1, limit=4
  $region2: #{dense_block_forward.1} parent=0 // loop_pre_header
    _
  $region3: #{dense_block_forward.1} parent=0 // loop_header
    %s10 = sphi 0, %s14
    %p11 = scmp.ge.s32.totalorder %s10, 4
    %s17 = sphi 0, %s29
    %s18 = sphi 0, %s25
    %s19 = sphi 0, %s17
    %s20 = sphi 0, %s18
    %s21 = sphi 0, %s19
    %s22 = sphi 0, %s20
    %s30 = sphi 0, %s30
    %s32 = sphi 0, %s30
    %s33 = sphi 0, %s32
    %s47 = sphi 0, %s33
    %s51 = sphi 0, %s51
    %s53 = sphi 0, %s51
    %s54 = sphi 0, %s53
    %s68 = sphi 0, %s54
    %s72 = sphi 0, %s72
    %s74 = sphi 0, %s72
    %s75 = sphi 0, %s74
    %s89 = sphi 0, %s75
    %s97 = sphi 0, %s99
    %s100 = sphi 0, %s97
    %s101 = sphi 0, %s100
    %s117 = sphi 0, %s101
  $region4: #{dense_block_forward.1} parent=0 // loop_header_branch
    %13 = sbr.rel (%p11) target = $region8
  $region5: #{dense_block_forward.1} parent=0 // loop_body
    %s15 = ssub.s32 %s10, 1
    %s16 = ssub.s32 %s10, 2
    %s23 = sadd.s32 1, %s18
    %p24 = scmp.ge.s32.totalorder %s23, 1
    %s25 = scalar_select %p24, 0, %s23
    %s26 = sadd.s32 1, %s17
    %s27 = scalar_select %p24, %s26, %s17
    %p28 = scmp.ge.s32.totalorder %s27, 2
    %s29 = scalar_select %p28, 0, %s27
    %s31 = sadd.s32 %s30, 1
    %p34 = scmp.eq.s32.totalorder %s10, 1
    %p35 = scmp.ne.s32.totalorder %s30, %s32
    %p36 = scmp.eq.s32.totalorder %s10, 0
    %p37 = por %p35, %p36
    %p38 = scmp.ne.s32.totalorder %s30, %s32
    %p39 = scmp.eq.s32.totalorder %s15, 1
    %p40 = por %p38, %p39
    %p41 = scmp.ne.s32.totalorder %s32, %s33
    %p42 = scmp.eq.s32.totalorder %s15, 0
    %p43 = por %p41, %p42
    %p44 = scmp.ne.s32.totalorder %s32, %s33
    %p45 = scmp.eq.s32.totalorder %s16, 1
    %p46 = por %p44, %p45
    %p48 = scmp.ne.s32.totalorder %s33, %s47
    %p49 = scmp.eq.s32.totalorder %s16, 0
    %p50 = por %p48, %p49
    %s52 = sadd.s32 %s51, 1
    %p55 = scmp.eq.s32.totalorder %s10, 1
    %p56 = scmp.ne.s32.totalorder %s51, %s53
    %p57 = scmp.eq.s32.totalorder %s10, 0
    %p58 = por %p56, %p57
    %p59 = scmp.ne.s32.totalorder %s51, %s53
    %p60 = scmp.eq.s32.totalorder %s15, 1
    %p61 = por %p59, %p60
    %p62 = scmp.ne.s32.totalorder %s53, %s54
    %p63 = scmp.eq.s32.totalorder %s15, 0
    %p64 = por %p62, %p63
    %p65 = scmp.ne.s32.totalorder %s53, %s54
    %p66 = scmp.eq.s32.totalorder %s16, 1
    %p67 = por %p65, %p66
    %p69 = scmp.ne.s32.totalorder %s54, %s68
    %p70 = scmp.eq.s32.totalorder %s16, 0
    %p71 = por %p69, %p70
    %s73 = sadd.s32 %s72, 1
    %p76 = scmp.eq.s32.totalorder %s10, 1
    %p77 = scmp.ne.s32.totalorder %s72, %s74
    %p78 = scmp.eq.s32.totalorder %s10, 0
    %p79 = por %p77, %p78
    %p80 = scmp.ne.s32.totalorder %s72, %s74
    %p81 = scmp.eq.s32.totalorder %s15, 1
    %p82 = por %p80, %p81
    %p83 = scmp.ne.s32.totalorder %s74, %s75
    %p84 = scmp.eq.s32.totalorder %s15, 0
    %p85 = por %p83, %p84
    %p86 = scmp.ne.s32.totalorder %s74, %s75
    %p87 = scmp.eq.s32.totalorder %s16, 1
    %p88 = por %p86, %p87
    %p90 = scmp.ne.s32.totalorder %s75, %s89
    %p91 = scmp.eq.s32.totalorder %s16, 0
    %p92 = por %p90, %p91
    %s93 = ssub.s32 %s17, %s29
    %s94 = ssub.s32 %s18, %s25
    %s95 = sor.u32 %s93, %s94
    %p96 = scmp.eq.s32.totalorder %s95, 0
    %s98 = sadd.s32 %s97, 1
    %s99 = scalar_select %p96, %s97, %s98
    %p102 = pneg %p96
    %p103 = scmp.eq.s32.totalorder %s10, 1
    %p104 = por %p102, %p103
    %p105 = scmp.ne.s32.totalorder %s97, %s100
    %p106 = scmp.eq.s32.totalorder %s10, 0
    %p107 = por %p105, %p106
    %p108 = scmp.ne.s32.totalorder %s97, %s100
    %p109 = scmp.eq.s32.totalorder %s15, 1
    %p110 = por %p108, %p109
    %p111 = scmp.ne.s32.totalorder %s100, %s101
    %p112 = scmp.eq.s32.totalorder %s15, 0
    %p113 = por %p111, %p112
    %p114 = scmp.ne.s32.totalorder %s100, %s101
    %p115 = scmp.eq.s32.totalorder %s16, 1
    %p116 = por %p114, %p115
    %p118 = scmp.ne.s32.totalorder %s101, %s117
    %p119 = scmp.eq.s32.totalorder %s16, 0
    %p120 = por %p118, %p119
    %p121 = scmp.le.s32.totalorder 1, %s10
    %p122 = scmp.lt.s32.totalorder %s10, 3
    %p123 = pnand %p121, %p122
    %p124 = pneg %p123
    // Predicated region
    $region9: #{dense_block_forward.1} parent=5 // pred_check
      _
    $region10: #{dense_block_forward.1} parent=5 // pred_check_branch
      %126 = sbr.rel (%p123) target = $region12
    $region11: #{dense_block_forward.1} parent=5 // pred_region
      %s127 = ssub.s32 %s10, 1
      // Predicated region
      $region13: #{dense_block_forward.1} parent=11 // pred_check
        %p128 = pneg %p43
      $region14: #{dense_block_forward.1} parent=11 // pred_check_branch
        %130 = sbr.rel (%p128) target = $region16
      $region15: #{dense_block_forward.1} parent=11 // pred_region
        _
      $region16: #{dense_block_forward.1} parent=11 // pred_fallthru
        _
      // Predicated region
      $region17: #{dense_block_forward.1} parent=11 // pred_check
        %p131 = pneg %p64
      $region18: #{dense_block_forward.1} parent=11 // pred_check_branch
        %133 = sbr.rel (%p131) target = $region20
      $region19: #{dense_block_forward.1} parent=11 // pred_region
        _
      $region20: #{dense_block_forward.1} parent=11 // pred_fallthru
        _
      // Predicated region
      $region21: #{dense_block_forward.1} parent=11 // pred_check
        %p134 = pneg %p85
      $region22: #{dense_block_forward.1} parent=11 // pred_check_branch
        %136 = sbr.rel (%p134) target = $region24
      $region23: #{dense_block_forward.1} parent=11 // pred_region
        _
      $region24: #{dense_block_forward.1} parent=11 // pred_fallthru
        _
    $region12: #{dense_block_forward.1} parent=5 // pred_fallthru
      _
    %p137 = scmp.lt.s32.totalorder %s10, 2
    // Predicated region
    $region25: #{dense_block_forward.1} parent=5 // pred_check
      %p138 = pneg %p137
    $region26: #{dense_block_forward.1} parent=5 // pred_check_branch
      %140 = sbr.rel (%p138) target = $region28
    $region27: #{dense_block_forward.1} parent=5 // pred_region
      _
    $region28: #{dense_block_forward.1} parent=5 // pred_fallthru
      _
    %p141 = scmp.le.s32.totalorder 1, %s10
    %p142 = scmp.lt.s32.totalorder %s10, 3
    %p143 = pnand %p141, %p142
    %p144 = pneg %p143
    // Predicated region
    $region29: #{dense_block_forward.1} parent=5 // pred_check
      _
    $region30: #{dense_block_forward.1} parent=5 // pred_check_branch
      %146 = sbr.rel (%p143) target = $region32
    $region31: #{dense_block_forward.1} parent=5 // pred_region
      %s147 = ssub.s32 %s10, 1
      %p148 = pneg %p43
      %p149 = pneg %p40
      %p150 = pneg %p64
      %p151 = pneg %p61
      %p152 = pneg %p85
      %p153 = pneg %p82
      %p154 = pneg %p113
      %p155 = pneg %p110
      %s156 = smul.u32 16, %s20
      %p157 = scmp.lt.s32.totalorder %s19, 1
      %s158 = scalar_select %p157, %s19, 1
      %p159 = scmp.lt.s32.totalorder %s156, 15
      %s160 = scalar_select %p159, %s156, 15
      %s161 = smul.addr %s160, 2
      %s162 = smul.addr %s158, 32
      %s163 = sadd.s32 %s161, %s162
      %s164 = smul.addr %s163, 8
      %s165 = scalar_lea.vmem %s4, %s164
      %s166 = smul.u32 16, %s20
      %p167 = scmp.lt.s32.totalorder %s19, 1
      %s168 = scalar_select %p167, %s19, 1
      %p169 = scmp.lt.s32.totalorder %s166, 15
      %s170 = scalar_select %p169, %s166, 15
      %s171 = smul.addr %s170, 2
      %s172 = smul.addr %s168, 32
      %s173 = sadd.s32 %s171, %s172
      %s174 = smul.addr %s173, 8
      %s175 = scalar_lea.vmem %s4, %s174
      %s176 = smul.u32 16, %s20
      %s178 = smul.u32 %s20, 16
      %s179 = smul.u32 %s178, 32
      %s180 = smul.u32 %s19, 704
      %s181 = sadd.s32 %s179, %s180
      %s182 = scalar_lea.vmem %s0, %s181
      %p184 = scmp.lt.u32.totalorder 704, 8
      %p185 = pneg %p184
      // Predicated region
      $region33: #{dense_block_forward.1} parent=31 // pred_check
        _
      $region34: #{dense_block_forward.1} parent=31 // pred_check_branch
        %187 = sbr.rel (%p184) target = $region36
      $region35: #{dense_block_forward.1} parent=31 // pred_region
        %s202 = sand.u32 704, 7
        %p203 = scmp.eq.s32.totalorder %s202, 0
        // Predicated region
        $region48: #{dense_block_forward.1} parent=35 // pred_check
          %p204 = pneg %p203
        $region49: #{dense_block_forward.1} parent=35 // pred_check_branch
          %206 = sbr.rel (%p204) target = $region51
        $region50: #{dense_block_forward.1} parent=35 // pred_region
          loop: start=0, step=1, limit=1
          $region52: #{dense_block_forward.1} parent=50 // loop_pre_header
            _
          $region53: #{dense_block_forward.1} parent=50 // loop_header
            %s208 = sphi 0, %s212
            %p209 = scmp.ge.s32.totalorder %s208, 1
            %s213 = sphi %s182, %s182
            %s214 = sphi [#allocation2], [#allocation2]
          $region54: #{dense_block_forward.1} parent=50 // loop_header_branch
            %211 = sbr.rel (%p209) target = $region58
          $region55: #{dense_block_forward.1} parent=50 // loop_body
            %v215 = vld [vmem:[%s213] sm:$0xff]
            %216 = vst [vmem:[%s214] sm:$0xff] %v215
            %v217 = vld [vmem:[%s213 + $0x8] sm:$0xff]
            %218 = vst [vmem:[%s214 + $0x8] sm:$0xff] %v217
            %v219 = vld [vmem:[%s213 + $0x10] sm:$0xff]
            %220 = vst [vmem:[%s214 + $0x10] sm:$0xff] %v219
            %v221 = vld [vmem:[%s213 + $0x18] sm:$0xff]
            %222 = vst [vmem:[%s214 + $0x18] sm:$0xff] %v221
            %v223 = vld [vmem:[%s213 + $0x20] sm:$0xff]
            %224 = vst [vmem:[%s214 + $0x20] sm:$0xff] %v223
            %v225 = vld [vmem:[%s213 + $0x28] sm:$0xff]
            %226 = vst [vmem:[%s214 + $0x28] sm:$0xff] %v225
            %v227 = vld [vmem:[%s213 + $0x30] sm:$0xff]
            %228 = vst [vmem:[%s214 + $0x30] sm:$0xff] %v227
            %v229 = vld [vmem:[%s213 + $0x38] sm:$0xff]
            %230 = vst [vmem:[%s214 + $0x38] sm:$0xff] %v229
            %v231 = vld [vmem:[%s213 + $0x40] sm:$0xff]
            %232 = vst [vmem:[%s214 + $0x40] sm:$0xff] %v231
            %v233 = vld [vmem:[%s213 + $0x48] sm:$0xff]
            %234 = vst [vmem:[%s214 + $0x48] sm:$0xff] %v233
            %v235 = vld [vmem:[%s213 + $0x50] sm:$0xff]
            %236 = vst [vmem:[%s214 + $0x50] sm:$0xff] %v235
            %v237 = vld [vmem:[%s213 + $0x58] sm:$0xff]
            %238 = vst [vmem:[%s214 + $0x58] sm:$0xff] %v237
            %v239 = vld [vmem:[%s213 + $0x60] sm:$0xff]
            %240 = vst [vmem:[%s214 + $0x60] sm:$0xff] %v239
            %v241 = vld [vmem:[%s213 + $0x68] sm:$0xff]
            %242 = vst [vmem:[%s214 + $0x68] sm:$0xff] %v241
            %v243 = vld [vmem:[%s213 + $0x70] sm:$0xff]
            %244 = vst [vmem:[%s214 + $0x70] sm:$0xff] %v243
            %v245 = vld [vmem:[%s213 + $0x78] sm:$0xff]
            %246 = vst [vmem:[%s214 + $0x78] sm:$0xff] %v245
            %v247 = vld [vmem:[%s213 + $0x80] sm:$0xff]
            %248 = vst [vmem:[%s214 + $0x80] sm:$0xff] %v247
            %v249 = vld [vmem:[%s213 + $0x88] sm:$0xff]
            %250 = vst [vmem:[%s214 + $0x88] sm:$0xff] %v249
            %v251 = vld [vmem:[%s213 + $0x90] sm:$0xff]
            %252 = vst [vmem:[%s214 + $0x90] sm:$0xff] %v251
            %v253 = vld [vmem:[%s213 + $0x98] sm:$0xff]
            %254 = vst [vmem:[%s214 + $0x98] sm:$0xff] %v253
            %v255 = vld [vmem:[%s213 + $0xa0] sm:$0xff]
            %256 = vst [vmem:[%s214 + $0xa0] sm:$0xff] %v255
            %v257 = vld [vmem:[%s213 + $0xa8] sm:$0xff]
            %258 = vst [vmem:[%s214 + $0xa8] sm:$0xff] %v257
            %v259 = vld [vmem:[%s213 + $0xb0] sm:$0xff]
            %260 = vst [vmem:[%s214 + $0xb0] sm:$0xff] %v259
            %v261 = vld [vmem:[%s213 + $0xb8] sm:$0xff]
            %262 = vst [vmem:[%s214 + $0xb8] sm:$0xff] %v261
            %v263 = vld [vmem:[%s213 + $0xc0] sm:$0xff]
            %264 = vst [vmem:[%s214 + $0xc0] sm:$0xff] %v263
            %v265 = vld [vmem:[%s213 + $0xc8] sm:$0xff]
            %266 = vst [vmem:[%s214 + $0xc8] sm:$0xff] %v265
            %v267 = vld [vmem:[%s213 + $0xd0] sm:$0xff]
            %268 = vst [vmem:[%s214 + $0xd0] sm:$0xff] %v267
            %v269 = vld [vmem:[%s213 + $0xd8] sm:$0xff]
            %270 = vst [vmem:[%s214 + $0xd8] sm:$0xff] %v269
            %v271 = vld [vmem:[%s213 + $0xe0] sm:$0xff]
            %272 = vst [vmem:[%s214 + $0xe0] sm:$0xff] %v271
            %v273 = vld [vmem:[%s213 + $0xe8] sm:$0xff]
            %274 = vst [vmem:[%s214 + $0xe8] sm:$0xff] %v273
            %v275 = vld [vmem:[%s213 + $0xf0] sm:$0xff]
            %276 = vst [vmem:[%s214 + $0xf0] sm:$0xff] %v275
            %v277 = vld [vmem:[%s213 + $0xf8] sm:$0xff]
            %278 = vst [vmem:[%s214 + $0xf8] sm:$0xff] %v277
            %v279 = vld [vmem:[%s213 + $0x100] sm:$0xff]
            %280 = vst [vmem:[%s214 + $0x100] sm:$0xff] %v279
            %v281 = vld [vmem:[%s213 + $0x108] sm:$0xff]
            %282 = vst [vmem:[%s214 + $0x108] sm:$0xff] %v281
            %v283 = vld [vmem:[%s213 + $0x110] sm:$0xff]
            %284 = vst [vmem:[%s214 + $0x110] sm:$0xff] %v283
            %v285 = vld [vmem:[%s213 + $0x118] sm:$0xff]
            %286 = vst [vmem:[%s214 + $0x118] sm:$0xff] %v285
            %v287 = vld [vmem:[%s213 + $0x120] sm:$0xff]
            %288 = vst [vmem:[%s214 + $0x120] sm:$0xff] %v287
            %v289 = vld [vmem:[%s213 + $0x128] sm:$0xff]
            %290 = vst [vmem:[%s214 + $0x128] sm:$0xff] %v289
            %v291 = vld [vmem:[%s213 + $0x130] sm:$0xff]
            %292 = vst [vmem:[%s214 + $0x130] sm:$0xff] %v291
            %v293 = vld [vmem:[%s213 + $0x138] sm:$0xff]
            %294 = vst [vmem:[%s214 + $0x138] sm:$0xff] %v293
            %v295 = vld [vmem:[%s213 + $0x140] sm:$0xff]
            %296 = vst [vmem:[%s214 + $0x140] sm:$0xff] %v295
            %v297 = vld [vmem:[%s213 + $0x148] sm:$0xff]
            %298 = vst [vmem:[%s214 + $0x148] sm:$0xff] %v297
            %v299 = vld [vmem:[%s213 + $0x150] sm:$0xff]
            %300 = vst [vmem:[%s214 + $0x150] sm:$0xff] %v299
            %v301 = vld [vmem:[%s213 + $0x158] sm:$0xff]
            %302 = vst [vmem:[%s214 + $0x158] sm:$0xff] %v301
            %v303 = vld [vmem:[%s213 + $0x160] sm:$0xff]
            %304 = vst [vmem:[%s214 + $0x160] sm:$0xff] %v303
            %v305 = vld [vmem:[%s213 + $0x168] sm:$0xff]
            %306 = vst [vmem:[%s214 + $0x168] sm:$0xff] %v305
            %v307 = vld [vmem:[%s213 + $0x170] sm:$0xff]
            %308 = vst [vmem:[%s214 + $0x170] sm:$0xff] %v307
            %v309 = vld [vmem:[%s213 + $0x178] sm:$0xff]
            %310 = vst [vmem:[%s214 + $0x178] sm:$0xff] %v309
            %v311 = vld [vmem:[%s213 + $0x180] sm:$0xff]
            %312 = vst [vmem:[%s214 + $0x180] sm:$0xff] %v311
            %v313 = vld [vmem:[%s213 + $0x188] sm:$0xff]
            %314 = vst [vmem:[%s214 + $0x188] sm:$0xff] %v313
            %v315 = vld [vmem:[%s213 + $0x190] sm:$0xff]
            %316 = vst [vmem:[%s214 + $0x190] sm:$0xff] %v315
            %v317 = vld [vmem:[%s213 + $0x198] sm:$0xff]
            %318 = vst [vmem:[%s214 + $0x198] sm:$0xff] %v317
            %v319 = vld [vmem:[%s213 + $0x1a0] sm:$0xff]
            %320 = vst [vmem:[%s214 + $0x1a0] sm:$0xff] %v319
            %v321 = vld [vmem:[%s213 + $0x1a8] sm:$0xff]
            %322 = vst [vmem:[%s214 + $0x1a8] sm:$0xff] %v321
            %v323 = vld [vmem:[%s213 + $0x1b0] sm:$0xff]
            %324 = vst [vmem:[%s214 + $0x1b0] sm:$0xff] %v323
            %v325 = vld [vmem:[%s213 + $0x1b8] sm:$0xff]
            %326 = vst [vmem:[%s214 + $0x1b8] sm:$0xff] %v325
            %v327 = vld [vmem:[%s213 + $0x1c0] sm:$0xff]
            %328 = vst [vmem:[%s214 + $0x1c0] sm:$0xff] %v327
            %v329 = vld [vmem:[%s213 + $0x1c8] sm:$0xff]
            %330 = vst [vmem:[%s214 + $0x1c8] sm:$0xff] %v329
            %v331 = vld [vmem:[%s213 + $0x1d0] sm:$0xff]
            %332 = vst [vmem:[%s214 + $0x1d0] sm:$0xff] %v331
            %v333 = vld [vmem:[%s213 + $0x1d8] sm:$0xff]
            %334 = vst [vmem:[%s214 + $0x1d8] sm:$0xff] %v333
            %v335 = vld [vmem:[%s213 + $0x1e0] sm:$0xff]
            %336 = vst [vmem:[%s214 + $0x1e0] sm:$0xff] %v335
            %v337 = vld [vmem:[%s213 + $0x1e8] sm:$0xff]
            %338 = vst [vmem:[%s214 + $0x1e8] sm:$0xff] %v337
            %v339 = vld [vmem:[%s213 + $0x1f0] sm:$0xff]
            %340 = vst [vmem:[%s214 + $0x1f0] sm:$0xff] %v339
            %v341 = vld [vmem:[%s213 + $0x1f8] sm:$0xff]
            %342 = vst [vmem:[%s214 + $0x1f8] sm:$0xff] %v341
            %v343 = vld [vmem:[%s213 + $0x200] sm:$0xff]
            %344 = vst [vmem:[%s214 + $0x200] sm:$0xff] %v343
            %v345 = vld [vmem:[%s213 + $0x208] sm:$0xff]
            %346 = vst [vmem:[%s214 + $0x208] sm:$0xff] %v345
            %v347 = vld [vmem:[%s213 + $0x210] sm:$0xff]
            %348 = vst [vmem:[%s214 + $0x210] sm:$0xff] %v347
            %v349 = vld [vmem:[%s213 + $0x218] sm:$0xff]
            %350 = vst [vmem:[%s214 + $0x218] sm:$0xff] %v349
            %v351 = vld [vmem:[%s213 + $0x220] sm:$0xff]
            %352 = vst [vmem:[%s214 + $0x220] sm:$0xff] %v351
            %v353 = vld [vmem:[%s213 + $0x228] sm:$0xff]
            %354 = vst [vmem:[%s214 + $0x228] sm:$0xff] %v353
            %v355 = vld [vmem:[%s213 + $0x230] sm:$0xff]
            %356 = vst [vmem:[%s214 + $0x230] sm:$0xff] %v355
            %v357 = vld [vmem:[%s213 + $0x238] sm:$0xff]
            %358 = vst [vmem:[%s214 + $0x238] sm:$0xff] %v357
            %v359 = vld [vmem:[%s213 + $0x240] sm:$0xff]
            %360 = vst [vmem:[%s214 + $0x240] sm:$0xff] %v359
            %v361 = vld [vmem:[%s213 + $0x248] sm:$0xff]
            %362 = vst [vmem:[%s214 + $0x248] sm:$0xff] %v361
            %v363 = vld [vmem:[%s213 + $0x250] sm:$0xff]
            %364 = vst [vmem:[%s214 + $0x250] sm:$0xff] %v363
            %v365 = vld [vmem:[%s213 + $0x258] sm:$0xff]
            %366 = vst [vmem:[%s214 + $0x258] sm:$0xff] %v365
            %v367 = vld [vmem:[%s213 + $0x260] sm:$0xff]
            %368 = vst [vmem:[%s214 + $0x260] sm:$0xff] %v367
            %v369 = vld [vmem:[%s213 + $0x268] sm:$0xff]
            %370 = vst [vmem:[%s214 + $0x268] sm:$0xff] %v369
            %v371 = vld [vmem:[%s213 + $0x270] sm:$0xff]
            %372 = vst [vmem:[%s214 + $0x270] sm:$0xff] %v371
            %v373 = vld [vmem:[%s213 + $0x278] sm:$0xff]
            %374 = vst [vmem:[%s214 + $0x278] sm:$0xff] %v373
            %v375 = vld [vmem:[%s213 + $0x280] sm:$0xff]
            %376 = vst [vmem:[%s214 + $0x280] sm:$0xff] %v375
            %v377 = vld [vmem:[%s213 + $0x288] sm:$0xff]
            %378 = vst [vmem:[%s214 + $0x288] sm:$0xff] %v377
            %v379 = vld [vmem:[%s213 + $0x290] sm:$0xff]
            %380 = vst [vmem:[%s214 + $0x290] sm:$0xff] %v379
            %v381 = vld [vmem:[%s213 + $0x298] sm:$0xff]
            %382 = vst [vmem:[%s214 + $0x298] sm:$0xff] %v381
            %v383 = vld [vmem:[%s213 + $0x2a0] sm:$0xff]
            %384 = vst [vmem:[%s214 + $0x2a0] sm:$0xff] %v383
            %v385 = vld [vmem:[%s213 + $0x2a8] sm:$0xff]
            %386 = vst [vmem:[%s214 + $0x2a8] sm:$0xff] %v385
            %v387 = vld [vmem:[%s213 + $0x2b0] sm:$0xff]
            %388 = vst [vmem:[%s214 + $0x2b0] sm:$0xff] %v387
            %v389 = vld [vmem:[%s213 + $0x2b8] sm:$0xff]
            %390 = vst [vmem:[%s214 + $0x2b8] sm:$0xff] %v389
          $region56: #{dense_block_forward.1} parent=50 // loop_footer
            %s212 = sadd.s32 1, %s208
          $region57: #{dense_block_forward.1} parent=50 // loop_footer_branch
            %207 = sbr.rel target = $region53
          $region58: #{dense_block_forward.1} parent=50 // loop_exit
            _
        $region51: #{dense_block_forward.1} parent=35 // pred_fallthru
          _
        %p391 = pneg %p203
        // Predicated region
        $region59: #{dense_block_forward.1} parent=35 // pred_check
          _
        $region60: #{dense_block_forward.1} parent=35 // pred_check_branch
          %393 = sbr.rel (%p203) target = $region62
        $region61: #{dense_block_forward.1} parent=35 // pred_region
          %s394 = sand.u32 704, 7
        $region62: #{dense_block_forward.1} parent=35 // pred_fallthru
          _
      $region36: #{dense_block_forward.1} parent=31 // pred_fallthru
        _
      // Predicated region
      $region37: #{dense_block_forward.1} parent=31 // pred_check
        %p188 = pneg %p184
      $region38: #{dense_block_forward.1} parent=31 // pred_check_branch
        %190 = sbr.rel (%p188) target = $region40
      $region39: #{dense_block_forward.1} parent=31 // pred_region
        %s191 = sshllo.u32 0, 704
        loop: start=0, step=1, limit=1
        $region41: #{dense_block_forward.1} parent=39 // loop_pre_header
          _
        $region42: #{dense_block_forward.1} parent=39 // loop_header
          %s193 = sphi 0, %s197
          %p194 = scmp.ge.s32.totalorder %s193, 1
          %s198 = sphi %s182, %s182
          %s199 = sphi [#allocation2], [#allocation2]
        $region43: #{dense_block_forward.1} parent=39 // loop_header_branch
          %196 = sbr.rel (%p194) target = $region47
        $region44: #{dense_block_forward.1} parent=39 // loop_body
          %v200 = vld [vmem:[%s198] sm:%s191]
          %201 = vst [vmem:[%s199] sm:%s191] %v200
        $region45: #{dense_block_forward.1} parent=39 // loop_footer
          %s197 = sadd.s32 1, %s193
        $region46: #{dense_block_forward.1} parent=39 // loop_footer_branch
          %192 = sbr.rel target = $region42
        $region47: #{dense_block_forward.1} parent=39 // loop_exit
          _
      $region40: #{dense_block_forward.1} parent=31 // pred_fallthru
        _
      // Predicated region
      $region63: #{dense_block_forward.1} parent=31 // pred_check
        _
      $region64: #{dense_block_forward.1} parent=31 // pred_check_branch
        %397 = sbr.rel (0) target = $region66
      $region65: #{dense_block_forward.1} parent=31 // pred_region
        %398 = vsyncadd [#allocation3], 11264
      $region66: #{dense_block_forward.1} parent=31 // pred_fallthru
        _
      %s399 = smul.u32 22, 32
      %s400 = smul.u32 %s399, 1
      %s401 = sshll.u32 %s400, 4
      %402 = dma.done [#allocation3], %s401
      %v403 = vld [vmem:[%s1] sm:$0x1]
      %v404 = vld [vmem:[%s2] sm:$0x1]
      %v405 = vld [vmem:[#allocation2] sm:$0xff]
      %v406 = vld [vmem:[#allocation2 + $0x8] sm:$0xff]
      %v407 = vld [vmem:[#allocation2 + $0x10] sm:$0xff]
      %v408 = vld [vmem:[#allocation2 + $0x18] sm:$0xff]
      %v409 = vld [vmem:[#allocation2 + $0x20] sm:$0xff]
      %v410 = vld [vmem:[#allocation2 + $0x28] sm:$0xff]
      %v411 = vld [vmem:[#allocation2 + $0x30] sm:$0xff]
      %v412 = vld [vmem:[#allocation2 + $0x38] sm:$0xff]
      %v413 = vld [vmem:[#allocation2 + $0x40] sm:$0xff]
      %v414 = vld [vmem:[#allocation2 + $0x48] sm:$0xff]
      %v415 = vld [vmem:[#allocation2 + $0x50] sm:$0xff]
      %v416 = vld [vmem:[#allocation2 + $0x58] sm:$0xff]
      %v417 = vld [vmem:[#allocation2 + $0x60] sm:$0xff]
      %v418 = vld [vmem:[#allocation2 + $0x68] sm:$0xff]
      %v419 = vld [vmem:[#allocation2 + $0x70] sm:$0xff]
      %v420 = vld [vmem:[#allocation2 + $0x78] sm:$0xff]
      %v421 = vld [vmem:[#allocation2 + $0x80] sm:$0xff]
      %v422 = vld [vmem:[#allocation2 + $0x88] sm:$0xff]
      %v423 = vld [vmem:[#allocation2 + $0x90] sm:$0xff]
      %v424 = vld [vmem:[#allocation2 + $0x98] sm:$0xff]
      %v425 = vld [vmem:[#allocation2 + $0xa0] sm:$0xff]
      %v426 = vld [vmem:[#allocation2 + $0xa8] sm:$0xff]
      %v427 = vld [vmem:[#allocation2 + $0xb0] sm:$0xff]
      %v428 = vld [vmem:[#allocation2 + $0xb8] sm:$0xff]
      %v429 = vld [vmem:[#allocation2 + $0xc0] sm:$0xff]
      %v430 = vld [vmem:[#allocation2 + $0xc8] sm:$0xff]
      %v431 = vld [vmem:[#allocation2 + $0xd0] sm:$0xff]
      %v432 = vld [vmem:[#allocation2 + $0xd8] sm:$0xff]
      %v433 = vld [vmem:[#allocation2 + $0xe0] sm:$0xff]
      %v434 = vld [vmem:[#allocation2 + $0xe8] sm:$0xff]
      %v435 = vld [vmem:[#allocation2 + $0xf0] sm:$0xff]
      %v436 = vld [vmem:[#allocation2 + $0xf8] sm:$0xff]
      %v437 = vld [vmem:[#allocation2 + $0x100] sm:$0xff]
      %v438 = vld [vmem:[#allocation2 + $0x108] sm:$0xff]
      %v439 = vld [vmem:[#allocation2 + $0x110] sm:$0xff]
      %v440 = vld [vmem:[#allocation2 + $0x118] sm:$0xff]
      %v441 = vld [vmem:[#allocation2 + $0x120] sm:$0xff]
      %v442 = vld [vmem:[#allocation2 + $0x128] sm:$0xff]
      %v443 = vld [vmem:[#allocation2 + $0x130] sm:$0xff]
      %v444 = vld [vmem:[#allocation2 + $0x138] sm:$0xff]
      %v445 = vld [vmem:[#allocation2 + $0x140] sm:$0xff]
      %v446 = vld [vmem:[#allocation2 + $0x148] sm:$0xff]
      %v447 = vld [vmem:[#allocation2 + $0x150] sm:$0xff]
      %v448 = vld [vmem:[#allocation2 + $0x158] sm:$0xff]
      %v449 = vld [vmem:[#allocation2 + $0x160] sm:$0xff]
      %v450 = vld [vmem:[#allocation2 + $0x168] sm:$0xff]
      %v451 = vld [vmem:[#allocation2 + $0x170] sm:$0xff]
      %v452 = vld [vmem:[#allocation2 + $0x178] sm:$0xff]
      %v453 = vld [vmem:[#allocation2 + $0x180] sm:$0xff]
      %v454 = vld [vmem:[#allocation2 + $0x188] sm:$0xff]
      %v455 = vld [vmem:[#allocation2 + $0x190] sm:$0xff]
      %v456 = vld [vmem:[#allocation2 + $0x198] sm:$0xff]
      %v457 = vld [vmem:[#allocation2 + $0x1a0] sm:$0xff]
      %v458 = vld [vmem:[#allocation2 + $0x1a8] sm:$0xff]
      %v459 = vld [vmem:[#allocation2 + $0x1b0] sm:$0xff]
      %v460 = vld [vmem:[#allocation2 + $0x1b8] sm:$0xff]
      %v461 = vld [vmem:[#allocation2 + $0x1c0] sm:$0xff]
      %v462 = vld [vmem:[#allocation2 + $0x1c8] sm:$0xff]
      %v463 = vld [vmem:[#allocation2 + $0x1d0] sm:$0xff]
      %v464 = vld [vmem:[#allocation2 + $0x1d8] sm:$0xff]
      %v465 = vld [vmem:[#allocation2 + $0x1e0] sm:$0xff]
      %v466 = vld [vmem:[#allocation2 + $0x1e8] sm:$0xff]
      %v467 = vld [vmem:[#allocation2 + $0x1f0] sm:$0xff]
      %v468 = vld [vmem:[#allocation2 + $0x1f8] sm:$0xff]
      %v469 = vld [vmem:[#allocation2 + $0x200] sm:$0xff]
      %v470 = vld [vmem:[#allocation2 + $0x208] sm:$0xff]
      %v471 = vld [vmem:[#allocation2 + $0x210] sm:$0xff]
      %v472 = vld [vmem:[#allocation2 + $0x218] sm:$0xff]
      %v473 = vld [vmem:[#allocation2 + $0x220] sm:$0xff]
      %v474 = vld [vmem:[#allocation2 + $0x228] sm:$0xff]
      %v475 = vld [vmem:[#allocation2 + $0x230] sm:$0xff]
      %v476 = vld [vmem:[#allocation2 + $0x238] sm:$0xff]
      %v477 = vld [vmem:[#allocation2 + $0x240] sm:$0xff]
      %v478 = vld [vmem:[#allocation2 + $0x248] sm:$0xff]
      %v479 = vld [vmem:[#allocation2 + $0x250] sm:$0xff]
      %v480 = vld [vmem:[#allocation2 + $0x258] sm:$0xff]
      %v481 = vld [vmem:[#allocation2 + $0x260] sm:$0xff]
      %v482 = vld [vmem:[#allocation2 + $0x268] sm:$0xff]
      %v483 = vld [vmem:[#allocation2 + $0x270] sm:$0xff]
      %v484 = vld [vmem:[#allocation2 + $0x278] sm:$0xff]
      %v485 = vld [vmem:[#allocation2 + $0x280] sm:$0xff]
      %v486 = vld [vmem:[#allocation2 + $0x288] sm:$0xff]
      %v487 = vld [vmem:[#allocation2 + $0x290] sm:$0xff]
      %v488 = vld [vmem:[#allocation2 + $0x298] sm:$0xff]
      %v489 = vld [vmem:[#allocation2 + $0x2a0] sm:$0xff]
      %v490 = vld [vmem:[#allocation2 + $0x2a8] sm:$0xff]
      %v491 = vld [vmem:[#allocation2 + $0x2b0] sm:$0xff]
      %v492 = vld [vmem:[#allocation2 + $0x2b8] sm:$0xff]
      %v493 = vlaneseq
      %v494 = vshrl.u32 %v493, 7
      %v495 = vsub.s32 0, %v494
      %v496 = vrot.slane %v403, %v495
      %v497 = vmul.f32 %v405, %v496
      %v498 = vmul.f32 %v406, %v496
      %v499 = vmul.f32 %v407, %v496
      %v500 = vmul.f32 %v408, %v496
      %v501 = vmul.f32 %v409, %v496
      %v502 = vmul.f32 %v410, %v496
      %v503 = vmul.f32 %v411, %v496
      %v504 = vmul.f32 %v412, %v496
      %v505 = vmul.f32 %v413, %v496
      %v506 = vmul.f32 %v414, %v496
      %v507 = vmul.f32 %v415, %v496
      %v508 = vmul.f32 %v416, %v496
      %v509 = vmul.f32 %v417, %v496
      %v510 = vmul.f32 %v418, %v496
      %v511 = vmul.f32 %v419, %v496
      %v512 = vmul.f32 %v420, %v496
      %v513 = vmul.f32 %v421, %v496
      %v514 = vmul.f32 %v422, %v496
      %v515 = vmul.f32 %v423, %v496
      %v516 = vmul.f32 %v424, %v496
      %v517 = vmul.f32 %v425, %v496
      %v518 = vmul.f32 %v426, %v496
      %v519 = vmul.f32 %v427, %v496
      %v520 = vmul.f32 %v428, %v496
      %v521 = vmul.f32 %v429, %v496
      %v522 = vmul.f32 %v430, %v496
      %v523 = vmul.f32 %v431, %v496
      %v524 = vmul.f32 %v432, %v496
      %v525 = vmul.f32 %v433, %v496
      %v526 = vmul.f32 %v434, %v496
      %v527 = vmul.f32 %v435, %v496
      %v528 = vmul.f32 %v436, %v496
      %v529 = vmul.f32 %v437, %v496
      %v530 = vmul.f32 %v438, %v496
      %v531 = vmul.f32 %v439, %v496
      %v532 = vmul.f32 %v440, %v496
      %v533 = vmul.f32 %v441, %v496
      %v534 = vmul.f32 %v442, %v496
      %v535 = vmul.f32 %v443, %v496
      %v536 = vmul.f32 %v444, %v496
      %v537 = vmul.f32 %v445, %v496
      %v538 = vmul.f32 %v446, %v496
      %v539 = vmul.f32 %v447, %v496
      %v540 = vmul.f32 %v448, %v496
      %v541 = vmul.f32 %v449, %v496
      %v542 = vmul.f32 %v450, %v496
      %v543 = vmul.f32 %v451, %v496
      %v544 = vmul.f32 %v452, %v496
      %v545 = vmul.f32 %v453, %v496
      %v546 = vmul.f32 %v454, %v496
      %v547 = vmul.f32 %v455, %v496
      %v548 = vmul.f32 %v456, %v496
      %v549 = vmul.f32 %v457, %v496
      %v550 = vmul.f32 %v458, %v496
      %v551 = vmul.f32 %v459, %v496
      %v552 = vmul.f32 %v460, %v496
      %v553 = vmul.f32 %v461, %v496
      %v554 = vmul.f32 %v462, %v496
      %v555 = vmul.f32 %v463, %v496
      %v556 = vmul.f32 %v464, %v496
      %v557 = vmul.f32 %v465, %v496
      %v558 = vmul.f32 %v466, %v496
      %v559 = vmul.f32 %v467, %v496
      %v560 = vmul.f32 %v468, %v496
      %v561 = vmul.f32 %v469, %v496
      %v562 = vmul.f32 %v470, %v496
      %v563 = vmul.f32 %v471, %v496
      %v564 = vmul.f32 %v472, %v496
      %v565 = vmul.f32 %v473, %v496
      %v566 = vmul.f32 %v474, %v496
      %v567 = vmul.f32 %v475, %v496
      %v568 = vmul.f32 %v476, %v496
      %v569 = vmul.f32 %v477, %v496
      %v570 = vmul.f32 %v478, %v496
      %v571 = vmul.f32 %v479, %v496
      %v572 = vmul.f32 %v480, %v496
      %v573 = vmul.f32 %v481, %v496
      %v574 = vmul.f32 %v482, %v496
      %v575 = vmul.f32 %v483, %v496
      %v576 = vmul.f32 %v484, %v496
      %v577 = vmul.f32 %v485, %v496
      %v578 = vmul.f32 %v486, %v496
      %v579 = vmul.f32 %v487, %v496
      %v580 = vmul.f32 %v488, %v496
      %v581 = vmul.f32 %v489, %v496
      %v582 = vmul.f32 %v490, %v496
      %v583 = vmul.f32 %v491, %v496
      %v584 = vmul.f32 %v492, %v496
      %v585 = vlaneseq
      %v586 = vshrl.u32 %v585, 7
      %v587 = vsub.s32 0, %v586
      %v588 = vrot.slane %v404, %v587
      %v589 = vadd.f32 %v497, %v588
      %v590 = vadd.f32 %v498, %v588
      %v591 = vadd.f32 %v499, %v588
      %v592 = vadd.f32 %v500, %v588
      %v593 = vadd.f32 %v501, %v588
      %v594 = vadd.f32 %v502, %v588
      %v595 = vadd.f32 %v503, %v588
      %v596 = vadd.f32 %v504, %v588
      %v597 = vadd.f32 %v505, %v588
      %v598 = vadd.f32 %v506, %v588
      %v599 = vadd.f32 %v507, %v588
      %v600 = vadd.f32 %v508, %v588
      %v601 = vadd.f32 %v509, %v588
      %v602 = vadd.f32 %v510, %v588
      %v603 = vadd.f32 %v511, %v588
      %v604 = vadd.f32 %v512, %v588
      %v605 = vadd.f32 %v513, %v588
      %v606 = vadd.f32 %v514, %v588
      %v607 = vadd.f32 %v515, %v588
      %v608 = vadd.f32 %v516, %v588
      %v609 = vadd.f32 %v517, %v588
      %v610 = vadd.f32 %v518, %v588
      %v611 = vadd.f32 %v519, %v588
      %v612 = vadd.f32 %v520, %v588
      %v613 = vadd.f32 %v521, %v588
      %v614 = vadd.f32 %v522, %v588
      %v615 = vadd.f32 %v523, %v588
      %v616 = vadd.f32 %v524, %v588
      %v617 = vadd.f32 %v525, %v588
      %v618 = vadd.f32 %v526, %v588
      %v619 = vadd.f32 %v527, %v588
      %v620 = vadd.f32 %v528, %v588
      %v621 = vadd.f32 %v529, %v588
      %v622 = vadd.f32 %v530, %v588
      %v623 = vadd.f32 %v531, %v588
      %v624 = vadd.f32 %v532, %v588
      %v625 = vadd.f32 %v533, %v588
      %v626 = vadd.f32 %v534, %v588
      %v627 = vadd.f32 %v535, %v588
      %v628 = vadd.f32 %v536, %v588
      %v629 = vadd.f32 %v537, %v588
      %v630 = vadd.f32 %v538, %v588
      %v631 = vadd.f32 %v539, %v588
      %v632 = vadd.f32 %v540, %v588
      %v633 = vadd.f32 %v541, %v588
      %v634 = vadd.f32 %v542, %v588
      %v635 = vadd.f32 %v543, %v588
      %v636 = vadd.f32 %v544, %v588
      %v637 = vadd.f32 %v545, %v588
      %v638 = vadd.f32 %v546, %v588
      %v639 = vadd.f32 %v547, %v588
      %v640 = vadd.f32 %v548, %v588
      %v641 = vadd.f32 %v549, %v588
      %v642 = vadd.f32 %v550, %v588
      %v643 = vadd.f32 %v551, %v588
      %v644 = vadd.f32 %v552, %v588
      %v645 = vadd.f32 %v553, %v588
      %v646 = vadd.f32 %v554, %v588
      %v647 = vadd.f32 %v555, %v588
      %v648 = vadd.f32 %v556, %v588
      %v649 = vadd.f32 %v557, %v588
      %v650 = vadd.f32 %v558, %v588
      %v651 = vadd.f32 %v559, %v588
      %v652 = vadd.f32 %v560, %v588
      %v653 = vadd.f32 %v561, %v588
      %v654 = vadd.f32 %v562, %v588
      %v655 = vadd.f32 %v563, %v588
      %v656 = vadd.f32 %v564, %v588
      %v657 = vadd.f32 %v565, %v588
      %v658 = vadd.f32 %v566, %v588
      %v659 = vadd.f32 %v567, %v588
      %v660 = vadd.f32 %v568, %v588
      %v661 = vadd.f32 %v569, %v588
      %v662 = vadd.f32 %v570, %v588
      %v663 = vadd.f32 %v571, %v588
      %v664 = vadd.f32 %v572, %v588
      %v665 = vadd.f32 %v573, %v588
      %v666 = vadd.f32 %v574, %v588
      %v667 = vadd.f32 %v575, %v588
      %v668 = vadd.f32 %v576, %v588
      %v669 = vadd.f32 %v577, %v588
      %v670 = vadd.f32 %v578, %v588
      %v671 = vadd.f32 %v579, %v588
      %v672 = vadd.f32 %v580, %v588
      %v673 = vadd.f32 %v581, %v588
      %v674 = vadd.f32 %v582, %v588
      %v675 = vadd.f32 %v583, %v588
      %v676 = vadd.f32 %v584, %v588
      %v677 = vmax.f32 %v589, 0.0
      %v678 = vmax.f32 %v590, 0.0
      %v679 = vmax.f32 %v591, 0.0
      %v680 = vmax.f32 %v592, 0.0
      %v681 = vmax.f32 %v593, 0.0
      %v682 = vmax.f32 %v594, 0.0
      %v683 = vmax.f32 %v595, 0.0
      %v684 = vmax.f32 %v596, 0.0
      %v685 = vmax.f32 %v597, 0.0
      %v686 = vmax.f32 %v598, 0.0
      %v687 = vmax.f32 %v599, 0.0
      %v688 = vmax.f32 %v600, 0.0
      %v689 = vmax.f32 %v601, 0.0
      %v690 = vmax.f32 %v602, 0.0
      %v691 = vmax.f32 %v603, 0.0
      %v692 = vmax.f32 %v604, 0.0
      %v693 = vmax.f32 %v605, 0.0
      %v694 = vmax.f32 %v606, 0.0
      %v695 = vmax.f32 %v607, 0.0
      %v696 = vmax.f32 %v608, 0.0
      %v697 = vmax.f32 %v609, 0.0
      %v698 = vmax.f32 %v610, 0.0
      %v699 = vmax.f32 %v611, 0.0
      %v700 = vmax.f32 %v612, 0.0
      %v701 = vmax.f32 %v613, 0.0
      %v702 = vmax.f32 %v614, 0.0
      %v703 = vmax.f32 %v615, 0.0
      %v704 = vmax.f32 %v616, 0.0
      %v705 = vmax.f32 %v617, 0.0
      %v706 = vmax.f32 %v618, 0.0
      %v707 = vmax.f32 %v619, 0.0
      %v708 = vmax.f32 %v620, 0.0
      %v709 = vmax.f32 %v621, 0.0
      %v710 = vmax.f32 %v622, 0.0
      %v711 = vmax.f32 %v623, 0.0
      %v712 = vmax.f32 %v624, 0.0
      %v713 = vmax.f32 %v625, 0.0
      %v714 = vmax.f32 %v626, 0.0
      %v715 = vmax.f32 %v627, 0.0
      %v716 = vmax.f32 %v628, 0.0
      %v717 = vmax.f32 %v629, 0.0
      %v718 = vmax.f32 %v630, 0.0
      %v719 = vmax.f32 %v631, 0.0
      %v720 = vmax.f32 %v632, 0.0
      %v721 = vmax.f32 %v633, 0.0
      %v722 = vmax.f32 %v634, 0.0
      %v723 = vmax.f32 %v635, 0.0
      %v724 = vmax.f32 %v636, 0.0
      %v725 = vmax.f32 %v637, 0.0
      %v726 = vmax.f32 %v638, 0.0
      %v727 = vmax.f32 %v639, 0.0
      %v728 = vmax.f32 %v640, 0.0
      %v729 = vmax.f32 %v641, 0.0
      %v730 = vmax.f32 %v642, 0.0
      %v731 = vmax.f32 %v643, 0.0
      %v732 = vmax.f32 %v644, 0.0
      %v733 = vmax.f32 %v645, 0.0
      %v734 = vmax.f32 %v646, 0.0
      %v735 = vmax.f32 %v647, 0.0
      %v736 = vmax.f32 %v648, 0.0
      %v737 = vmax.f32 %v649, 0.0
      %v738 = vmax.f32 %v650, 0.0
      %v739 = vmax.f32 %v651, 0.0
      %v740 = vmax.f32 %v652, 0.0
      %v741 = vmax.f32 %v653, 0.0
      %v742 = vmax.f32 %v654, 0.0
      %v743 = vmax.f32 %v655, 0.0
      %v744 = vmax.f32 %v656, 0.0
      %v745 = vmax.f32 %v657, 0.0
      %v746 = vmax.f32 %v658, 0.0
      %v747 = vmax.f32 %v659, 0.0
      %v748 = vmax.f32 %v660, 0.0
      %v749 = vmax.f32 %v661, 0.0
      %v750 = vmax.f32 %v662, 0.0
      %v751 = vmax.f32 %v663, 0.0
      %v752 = vmax.f32 %v664, 0.0
      %v753 = vmax.f32 %v665, 0.0
      %v754 = vmax.f32 %v666, 0.0
      %v755 = vmax.f32 %v667, 0.0
      %v756 = vmax.f32 %v668, 0.0
      %v757 = vmax.f32 %v669, 0.0
      %v758 = vmax.f32 %v670, 0.0
      %v759 = vmax.f32 %v671, 0.0
      %v760 = vmax.f32 %v672, 0.0
      %v761 = vmax.f32 %v673, 0.0
      %v762 = vmax.f32 %v674, 0.0
      %v763 = vmax.f32 %v675, 0.0
      %v764 = vmax.f32 %v676, 0.0
      %v765 = vpack.c.bf16 %v678, %v677
      %v766 = vpack.c.bf16 %v680, %v679
      %v767 = vpack.c.bf16 %v682, %v681
      %v768 = vpack.c.bf16 %v684, %v683
      %v769 = vpack.c.bf16 %v686, %v685
      %v770 = vpack.c.bf16 %v688, %v687
      %v771 = vpack.c.bf16 %v690, %v689
      %v772 = vpack.c.bf16 %v692, %v691
      %v773 = vpack.c.bf16 %v694, %v693
      %v774 = vpack.c.bf16 %v696, %v695
      %v775 = vpack.c.bf16 %v698, %v697
      %v776 = vpack.c.bf16 %v700, %v699
      %v777 = vpack.c.bf16 %v702, %v701
      %v778 = vpack.c.bf16 %v704, %v703
      %v779 = vpack.c.bf16 %v706, %v705
      %v780 = vpack.c.bf16 %v708, %v707
      %v781 = vpack.c.bf16 %v710, %v709
      %v782 = vpack.c.bf16 %v712, %v711
      %v783 = vpack.c.bf16 %v714, %v713
      %v784 = vpack.c.bf16 %v716, %v715
      %v785 = vpack.c.bf16 %v718, %v717
      %v786 = vpack.c.bf16 %v720, %v719
      %v787 = vpack.c.bf16 %v722, %v721
      %v788 = vpack.c.bf16 %v724, %v723
      %v789 = vpack.c.bf16 %v726, %v725
      %v790 = vpack.c.bf16 %v728, %v727
      %v791 = vpack.c.bf16 %v730, %v729
      %v792 = vpack.c.bf16 %v732, %v731
      %v793 = vpack.c.bf16 %v734, %v733
      %v794 = vpack.c.bf16 %v736, %v735
      %v795 = vpack.c.bf16 %v738, %v737
      %v796 = vpack.c.bf16 %v740, %v739
      %v797 = vpack.c.bf16 %v742, %v741
      %v798 = vpack.c.bf16 %v744, %v743
      %v799 = vpack.c.bf16 %v746, %v745
      %v800 = vpack.c.bf16 %v748, %v747
      %v801 = vpack.c.bf16 %v750, %v749
      %v802 = vpack.c.bf16 %v752, %v751
      %v803 = vpack.c.bf16 %v754, %v753
      %v804 = vpack.c.bf16 %v756, %v755
      %v805 = vpack.c.bf16 %v758, %v757
      %v806 = vpack.c.bf16 %v760, %v759
      %v807 = vpack.c.bf16 %v762, %v761
      %v808 = vpack.c.bf16 %v764, %v763
      %vm809 = vsmask.f32 4352
      %v811 = vshrl.u32 %v765, 16
      %v813 = vrot.slane %v811, 3
      %v814 = vshll.u32 %v765, 16
      %v816 = vrot.slane %v814, 4
      %v817 = vor.u32 %v813, %v816
      %v819 = vshrl.u32 %v766, 16
      %v821 = vrot.slane %v819, 3
      %v822 = vshll.u32 %v766, 16
      %v824 = vrot.slane %v822, 4
      %v825 = vor.u32 %v821, %v824
      %v826 = vsel %vm809, %v817, %v825
      %v828 = vshrl.u32 %v767, 16
      %v830 = vrot.slane %v828, 3
      %v831 = vshll.u32 %v767, 16
      %v833 = vrot.slane %v831, 4
      %v834 = vor.u32 %v830, %v833
      %v836 = vshrl.u32 %v768, 16
      %v838 = vrot.slane %v836, 3
      %v839 = vshll.u32 %v768, 16
      %v841 = vrot.slane %v839, 4
      %v842 = vor.u32 %v838, %v841
      %v843 = vsel %vm809, %v834, %v842
      %v845 = vshrl.u32 %v769, 16
      %v847 = vrot.slane %v845, 3
      %v848 = vshll.u32 %v769, 16
      %v850 = vrot.slane %v848, 4
      %v851 = vor.u32 %v847, %v850
      %v853 = vshrl.u32 %v770, 16
      %v855 = vrot.slane %v853, 3
      %v856 = vshll.u32 %v770, 16
      %v858 = vrot.slane %v856, 4
      %v859 = vor.u32 %v855, %v858
      %v860 = vsel %vm809, %v851, %v859
      %v862 = vshrl.u32 %v771, 16
      %v864 = vrot.slane %v862, 3
      %v865 = vshll.u32 %v771, 16
      %v867 = vrot.slane %v865, 4
      %v868 = vor.u32 %v864, %v867
      %v870 = vshrl.u32 %v772, 16
      %v872 = vrot.slane %v870, 3
      %v873 = vshll.u32 %v772, 16
      %v875 = vrot.slane %v873, 4
      %v876 = vor.u32 %v872, %v875
      %v877 = vsel %vm809, %v868, %v876
      %v879 = vshrl.u32 %v773, 16
      %v881 = vrot.slane %v879, 3
      %v882 = vshll.u32 %v773, 16
      %v884 = vrot.slane %v882, 4
      %v885 = vor.u32 %v881, %v884
      %v887 = vshrl.u32 %v774, 16
      %v889 = vrot.slane %v887, 3
      %v890 = vshll.u32 %v774, 16
      %v892 = vrot.slane %v890, 4
      %v893 = vor.u32 %v889, %v892
      %v894 = vsel %vm809, %v885, %v893
      %v896 = vshrl.u32 %v775, 16
      %v898 = vrot.slane %v896, 3
      %v899 = vshll.u32 %v775, 16
      %v901 = vrot.slane %v899, 4
      %v902 = vor.u32 %v898, %v901
      %v904 = vshrl.u32 %v776, 16
      %v906 = vrot.slane %v904, 3
      %v907 = vshll.u32 %v776, 16
      %v909 = vrot.slane %v907, 4
      %v910 = vor.u32 %v906, %v909
      %v911 = vsel %vm809, %v902, %v910
      %v913 = vshrl.u32 %v777, 16
      %v915 = vrot.slane %v913, 3
      %v916 = vshll.u32 %v777, 16
      %v918 = vrot.slane %v916, 4
      %v919 = vor.u32 %v915, %v918
      %v921 = vshrl.u32 %v778, 16
      %v923 = vrot.slane %v921, 3
      %v924 = vshll.u32 %v778, 16
      %v926 = vrot.slane %v924, 4
      %v927 = vor.u32 %v923, %v926
      %v928 = vsel %vm809, %v919, %v927
      %v930 = vshrl.u32 %v779, 16
      %v932 = vrot.slane %v930, 3
      %v933 = vshll.u32 %v779, 16
      %v935 = vrot.slane %v933, 4
      %v936 = vor.u32 %v932, %v935
      %v938 = vshrl.u32 %v780, 16
      %v940 = vrot.slane %v938, 3
      %v941 = vshll.u32 %v780, 16
      %v943 = vrot.slane %v941, 4
      %v944 = vor.u32 %v940, %v943
      %v945 = vsel %vm809, %v936, %v944
      %v947 = vshrl.u32 %v781, 16
      %v949 = vrot.slane %v947, 3
      %v950 = vshll.u32 %v781, 16
      %v952 = vrot.slane %v950, 4
      %v953 = vor.u32 %v949, %v952
      %v955 = vshrl.u32 %v782, 16
      %v957 = vrot.slane %v955, 3
      %v958 = vshll.u32 %v782, 16
      %v960 = vrot.slane %v958, 4
      %v961 = vor.u32 %v957, %v960
      %v962 = vsel %vm809, %v953, %v961
      %v964 = vshrl.u32 %v783, 16
      %v966 = vrot.slane %v964, 3
      %v967 = vshll.u32 %v783, 16
      %v969 = vrot.slane %v967, 4
      %v970 = vor.u32 %v966, %v969
      %v972 = vshrl.u32 %v784, 16
      %v974 = vrot.slane %v972, 3
      %v975 = vshll.u32 %v784, 16
      %v977 = vrot.slane %v975, 4
      %v978 = vor.u32 %v974, %v977
      %v979 = vsel %vm809, %v970, %v978
      %v981 = vshrl.u32 %v785, 16
      %v983 = vrot.slane %v981, 3
      %v984 = vshll.u32 %v785, 16
      %v986 = vrot.slane %v984, 4
      %v987 = vor.u32 %v983, %v986
      %v989 = vshrl.u32 %v786, 16
      %v991 = vrot.slane %v989, 3
      %v992 = vshll.u32 %v786, 16
      %v994 = vrot.slane %v992, 4
      %v995 = vor.u32 %v991, %v994
      %v996 = vsel %vm809, %v987, %v995
      %v998 = vshrl.u32 %v787, 16
      %v1000 = vrot.slane %v998, 3
      %v1001 = vshll.u32 %v787, 16
      %v1003 = vrot.slane %v1001, 4
      %v1004 = vor.u32 %v1000, %v1003
      %v1006 = vshrl.u32 %v788, 16
      %v1008 = vrot.slane %v1006, 3
      %v1009 = vshll.u32 %v788, 16
      %v1011 = vrot.slane %v1009, 4
      %v1012 = vor.u32 %v1008, %v1011
      %v1013 = vsel %vm809, %v1004, %v1012
      %v1015 = vshrl.u32 %v789, 16
      %v1017 = vrot.slane %v1015, 3
      %v1018 = vshll.u32 %v789, 16
      %v1020 = vrot.slane %v1018, 4
      %v1021 = vor.u32 %v1017, %v1020
      %v1023 = vshrl.u32 %v790, 16
      %v1025 = vrot.slane %v1023, 3
      %v1026 = vshll.u32 %v790, 16
      %v1028 = vrot.slane %v1026, 4
      %v1029 = vor.u32 %v1025, %v1028
      %v1030 = vsel %vm809, %v1021, %v1029
      %v1032 = vshrl.u32 %v791, 16
      %v1034 = vrot.slane %v1032, 3
      %v1035 = vshll.u32 %v791, 16
      %v1037 = vrot.slane %v1035, 4
      %v1038 = vor.u32 %v1034, %v1037
      %v1040 = vshrl.u32 %v792, 16
      %v1042 = vrot.slane %v1040, 3
      %v1043 = vshll.u32 %v792, 16
      %v1045 = vrot.slane %v1043, 4
      %v1046 = vor.u32 %v1042, %v1045
      %v1047 = vsel %vm809, %v1038, %v1046
      %v1049 = vshrl.u32 %v793, 16
      %v1051 = vrot.slane %v1049, 3
      %v1052 = vshll.u32 %v793, 16
      %v1054 = vrot.slane %v1052, 4
      %v1055 = vor.u32 %v1051, %v1054
      %v1057 = vshrl.u32 %v794, 16
      %v1059 = vrot.slane %v1057, 3
      %v1060 = vshll.u32 %v794, 16
      %v1062 = vrot.slane %v1060, 4
      %v1063 = vor.u32 %v1059, %v1062
      %v1064 = vsel %vm809, %v1055, %v1063
      %v1066 = vshrl.u32 %v795, 16
      %v1068 = vrot.slane %v1066, 3
      %v1069 = vshll.u32 %v795, 16
      %v1071 = vrot.slane %v1069, 4
      %v1072 = vor.u32 %v1068, %v1071
      %v1074 = vshrl.u32 %v796, 16
      %v1076 = vrot.slane %v1074, 3
      %v1077 = vshll.u32 %v796, 16
      %v1079 = vrot.slane %v1077, 4
      %v1080 = vor.u32 %v1076, %v1079
      %v1081 = vsel %vm809, %v1072, %v1080
      %v1083 = vshrl.u32 %v797, 16
      %v1085 = vrot.slane %v1083, 3
      %v1086 = vshll.u32 %v797, 16
      %v1088 = vrot.slane %v1086, 4
      %v1089 = vor.u32 %v1085, %v1088
      %v1091 = vshrl.u32 %v798, 16
      %v1093 = vrot.slane %v1091, 3
      %v1094 = vshll.u32 %v798, 16
      %v1096 = vrot.slane %v1094, 4
      %v1097 = vor.u32 %v1093, %v1096
      %v1098 = vsel %vm809, %v1089, %v1097
      %v1100 = vshrl.u32 %v799, 16
      %v1102 = vrot.slane %v1100, 3
      %v1103 = vshll.u32 %v799, 16
      %v1105 = vrot.slane %v1103, 4
      %v1106 = vor.u32 %v1102, %v1105
      %v1108 = vshrl.u32 %v800, 16
      %v1110 = vrot.slane %v1108, 3
      %v1111 = vshll.u32 %v800, 16
      %v1113 = vrot.slane %v1111, 4
      %v1114 = vor.u32 %v1110, %v1113
      %v1115 = vsel %vm809, %v1106, %v1114
      %v1117 = vshrl.u32 %v801, 16
      %v1119 = vrot.slane %v1117, 3
      %v1120 = vshll.u32 %v801, 16
      %v1122 = vrot.slane %v1120, 4
      %v1123 = vor.u32 %v1119, %v1122
      %v1125 = vshrl.u32 %v802, 16
      %v1127 = vrot.slane %v1125, 3
      %v1128 = vshll.u32 %v802, 16
      %v1130 = vrot.slane %v1128, 4
      %v1131 = vor.u32 %v1127, %v1130
      %v1132 = vsel %vm809, %v1123, %v1131
      %v1134 = vshrl.u32 %v803, 16
      %v1136 = vrot.slane %v1134, 3
      %v1137 = vshll.u32 %v803, 16
      %v1139 = vrot.slane %v1137, 4
      %v1140 = vor.u32 %v1136, %v1139
      %v1142 = vshrl.u32 %v804, 16
      %v1144 = vrot.slane %v1142, 3
      %v1145 = vshll.u32 %v804, 16
      %v1147 = vrot.slane %v1145, 4
      %v1148 = vor.u32 %v1144, %v1147
      %v1149 = vsel %vm809, %v1140, %v1148
      %v1170 = vld [vmem:[%s3] sm:$0x3]
      %vm1211 = vcmask 1043456
      %v1212 = vrot.slane %v765, 4
      %v1213 = vrot.slane %v766, 4
      %v1214 = vsel %vm1211, %v1212, %v1213
      %v1215 = vrot.slane %v767, 4
      %v1216 = vrot.slane %v768, 4
      %v1217 = vsel %vm1211, %v1215, %v1216
      %v1218 = vrot.slane %v769, 4
      %v1219 = vrot.slane %v770, 4
      %v1220 = vsel %vm1211, %v1218, %v1219
      %v1221 = vrot.slane %v771, 4
      %v1222 = vrot.slane %v772, 4
      %v1223 = vsel %vm1211, %v1221, %v1222
      %v1224 = vrot.slane %v773, 4
      %v1225 = vrot.slane %v774, 4
      %v1226 = vsel %vm1211, %v1224, %v1225
      %v1227 = vrot.slane %v775, 4
      %v1228 = vrot.slane %v776, 4
      %v1229 = vsel %vm1211, %v1227, %v1228
      %v1230 = vrot.slane %v777, 4
      %v1231 = vrot.slane %v778, 4
      %v1232 = vsel %vm1211, %v1230, %v1231
      %v1233 = vrot.slane %v779, 4
      %v1234 = vrot.slane %v780, 4
      %v1235 = vsel %vm1211, %v1233, %v1234
      %v1236 = vrot.slane %v781, 4
      %v1237 = vrot.slane %v782, 4
      %v1238 = vsel %vm1211, %v1236, %v1237
      %v1239 = vrot.slane %v783, 4
      %v1240 = vrot.slane %v784, 4
      %v1241 = vsel %vm1211, %v1239, %v1240
      %v1242 = vrot.slane %v785, 4
      %v1243 = vrot.slane %v786, 4
      %v1244 = vsel %vm1211, %v1242, %v1243
      %v1245 = vrot.slane %v787, 4
      %v1246 = vrot.slane %v788, 4
      %v1247 = vsel %vm1211, %v1245, %v1246
      %v1248 = vrot.slane %v789, 4
      %v1249 = vrot.slane %v790, 4
      %v1250 = vsel %vm1211, %v1248, %v1249
      %v1251 = vrot.slane %v791, 4
      %v1252 = vrot.slane %v792, 4
      %v1253 = vsel %vm1211, %v1251, %v1252
      %v1254 = vrot.slane %v793, 4
      %v1255 = vrot.slane %v794, 4
      %v1256 = vsel %vm1211, %v1254, %v1255
      %v1257 = vrot.slane %v795, 4
      %v1258 = vrot.slane %v796, 4
      %v1259 = vsel %vm1211, %v1257, %v1258
      %v1260 = vrot.slane %v797, 4
      %v1261 = vrot.slane %v798, 4
      %v1262 = vsel %vm1211, %v1260, %v1261
      %v1263 = vrot.slane %v799, 4
      %v1264 = vrot.slane %v800, 4
      %v1265 = vsel %vm1211, %v1263, %v1264
      %v1266 = vrot.slane %v801, 4
      %v1267 = vrot.slane %v802, 4
      %v1268 = vsel %vm1211, %v1266, %v1267
      %v1269 = vrot.slane %v803, 4
      %v1270 = vrot.slane %v804, 4
      %v1271 = vsel %vm1211, %v1269, %v1270
      %s1292 = scalar_lea.vmem %s3, 2
      %v1293 = vld [vmem:[%s1292] sm:$0x3]
      %1294 = vmatprep.subr.bf16.mxu0 0
      %1295 = vmatpush1.bf16.xpose.msra.mxu0 %v1293
      %1296 = vmatprep.subr.bf16.mxu0 0
      %1297 = vmatpush1.bf16.xpose.msra.mxu0 0
      %1298 = vmatprep.subr.bf16.mxu0 0
      %1299 = vmatpush1.bf16.xpose.msra.mxu0 0
      %1300 = vmatprep.subr.bf16.mxu0 0
      %1301 = vmatpush1.bf16.xpose.msra.mxu0 0
      %1302 = vmatprep.subr.bf16.mxu0 0
      %1303 = vmatpush1.bf16.xpose.msra.mxu0 0
      %1304 = vmatprep.subr.bf16.mxu0 0
      %1305 = vmatpush1.bf16.xpose.msra.mxu0 0
      %1306 = vmatprep.subr.bf16.mxu0 0
      %1307 = vmatpush1.bf16.xpose.msra.mxu0 0
      %1308 = vmatprep.subr.bf16.mxu0 0
      %1309 = vmatpush1.bf16.xpose.msra.mxu0 0
      %1310 = vmatprep.subr.bf16.mxu0 0
      %1311 = vmatpush1.bf16.xpose.msra.mxu0 0
      %1312 = vmatprep.subr.bf16.mxu0 0
      %1313 = vmatpush1.bf16.xpose.msra.mxu0 0
      %1314 = vmatprep.subr.bf16.mxu0 0
      %1315 = vmatpush1.bf16.xpose.msra.mxu0 0
      %1316 = vmatprep.subr.bf16.mxu0 0
      %1317 = vmatpush1.bf16.xpose.msra.mxu0 0
      %1318 = vmatprep.subr.bf16.mxu0 0
      %1319 = vmatpush1.bf16.xpose.msra.mxu0 0
      %1320 = vmatprep.subr.bf16.mxu0 0
      %1321 = vmatpush1.bf16.xpose.msra.mxu0 0
      %1322 = vmatprep.subr.bf16.mxu0 0
      %1323 = vmatpush1.bf16.xpose.msra.mxu0 0
      %1324 = vmatprep.subr.bf16.mxu0 0
      %1325 = vmatpush1.bf16.xpose.msra.mxu0 0
      %1326 = vmatprep.mubr.bf16.mxu0 0
      %1327 = vmatmul.mubr.bf16.gmra.mrb[0].mxu0 %v1214
      %v1328 = vpop.f32.mrb[0].mxu0
      %v1329 = vadd.f32 0.0, %v1328
      %v1330 = vpop.f32.mrb[0].mxu0
      %v1331 = vpop.f32.mrb[0].mxu0
      %v1332 = vadd.f32 0.0, %v1331
      %v1333 = vpop.f32.mrb[0].mxu0
      %1334 = vmatprep.mubr.bf16.mxu0 0
      %1335 = vmatmul.mubr.bf16.gmra.mrb[0].mxu0 %v1217
      %v1336 = vpop.f32.mrb[0].mxu0
      %v1337 = vadd.f32 0.0, %v1336
      %v1338 = vpop.f32.mrb[0].mxu0
      %v1339 = vpop.f32.mrb[0].mxu0
      %v1340 = vadd.f32 0.0, %v1339
      %v1341 = vpop.f32.mrb[0].mxu0
      %1342 = vmatprep.mubr.bf16.mxu0 0
      %1343 = vmatmul.mubr.bf16.gmra.mrb[0].mxu0 %v1220
      %v1344 = vpop.f32.mrb[0].mxu0
      %v1345 = vadd.f32 0.0, %v1344
      %v1346 = vpop.f32.mrb[0].mxu0
      %v1347 = vpop.f32.mrb[0].mxu0
      %v1348 = vadd.f32 0.0, %v1347
      %v1349 = vpop.f32.mrb[0].mxu0
      %1350 = vmatprep.mubr.bf16.mxu0 0
      %1351 = vmatmul.mubr.bf16.gmra.mrb[0].mxu0 %v1223
      %v1352 = vpop.f32.mrb[0].mxu0
      %v1353 = vadd.f32 0.0, %v1352
      %v1354 = vpop.f32.mrb[0].mxu0
      %v1355 = vpop.f32.mrb[0].mxu0
      %v1356 = vadd.f32 0.0, %v1355
      %v1357 = vpop.f32.mrb[0].mxu0
      %1358 = vmatprep.mubr.bf16.mxu0 0
      %1359 = vmatmul.mubr.bf16.gmra.mrb[0].mxu0 %v1226
      %v1360 = vpop.f32.mrb[0].mxu0
      %v1361 = vadd.f32 0.0, %v1360
      %v1362 = vpop.f32.mrb[0].mxu0
      %v1363 = vpop.f32.mrb[0].mxu0
      %v1364 = vadd.f32 0.0, %v1363
      %v1365 = vpop.f32.mrb[0].mxu0
      %1366 = vmatprep.mubr.bf16.mxu0 0
      %1367 = vmatmul.mubr.bf16.gmra.mrb[0].mxu0 %v1229
      %v1368 = vpop.f32.mrb[0].mxu0
      %v1369 = vadd.f32 0.0, %v1368
      %v1370 = vpop.f32.mrb[0].mxu0
      %v1371 = vpop.f32.mrb[0].mxu0
      %v1372 = vadd.f32 0.0, %v1371
      %v1373 = vpop.f32.mrb[0].mxu0
      %1374 = vmatprep.mubr.bf16.mxu0 0
      %1375 = vmatmul.mubr.bf16.gmra.mrb[0].mxu0 %v1232
      %v1376 = vpop.f32.mrb[0].mxu0
      %v1377 = vadd.f32 0.0, %v1376
      %v1378 = vpop.f32.mrb[0].mxu0
      %v1379 = vpop.f32.mrb[0].mxu0
      %v1380 = vadd.f32 0.0, %v1379
      %v1381 = vpop.f32.mrb[0].mxu0
      %1382 = vmatprep.mubr.bf16.mxu0 0
      %1383 = vmatmul.mubr.bf16.gmra.mrb[0].mxu0 %v1235
      %v1384 = vpop.f32.mrb[0].mxu0
      %v1385 = vadd.f32 0.0, %v1384
      %v1386 = vpop.f32.mrb[0].mxu0
      %v1387 = vpop.f32.mrb[0].mxu0
      %v1388 = vadd.f32 0.0, %v1387
      %v1389 = vpop.f32.mrb[0].mxu0
      %1390 = vmatprep.mubr.bf16.mxu0 0
      %1391 = vmatmul.mubr.bf16.gmra.mrb[0].mxu0 %v1238
      %v1392 = vpop.f32.mrb[0].mxu0
      %v1393 = vadd.f32 0.0, %v1392
      %v1394 = vpop.f32.mrb[0].mxu0
      %v1395 = vpop.f32.mrb[0].mxu0
      %v1396 = vadd.f32 0.0, %v1395
      %v1397 = vpop.f32.mrb[0].mxu0
      %1398 = vmatprep.mubr.bf16.mxu0 0
      %1399 = vmatmul.mubr.bf16.gmra.mrb[0].mxu0 %v1241
      %v1400 = vpop.f32.mrb[0].mxu0
      %v1401 = vadd.f32 0.0, %v1400
      %v1402 = vpop.f32.mrb[0].mxu0
      %v1403 = vpop.f32.mrb[0].mxu0
      %v1404 = vadd.f32 0.0, %v1403
      %v1405 = vpop.f32.mrb[0].mxu0
      %1406 = vmatprep.mubr.bf16.mxu0 0
      %1407 = vmatmul.mubr.bf16.gmra.mrb[0].mxu0 %v1244
      %v1408 = vpop.f32.mrb[0].mxu0
      %v1409 = vadd.f32 0.0, %v1408
      %v1410 = vpop.f32.mrb[0].mxu0
      %v1411 = vpop.f32.mrb[0].mxu0
      %v1412 = vadd.f32 0.0, %v1411
      %v1413 = vpop.f32.mrb[0].mxu0
      %1414 = vmatprep.mubr.bf16.mxu0 0
      %1415 = vmatmul.mubr.bf16.gmra.mrb[0].mxu0 %v1247
      %v1416 = vpop.f32.mrb[0].mxu0
      %v1417 = vadd.f32 0.0, %v1416
      %v1418 = vpop.f32.mrb[0].mxu0
      %v1419 = vpop.f32.mrb[0].mxu0
      %v1420 = vadd.f32 0.0, %v1419
      %v1421 = vpop.f32.mrb[0].mxu0
      %1422 = vmatprep.mubr.bf16.mxu0 0
      %1423 = vmatmul.mubr.bf16.gmra.mrb[0].mxu0 %v1250
      %v1424 = vpop.f32.mrb[0].mxu0
      %v1425 = vadd.f32 0.0, %v1424
      %v1426 = vpop.f32.mrb[0].mxu0
      %v1427 = vpop.f32.mrb[0].mxu0
      %v1428 = vadd.f32 0.0, %v1427
      %v1429 = vpop.f32.mrb[0].mxu0
      %1430 = vmatprep.mubr.bf16.mxu0 0
      %1431 = vmatmul.mubr.bf16.gmra.mrb[0].mxu0 %v1253
      %v1432 = vpop.f32.mrb[0].mxu0
      %v1433 = vadd.f32 0.0, %v1432
      %v1434 = vpop.f32.mrb[0].mxu0
      %v1435 = vpop.f32.mrb[0].mxu0
      %v1436 = vadd.f32 0.0, %v1435
      %v1437 = vpop.f32.mrb[0].mxu0
      %1438 = vmatprep.mubr.bf16.mxu0 0
      %1439 = vmatmul.mubr.bf16.gmra.mrb[0].mxu0 %v1256
      %v1440 = vpop.f32.mrb[0].mxu0
      %v1441 = vadd.f32 0.0, %v1440
      %v1442 = vpop.f32.mrb[0].mxu0
      %v1443 = vpop.f32.mrb[0].mxu0
      %v1444 = vadd.f32 0.0, %v1443
      %v1445 = vpop.f32.mrb[0].mxu0
      %1446 = vmatprep.mubr.bf16.mxu0 0
      %1447 = vmatmul.mubr.bf16.gmra.mrb[0].mxu0 %v1259
      %v1448 = vpop.f32.mrb[0].mxu0
      %v1449 = vadd.f32 0.0, %v1448
      %v1450 = vpop.f32.mrb[0].mxu0
      %v1451 = vpop.f32.mrb[0].mxu0
      %v1452 = vadd.f32 0.0, %v1451
      %v1453 = vpop.f32.mrb[0].mxu0
      %1454 = vmatprep.mubr.bf16.mxu0 0
      %1455 = vmatmul.mubr.bf16.gmra.mrb[0].mxu0 %v1262
      %v1456 = vpop.f32.mrb[0].mxu0
      %v1457 = vadd.f32 0.0, %v1456
      %v1458 = vpop.f32.mrb[0].mxu0
      %v1459 = vpop.f32.mrb[0].mxu0
      %v1460 = vadd.f32 0.0, %v1459
      %v1461 = vpop.f32.mrb[0].mxu0
      %1462 = vmatprep.mubr.bf16.mxu0 0
      %1463 = vmatmul.mubr.bf16.gmra.mrb[0].mxu0 %v1265
      %v1464 = vpop.f32.mrb[0].mxu0
      %v1465 = vadd.f32 0.0, %v1464
      %v1466 = vpop.f32.mrb[0].mxu0
      %v1467 = vpop.f32.mrb[0].mxu0
      %v1468 = vadd.f32 0.0, %v1467
      %v1469 = vpop.f32.mrb[0].mxu0
      %1470 = vmatprep.mubr.bf16.mxu0 0
      %1471 = vmatmul.mubr.bf16.gmra.mrb[0].mxu0 %v1268
      %v1472 = vpop.f32.mrb[0].mxu0
      %v1473 = vadd.f32 0.0, %v1472
      %v1474 = vpop.f32.mrb[0].mxu0
      %v1475 = vpop.f32.mrb[0].mxu0
      %v1476 = vadd.f32 0.0, %v1475
      %v1477 = vpop.f32.mrb[0].mxu0
      %1478 = vmatprep.mubr.bf16.mxu0 0
      %1479 = vmatmul.mubr.bf16.gmra.mrb[0].mxu0 %v1271
      %v1480 = vpop.f32.mrb[0].mxu0
      %v1481 = vadd.f32 0.0, %v1480
      %v1482 = vpop.f32.mrb[0].mxu0
      %v1483 = vpop.f32.mrb[0].mxu0
      %v1484 = vadd.f32 0.0, %v1483
      %v1485 = vpop.f32.mrb[0].mxu0
      %1486 = vdwg.mxu0
      %1487 = vmatprep.subr.bf16.mxu0 0
      %1488 = vmatpush1.bf16.xpose.msra.mxu0 %v1170
      %1489 = vmatprep.subr.bf16.mxu0 0
      %1490 = vmatpush1.bf16.xpose.msra.mxu0 0
      %1491 = vmatprep.subr.bf16.mxu0 0
      %1492 = vmatpush1.bf16.xpose.msra.mxu0 0
      %1493 = vmatprep.subr.bf16.mxu0 0
      %1494 = vmatpush1.bf16.xpose.msra.mxu0 0
      %1495 = vmatprep.subr.bf16.mxu0 0
      %1496 = vmatpush1.bf16.xpose.msra.mxu0 0
      %1497 = vmatprep.subr.bf16.mxu0 0
      %1498 = vmatpush1.bf16.xpose.msra.mxu0 0
      %1499 = vmatprep.subr.bf16.mxu0 0
      %1500 = vmatpush1.bf16.xpose.msra.mxu0 0
      %1501 = vmatprep.subr.bf16.mxu0 0
      %1502 = vmatpush1.bf16.xpose.msra.mxu0 0
      %1503 = vmatprep.subr.bf16.mxu0 0
      %1504 = vmatpush1.bf16.xpose.msra.mxu0 0
      %1505 = vmatprep.subr.bf16.mxu0 0
      %1506 = vmatpush1.bf16.xpose.msra.mxu0 0
      %1507 = vmatprep.subr.bf16.mxu0 0
      %1508 = vmatpush1.bf16.xpose.msra.mxu0 0
      %1509 = vmatprep.subr.bf16.mxu0 0
      %1510 = vmatpush1.bf16.xpose.msra.mxu0 0
      %1511 = vmatprep.subr.bf16.mxu0 0
      %1512 = vmatpush1.bf16.xpose.msra.mxu0 0
      %1513 = vmatprep.subr.bf16.mxu0 0
      %1514 = vmatpush1.bf16.xpose.msra.mxu0 0
      %1515 = vmatprep.subr.bf16.mxu0 0
      %1516 = vmatpush1.bf16.xpose.msra.mxu0 0
      %1517 = vmatprep.subr.bf16.mxu0 0
      %1518 = vmatpush1.bf16.xpose.msra.mxu0 0
      %1519 = vmatprep.mubr.bf16.mxu0 0
      %1520 = vmatmul.mubr.bf16.gmra.mrb[0].mxu0 %v826
      %v1521 = vpop.f32.mrb[0].mxu0
      %v1522 = vadd.f32 %v1329, %v1521
      %v1523 = vpop.f32.mrb[0].mxu0
      %v1524 = vpop.f32.mrb[0].mxu0
      %v1525 = vadd.f32 %v1332, %v1524
      %v1526 = vpop.f32.mrb[0].mxu0
      %1527 = vmatprep.mubr.bf16.mxu0 0
      %1528 = vmatmul.mubr.bf16.gmra.mrb[0].mxu0 %v843
      %v1529 = vpop.f32.mrb[0].mxu0
      %v1530 = vadd.f32 %v1337, %v1529
      %v1531 = vpop.f32.mrb[0].mxu0
      %v1532 = vpop.f32.mrb[0].mxu0
      %v1533 = vadd.f32 %v1340, %v1532
      %v1534 = vpop.f32.mrb[0].mxu0
      %1535 = vmatprep.mubr.bf16.mxu0 0
      %1536 = vmatmul.mubr.bf16.gmra.mrb[0].mxu0 %v860
      %v1537 = vpop.f32.mrb[0].mxu0
      %v1538 = vadd.f32 %v1345, %v1537
      %v1539 = vpop.f32.mrb[0].mxu0
      %v1540 = vpop.f32.mrb[0].mxu0
      %v1541 = vadd.f32 %v1348, %v1540
      %v1542 = vpop.f32.mrb[0].mxu0
      %1543 = vmatprep.mubr.bf16.mxu0 0
      %1544 = vmatmul.mubr.bf16.gmra.mrb[0].mxu0 %v877
      %v1545 = vpop.f32.mrb[0].mxu0
      %v1546 = vadd.f32 %v1353, %v1545
      %v1547 = vpop.f32.mrb[0].mxu0
      %v1548 = vpop.f32.mrb[0].mxu0
      %v1549 = vadd.f32 %v1356, %v1548
      %v1550 = vpop.f32.mrb[0].mxu0
      %1551 = vmatprep.mubr.bf16.mxu0 0
      %1552 = vmatmul.mubr.bf16.gmra.mrb[0].mxu0 %v894
      %v1553 = vpop.f32.mrb[0].mxu0
      %v1554 = vadd.f32 %v1361, %v1553
      %v1555 = vpop.f32.mrb[0].mxu0
      %v1556 = vpop.f32.mrb[0].mxu0
      %v1557 = vadd.f32 %v1364, %v1556
      %v1558 = vpop.f32.mrb[0].mxu0
      %1559 = vmatprep.mubr.bf16.mxu0 0
      %1560 = vmatmul.mubr.bf16.gmra.mrb[0].mxu0 %v911
      %v1561 = vpop.f32.mrb[0].mxu0
      %v1562 = vadd.f32 %v1369, %v1561
      %v1563 = vpop.f32.mrb[0].mxu0
      %v1564 = vpop.f32.mrb[0].mxu0
      %v1565 = vadd.f32 %v1372, %v1564
      %v1566 = vpop.f32.mrb[0].mxu0
      %1567 = vmatprep.mubr.bf16.mxu0 0
      %1568 = vmatmul.mubr.bf16.gmra.mrb[0].mxu0 %v928
      %v1569 = vpop.f32.mrb[0].mxu0
      %v1570 = vadd.f32 %v1377, %v1569
      %v1571 = vpop.f32.mrb[0].mxu0
      %v1572 = vpop.f32.mrb[0].mxu0
      %v1573 = vadd.f32 %v1380, %v1572
      %v1574 = vpop.f32.mrb[0].mxu0
      %1575 = vmatprep.mubr.bf16.mxu0 0
      %1576 = vmatmul.mubr.bf16.gmra.mrb[0].mxu0 %v945
      %v1577 = vpop.f32.mrb[0].mxu0
      %v1578 = vadd.f32 %v1385, %v1577
      %v1579 = vpop.f32.mrb[0].mxu0
      %v1580 = vpop.f32.mrb[0].mxu0
      %v1581 = vadd.f32 %v1388, %v1580
      %v1582 = vpop.f32.mrb[0].mxu0
      %1583 = vmatprep.mubr.bf16.mxu0 0
      %1584 = vmatmul.mubr.bf16.gmra.mrb[0].mxu0 %v962
      %v1585 = vpop.f32.mrb[0].mxu0
      %v1586 = vadd.f32 %v1393, %v1585
      %v1587 = vpop.f32.mrb[0].mxu0
      %v1588 = vpop.f32.mrb[0].mxu0
      %v1589 = vadd.f32 %v1396, %v1588
      %v1590 = vpop.f32.mrb[0].mxu0
      %1591 = vmatprep.mubr.bf16.mxu0 0
      %1592 = vmatmul.mubr.bf16.gmra.mrb[0].mxu0 %v979
      %v1593 = vpop.f32.mrb[0].mxu0
      %v1594 = vadd.f32 %v1401, %v1593
      %v1595 = vpop.f32.mrb[0].mxu0
      %v1596 = vpop.f32.mrb[0].mxu0
      %v1597 = vadd.f32 %v1404, %v1596
      %v1598 = vpop.f32.mrb[0].mxu0
      %1599 = vmatprep.mubr.bf16.mxu0 0
      %1600 = vmatmul.mubr.bf16.gmra.mrb[0].mxu0 %v996
      %v1601 = vpop.f32.mrb[0].mxu0
      %v1602 = vadd.f32 %v1409, %v1601
      %v1603 = vpop.f32.mrb[0].mxu0
      %v1604 = vpop.f32.mrb[0].mxu0
      %v1605 = vadd.f32 %v1412, %v1604
      %v1606 = vpop.f32.mrb[0].mxu0
      %1607 = vmatprep.mubr.bf16.mxu0 0
      %1608 = vmatmul.mubr.bf16.gmra.mrb[0].mxu0 %v1013
      %v1609 = vpop.f32.mrb[0].mxu0
      %v1610 = vadd.f32 %v1417, %v1609
      %v1611 = vpop.f32.mrb[0].mxu0
      %v1612 = vpop.f32.mrb[0].mxu0
      %v1613 = vadd.f32 %v1420, %v1612
      %v1614 = vpop.f32.mrb[0].mxu0
      %1615 = vmatprep.mubr.bf16.mxu0 0
      %1616 = vmatmul.mubr.bf16.gmra.mrb[0].mxu0 %v1030
      %v1617 = vpop.f32.mrb[0].mxu0
      %v1618 = vadd.f32 %v1425, %v1617
      %v1619 = vpop.f32.mrb[0].mxu0
      %v1620 = vpop.f32.mrb[0].mxu0
      %v1621 = vadd.f32 %v1428, %v1620
      %v1622 = vpop.f32.mrb[0].mxu0
      %1623 = vmatprep.mubr.bf16.mxu0 0
      %1624 = vmatmul.mubr.bf16.gmra.mrb[0].mxu0 %v1047
      %v1625 = vpop.f32.mrb[0].mxu0
      %v1626 = vadd.f32 %v1433, %v1625
      %v1627 = vpop.f32.mrb[0].mxu0
      %v1628 = vpop.f32.mrb[0].mxu0
      %v1629 = vadd.f32 %v1436, %v1628
      %v1630 = vpop.f32.mrb[0].mxu0
      %1631 = vmatprep.mubr.bf16.mxu0 0
      %1632 = vmatmul.mubr.bf16.gmra.mrb[0].mxu0 %v1064
      %v1633 = vpop.f32.mrb[0].mxu0
      %v1634 = vadd.f32 %v1441, %v1633
      %v1635 = vpop.f32.mrb[0].mxu0
      %v1636 = vpop.f32.mrb[0].mxu0
      %v1637 = vadd.f32 %v1444, %v1636
      %v1638 = vpop.f32.mrb[0].mxu0
      %1639 = vmatprep.mubr.bf16.mxu0 0
      %1640 = vmatmul.mubr.bf16.gmra.mrb[0].mxu0 %v1081
      %v1641 = vpop.f32.mrb[0].mxu0
      %v1642 = vadd.f32 %v1449, %v1641
      %v1643 = vpop.f32.mrb[0].mxu0
      %v1644 = vpop.f32.mrb[0].mxu0
      %v1645 = vadd.f32 %v1452, %v1644
      %v1646 = vpop.f32.mrb[0].mxu0
      %1647 = vmatprep.mubr.bf16.mxu0 0
      %1648 = vmatmul.mubr.bf16.gmra.mrb[0].mxu0 %v1098
      %v1649 = vpop.f32.mrb[0].mxu0
      %v1650 = vadd.f32 %v1457, %v1649
      %v1651 = vpop.f32.mrb[0].mxu0
      %v1652 = vpop.f32.mrb[0].mxu0
      %v1653 = vadd.f32 %v1460, %v1652
      %v1654 = vpop.f32.mrb[0].mxu0
      %1655 = vmatprep.mubr.bf16.mxu0 0
      %1656 = vmatmul.mubr.bf16.gmra.mrb[0].mxu0 %v1115
      %v1657 = vpop.f32.mrb[0].mxu0
      %v1658 = vadd.f32 %v1465, %v1657
      %v1659 = vpop.f32.mrb[0].mxu0
      %v1660 = vpop.f32.mrb[0].mxu0
      %v1661 = vadd.f32 %v1468, %v1660
      %v1662 = vpop.f32.mrb[0].mxu0
      %1663 = vmatprep.mubr.bf16.mxu0 0
      %1664 = vmatmul.mubr.bf16.gmra.mrb[0].mxu0 %v1132
      %v1665 = vpop.f32.mrb[0].mxu0
      %v1666 = vadd.f32 %v1473, %v1665
      %v1667 = vpop.f32.mrb[0].mxu0
      %v1668 = vpop.f32.mrb[0].mxu0
      %v1669 = vadd.f32 %v1476, %v1668
      %v1670 = vpop.f32.mrb[0].mxu0
      %1671 = vmatprep.mubr.bf16.mxu0 0
      %1672 = vmatmul.mubr.bf16.gmra.mrb[0].mxu0 %v1149
      %v1673 = vpop.f32.mrb[0].mxu0
      %v1674 = vadd.f32 %v1481, %v1673
      %v1675 = vpop.f32.mrb[0].mxu0
      %v1676 = vpop.f32.mrb[0].mxu0
      %v1677 = vadd.f32 %v1484, %v1676
      %v1678 = vpop.f32.mrb[0].mxu0
      %1679 = vdwg.mxu0
      %vm1680 = vsmask.f32 3328
      %v1681 = vrot.slane %v811, 4
      %v1682 = vrot.slane %v814, 5
      %v1683 = vor.u32 %v1681, %v1682
      %v1684 = vrot.slane %v819, 4
      %v1685 = vrot.slane %v822, 5
      %v1686 = vor.u32 %v1684, %v1685
      %v1687 = vsel %vm1680, %v1683, %v1686
      %v1688 = vrot.slane %v828, 4
      %v1689 = vrot.slane %v831, 5
      %v1690 = vor.u32 %v1688, %v1689
      %v1691 = vrot.slane %v836, 4
      %v1692 = vrot.slane %v839, 5
      %v1693 = vor.u32 %v1691, %v1692
      %v1694 = vsel %vm1680, %v1690, %v1693
      %v1695 = vrot.slane %v845, 4
      %v1696 = vrot.slane %v848, 5
      %v1697 = vor.u32 %v1695, %v1696
      %v1698 = vrot.slane %v853, 4
      %v1699 = vrot.slane %v856, 5
      %v1700 = vor.u32 %v1698, %v1699
      %v1701 = vsel %vm1680, %v1697, %v1700
      %v1702 = vrot.slane %v862, 4
      %v1703 = vrot.slane %v865, 5
      %v1704 = vor.u32 %v1702, %v1703
      %v1705 = vrot.slane %v870, 4
      %v1706 = vrot.slane %v873, 5
      %v1707 = vor.u32 %v1705, %v1706
      %v1708 = vsel %vm1680, %v1704, %v1707
      %v1709 = vrot.slane %v879, 4
      %v1710 = vrot.slane %v882, 5
      %v1711 = vor.u32 %v1709, %v1710
      %v1712 = vrot.slane %v887, 4
      %v1713 = vrot.slane %v890, 5
      %v1714 = vor.u32 %v1712, %v1713
      %v1715 = vsel %vm1680, %v1711, %v1714
      %v1716 = vrot.slane %v896, 4
      %v1717 = vrot.slane %v899, 5
      %v1718 = vor.u32 %v1716, %v1717
      %v1719 = vrot.slane %v904, 4
      %v1720 = vrot.slane %v907, 5
      %v1721 = vor.u32 %v1719, %v1720
      %v1722 = vsel %vm1680, %v1718, %v1721
      %v1723 = vrot.slane %v913, 4
      %v1724 = vrot.slane %v916, 5
      %v1725 = vor.u32 %v1723, %v1724
      %v1726 = vrot.slane %v921, 4
      %v1727 = vrot.slane %v924, 5
      %v1728 = vor.u32 %v1726, %v1727
      %v1729 = vsel %vm1680, %v1725, %v1728
      %v1730 = vrot.slane %v930, 4
      %v1731 = vrot.slane %v933, 5
      %v1732 = vor.u32 %v1730, %v1731
      %v1733 = vrot.slane %v938, 4
      %v1734 = vrot.slane %v941, 5
      %v1735 = vor.u32 %v1733, %v1734
      %v1736 = vsel %vm1680, %v1732, %v1735
      %v1737 = vrot.slane %v947, 4
      %v1738 = vrot.slane %v950, 5
      %v1739 = vor.u32 %v1737, %v1738
      %v1740 = vrot.slane %v955, 4
      %v1741 = vrot.slane %v958, 5
      %v1742 = vor.u32 %v1740, %v1741
      %v1743 = vsel %vm1680, %v1739, %v1742
      %v1744 = vrot.slane %v964, 4
      %v1745 = vrot.slane %v967, 5
      %v1746 = vor.u32 %v1744, %v1745
      %v1747 = vrot.slane %v972, 4
      %v1748 = vrot.slane %v975, 5
      %v1749 = vor.u32 %v1747, %v1748
      %v1750 = vsel %vm1680, %v1746, %v1749
      %v1751 = vrot.slane %v981, 4
      %v1752 = vrot.slane %v984, 5
      %v1753 = vor.u32 %v1751, %v1752
      %v1754 = vrot.slane %v989, 4
      %v1755 = vrot.slane %v992, 5
      %v1756 = vor.u32 %v1754, %v1755
      %v1757 = vsel %vm1680, %v1753, %v1756
      %v1758 = vrot.slane %v998, 4
      %v1759 = vrot.slane %v1001, 5
      %v1760 = vor.u32 %v1758, %v1759
      %v1761 = vrot.slane %v1006, 4
      %v1762 = vrot.slane %v1009, 5
      %v1763 = vor.u32 %v1761, %v1762
      %v1764 = vsel %vm1680, %v1760, %v1763
      %v1765 = vrot.slane %v1015, 4
      %v1766 = vrot.slane %v1018, 5
      %v1767 = vor.u32 %v1765, %v1766
      %v1768 = vrot.slane %v1023, 4
      %v1769 = vrot.slane %v1026, 5
      %v1770 = vor.u32 %v1768, %v1769
      %v1771 = vsel %vm1680, %v1767, %v1770
      %v1772 = vrot.slane %v1032, 4
      %v1773 = vrot.slane %v1035, 5
      %v1774 = vor.u32 %v1772, %v1773
      %v1775 = vrot.slane %v1040, 4
      %v1776 = vrot.slane %v1043, 5
      %v1777 = vor.u32 %v1775, %v1776
      %v1778 = vsel %vm1680, %v1774, %v1777
      %v1779 = vrot.slane %v1049, 4
      %v1780 = vrot.slane %v1052, 5
      %v1781 = vor.u32 %v1779, %v1780
      %v1782 = vrot.slane %v1057, 4
      %v1783 = vrot.slane %v1060, 5
      %v1784 = vor.u32 %v1782, %v1783
      %v1785 = vsel %vm1680, %v1781, %v1784
      %v1786 = vrot.slane %v1066, 4
      %v1787 = vrot.slane %v1069, 5
      %v1788 = vor.u32 %v1786, %v1787
      %v1789 = vrot.slane %v1074, 4
      %v1790 = vrot.slane %v1077, 5
      %v1791 = vor.u32 %v1789, %v1790
      %v1792 = vsel %vm1680, %v1788, %v1791
      %v1793 = vrot.slane %v1083, 4
      %v1794 = vrot.slane %v1086, 5
      %v1795 = vor.u32 %v1793, %v1794
      %v1796 = vrot.slane %v1091, 4
      %v1797 = vrot.slane %v1094, 5
      %v1798 = vor.u32 %v1796, %v1797
      %v1799 = vsel %vm1680, %v1795, %v1798
      %v1800 = vrot.slane %v1100, 4
      %v1801 = vrot.slane %v1103, 5
      %v1802 = vor.u32 %v1800, %v1801
      %v1803 = vrot.slane %v1108, 4
      %v1804 = vrot.slane %v1111, 5
      %v1805 = vor.u32 %v1803, %v1804
      %v1806 = vsel %vm1680, %v1802, %v1805
      %v1807 = vrot.slane %v1117, 4
      %v1808 = vrot.slane %v1120, 5
      %v1809 = vor.u32 %v1807, %v1808
      %v1810 = vrot.slane %v1125, 4
      %v1811 = vrot.slane %v1128, 5
      %v1812 = vor.u32 %v1810, %v1811
      %v1813 = vsel %vm1680, %v1809, %v1812
      %v1814 = vrot.slane %v1134, 4
      %v1815 = vrot.slane %v1137, 5
      %v1816 = vor.u32 %v1814, %v1815
      %v1817 = vrot.slane %v1142, 4
      %v1818 = vrot.slane %v1145, 5
      %v1819 = vor.u32 %v1817, %v1818
      %v1820 = vsel %vm1680, %v1816, %v1819
      %s1841 = scalar_lea.vmem %s3, 4
      %v1842 = vld [vmem:[%s1841] sm:$0x3]
      %1843 = vmatprep.subr.bf16.mxu0 0
      %1844 = vmatpush1.bf16.xpose.msra.mxu0 %v1842
      %1845 = vmatprep.subr.bf16.mxu0 0
      %1846 = vmatpush1.bf16.xpose.msra.mxu0 0
      %1847 = vmatprep.subr.bf16.mxu0 0
      %1848 = vmatpush1.bf16.xpose.msra.mxu0 0
      %1849 = vmatprep.subr.bf16.mxu0 0
      %1850 = vmatpush1.bf16.xpose.msra.mxu0 0
      %1851 = vmatprep.subr.bf16.mxu0 0
      %1852 = vmatpush1.bf16.xpose.msra.mxu0 0
      %1853 = vmatprep.subr.bf16.mxu0 0
      %1854 = vmatpush1.bf16.xpose.msra.mxu0 0
      %1855 = vmatprep.subr.bf16.mxu0 0
      %1856 = vmatpush1.bf16.xpose.msra.mxu0 0
      %1857 = vmatprep.subr.bf16.mxu0 0
      %1858 = vmatpush1.bf16.xpose.msra.mxu0 0
      %1859 = vmatprep.subr.bf16.mxu0 0
      %1860 = vmatpush1.bf16.xpose.msra.mxu0 0
      %1861 = vmatprep.subr.bf16.mxu0 0
      %1862 = vmatpush1.bf16.xpose.msra.mxu0 0
      %1863 = vmatprep.subr.bf16.mxu0 0
      %1864 = vmatpush1.bf16.xpose.msra.mxu0 0
      %1865 = vmatprep.subr.bf16.mxu0 0
      %1866 = vmatpush1.bf16.xpose.msra.mxu0 0
      %1867 = vmatprep.subr.bf16.mxu0 0
      %1868 = vmatpush1.bf16.xpose.msra.mxu0 0
      %1869 = vmatprep.subr.bf16.mxu0 0
      %1870 = vmatpush1.bf16.xpose.msra.mxu0 0
      %1871 = vmatprep.subr.bf16.mxu0 0
      %1872 = vmatpush1.bf16.xpose.msra.mxu0 0
      %1873 = vmatprep.subr.bf16.mxu0 0
      %1874 = vmatpush1.bf16.xpose.msra.mxu0 0
      %1875 = vmatprep.mubr.bf16.mxu0 0
      %1876 = vmatmul.mubr.bf16.gmra.mrb[0].mxu0 %v1687
      %v1877 = vpop.f32.mrb[0].mxu0
      %v1878 = vadd.f32 0.0, %v1877
      %v1879 = vpop.f32.mrb[0].mxu0
      %v1880 = vpop.f32.mrb[0].mxu0
      %v1881 = vadd.f32 0.0, %v1880
      %v1882 = vpop.f32.mrb[0].mxu0
      %1883 = vmatprep.mubr.bf16.mxu0 0
      %1884 = vmatmul.mubr.bf16.gmra.mrb[0].mxu0 %v1694
      %v1885 = vpop.f32.mrb[0].mxu0
      %v1886 = vadd.f32 0.0, %v1885
      %v1887 = vpop.f32.mrb[0].mxu0
      %v1888 = vpop.f32.mrb[0].mxu0
      %v1889 = vadd.f32 0.0, %v1888
      %v1890 = vpop.f32.mrb[0].mxu0
      %1891 = vmatprep.mubr.bf16.mxu0 0
      %1892 = vmatmul.mubr.bf16.gmra.mrb[0].mxu0 %v1701
      %v1893 = vpop.f32.mrb[0].mxu0
      %v1894 = vadd.f32 0.0, %v1893
      %v1895 = vpop.f32.mrb[0].mxu0
      %v1896 = vpop.f32.mrb[0].mxu0
      %v1897 = vadd.f32 0.0, %v1896
      %v1898 = vpop.f32.mrb[0].mxu0
      %1899 = vmatprep.mubr.bf16.mxu0 0
      %1900 = vmatmul.mubr.bf16.gmra.mrb[0].mxu0 %v1708
      %v1901 = vpop.f32.mrb[0].mxu0
      %v1902 = vadd.f32 0.0, %v1901
      %v1903 = vpop.f32.mrb[0].mxu0
      %v1904 = vpop.f32.mrb[0].mxu0
      %v1905 = vadd.f32 0.0, %v1904
      %v1906 = vpop.f32.mrb[0].mxu0
      %1907 = vmatprep.mubr.bf16.mxu0 0
      %1908 = vmatmul.mubr.bf16.gmra.mrb[0].mxu0 %v1715
      %v1909 = vpop.f32.mrb[0].mxu0
      %v1910 = vadd.f32 0.0, %v1909
      %v1911 = vpop.f32.mrb[0].mxu0
      %v1912 = vpop.f32.mrb[0].mxu0
      %v1913 = vadd.f32 0.0, %v1912
      %v1914 = vpop.f32.mrb[0].mxu0
      %1915 = vmatprep.mubr.bf16.mxu0 0
      %1916 = vmatmul.mubr.bf16.gmra.mrb[0].mxu0 %v1722
      %v1917 = vpop.f32.mrb[0].mxu0
      %v1918 = vadd.f32 0.0, %v1917
      %v1919 = vpop.f32.mrb[0].mxu0
      %v1920 = vpop.f32.mrb[0].mxu0
      %v1921 = vadd.f32 0.0, %v1920
      %v1922 = vpop.f32.mrb[0].mxu0
      %1923 = vmatprep.mubr.bf16.mxu0 0
      %1924 = vmatmul.mubr.bf16.gmra.mrb[0].mxu0 %v1729
      %v1925 = vpop.f32.mrb[0].mxu0
      %v1926 = vadd.f32 0.0, %v1925
      %v1927 = vpop.f32.mrb[0].mxu0
      %v1928 = vpop.f32.mrb[0].mxu0
      %v1929 = vadd.f32 0.0, %v1928
      %v1930 = vpop.f32.mrb[0].mxu0
      %1931 = vmatprep.mubr.bf16.mxu0 0
      %1932 = vmatmul.mubr.bf16.gmra.mrb[0].mxu0 %v1736
      %v1933 = vpop.f32.mrb[0].mxu0
      %v1934 = vadd.f32 0.0, %v1933
      %v1935 = vpop.f32.mrb[0].mxu0
      %v1936 = vpop.f32.mrb[0].mxu0
      %v1937 = vadd.f32 0.0, %v1936
      %v1938 = vpop.f32.mrb[0].mxu0
      %1939 = vmatprep.mubr.bf16.mxu0 0
      %1940 = vmatmul.mubr.bf16.gmra.mrb[0].mxu0 %v1743
      %v1941 = vpop.f32.mrb[0].mxu0
      %v1942 = vadd.f32 0.0, %v1941
      %v1943 = vpop.f32.mrb[0].mxu0
      %v1944 = vpop.f32.mrb[0].mxu0
      %v1945 = vadd.f32 0.0, %v1944
      %v1946 = vpop.f32.mrb[0].mxu0
      %1947 = vmatprep.mubr.bf16.mxu0 0
      %1948 = vmatmul.mubr.bf16.gmra.mrb[0].mxu0 %v1750
      %v1949 = vpop.f32.mrb[0].mxu0
      %v1950 = vadd.f32 0.0, %v1949
      %v1951 = vpop.f32.mrb[0].mxu0
      %v1952 = vpop.f32.mrb[0].mxu0
      %v1953 = vadd.f32 0.0, %v1952
      %v1954 = vpop.f32.mrb[0].mxu0
      %1955 = vmatprep.mubr.bf16.mxu0 0
      %1956 = vmatmul.mubr.bf16.gmra.mrb[0].mxu0 %v1757
      %v1957 = vpop.f32.mrb[0].mxu0
      %v1958 = vadd.f32 0.0, %v1957
      %v1959 = vpop.f32.mrb[0].mxu0
      %v1960 = vpop.f32.mrb[0].mxu0
      %v1961 = vadd.f32 0.0, %v1960
      %v1962 = vpop.f32.mrb[0].mxu0
      %1963 = vmatprep.mubr.bf16.mxu0 0
      %1964 = vmatmul.mubr.bf16.gmra.mrb[0].mxu0 %v1764
      %v1965 = vpop.f32.mrb[0].mxu0
      %v1966 = vadd.f32 0.0, %v1965
      %v1967 = vpop.f32.mrb[0].mxu0
      %v1968 = vpop.f32.mrb[0].mxu0
      %v1969 = vadd.f32 0.0, %v1968
      %v1970 = vpop.f32.mrb[0].mxu0
      %1971 = vmatprep.mubr.bf16.mxu0 0
      %1972 = vmatmul.mubr.bf16.gmra.mrb[0].mxu0 %v1771
      %v1973 = vpop.f32.mrb[0].mxu0
      %v1974 = vadd.f32 0.0, %v1973
      %v1975 = vpop.f32.mrb[0].mxu0
      %v1976 = vpop.f32.mrb[0].mxu0
      %v1977 = vadd.f32 0.0, %v1976
      %v1978 = vpop.f32.mrb[0].mxu0
      %1979 = vmatprep.mubr.bf16.mxu0 0
      %1980 = vmatmul.mubr.bf16.gmra.mrb[0].mxu0 %v1778
      %v1981 = vpop.f32.mrb[0].mxu0
      %v1982 = vadd.f32 0.0, %v1981
      %v1983 = vpop.f32.mrb[0].mxu0
      %v1984 = vpop.f32.mrb[0].mxu0
      %v1985 = vadd.f32 0.0, %v1984
      %v1986 = vpop.f32.mrb[0].mxu0
      %1987 = vmatprep.mubr.bf16.mxu0 0
      %1988 = vmatmul.mubr.bf16.gmra.mrb[0].mxu0 %v1785
      %v1989 = vpop.f32.mrb[0].mxu0
      %v1990 = vadd.f32 0.0, %v1989
      %v1991 = vpop.f32.mrb[0].mxu0
      %v1992 = vpop.f32.mrb[0].mxu0
      %v1993 = vadd.f32 0.0, %v1992
      %v1994 = vpop.f32.mrb[0].mxu0
      %1995 = vmatprep.mubr.bf16.mxu0 0
      %1996 = vmatmul.mubr.bf16.gmra.mrb[0].mxu0 %v1792
      %v1997 = vpop.f32.mrb[0].mxu0
      %v1998 = vadd.f32 0.0, %v1997
      %v1999 = vpop.f32.mrb[0].mxu0
      %v2000 = vpop.f32.mrb[0].mxu0
      %v2001 = vadd.f32 0.0, %v2000
      %v2002 = vpop.f32.mrb[0].mxu0
      %2003 = vmatprep.mubr.bf16.mxu0 0
      %2004 = vmatmul.mubr.bf16.gmra.mrb[0].mxu0 %v1799
      %v2005 = vpop.f32.mrb[0].mxu0
      %v2006 = vadd.f32 0.0, %v2005
      %v2007 = vpop.f32.mrb[0].mxu0
      %v2008 = vpop.f32.mrb[0].mxu0
      %v2009 = vadd.f32 0.0, %v2008
      %v2010 = vpop.f32.mrb[0].mxu0
      %2011 = vmatprep.mubr.bf16.mxu0 0
      %2012 = vmatmul.mubr.bf16.gmra.mrb[0].mxu0 %v1806
      %v2013 = vpop.f32.mrb[0].mxu0
      %v2014 = vadd.f32 0.0, %v2013
      %v2015 = vpop.f32.mrb[0].mxu0
      %v2016 = vpop.f32.mrb[0].mxu0
      %v2017 = vadd.f32 0.0, %v2016
      %v2018 = vpop.f32.mrb[0].mxu0
      %2019 = vmatprep.mubr.bf16.mxu0 0
      %2020 = vmatmul.mubr.bf16.gmra.mrb[0].mxu0 %v1813
      %v2021 = vpop.f32.mrb[0].mxu0
      %v2022 = vadd.f32 0.0, %v2021
      %v2023 = vpop.f32.mrb[0].mxu0
      %v2024 = vpop.f32.mrb[0].mxu0
      %v2025 = vadd.f32 0.0, %v2024
      %v2026 = vpop.f32.mrb[0].mxu0
      %2027 = vmatprep.mubr.bf16.mxu0 0
      %2028 = vmatmul.mubr.bf16.gmra.mrb[0].mxu0 %v1820
      %v2029 = vpop.f32.mrb[0].mxu0
      %v2030 = vadd.f32 0.0, %v2029
      %v2031 = vpop.f32.mrb[0].mxu0
      %v2032 = vpop.f32.mrb[0].mxu0
      %v2033 = vadd.f32 0.0, %v2032
      %v2034 = vpop.f32.mrb[0].mxu0
      %2035 = vdwg.mxu0
      %v2036 = vadd.f32 %v1522, %v1878
      %v2037 = vadd.f32 %v1525, %v1881
      %v2038 = vadd.f32 %v1530, %v1886
      %v2039 = vadd.f32 %v1533, %v1889
      %v2040 = vadd.f32 %v1538, %v1894
      %v2041 = vadd.f32 %v1541, %v1897
      %v2042 = vadd.f32 %v1546, %v1902
      %v2043 = vadd.f32 %v1549, %v1905
      %v2044 = vadd.f32 %v1554, %v1910
      %v2045 = vadd.f32 %v1557, %v1913
      %v2046 = vadd.f32 %v1562, %v1918
      %v2047 = vadd.f32 %v1565, %v1921
      %v2048 = vadd.f32 %v1570, %v1926
      %v2049 = vadd.f32 %v1573, %v1929
      %v2050 = vadd.f32 %v1578, %v1934
      %v2051 = vadd.f32 %v1581, %v1937
      %v2052 = vadd.f32 %v1586, %v1942
      %v2053 = vadd.f32 %v1589, %v1945
      %v2054 = vadd.f32 %v1594, %v1950
      %v2055 = vadd.f32 %v1597, %v1953
      %v2056 = vadd.f32 %v1602, %v1958
      %v2057 = vadd.f32 %v1605, %v1961
      %v2058 = vadd.f32 %v1610, %v1966
      %v2059 = vadd.f32 %v1613, %v1969
      %v2060 = vadd.f32 %v1618, %v1974
      %v2061 = vadd.f32 %v1621, %v1977
      %v2062 = vadd.f32 %v1626, %v1982
      %v2063 = vadd.f32 %v1629, %v1985
      %v2064 = vadd.f32 %v1634, %v1990
      %v2065 = vadd.f32 %v1637, %v1993
      %v2066 = vadd.f32 %v1642, %v1998
      %v2067 = vadd.f32 %v1645, %v2001
      %v2068 = vadd.f32 %v1650, %v2006
      %v2069 = vadd.f32 %v1653, %v2009
      %v2070 = vadd.f32 %v1658, %v2014
      %v2071 = vadd.f32 %v1661, %v2017
      %v2072 = vadd.f32 %v1666, %v2022
      %v2073 = vadd.f32 %v1669, %v2025
      %v2074 = vadd.f32 %v1674, %v2030
      %v2075 = vadd.f32 %v1677, %v2033
      %v2077 = vshrl.u32 %v805, 16
      %v2079 = vrot.slane %v2077, 3
      %v2080 = vshll.u32 %v805, 16
      %v2082 = vrot.slane %v2080, 4
      %v2083 = vor.u32 %v2079, %v2082
      %v2085 = vshrl.u32 %v806, 16
      %v2087 = vrot.slane %v2085, 3
      %v2088 = vshll.u32 %v806, 16
      %v2090 = vrot.slane %v2088, 4
      %v2091 = vor.u32 %v2087, %v2090
      %v2092 = vsel %vm809, %v2083, %v2091
      %s2094 = scalar_lea.vmem %s3, 6
      %v2095 = vld [vmem:[%s2094] sm:$0x3]
      %2096 = vmatprep.subr.bf16.mxu0 0
      %2097 = vmatpush1.bf16.xpose.msra.mxu0 %v2095
      %2098 = vmatprep.subr.bf16.mxu0 0
      %2099 = vmatpush1.bf16.xpose.msra.mxu0 0
      %2100 = vmatprep.subr.bf16.mxu0 0
      %2101 = vmatpush1.bf16.xpose.msra.mxu0 0
      %2102 = vmatprep.subr.bf16.mxu0 0
      %2103 = vmatpush1.bf16.xpose.msra.mxu0 0
      %2104 = vmatprep.subr.bf16.mxu0 0
      %2105 = vmatpush1.bf16.xpose.msra.mxu0 0
      %2106 = vmatprep.subr.bf16.mxu0 0
      %2107 = vmatpush1.bf16.xpose.msra.mxu0 0
      %2108 = vmatprep.subr.bf16.mxu0 0
      %2109 = vmatpush1.bf16.xpose.msra.mxu0 0
      %2110 = vmatprep.subr.bf16.mxu0 0
      %2111 = vmatpush1.bf16.xpose.msra.mxu0 0
      %2112 = vmatprep.subr.bf16.mxu0 0
      %2113 = vmatpush1.bf16.xpose.msra.mxu0 0
      %2114 = vmatprep.subr.bf16.mxu0 0
      %2115 = vmatpush1.bf16.xpose.msra.mxu0 0
      %2116 = vmatprep.subr.bf16.mxu0 0
      %2117 = vmatpush1.bf16.xpose.msra.mxu0 0
      %2118 = vmatprep.subr.bf16.mxu0 0
      %2119 = vmatpush1.bf16.xpose.msra.mxu0 0
      %2120 = vmatprep.subr.bf16.mxu0 0
      %2121 = vmatpush1.bf16.xpose.msra.mxu0 0
      %2122 = vmatprep.subr.bf16.mxu0 0
      %2123 = vmatpush1.bf16.xpose.msra.mxu0 0
      %2124 = vmatprep.subr.bf16.mxu0 0
      %2125 = vmatpush1.bf16.xpose.msra.mxu0 0
      %2126 = vmatprep.subr.bf16.mxu0 0
      %2127 = vmatpush1.bf16.xpose.msra.mxu0 0
      %2128 = vmatprep.mubr.bf16.mxu0 0
      %2129 = vmatmul.mubr.bf16.gmra.mrb[0].mxu0 %v843
      %v2130 = vpop.f32.mrb[0].mxu0
      %v2131 = vadd.f32 0.0, %v2130
      %v2132 = vpop.f32.mrb[0].mxu0
      %v2133 = vpop.f32.mrb[0].mxu0
      %v2134 = vadd.f32 0.0, %v2133
      %v2135 = vpop.f32.mrb[0].mxu0
      %2136 = vmatprep.mubr.bf16.mxu0 0
      %2137 = vmatmul.mubr.bf16.gmra.mrb[0].mxu0 %v860
      %v2138 = vpop.f32.mrb[0].mxu0
      %v2139 = vadd.f32 0.0, %v2138
      %v2140 = vpop.f32.mrb[0].mxu0
      %v2141 = vpop.f32.mrb[0].mxu0
      %v2142 = vadd.f32 0.0, %v2141
      %v2143 = vpop.f32.mrb[0].mxu0
      %2144 = vmatprep.mubr.bf16.mxu0 0
      %2145 = vmatmul.mubr.bf16.gmra.mrb[0].mxu0 %v877
      %v2146 = vpop.f32.mrb[0].mxu0
      %v2147 = vadd.f32 0.0, %v2146
      %v2148 = vpop.f32.mrb[0].mxu0
      %v2149 = vpop.f32.mrb[0].mxu0
      %v2150 = vadd.f32 0.0, %v2149
      %v2151 = vpop.f32.mrb[0].mxu0
      %2152 = vmatprep.mubr.bf16.mxu0 0
      %2153 = vmatmul.mubr.bf16.gmra.mrb[0].mxu0 %v894
      %v2154 = vpop.f32.mrb[0].mxu0
      %v2155 = vadd.f32 0.0, %v2154
      %v2156 = vpop.f32.mrb[0].mxu0
      %v2157 = vpop.f32.mrb[0].mxu0
      %v2158 = vadd.f32 0.0, %v2157
      %v2159 = vpop.f32.mrb[0].mxu0
      %2160 = vmatprep.mubr.bf16.mxu0 0
      %2161 = vmatmul.mubr.bf16.gmra.mrb[0].mxu0 %v911
      %v2162 = vpop.f32.mrb[0].mxu0
      %v2163 = vadd.f32 0.0, %v2162
      %v2164 = vpop.f32.mrb[0].mxu0
      %v2165 = vpop.f32.mrb[0].mxu0
      %v2166 = vadd.f32 0.0, %v2165
      %v2167 = vpop.f32.mrb[0].mxu0
      %2168 = vmatprep.mubr.bf16.mxu0 0
      %2169 = vmatmul.mubr.bf16.gmra.mrb[0].mxu0 %v928
      %v2170 = vpop.f32.mrb[0].mxu0
      %v2171 = vadd.f32 0.0, %v2170
      %v2172 = vpop.f32.mrb[0].mxu0
      %v2173 = vpop.f32.mrb[0].mxu0
      %v2174 = vadd.f32 0.0, %v2173
      %v2175 = vpop.f32.mrb[0].mxu0
      %2176 = vmatprep.mubr.bf16.mxu0 0
      %2177 = vmatmul.mubr.bf16.gmra.mrb[0].mxu0 %v945
      %v2178 = vpop.f32.mrb[0].mxu0
      %v2179 = vadd.f32 0.0, %v2178
      %v2180 = vpop.f32.mrb[0].mxu0
      %v2181 = vpop.f32.mrb[0].mxu0
      %v2182 = vadd.f32 0.0, %v2181
      %v2183 = vpop.f32.mrb[0].mxu0
      %2184 = vmatprep.mubr.bf16.mxu0 0
      %2185 = vmatmul.mubr.bf16.gmra.mrb[0].mxu0 %v962
      %v2186 = vpop.f32.mrb[0].mxu0
      %v2187 = vadd.f32 0.0, %v2186
      %v2188 = vpop.f32.mrb[0].mxu0
      %v2189 = vpop.f32.mrb[0].mxu0
      %v2190 = vadd.f32 0.0, %v2189
      %v2191 = vpop.f32.mrb[0].mxu0
      %2192 = vmatprep.mubr.bf16.mxu0 0
      %2193 = vmatmul.mubr.bf16.gmra.mrb[0].mxu0 %v979
      %v2194 = vpop.f32.mrb[0].mxu0
      %v2195 = vadd.f32 0.0, %v2194
      %v2196 = vpop.f32.mrb[0].mxu0
      %v2197 = vpop.f32.mrb[0].mxu0
      %v2198 = vadd.f32 0.0, %v2197
      %v2199 = vpop.f32.mrb[0].mxu0
      %2200 = vmatprep.mubr.bf16.mxu0 0
      %2201 = vmatmul.mubr.bf16.gmra.mrb[0].mxu0 %v996
      %v2202 = vpop.f32.mrb[0].mxu0
      %v2203 = vadd.f32 0.0, %v2202
      %v2204 = vpop.f32.mrb[0].mxu0
      %v2205 = vpop.f32.mrb[0].mxu0
      %v2206 = vadd.f32 0.0, %v2205
      %v2207 = vpop.f32.mrb[0].mxu0
      %2208 = vmatprep.mubr.bf16.mxu0 0
      %2209 = vmatmul.mubr.bf16.gmra.mrb[0].mxu0 %v1013
      %v2210 = vpop.f32.mrb[0].mxu0
      %v2211 = vadd.f32 0.0, %v2210
      %v2212 = vpop.f32.mrb[0].mxu0
      %v2213 = vpop.f32.mrb[0].mxu0
      %v2214 = vadd.f32 0.0, %v2213
      %v2215 = vpop.f32.mrb[0].mxu0
      %2216 = vmatprep.mubr.bf16.mxu0 0
      %2217 = vmatmul.mubr.bf16.gmra.mrb[0].mxu0 %v1030
      %v2218 = vpop.f32.mrb[0].mxu0
      %v2219 = vadd.f32 0.0, %v2218
      %v2220 = vpop.f32.mrb[0].mxu0
      %v2221 = vpop.f32.mrb[0].mxu0
      %v2222 = vadd.f32 0.0, %v2221
      %v2223 = vpop.f32.mrb[0].mxu0
      %2224 = vmatprep.mubr.bf16.mxu0 0
      %2225 = vmatmul.mubr.bf16.gmra.mrb[0].mxu0 %v1047
      %v2226 = vpop.f32.mrb[0].mxu0
      %v2227 = vadd.f32 0.0, %v2226
      %v2228 = vpop.f32.mrb[0].mxu0
      %v2229 = vpop.f32.mrb[0].mxu0
      %v2230 = vadd.f32 0.0, %v2229
      %v2231 = vpop.f32.mrb[0].mxu0
      %2232 = vmatprep.mubr.bf16.mxu0 0
      %2233 = vmatmul.mubr.bf16.gmra.mrb[0].mxu0 %v1064
      %v2234 = vpop.f32.mrb[0].mxu0
      %v2235 = vadd.f32 0.0, %v2234
      %v2236 = vpop.f32.mrb[0].mxu0
      %v2237 = vpop.f32.mrb[0].mxu0
      %v2238 = vadd.f32 0.0, %v2237
      %v2239 = vpop.f32.mrb[0].mxu0
      %2240 = vmatprep.mubr.bf16.mxu0 0
      %2241 = vmatmul.mubr.bf16.gmra.mrb[0].mxu0 %v1081
      %v2242 = vpop.f32.mrb[0].mxu0
      %v2243 = vadd.f32 0.0, %v2242
      %v2244 = vpop.f32.mrb[0].mxu0
      %v2245 = vpop.f32.mrb[0].mxu0
      %v2246 = vadd.f32 0.0, %v2245
      %v2247 = vpop.f32.mrb[0].mxu0
      %2248 = vmatprep.mubr.bf16.mxu0 0
      %2249 = vmatmul.mubr.bf16.gmra.mrb[0].mxu0 %v1098
      %v2250 = vpop.f32.mrb[0].mxu0
      %v2251 = vadd.f32 0.0, %v2250
      %v2252 = vpop.f32.mrb[0].mxu0
      %v2253 = vpop.f32.mrb[0].mxu0
      %v2254 = vadd.f32 0.0, %v2253
      %v2255 = vpop.f32.mrb[0].mxu0
      %2256 = vmatprep.mubr.bf16.mxu0 0
      %2257 = vmatmul.mubr.bf16.gmra.mrb[0].mxu0 %v1115
      %v2258 = vpop.f32.mrb[0].mxu0
      %v2259 = vadd.f32 0.0, %v2258
      %v2260 = vpop.f32.mrb[0].mxu0
      %v2261 = vpop.f32.mrb[0].mxu0
      %v2262 = vadd.f32 0.0, %v2261
      %v2263 = vpop.f32.mrb[0].mxu0
      %2264 = vmatprep.mubr.bf16.mxu0 0
      %2265 = vmatmul.mubr.bf16.gmra.mrb[0].mxu0 %v1132
      %v2266 = vpop.f32.mrb[0].mxu0
      %v2267 = vadd.f32 0.0, %v2266
      %v2268 = vpop.f32.mrb[0].mxu0
      %v2269 = vpop.f32.mrb[0].mxu0
      %v2270 = vadd.f32 0.0, %v2269
      %v2271 = vpop.f32.mrb[0].mxu0
      %2272 = vmatprep.mubr.bf16.mxu0 0
      %2273 = vmatmul.mubr.bf16.gmra.mrb[0].mxu0 %v1149
      %v2274 = vpop.f32.mrb[0].mxu0
      %v2275 = vadd.f32 0.0, %v2274
      %v2276 = vpop.f32.mrb[0].mxu0
      %v2277 = vpop.f32.mrb[0].mxu0
      %v2278 = vadd.f32 0.0, %v2277
      %v2279 = vpop.f32.mrb[0].mxu0
      %2280 = vmatprep.mubr.bf16.mxu0 0
      %2281 = vmatmul.mubr.bf16.gmra.mrb[0].mxu0 %v2092
      %v2282 = vpop.f32.mrb[0].mxu0
      %v2283 = vadd.f32 0.0, %v2282
      %v2284 = vpop.f32.mrb[0].mxu0
      %v2285 = vpop.f32.mrb[0].mxu0
      %v2286 = vadd.f32 0.0, %v2285
      %v2287 = vpop.f32.mrb[0].mxu0
      %2288 = vdwg.mxu0
      %v2289 = vadd.f32 %v2036, %v2131
      %v2290 = vadd.f32 %v2037, %v2134
      %v2291 = vadd.f32 %v2038, %v2139
      %v2292 = vadd.f32 %v2039, %v2142
      %v2293 = vadd.f32 %v2040, %v2147
      %v2294 = vadd.f32 %v2041, %v2150
      %v2295 = vadd.f32 %v2042, %v2155
      %v2296 = vadd.f32 %v2043, %v2158
      %v2297 = vadd.f32 %v2044, %v2163
      %v2298 = vadd.f32 %v2045, %v2166
      %v2299 = vadd.f32 %v2046, %v2171
      %v2300 = vadd.f32 %v2047, %v2174
      %v2301 = vadd.f32 %v2048, %v2179
      %v2302 = vadd.f32 %v2049, %v2182
      %v2303 = vadd.f32 %v2050, %v2187
      %v2304 = vadd.f32 %v2051, %v2190
      %v2305 = vadd.f32 %v2052, %v2195
      %v2306 = vadd.f32 %v2053, %v2198
      %v2307 = vadd.f32 %v2054, %v2203
      %v2308 = vadd.f32 %v2055, %v2206
      %v2309 = vadd.f32 %v2056, %v2211
      %v2310 = vadd.f32 %v2057, %v2214
      %v2311 = vadd.f32 %v2058, %v2219
      %v2312 = vadd.f32 %v2059, %v2222
      %v2313 = vadd.f32 %v2060, %v2227
      %v2314 = vadd.f32 %v2061, %v2230
      %v2315 = vadd.f32 %v2062, %v2235
      %v2316 = vadd.f32 %v2063, %v2238
      %v2317 = vadd.f32 %v2064, %v2243
      %v2318 = vadd.f32 %v2065, %v2246
      %v2319 = vadd.f32 %v2066, %v2251
      %v2320 = vadd.f32 %v2067, %v2254
      %v2321 = vadd.f32 %v2068, %v2259
      %v2322 = vadd.f32 %v2069, %v2262
      %v2323 = vadd.f32 %v2070, %v2267
      %v2324 = vadd.f32 %v2071, %v2270
      %v2325 = vadd.f32 %v2072, %v2275
      %v2326 = vadd.f32 %v2073, %v2278
      %v2327 = vadd.f32 %v2074, %v2283
      %v2328 = vadd.f32 %v2075, %v2286
      %v2331 = vrot.slane %v805, 4
      %v2332 = vrot.slane %v806, 4
      %v2333 = vsel %vm1211, %v2331, %v2332
      %s2335 = scalar_lea.vmem %s3, 8
      %v2336 = vld [vmem:[%s2335] sm:$0x3]
      %2337 = vmatprep.subr.bf16.mxu0 0
      %2338 = vmatpush1.bf16.xpose.msra.mxu0 %v2336
      %2339 = vmatprep.subr.bf16.mxu0 0
      %2340 = vmatpush1.bf16.xpose.msra.mxu0 0
      %2341 = vmatprep.subr.bf16.mxu0 0
      %2342 = vmatpush1.bf16.xpose.msra.mxu0 0
      %2343 = vmatprep.subr.bf16.mxu0 0
      %2344 = vmatpush1.bf16.xpose.msra.mxu0 0
      %2345 = vmatprep.subr.bf16.mxu0 0
      %2346 = vmatpush1.bf16.xpose.msra.mxu0 0
      %2347 = vmatprep.subr.bf16.mxu0 0
      %2348 = vmatpush1.bf16.xpose.msra.mxu0 0
      %2349 = vmatprep.subr.bf16.mxu0 0
      %2350 = vmatpush1.bf16.xpose.msra.mxu0 0
      %2351 = vmatprep.subr.bf16.mxu0 0
      %2352 = vmatpush1.bf16.xpose.msra.mxu0 0
      %2353 = vmatprep.subr.bf16.mxu0 0
      %2354 = vmatpush1.bf16.xpose.msra.mxu0 0
      %2355 = vmatprep.subr.bf16.mxu0 0
      %2356 = vmatpush1.bf16.xpose.msra.mxu0 0
      %2357 = vmatprep.subr.bf16.mxu0 0
      %2358 = vmatpush1.bf16.xpose.msra.mxu0 0
      %2359 = vmatprep.subr.bf16.mxu0 0
      %2360 = vmatpush1.bf16.xpose.msra.mxu0 0
      %2361 = vmatprep.subr.bf16.mxu0 0
      %2362 = vmatpush1.bf16.xpose.msra.mxu0 0
      %2363 = vmatprep.subr.bf16.mxu0 0
      %2364 = vmatpush1.bf16.xpose.msra.mxu0 0
      %2365 = vmatprep.subr.bf16.mxu0 0
      %2366 = vmatpush1.bf16.xpose.msra.mxu0 0
      %2367 = vmatprep.subr.bf16.mxu0 0
      %2368 = vmatpush1.bf16.xpose.msra.mxu0 0
      %2369 = vmatprep.mubr.bf16.mxu0 0
      %2370 = vmatmul.mubr.bf16.gmra.mrb[0].mxu0 %v1217
      %v2371 = vpop.f32.mrb[0].mxu0
      %v2372 = vadd.f32 0.0, %v2371
      %v2373 = vpop.f32.mrb[0].mxu0
      %v2374 = vpop.f32.mrb[0].mxu0
      %v2375 = vadd.f32 0.0, %v2374
      %v2376 = vpop.f32.mrb[0].mxu0
      %2377 = vmatprep.mubr.bf16.mxu0 0
      %2378 = vmatmul.mubr.bf16.gmra.mrb[0].mxu0 %v1220
      %v2379 = vpop.f32.mrb[0].mxu0
      %v2380 = vadd.f32 0.0, %v2379
      %v2381 = vpop.f32.mrb[0].mxu0
      %v2382 = vpop.f32.mrb[0].mxu0
      %v2383 = vadd.f32 0.0, %v2382
      %v2384 = vpop.f32.mrb[0].mxu0
      %2385 = vmatprep.mubr.bf16.mxu0 0
      %2386 = vmatmul.mubr.bf16.gmra.mrb[0].mxu0 %v1223
      %v2387 = vpop.f32.mrb[0].mxu0
      %v2388 = vadd.f32 0.0, %v2387
      %v2389 = vpop.f32.mrb[0].mxu0
      %v2390 = vpop.f32.mrb[0].mxu0
      %v2391 = vadd.f32 0.0, %v2390
      %v2392 = vpop.f32.mrb[0].mxu0
      %2393 = vmatprep.mubr.bf16.mxu0 0
      %2394 = vmatmul.mubr.bf16.gmra.mrb[0].mxu0 %v1226
      %v2395 = vpop.f32.mrb[0].mxu0
      %v2396 = vadd.f32 0.0, %v2395
      %v2397 = vpop.f32.mrb[0].mxu0
      %v2398 = vpop.f32.mrb[0].mxu0
      %v2399 = vadd.f32 0.0, %v2398
      %v2400 = vpop.f32.mrb[0].mxu0
      %2401 = vmatprep.mubr.bf16.mxu0 0
      %2402 = vmatmul.mubr.bf16.gmra.mrb[0].mxu0 %v1229
      %v2403 = vpop.f32.mrb[0].mxu0
      %v2404 = vadd.f32 0.0, %v2403
      %v2405 = vpop.f32.mrb[0].mxu0
      %v2406 = vpop.f32.mrb[0].mxu0
      %v2407 = vadd.f32 0.0, %v2406
      %v2408 = vpop.f32.mrb[0].mxu0
      %2409 = vmatprep.mubr.bf16.mxu0 0
      %2410 = vmatmul.mubr.bf16.gmra.mrb[0].mxu0 %v1232
      %v2411 = vpop.f32.mrb[0].mxu0
      %v2412 = vadd.f32 0.0, %v2411
      %v2413 = vpop.f32.mrb[0].mxu0
      %v2414 = vpop.f32.mrb[0].mxu0
      %v2415 = vadd.f32 0.0, %v2414
      %v2416 = vpop.f32.mrb[0].mxu0
      %2417 = vmatprep.mubr.bf16.mxu0 0
      %2418 = vmatmul.mubr.bf16.gmra.mrb[0].mxu0 %v1235
      %v2419 = vpop.f32.mrb[0].mxu0
      %v2420 = vadd.f32 0.0, %v2419
      %v2421 = vpop.f32.mrb[0].mxu0
      %v2422 = vpop.f32.mrb[0].mxu0
      %v2423 = vadd.f32 0.0, %v2422
      %v2424 = vpop.f32.mrb[0].mxu0
      %2425 = vmatprep.mubr.bf16.mxu0 0
      %2426 = vmatmul.mubr.bf16.gmra.mrb[0].mxu0 %v1238
      %v2427 = vpop.f32.mrb[0].mxu0
      %v2428 = vadd.f32 0.0, %v2427
      %v2429 = vpop.f32.mrb[0].mxu0
      %v2430 = vpop.f32.mrb[0].mxu0
      %v2431 = vadd.f32 0.0, %v2430
      %v2432 = vpop.f32.mrb[0].mxu0
      %2433 = vmatprep.mubr.bf16.mxu0 0
      %2434 = vmatmul.mubr.bf16.gmra.mrb[0].mxu0 %v1241
      %v2435 = vpop.f32.mrb[0].mxu0
      %v2436 = vadd.f32 0.0, %v2435
      %v2437 = vpop.f32.mrb[0].mxu0
      %v2438 = vpop.f32.mrb[0].mxu0
      %v2439 = vadd.f32 0.0, %v2438
      %v2440 = vpop.f32.mrb[0].mxu0
      %2441 = vmatprep.mubr.bf16.mxu0 0
      %2442 = vmatmul.mubr.bf16.gmra.mrb[0].mxu0 %v1244
      %v2443 = vpop.f32.mrb[0].mxu0
      %v2444 = vadd.f32 0.0, %v2443
      %v2445 = vpop.f32.mrb[0].mxu0
      %v2446 = vpop.f32.mrb[0].mxu0
      %v2447 = vadd.f32 0.0, %v2446
      %v2448 = vpop.f32.mrb[0].mxu0
      %2449 = vmatprep.mubr.bf16.mxu0 0
      %2450 = vmatmul.mubr.bf16.gmra.mrb[0].mxu0 %v1247
      %v2451 = vpop.f32.mrb[0].mxu0
      %v2452 = vadd.f32 0.0, %v2451
      %v2453 = vpop.f32.mrb[0].mxu0
      %v2454 = vpop.f32.mrb[0].mxu0
      %v2455 = vadd.f32 0.0, %v2454
      %v2456 = vpop.f32.mrb[0].mxu0
      %2457 = vmatprep.mubr.bf16.mxu0 0
      %2458 = vmatmul.mubr.bf16.gmra.mrb[0].mxu0 %v1250
      %v2459 = vpop.f32.mrb[0].mxu0
      %v2460 = vadd.f32 0.0, %v2459
      %v2461 = vpop.f32.mrb[0].mxu0
      %v2462 = vpop.f32.mrb[0].mxu0
      %v2463 = vadd.f32 0.0, %v2462
      %v2464 = vpop.f32.mrb[0].mxu0
      %2465 = vmatprep.mubr.bf16.mxu0 0
      %2466 = vmatmul.mubr.bf16.gmra.mrb[0].mxu0 %v1253
      %v2467 = vpop.f32.mrb[0].mxu0
      %v2468 = vadd.f32 0.0, %v2467
      %v2469 = vpop.f32.mrb[0].mxu0
      %v2470 = vpop.f32.mrb[0].mxu0
      %v2471 = vadd.f32 0.0, %v2470
      %v2472 = vpop.f32.mrb[0].mxu0
      %2473 = vmatprep.mubr.bf16.mxu0 0
      %2474 = vmatmul.mubr.bf16.gmra.mrb[0].mxu0 %v1256
      %v2475 = vpop.f32.mrb[0].mxu0
      %v2476 = vadd.f32 0.0, %v2475
      %v2477 = vpop.f32.mrb[0].mxu0
      %v2478 = vpop.f32.mrb[0].mxu0
      %v2479 = vadd.f32 0.0, %v2478
      %v2480 = vpop.f32.mrb[0].mxu0
      %2481 = vmatprep.mubr.bf16.mxu0 0
      %2482 = vmatmul.mubr.bf16.gmra.mrb[0].mxu0 %v1259
      %v2483 = vpop.f32.mrb[0].mxu0
      %v2484 = vadd.f32 0.0, %v2483
      %v2485 = vpop.f32.mrb[0].mxu0
      %v2486 = vpop.f32.mrb[0].mxu0
      %v2487 = vadd.f32 0.0, %v2486
      %v2488 = vpop.f32.mrb[0].mxu0
      %2489 = vmatprep.mubr.bf16.mxu0 0
      %2490 = vmatmul.mubr.bf16.gmra.mrb[0].mxu0 %v1262
      %v2491 = vpop.f32.mrb[0].mxu0
      %v2492 = vadd.f32 0.0, %v2491
      %v2493 = vpop.f32.mrb[0].mxu0
      %v2494 = vpop.f32.mrb[0].mxu0
      %v2495 = vadd.f32 0.0, %v2494
      %v2496 = vpop.f32.mrb[0].mxu0
      %2497 = vmatprep.mubr.bf16.mxu0 0
      %2498 = vmatmul.mubr.bf16.gmra.mrb[0].mxu0 %v1265
      %v2499 = vpop.f32.mrb[0].mxu0
      %v2500 = vadd.f32 0.0, %v2499
      %v2501 = vpop.f32.mrb[0].mxu0
      %v2502 = vpop.f32.mrb[0].mxu0
      %v2503 = vadd.f32 0.0, %v2502
      %v2504 = vpop.f32.mrb[0].mxu0
      %2505 = vmatprep.mubr.bf16.mxu0 0
      %2506 = vmatmul.mubr.bf16.gmra.mrb[0].mxu0 %v1268
      %v2507 = vpop.f32.mrb[0].mxu0
      %v2508 = vadd.f32 0.0, %v2507
      %v2509 = vpop.f32.mrb[0].mxu0
      %v2510 = vpop.f32.mrb[0].mxu0
      %v2511 = vadd.f32 0.0, %v2510
      %v2512 = vpop.f32.mrb[0].mxu0
      %2513 = vmatprep.mubr.bf16.mxu0 0
      %2514 = vmatmul.mubr.bf16.gmra.mrb[0].mxu0 %v1271
      %v2515 = vpop.f32.mrb[0].mxu0
      %v2516 = vadd.f32 0.0, %v2515
      %v2517 = vpop.f32.mrb[0].mxu0
      %v2518 = vpop.f32.mrb[0].mxu0
      %v2519 = vadd.f32 0.0, %v2518
      %v2520 = vpop.f32.mrb[0].mxu0
      %2521 = vmatprep.mubr.bf16.mxu0 0
      %2522 = vmatmul.mubr.bf16.gmra.mrb[0].mxu0 %v2333
      %v2523 = vpop.f32.mrb[0].mxu0
      %v2524 = vadd.f32 0.0, %v2523
      %v2525 = vpop.f32.mrb[0].mxu0
      %v2526 = vpop.f32.mrb[0].mxu0
      %v2527 = vadd.f32 0.0, %v2526
      %v2528 = vpop.f32.mrb[0].mxu0
      %2529 = vdwg.mxu0
      %v2530 = vadd.f32 %v2289, %v2372
      %v2531 = vadd.f32 %v2290, %v2375
      %v2532 = vadd.f32 %v2291, %v2380
      %v2533 = vadd.f32 %v2292, %v2383
      %v2534 = vadd.f32 %v2293, %v2388
      %v2535 = vadd.f32 %v2294, %v2391
      %v2536 = vadd.f32 %v2295, %v2396
      %v2537 = vadd.f32 %v2296, %v2399
      %v2538 = vadd.f32 %v2297, %v2404
      %v2539 = vadd.f32 %v2298, %v2407
      %v2540 = vadd.f32 %v2299, %v2412
      %v2541 = vadd.f32 %v2300, %v2415
      %v2542 = vadd.f32 %v2301, %v2420
      %v2543 = vadd.f32 %v2302, %v2423
      %v2544 = vadd.f32 %v2303, %v2428
      %v2545 = vadd.f32 %v2304, %v2431
      %v2546 = vadd.f32 %v2305, %v2436
      %v2547 = vadd.f32 %v2306, %v2439
      %v2548 = vadd.f32 %v2307, %v2444
      %v2549 = vadd.f32 %v2308, %v2447
      %v2550 = vadd.f32 %v2309, %v2452
      %v2551 = vadd.f32 %v2310, %v2455
      %v2552 = vadd.f32 %v2311, %v2460
      %v2553 = vadd.f32 %v2312, %v2463
      %v2554 = vadd.f32 %v2313, %v2468
      %v2555 = vadd.f32 %v2314, %v2471
      %v2556 = vadd.f32 %v2315, %v2476
      %v2557 = vadd.f32 %v2316, %v2479
      %v2558 = vadd.f32 %v2317, %v2484
      %v2559 = vadd.f32 %v2318, %v2487
      %v2560 = vadd.f32 %v2319, %v2492
      %v2561 = vadd.f32 %v2320, %v2495
      %v2562 = vadd.f32 %v2321, %v2500
      %v2563 = vadd.f32 %v2322, %v2503
      %v2564 = vadd.f32 %v2323, %v2508
      %v2565 = vadd.f32 %v2324, %v2511
      %v2566 = vadd.f32 %v2325, %v2516
      %v2567 = vadd.f32 %v2326, %v2519
      %v2568 = vadd.f32 %v2327, %v2524
      %v2569 = vadd.f32 %v2328, %v2527
      %v2570 = vrot.slane %v2077, 4
      %v2571 = vrot.slane %v2080, 5
      %v2572 = vor.u32 %v2570, %v2571
      %v2573 = vrot.slane %v2085, 4
      %v2574 = vrot.slane %v2088, 5
      %v2575 = vor.u32 %v2573, %v2574
      %v2576 = vsel %vm1680, %v2572, %v2575
      %s2578 = scalar_lea.vmem %s3, 10
      %v2579 = vld [vmem:[%s2578] sm:$0x3]
      %2580 = vmatprep.subr.bf16.mxu0 0
      %2581 = vmatpush1.bf16.xpose.msra.mxu0 %v2579
      %2582 = vmatprep.subr.bf16.mxu0 0
      %2583 = vmatpush1.bf16.xpose.msra.mxu0 0
      %2584 = vmatprep.subr.bf16.mxu0 0
      %2585 = vmatpush1.bf16.xpose.msra.mxu0 0
      %2586 = vmatprep.subr.bf16.mxu0 0
      %2587 = vmatpush1.bf16.xpose.msra.mxu0 0
      %2588 = vmatprep.subr.bf16.mxu0 0
      %2589 = vmatpush1.bf16.xpose.msra.mxu0 0
      %2590 = vmatprep.subr.bf16.mxu0 0
      %2591 = vmatpush1.bf16.xpose.msra.mxu0 0
      %2592 = vmatprep.subr.bf16.mxu0 0
      %2593 = vmatpush1.bf16.xpose.msra.mxu0 0
      %2594 = vmatprep.subr.bf16.mxu0 0
      %2595 = vmatpush1.bf16.xpose.msra.mxu0 0
      %2596 = vmatprep.subr.bf16.mxu0 0
      %2597 = vmatpush1.bf16.xpose.msra.mxu0 0
      %2598 = vmatprep.subr.bf16.mxu0 0
      %2599 = vmatpush1.bf16.xpose.msra.mxu0 0
      %2600 = vmatprep.subr.bf16.mxu0 0
      %2601 = vmatpush1.bf16.xpose.msra.mxu0 0
      %2602 = vmatprep.subr.bf16.mxu0 0
      %2603 = vmatpush1.bf16.xpose.msra.mxu0 0
      %2604 = vmatprep.subr.bf16.mxu0 0
      %2605 = vmatpush1.bf16.xpose.msra.mxu0 0
      %2606 = vmatprep.subr.bf16.mxu0 0
      %2607 = vmatpush1.bf16.xpose.msra.mxu0 0
      %2608 = vmatprep.subr.bf16.mxu0 0
      %2609 = vmatpush1.bf16.xpose.msra.mxu0 0
      %2610 = vmatprep.subr.bf16.mxu0 0
      %2611 = vmatpush1.bf16.xpose.msra.mxu0 0
      %2612 = vmatprep.mubr.bf16.mxu0 0
      %2613 = vmatmul.mubr.bf16.gmra.mrb[0].mxu0 %v1694
      %v2614 = vpop.f32.mrb[0].mxu0
      %v2615 = vadd.f32 0.0, %v2614
      %v2616 = vpop.f32.mrb[0].mxu0
      %v2617 = vpop.f32.mrb[0].mxu0
      %v2618 = vadd.f32 0.0, %v2617
      %v2619 = vpop.f32.mrb[0].mxu0
      %2620 = vmatprep.mubr.bf16.mxu0 0
      %2621 = vmatmul.mubr.bf16.gmra.mrb[0].mxu0 %v1701
      %v2622 = vpop.f32.mrb[0].mxu0
      %v2623 = vadd.f32 0.0, %v2622
      %v2624 = vpop.f32.mrb[0].mxu0
      %v2625 = vpop.f32.mrb[0].mxu0
      %v2626 = vadd.f32 0.0, %v2625
      %v2627 = vpop.f32.mrb[0].mxu0
      %2628 = vmatprep.mubr.bf16.mxu0 0
      %2629 = vmatmul.mubr.bf16.gmra.mrb[0].mxu0 %v1708
      %v2630 = vpop.f32.mrb[0].mxu0
      %v2631 = vadd.f32 0.0, %v2630
      %v2632 = vpop.f32.mrb[0].mxu0
      %v2633 = vpop.f32.mrb[0].mxu0
      %v2634 = vadd.f32 0.0, %v2633
      %v2635 = vpop.f32.mrb[0].mxu0
      %2636 = vmatprep.mubr.bf16.mxu0 0
      %2637 = vmatmul.mubr.bf16.gmra.mrb[0].mxu0 %v1715
      %v2638 = vpop.f32.mrb[0].mxu0
      %v2639 = vadd.f32 0.0, %v2638
      %v2640 = vpop.f32.mrb[0].mxu0
      %v2641 = vpop.f32.mrb[0].mxu0
      %v2642 = vadd.f32 0.0, %v2641
      %v2643 = vpop.f32.mrb[0].mxu0
      %2644 = vmatprep.mubr.bf16.mxu0 0
      %2645 = vmatmul.mubr.bf16.gmra.mrb[0].mxu0 %v1722
      %v2646 = vpop.f32.mrb[0].mxu0
      %v2647 = vadd.f32 0.0, %v2646
      %v2648 = vpop.f32.mrb[0].mxu0
      %v2649 = vpop.f32.mrb[0].mxu0
      %v2650 = vadd.f32 0.0, %v2649
      %v2651 = vpop.f32.mrb[0].mxu0
      %2652 = vmatprep.mubr.bf16.mxu0 0
      %2653 = vmatmul.mubr.bf16.gmra.mrb[0].mxu0 %v1729
      %v2654 = vpop.f32.mrb[0].mxu0
      %v2655 = vadd.f32 0.0, %v2654
      %v2656 = vpop.f32.mrb[0].mxu0
      %v2657 = vpop.f32.mrb[0].mxu0
      %v2658 = vadd.f32 0.0, %v2657
      %v2659 = vpop.f32.mrb[0].mxu0
      %2660 = vmatprep.mubr.bf16.mxu0 0
      %2661 = vmatmul.mubr.bf16.gmra.mrb[0].mxu0 %v1736
      %v2662 = vpop.f32.mrb[0].mxu0
      %v2663 = vadd.f32 0.0, %v2662
      %v2664 = vpop.f32.mrb[0].mxu0
      %v2665 = vpop.f32.mrb[0].mxu0
      %v2666 = vadd.f32 0.0, %v2665
      %v2667 = vpop.f32.mrb[0].mxu0
      %2668 = vmatprep.mubr.bf16.mxu0 0
      %2669 = vmatmul.mubr.bf16.gmra.mrb[0].mxu0 %v1743
      %v2670 = vpop.f32.mrb[0].mxu0
      %v2671 = vadd.f32 0.0, %v2670
      %v2672 = vpop.f32.mrb[0].mxu0
      %v2673 = vpop.f32.mrb[0].mxu0
      %v2674 = vadd.f32 0.0, %v2673
      %v2675 = vpop.f32.mrb[0].mxu0
      %2676 = vmatprep.mubr.bf16.mxu0 0
      %2677 = vmatmul.mubr.bf16.gmra.mrb[0].mxu0 %v1750
      %v2678 = vpop.f32.mrb[0].mxu0
      %v2679 = vadd.f32 0.0, %v2678
      %v2680 = vpop.f32.mrb[0].mxu0
      %v2681 = vpop.f32.mrb[0].mxu0
      %v2682 = vadd.f32 0.0, %v2681
      %v2683 = vpop.f32.mrb[0].mxu0
      %2684 = vmatprep.mubr.bf16.mxu0 0
      %2685 = vmatmul.mubr.bf16.gmra.mrb[0].mxu0 %v1757
      %v2686 = vpop.f32.mrb[0].mxu0
      %v2687 = vadd.f32 0.0, %v2686
      %v2688 = vpop.f32.mrb[0].mxu0
      %v2689 = vpop.f32.mrb[0].mxu0
      %v2690 = vadd.f32 0.0, %v2689
      %v2691 = vpop.f32.mrb[0].mxu0
      %2692 = vmatprep.mubr.bf16.mxu0 0
      %2693 = vmatmul.mubr.bf16.gmra.mrb[0].mxu0 %v1764
      %v2694 = vpop.f32.mrb[0].mxu0
      %v2695 = vadd.f32 0.0, %v2694
      %v2696 = vpop.f32.mrb[0].mxu0
      %v2697 = vpop.f32.mrb[0].mxu0
      %v2698 = vadd.f32 0.0, %v2697
      %v2699 = vpop.f32.mrb[0].mxu0
      %2700 = vmatprep.mubr.bf16.mxu0 0
      %2701 = vmatmul.mubr.bf16.gmra.mrb[0].mxu0 %v1771
      %v2702 = vpop.f32.mrb[0].mxu0
      %v2703 = vadd.f32 0.0, %v2702
      %v2704 = vpop.f32.mrb[0].mxu0
      %v2705 = vpop.f32.mrb[0].mxu0
      %v2706 = vadd.f32 0.0, %v2705
      %v2707 = vpop.f32.mrb[0].mxu0
      %2708 = vmatprep.mubr.bf16.mxu0 0
      %2709 = vmatmul.mubr.bf16.gmra.mrb[0].mxu0 %v1778
      %v2710 = vpop.f32.mrb[0].mxu0
      %v2711 = vadd.f32 0.0, %v2710
      %v2712 = vpop.f32.mrb[0].mxu0
      %v2713 = vpop.f32.mrb[0].mxu0
      %v2714 = vadd.f32 0.0, %v2713
      %v2715 = vpop.f32.mrb[0].mxu0
      %2716 = vmatprep.mubr.bf16.mxu0 0
      %2717 = vmatmul.mubr.bf16.gmra.mrb[0].mxu0 %v1785
      %v2718 = vpop.f32.mrb[0].mxu0
      %v2719 = vadd.f32 0.0, %v2718
      %v2720 = vpop.f32.mrb[0].mxu0
      %v2721 = vpop.f32.mrb[0].mxu0
      %v2722 = vadd.f32 0.0, %v2721
      %v2723 = vpop.f32.mrb[0].mxu0
      %2724 = vmatprep.mubr.bf16.mxu0 0
      %2725 = vmatmul.mubr.bf16.gmra.mrb[0].mxu0 %v1792
      %v2726 = vpop.f32.mrb[0].mxu0
      %v2727 = vadd.f32 0.0, %v2726
      %v2728 = vpop.f32.mrb[0].mxu0
      %v2729 = vpop.f32.mrb[0].mxu0
      %v2730 = vadd.f32 0.0, %v2729
      %v2731 = vpop.f32.mrb[0].mxu0
      %2732 = vmatprep.mubr.bf16.mxu0 0
      %2733 = vmatmul.mubr.bf16.gmra.mrb[0].mxu0 %v1799
      %v2734 = vpop.f32.mrb[0].mxu0
      %v2735 = vadd.f32 0.0, %v2734
      %v2736 = vpop.f32.mrb[0].mxu0
      %v2737 = vpop.f32.mrb[0].mxu0
      %v2738 = vadd.f32 0.0, %v2737
      %v2739 = vpop.f32.mrb[0].mxu0
      %2740 = vmatprep.mubr.bf16.mxu0 0
      %2741 = vmatmul.mubr.bf16.gmra.mrb[0].mxu0 %v1806
      %v2742 = vpop.f32.mrb[0].mxu0
      %v2743 = vadd.f32 0.0, %v2742
      %v2744 = vpop.f32.mrb[0].mxu0
      %v2745 = vpop.f32.mrb[0].mxu0
      %v2746 = vadd.f32 0.0, %v2745
      %v2747 = vpop.f32.mrb[0].mxu0
      %2748 = vmatprep.mubr.bf16.mxu0 0
      %2749 = vmatmul.mubr.bf16.gmra.mrb[0].mxu0 %v1813
      %v2750 = vpop.f32.mrb[0].mxu0
      %v2751 = vadd.f32 0.0, %v2750
      %v2752 = vpop.f32.mrb[0].mxu0
      %v2753 = vpop.f32.mrb[0].mxu0
      %v2754 = vadd.f32 0.0, %v2753
      %v2755 = vpop.f32.mrb[0].mxu0
      %2756 = vmatprep.mubr.bf16.mxu0 0
      %2757 = vmatmul.mubr.bf16.gmra.mrb[0].mxu0 %v1820
      %v2758 = vpop.f32.mrb[0].mxu0
      %v2759 = vadd.f32 0.0, %v2758
      %v2760 = vpop.f32.mrb[0].mxu0
      %v2761 = vpop.f32.mrb[0].mxu0
      %v2762 = vadd.f32 0.0, %v2761
      %v2763 = vpop.f32.mrb[0].mxu0
      %2764 = vmatprep.mubr.bf16.mxu0 0
      %2765 = vmatmul.mubr.bf16.gmra.mrb[0].mxu0 %v2576
      %v2766 = vpop.f32.mrb[0].mxu0
      %v2767 = vadd.f32 0.0, %v2766
      %v2768 = vpop.f32.mrb[0].mxu0
      %v2769 = vpop.f32.mrb[0].mxu0
      %v2770 = vadd.f32 0.0, %v2769
      %v2771 = vpop.f32.mrb[0].mxu0
      %2772 = vdwg.mxu0
      %v2773 = vadd.f32 %v2530, %v2615
      %v2774 = vadd.f32 %v2531, %v2618
      %v2775 = vadd.f32 %v2532, %v2623
      %v2776 = vadd.f32 %v2533, %v2626
      %v2777 = vadd.f32 %v2534, %v2631
      %v2778 = vadd.f32 %v2535, %v2634
      %v2779 = vadd.f32 %v2536, %v2639
      %v2780 = vadd.f32 %v2537, %v2642
      %v2781 = vadd.f32 %v2538, %v2647
      %v2782 = vadd.f32 %v2539, %v2650
      %v2783 = vadd.f32 %v2540, %v2655
      %v2784 = vadd.f32 %v2541, %v2658
      %v2785 = vadd.f32 %v2542, %v2663
      %v2786 = vadd.f32 %v2543, %v2666
      %v2787 = vadd.f32 %v2544, %v2671
      %v2788 = vadd.f32 %v2545, %v2674
      %v2789 = vadd.f32 %v2546, %v2679
      %v2790 = vadd.f32 %v2547, %v2682
      %v2791 = vadd.f32 %v2548, %v2687
      %v2792 = vadd.f32 %v2549, %v2690
      %v2793 = vadd.f32 %v2550, %v2695
      %v2794 = vadd.f32 %v2551, %v2698
      %v2795 = vadd.f32 %v2552, %v2703
      %v2796 = vadd.f32 %v2553, %v2706
      %v2797 = vadd.f32 %v2554, %v2711
      %v2798 = vadd.f32 %v2555, %v2714
      %v2799 = vadd.f32 %v2556, %v2719
      %v2800 = vadd.f32 %v2557, %v2722
      %v2801 = vadd.f32 %v2558, %v2727
      %v2802 = vadd.f32 %v2559, %v2730
      %v2803 = vadd.f32 %v2560, %v2735
      %v2804 = vadd.f32 %v2561, %v2738
      %v2805 = vadd.f32 %v2562, %v2743
      %v2806 = vadd.f32 %v2563, %v2746
      %v2807 = vadd.f32 %v2564, %v2751
      %v2808 = vadd.f32 %v2565, %v2754
      %v2809 = vadd.f32 %v2566, %v2759
      %v2810 = vadd.f32 %v2567, %v2762
      %v2811 = vadd.f32 %v2568, %v2767
      %v2812 = vadd.f32 %v2569, %v2770
      %v2814 = vshrl.u32 %v807, 16
      %v2816 = vrot.slane %v2814, 3
      %v2817 = vshll.u32 %v807, 16
      %v2819 = vrot.slane %v2817, 4
      %v2820 = vor.u32 %v2816, %v2819
      %v2822 = vshrl.u32 %v808, 16
      %v2824 = vrot.slane %v2822, 3
      %v2825 = vshll.u32 %v808, 16
      %v2827 = vrot.slane %v2825, 4
      %v2828 = vor.u32 %v2824, %v2827
      %v2829 = vsel %vm809, %v2820, %v2828
      %s2831 = scalar_lea.vmem %s3, 12
      %v2832 = vld [vmem:[%s2831] sm:$0x3]
      %2833 = vmatprep.subr.bf16.mxu0 0
      %2834 = vmatpush1.bf16.xpose.msra.mxu0 %v2832
      %2835 = vmatprep.subr.bf16.mxu0 0
      %2836 = vmatpush1.bf16.xpose.msra.mxu0 0
      %2837 = vmatprep.subr.bf16.mxu0 0
      %2838 = vmatpush1.bf16.xpose.msra.mxu0 0
      %2839 = vmatprep.subr.bf16.mxu0 0
      %2840 = vmatpush1.bf16.xpose.msra.mxu0 0
      %2841 = vmatprep.subr.bf16.mxu0 0
      %2842 = vmatpush1.bf16.xpose.msra.mxu0 0
      %2843 = vmatprep.subr.bf16.mxu0 0
      %2844 = vmatpush1.bf16.xpose.msra.mxu0 0
      %2845 = vmatprep.subr.bf16.mxu0 0
      %2846 = vmatpush1.bf16.xpose.msra.mxu0 0
      %2847 = vmatprep.subr.bf16.mxu0 0
      %2848 = vmatpush1.bf16.xpose.msra.mxu0 0
      %2849 = vmatprep.subr.bf16.mxu0 0
      %2850 = vmatpush1.bf16.xpose.msra.mxu0 0
      %2851 = vmatprep.subr.bf16.mxu0 0
      %2852 = vmatpush1.bf16.xpose.msra.mxu0 0
      %2853 = vmatprep.subr.bf16.mxu0 0
      %2854 = vmatpush1.bf16.xpose.msra.mxu0 0
      %2855 = vmatprep.subr.bf16.mxu0 0
      %2856 = vmatpush1.bf16.xpose.msra.mxu0 0
      %2857 = vmatprep.subr.bf16.mxu0 0
      %2858 = vmatpush1.bf16.xpose.msra.mxu0 0
      %2859 = vmatprep.subr.bf16.mxu0 0
      %2860 = vmatpush1.bf16.xpose.msra.mxu0 0
      %2861 = vmatprep.subr.bf16.mxu0 0
      %2862 = vmatpush1.bf16.xpose.msra.mxu0 0
      %2863 = vmatprep.subr.bf16.mxu0 0
      %2864 = vmatpush1.bf16.xpose.msra.mxu0 0
      %2865 = vmatprep.mubr.bf16.mxu0 0
      %2866 = vmatmul.mubr.bf16.gmra.mrb[0].mxu0 %v860
      %v2867 = vpop.f32.mrb[0].mxu0
      %v2868 = vadd.f32 0.0, %v2867
      %v2869 = vpop.f32.mrb[0].mxu0
      %v2870 = vpop.f32.mrb[0].mxu0
      %v2871 = vadd.f32 0.0, %v2870
      %v2872 = vpop.f32.mrb[0].mxu0
      %2873 = vmatprep.mubr.bf16.mxu0 0
      %2874 = vmatmul.mubr.bf16.gmra.mrb[0].mxu0 %v877
      %v2875 = vpop.f32.mrb[0].mxu0
      %v2876 = vadd.f32 0.0, %v2875
      %v2877 = vpop.f32.mrb[0].mxu0
      %v2878 = vpop.f32.mrb[0].mxu0
      %v2879 = vadd.f32 0.0, %v2878
      %v2880 = vpop.f32.mrb[0].mxu0
      %2881 = vmatprep.mubr.bf16.mxu0 0
      %2882 = vmatmul.mubr.bf16.gmra.mrb[0].mxu0 %v894
      %v2883 = vpop.f32.mrb[0].mxu0
      %v2884 = vadd.f32 0.0, %v2883
      %v2885 = vpop.f32.mrb[0].mxu0
      %v2886 = vpop.f32.mrb[0].mxu0
      %v2887 = vadd.f32 0.0, %v2886
      %v2888 = vpop.f32.mrb[0].mxu0
      %2889 = vmatprep.mubr.bf16.mxu0 0
      %2890 = vmatmul.mubr.bf16.gmra.mrb[0].mxu0 %v911
      %v2891 = vpop.f32.mrb[0].mxu0
      %v2892 = vadd.f32 0.0, %v2891
      %v2893 = vpop.f32.mrb[0].mxu0
      %v2894 = vpop.f32.mrb[0].mxu0
      %v2895 = vadd.f32 0.0, %v2894
      %v2896 = vpop.f32.mrb[0].mxu0
      %2897 = vmatprep.mubr.bf16.mxu0 0
      %2898 = vmatmul.mubr.bf16.gmra.mrb[0].mxu0 %v928
      %v2899 = vpop.f32.mrb[0].mxu0
      %v2900 = vadd.f32 0.0, %v2899
      %v2901 = vpop.f32.mrb[0].mxu0
      %v2902 = vpop.f32.mrb[0].mxu0
      %v2903 = vadd.f32 0.0, %v2902
      %v2904 = vpop.f32.mrb[0].mxu0
      %2905 = vmatprep.mubr.bf16.mxu0 0
      %2906 = vmatmul.mubr.bf16.gmra.mrb[0].mxu0 %v945
      %v2907 = vpop.f32.mrb[0].mxu0
      %v2908 = vadd.f32 0.0, %v2907
      %v2909 = vpop.f32.mrb[0].mxu0
      %v2910 = vpop.f32.mrb[0].mxu0
      %v2911 = vadd.f32 0.0, %v2910
      %v2912 = vpop.f32.mrb[0].mxu0
      %2913 = vmatprep.mubr.bf16.mxu0 0
      %2914 = vmatmul.mubr.bf16.gmra.mrb[0].mxu0 %v962
      %v2915 = vpop.f32.mrb[0].mxu0
      %v2916 = vadd.f32 0.0, %v2915
      %v2917 = vpop.f32.mrb[0].mxu0
      %v2918 = vpop.f32.mrb[0].mxu0
      %v2919 = vadd.f32 0.0, %v2918
      %v2920 = vpop.f32.mrb[0].mxu0
      %2921 = vmatprep.mubr.bf16.mxu0 0
      %2922 = vmatmul.mubr.bf16.gmra.mrb[0].mxu0 %v979
      %v2923 = vpop.f32.mrb[0].mxu0
      %v2924 = vadd.f32 0.0, %v2923
      %v2925 = vpop.f32.mrb[0].mxu0
      %v2926 = vpop.f32.mrb[0].mxu0
      %v2927 = vadd.f32 0.0, %v2926
      %v2928 = vpop.f32.mrb[0].mxu0
      %2929 = vmatprep.mubr.bf16.mxu0 0
      %2930 = vmatmul.mubr.bf16.gmra.mrb[0].mxu0 %v996
      %v2931 = vpop.f32.mrb[0].mxu0
      %v2932 = vadd.f32 0.0, %v2931
      %v2933 = vpop.f32.mrb[0].mxu0
      %v2934 = vpop.f32.mrb[0].mxu0
      %v2935 = vadd.f32 0.0, %v2934
      %v2936 = vpop.f32.mrb[0].mxu0
      %2937 = vmatprep.mubr.bf16.mxu0 0
      %2938 = vmatmul.mubr.bf16.gmra.mrb[0].mxu0 %v1013
      %v2939 = vpop.f32.mrb[0].mxu0
      %v2940 = vadd.f32 0.0, %v2939
      %v2941 = vpop.f32.mrb[0].mxu0
      %v2942 = vpop.f32.mrb[0].mxu0
      %v2943 = vadd.f32 0.0, %v2942
      %v2944 = vpop.f32.mrb[0].mxu0
      %2945 = vmatprep.mubr.bf16.mxu0 0
      %2946 = vmatmul.mubr.bf16.gmra.mrb[0].mxu0 %v1030
      %v2947 = vpop.f32.mrb[0].mxu0
      %v2948 = vadd.f32 0.0, %v2947
      %v2949 = vpop.f32.mrb[0].mxu0
      %v2950 = vpop.f32.mrb[0].mxu0
      %v2951 = vadd.f32 0.0, %v2950
      %v2952 = vpop.f32.mrb[0].mxu0
      %2953 = vmatprep.mubr.bf16.mxu0 0
      %2954 = vmatmul.mubr.bf16.gmra.mrb[0].mxu0 %v1047
      %v2955 = vpop.f32.mrb[0].mxu0
      %v2956 = vadd.f32 0.0, %v2955
      %v2957 = vpop.f32.mrb[0].mxu0
      %v2958 = vpop.f32.mrb[0].mxu0
      %v2959 = vadd.f32 0.0, %v2958
      %v2960 = vpop.f32.mrb[0].mxu0
      %2961 = vmatprep.mubr.bf16.mxu0 0
      %2962 = vmatmul.mubr.bf16.gmra.mrb[0].mxu0 %v1064
      %v2963 = vpop.f32.mrb[0].mxu0
      %v2964 = vadd.f32 0.0, %v2963
      %v2965 = vpop.f32.mrb[0].mxu0
      %v2966 = vpop.f32.mrb[0].mxu0
      %v2967 = vadd.f32 0.0, %v2966
      %v2968 = vpop.f32.mrb[0].mxu0
      %2969 = vmatprep.mubr.bf16.mxu0 0
      %2970 = vmatmul.mubr.bf16.gmra.mrb[0].mxu0 %v1081
      %v2971 = vpop.f32.mrb[0].mxu0
      %v2972 = vadd.f32 0.0, %v2971
      %v2973 = vpop.f32.mrb[0].mxu0
      %v2974 = vpop.f32.mrb[0].mxu0
      %v2975 = vadd.f32 0.0, %v2974
      %v2976 = vpop.f32.mrb[0].mxu0
      %2977 = vmatprep.mubr.bf16.mxu0 0
      %2978 = vmatmul.mubr.bf16.gmra.mrb[0].mxu0 %v1098
      %v2979 = vpop.f32.mrb[0].mxu0
      %v2980 = vadd.f32 0.0, %v2979
      %v2981 = vpop.f32.mrb[0].mxu0
      %v2982 = vpop.f32.mrb[0].mxu0
      %v2983 = vadd.f32 0.0, %v2982
      %v2984 = vpop.f32.mrb[0].mxu0
      %2985 = vmatprep.mubr.bf16.mxu0 0
      %2986 = vmatmul.mubr.bf16.gmra.mrb[0].mxu0 %v1115
      %v2987 = vpop.f32.mrb[0].mxu0
      %v2988 = vadd.f32 0.0, %v2987
      %v2989 = vpop.f32.mrb[0].mxu0
      %v2990 = vpop.f32.mrb[0].mxu0
      %v2991 = vadd.f32 0.0, %v2990
      %v2992 = vpop.f32.mrb[0].mxu0
      %2993 = vmatprep.mubr.bf16.mxu0 0
      %2994 = vmatmul.mubr.bf16.gmra.mrb[0].mxu0 %v1132
      %v2995 = vpop.f32.mrb[0].mxu0
      %v2996 = vadd.f32 0.0, %v2995
      %v2997 = vpop.f32.mrb[0].mxu0
      %v2998 = vpop.f32.mrb[0].mxu0
      %v2999 = vadd.f32 0.0, %v2998
      %v3000 = vpop.f32.mrb[0].mxu0
      %3001 = vmatprep.mubr.bf16.mxu0 0
      %3002 = vmatmul.mubr.bf16.gmra.mrb[0].mxu0 %v1149
      %v3003 = vpop.f32.mrb[0].mxu0
      %v3004 = vadd.f32 0.0, %v3003
      %v3005 = vpop.f32.mrb[0].mxu0
      %v3006 = vpop.f32.mrb[0].mxu0
      %v3007 = vadd.f32 0.0, %v3006
      %v3008 = vpop.f32.mrb[0].mxu0
      %3009 = vmatprep.mubr.bf16.mxu0 0
      %3010 = vmatmul.mubr.bf16.gmra.mrb[0].mxu0 %v2092
      %v3011 = vpop.f32.mrb[0].mxu0
      %v3012 = vadd.f32 0.0, %v3011
      %v3013 = vpop.f32.mrb[0].mxu0
      %v3014 = vpop.f32.mrb[0].mxu0
      %v3015 = vadd.f32 0.0, %v3014
      %v3016 = vpop.f32.mrb[0].mxu0
      %3017 = vmatprep.mubr.bf16.mxu0 0
      %3018 = vmatmul.mubr.bf16.gmra.mrb[0].mxu0 %v2829
      %v3019 = vpop.f32.mrb[0].mxu0
      %v3020 = vadd.f32 0.0, %v3019
      %v3021 = vpop.f32.mrb[0].mxu0
      %v3022 = vpop.f32.mrb[0].mxu0
      %v3023 = vadd.f32 0.0, %v3022
      %v3024 = vpop.f32.mrb[0].mxu0
      %3025 = vdwg.mxu0
      %v3026 = vadd.f32 %v2773, %v2868
      %v3027 = vadd.f32 %v2774, %v2871
      %v3028 = vadd.f32 %v2775, %v2876
      %v3029 = vadd.f32 %v2776, %v2879
      %v3030 = vadd.f32 %v2777, %v2884
      %v3031 = vadd.f32 %v2778, %v2887
      %v3032 = vadd.f32 %v2779, %v2892
      %v3033 = vadd.f32 %v2780, %v2895
      %v3034 = vadd.f32 %v2781, %v2900
      %v3035 = vadd.f32 %v2782, %v2903
      %v3036 = vadd.f32 %v2783, %v2908
      %v3037 = vadd.f32 %v2784, %v2911
      %v3038 = vadd.f32 %v2785, %v2916
      %v3039 = vadd.f32 %v2786, %v2919
      %v3040 = vadd.f32 %v2787, %v2924
      %v3041 = vadd.f32 %v2788, %v2927
      %v3042 = vadd.f32 %v2789, %v2932
      %v3043 = vadd.f32 %v2790, %v2935
      %v3044 = vadd.f32 %v2791, %v2940
      %v3045 = vadd.f32 %v2792, %v2943
      %v3046 = vadd.f32 %v2793, %v2948
      %v3047 = vadd.f32 %v2794, %v2951
      %v3048 = vadd.f32 %v2795, %v2956
      %v3049 = vadd.f32 %v2796, %v2959
      %v3050 = vadd.f32 %v2797, %v2964
      %v3051 = vadd.f32 %v2798, %v2967
      %v3052 = vadd.f32 %v2799, %v2972
      %v3053 = vadd.f32 %v2800, %v2975
      %v3054 = vadd.f32 %v2801, %v2980
      %v3055 = vadd.f32 %v2802, %v2983
      %v3056 = vadd.f32 %v2803, %v2988
      %v3057 = vadd.f32 %v2804, %v2991
      %v3058 = vadd.f32 %v2805, %v2996
      %v3059 = vadd.f32 %v2806, %v2999
      %v3060 = vadd.f32 %v2807, %v3004
      %v3061 = vadd.f32 %v2808, %v3007
      %v3062 = vadd.f32 %v2809, %v3012
      %v3063 = vadd.f32 %v2810, %v3015
      %v3064 = vadd.f32 %v2811, %v3020
      %v3065 = vadd.f32 %v2812, %v3023
      %v3068 = vrot.slane %v807, 4
      %v3069 = vrot.slane %v808, 4
      %v3070 = vsel %vm1211, %v3068, %v3069
      %s3072 = scalar_lea.vmem %s3, 14
      %v3073 = vld [vmem:[%s3072] sm:$0x3]
      %3074 = vmatprep.subr.bf16.mxu0 0
      %3075 = vmatpush1.bf16.xpose.msra.mxu0 %v3073
      %3076 = vmatprep.subr.bf16.mxu0 0
      %3077 = vmatpush1.bf16.xpose.msra.mxu0 0
      %3078 = vmatprep.subr.bf16.mxu0 0
      %3079 = vmatpush1.bf16.xpose.msra.mxu0 0
      %3080 = vmatprep.subr.bf16.mxu0 0
      %3081 = vmatpush1.bf16.xpose.msra.mxu0 0
      %3082 = vmatprep.subr.bf16.mxu0 0
      %3083 = vmatpush1.bf16.xpose.msra.mxu0 0
      %3084 = vmatprep.subr.bf16.mxu0 0
      %3085 = vmatpush1.bf16.xpose.msra.mxu0 0
      %3086 = vmatprep.subr.bf16.mxu0 0
      %3087 = vmatpush1.bf16.xpose.msra.mxu0 0
      %3088 = vmatprep.subr.bf16.mxu0 0
      %3089 = vmatpush1.bf16.xpose.msra.mxu0 0
      %3090 = vmatprep.subr.bf16.mxu0 0
      %3091 = vmatpush1.bf16.xpose.msra.mxu0 0
      %3092 = vmatprep.subr.bf16.mxu0 0
      %3093 = vmatpush1.bf16.xpose.msra.mxu0 0
      %3094 = vmatprep.subr.bf16.mxu0 0
      %3095 = vmatpush1.bf16.xpose.msra.mxu0 0
      %3096 = vmatprep.subr.bf16.mxu0 0
      %3097 = vmatpush1.bf16.xpose.msra.mxu0 0
      %3098 = vmatprep.subr.bf16.mxu0 0
      %3099 = vmatpush1.bf16.xpose.msra.mxu0 0
      %3100 = vmatprep.subr.bf16.mxu0 0
      %3101 = vmatpush1.bf16.xpose.msra.mxu0 0
      %3102 = vmatprep.subr.bf16.mxu0 0
      %3103 = vmatpush1.bf16.xpose.msra.mxu0 0
      %3104 = vmatprep.subr.bf16.mxu0 0
      %3105 = vmatpush1.bf16.xpose.msra.mxu0 0
      %3106 = vmatprep.mubr.bf16.mxu0 0
      %3107 = vmatmul.mubr.bf16.gmra.mrb[0].mxu0 %v1220
      %v3108 = vpop.f32.mrb[0].mxu0
      %v3109 = vadd.f32 0.0, %v3108
      %v3110 = vpop.f32.mrb[0].mxu0
      %v3111 = vpop.f32.mrb[0].mxu0
      %v3112 = vadd.f32 0.0, %v3111
      %v3113 = vpop.f32.mrb[0].mxu0
      %3114 = vmatprep.mubr.bf16.mxu0 0
      %3115 = vmatmul.mubr.bf16.gmra.mrb[0].mxu0 %v1223
      %v3116 = vpop.f32.mrb[0].mxu0
      %v3117 = vadd.f32 0.0, %v3116
      %v3118 = vpop.f32.mrb[0].mxu0
      %v3119 = vpop.f32.mrb[0].mxu0
      %v3120 = vadd.f32 0.0, %v3119
      %v3121 = vpop.f32.mrb[0].mxu0
      %3122 = vmatprep.mubr.bf16.mxu0 0
      %3123 = vmatmul.mubr.bf16.gmra.mrb[0].mxu0 %v1226
      %v3124 = vpop.f32.mrb[0].mxu0
      %v3125 = vadd.f32 0.0, %v3124
      %v3126 = vpop.f32.mrb[0].mxu0
      %v3127 = vpop.f32.mrb[0].mxu0
      %v3128 = vadd.f32 0.0, %v3127
      %v3129 = vpop.f32.mrb[0].mxu0
      %3130 = vmatprep.mubr.bf16.mxu0 0
      %3131 = vmatmul.mubr.bf16.gmra.mrb[0].mxu0 %v1229
      %v3132 = vpop.f32.mrb[0].mxu0
      %v3133 = vadd.f32 0.0, %v3132
      %v3134 = vpop.f32.mrb[0].mxu0
      %v3135 = vpop.f32.mrb[0].mxu0
      %v3136 = vadd.f32 0.0, %v3135
      %v3137 = vpop.f32.mrb[0].mxu0
      %3138 = vmatprep.mubr.bf16.mxu0 0
      %3139 = vmatmul.mubr.bf16.gmra.mrb[0].mxu0 %v1232
      %v3140 = vpop.f32.mrb[0].mxu0
      %v3141 = vadd.f32 0.0, %v3140
      %v3142 = vpop.f32.mrb[0].mxu0
      %v3143 = vpop.f32.mrb[0].mxu0
      %v3144 = vadd.f32 0.0, %v3143
      %v3145 = vpop.f32.mrb[0].mxu0
      %3146 = vmatprep.mubr.bf16.mxu0 0
      %3147 = vmatmul.mubr.bf16.gmra.mrb[0].mxu0 %v1235
      %v3148 = vpop.f32.mrb[0].mxu0
      %v3149 = vadd.f32 0.0, %v3148
      %v3150 = vpop.f32.mrb[0].mxu0
      %v3151 = vpop.f32.mrb[0].mxu0
      %v3152 = vadd.f32 0.0, %v3151
      %v3153 = vpop.f32.mrb[0].mxu0
      %3154 = vmatprep.mubr.bf16.mxu0 0
      %3155 = vmatmul.mubr.bf16.gmra.mrb[0].mxu0 %v1238
      %v3156 = vpop.f32.mrb[0].mxu0
      %v3157 = vadd.f32 0.0, %v3156
      %v3158 = vpop.f32.mrb[0].mxu0
      %v3159 = vpop.f32.mrb[0].mxu0
      %v3160 = vadd.f32 0.0, %v3159
      %v3161 = vpop.f32.mrb[0].mxu0
      %3162 = vmatprep.mubr.bf16.mxu0 0
      %3163 = vmatmul.mubr.bf16.gmra.mrb[0].mxu0 %v1241
      %v3164 = vpop.f32.mrb[0].mxu0
      %v3165 = vadd.f32 0.0, %v3164
      %v3166 = vpop.f32.mrb[0].mxu0
      %v3167 = vpop.f32.mrb[0].mxu0
      %v3168 = vadd.f32 0.0, %v3167
      %v3169 = vpop.f32.mrb[0].mxu0
      %3170 = vmatprep.mubr.bf16.mxu0 0
      %3171 = vmatmul.mubr.bf16.gmra.mrb[0].mxu0 %v1244
      %v3172 = vpop.f32.mrb[0].mxu0
      %v3173 = vadd.f32 0.0, %v3172
      %v3174 = vpop.f32.mrb[0].mxu0
      %v3175 = vpop.f32.mrb[0].mxu0
      %v3176 = vadd.f32 0.0, %v3175
      %v3177 = vpop.f32.mrb[0].mxu0
      %3178 = vmatprep.mubr.bf16.mxu0 0
      %3179 = vmatmul.mubr.bf16.gmra.mrb[0].mxu0 %v1247
      %v3180 = vpop.f32.mrb[0].mxu0
      %v3181 = vadd.f32 0.0, %v3180
      %v3182 = vpop.f32.mrb[0].mxu0
      %v3183 = vpop.f32.mrb[0].mxu0
      %v3184 = vadd.f32 0.0, %v3183
      %v3185 = vpop.f32.mrb[0].mxu0
      %3186 = vmatprep.mubr.bf16.mxu0 0
      %3187 = vmatmul.mubr.bf16.gmra.mrb[0].mxu0 %v1250
      %v3188 = vpop.f32.mrb[0].mxu0
      %v3189 = vadd.f32 0.0, %v3188
      %v3190 = vpop.f32.mrb[0].mxu0
      %v3191 = vpop.f32.mrb[0].mxu0
      %v3192 = vadd.f32 0.0, %v3191
      %v3193 = vpop.f32.mrb[0].mxu0
      %3194 = vmatprep.mubr.bf16.mxu0 0
      %3195 = vmatmul.mubr.bf16.gmra.mrb[0].mxu0 %v1253
      %v3196 = vpop.f32.mrb[0].mxu0
      %v3197 = vadd.f32 0.0, %v3196
      %v3198 = vpop.f32.mrb[0].mxu0
      %v3199 = vpop.f32.mrb[0].mxu0
      %v3200 = vadd.f32 0.0, %v3199
      %v3201 = vpop.f32.mrb[0].mxu0
      %3202 = vmatprep.mubr.bf16.mxu0 0
      %3203 = vmatmul.mubr.bf16.gmra.mrb[0].mxu0 %v1256
      %v3204 = vpop.f32.mrb[0].mxu0
      %v3205 = vadd.f32 0.0, %v3204
      %v3206 = vpop.f32.mrb[0].mxu0
      %v3207 = vpop.f32.mrb[0].mxu0
      %v3208 = vadd.f32 0.0, %v3207
      %v3209 = vpop.f32.mrb[0].mxu0
      %3210 = vmatprep.mubr.bf16.mxu0 0
      %3211 = vmatmul.mubr.bf16.gmra.mrb[0].mxu0 %v1259
      %v3212 = vpop.f32.mrb[0].mxu0
      %v3213 = vadd.f32 0.0, %v3212
      %v3214 = vpop.f32.mrb[0].mxu0
      %v3215 = vpop.f32.mrb[0].mxu0
      %v3216 = vadd.f32 0.0, %v3215
      %v3217 = vpop.f32.mrb[0].mxu0
      %3218 = vmatprep.mubr.bf16.mxu0 0
      %3219 = vmatmul.mubr.bf16.gmra.mrb[0].mxu0 %v1262
      %v3220 = vpop.f32.mrb[0].mxu0
      %v3221 = vadd.f32 0.0, %v3220
      %v3222 = vpop.f32.mrb[0].mxu0
      %v3223 = vpop.f32.mrb[0].mxu0
      %v3224 = vadd.f32 0.0, %v3223
      %v3225 = vpop.f32.mrb[0].mxu0
      %3226 = vmatprep.mubr.bf16.mxu0 0
      %3227 = vmatmul.mubr.bf16.gmra.mrb[0].mxu0 %v1265
      %v3228 = vpop.f32.mrb[0].mxu0
      %v3229 = vadd.f32 0.0, %v3228
      %v3230 = vpop.f32.mrb[0].mxu0
      %v3231 = vpop.f32.mrb[0].mxu0
      %v3232 = vadd.f32 0.0, %v3231
      %v3233 = vpop.f32.mrb[0].mxu0
      %3234 = vmatprep.mubr.bf16.mxu0 0
      %3235 = vmatmul.mubr.bf16.gmra.mrb[0].mxu0 %v1268
      %v3236 = vpop.f32.mrb[0].mxu0
      %v3237 = vadd.f32 0.0, %v3236
      %v3238 = vpop.f32.mrb[0].mxu0
      %v3239 = vpop.f32.mrb[0].mxu0
      %v3240 = vadd.f32 0.0, %v3239
      %v3241 = vpop.f32.mrb[0].mxu0
      %3242 = vmatprep.mubr.bf16.mxu0 0
      %3243 = vmatmul.mubr.bf16.gmra.mrb[0].mxu0 %v1271
      %v3244 = vpop.f32.mrb[0].mxu0
      %v3245 = vadd.f32 0.0, %v3244
      %v3246 = vpop.f32.mrb[0].mxu0
      %v3247 = vpop.f32.mrb[0].mxu0
      %v3248 = vadd.f32 0.0, %v3247
      %v3249 = vpop.f32.mrb[0].mxu0
      %3250 = vmatprep.mubr.bf16.mxu0 0
      %3251 = vmatmul.mubr.bf16.gmra.mrb[0].mxu0 %v2333
      %v3252 = vpop.f32.mrb[0].mxu0
      %v3253 = vadd.f32 0.0, %v3252
      %v3254 = vpop.f32.mrb[0].mxu0
      %v3255 = vpop.f32.mrb[0].mxu0
      %v3256 = vadd.f32 0.0, %v3255
      %v3257 = vpop.f32.mrb[0].mxu0
      %3258 = vmatprep.mubr.bf16.mxu0 0
      %3259 = vmatmul.mubr.bf16.gmra.mrb[0].mxu0 %v3070
      %v3260 = vpop.f32.mrb[0].mxu0
      %v3261 = vadd.f32 0.0, %v3260
      %v3262 = vpop.f32.mrb[0].mxu0
      %v3263 = vpop.f32.mrb[0].mxu0
      %v3264 = vadd.f32 0.0, %v3263
      %v3265 = vpop.f32.mrb[0].mxu0
      %3266 = vdwg.mxu0
      %v3267 = vadd.f32 %v3026, %v3109
      %v3268 = vadd.f32 %v3027, %v3112
      %v3269 = vadd.f32 %v3028, %v3117
      %v3270 = vadd.f32 %v3029, %v3120
      %v3271 = vadd.f32 %v3030, %v3125
      %v3272 = vadd.f32 %v3031, %v3128
      %v3273 = vadd.f32 %v3032, %v3133
      %v3274 = vadd.f32 %v3033, %v3136
      %v3275 = vadd.f32 %v3034, %v3141
      %v3276 = vadd.f32 %v3035, %v3144
      %v3277 = vadd.f32 %v3036, %v3149
      %v3278 = vadd.f32 %v3037, %v3152
      %v3279 = vadd.f32 %v3038, %v3157
      %v3280 = vadd.f32 %v3039, %v3160
      %v3281 = vadd.f32 %v3040, %v3165
      %v3282 = vadd.f32 %v3041, %v3168
      %v3283 = vadd.f32 %v3042, %v3173
      %v3284 = vadd.f32 %v3043, %v3176
      %v3285 = vadd.f32 %v3044, %v3181
      %v3286 = vadd.f32 %v3045, %v3184
      %v3287 = vadd.f32 %v3046, %v3189
      %v3288 = vadd.f32 %v3047, %v3192
      %v3289 = vadd.f32 %v3048, %v3197
      %v3290 = vadd.f32 %v3049, %v3200
      %v3291 = vadd.f32 %v3050, %v3205
      %v3292 = vadd.f32 %v3051, %v3208
      %v3293 = vadd.f32 %v3052, %v3213
      %v3294 = vadd.f32 %v3053, %v3216
      %v3295 = vadd.f32 %v3054, %v3221
      %v3296 = vadd.f32 %v3055, %v3224
      %v3297 = vadd.f32 %v3056, %v3229
      %v3298 = vadd.f32 %v3057, %v3232
      %v3299 = vadd.f32 %v3058, %v3237
      %v3300 = vadd.f32 %v3059, %v3240
      %v3301 = vadd.f32 %v3060, %v3245
      %v3302 = vadd.f32 %v3061, %v3248
      %v3303 = vadd.f32 %v3062, %v3253
      %v3304 = vadd.f32 %v3063, %v3256
      %v3305 = vadd.f32 %v3064, %v3261
      %v3306 = vadd.f32 %v3065, %v3264
      %v3307 = vrot.slane %v2814, 4
      %v3308 = vrot.slane %v2817, 5
      %v3309 = vor.u32 %v3307, %v3308
      %v3310 = vrot.slane %v2822, 4
      %v3311 = vrot.slane %v2825, 5
      %v3312 = vor.u32 %v3310, %v3311
      %v3313 = vsel %vm1680, %v3309, %v3312
      %s3315 = scalar_lea.vmem %s3, 16
      %v3316 = vld [vmem:[%s3315] sm:$0x3]
      %3317 = vmatprep.subr.bf16.mxu0 0
      %3318 = vmatpush1.bf16.xpose.msra.mxu0 %v3316
      %3319 = vmatprep.subr.bf16.mxu0 0
      %3320 = vmatpush1.bf16.xpose.msra.mxu0 0
      %3321 = vmatprep.subr.bf16.mxu0 0
      %3322 = vmatpush1.bf16.xpose.msra.mxu0 0
      %3323 = vmatprep.subr.bf16.mxu0 0
      %3324 = vmatpush1.bf16.xpose.msra.mxu0 0
      %3325 = vmatprep.subr.bf16.mxu0 0
      %3326 = vmatpush1.bf16.xpose.msra.mxu0 0
      %3327 = vmatprep.subr.bf16.mxu0 0
      %3328 = vmatpush1.bf16.xpose.msra.mxu0 0
      %3329 = vmatprep.subr.bf16.mxu0 0
      %3330 = vmatpush1.bf16.xpose.msra.mxu0 0
      %3331 = vmatprep.subr.bf16.mxu0 0
      %3332 = vmatpush1.bf16.xpose.msra.mxu0 0
      %3333 = vmatprep.subr.bf16.mxu0 0
      %3334 = vmatpush1.bf16.xpose.msra.mxu0 0
      %3335 = vmatprep.subr.bf16.mxu0 0
      %3336 = vmatpush1.bf16.xpose.msra.mxu0 0
      %3337 = vmatprep.subr.bf16.mxu0 0
      %3338 = vmatpush1.bf16.xpose.msra.mxu0 0
      %3339 = vmatprep.subr.bf16.mxu0 0
      %3340 = vmatpush1.bf16.xpose.msra.mxu0 0
      %3341 = vmatprep.subr.bf16.mxu0 0
      %3342 = vmatpush1.bf16.xpose.msra.mxu0 0
      %3343 = vmatprep.subr.bf16.mxu0 0
      %3344 = vmatpush1.bf16.xpose.msra.mxu0 0
      %3345 = vmatprep.subr.bf16.mxu0 0
      %3346 = vmatpush1.bf16.xpose.msra.mxu0 0
      %3347 = vmatprep.subr.bf16.mxu0 0
      %3348 = vmatpush1.bf16.xpose.msra.mxu0 0
      %3349 = vmatprep.mubr.bf16.mxu0 0
      %3350 = vmatmul.mubr.bf16.gmra.mrb[0].mxu0 %v1701
      %v3351 = vpop.f32.mrb[0].mxu0
      %v3352 = vadd.f32 0.0, %v3351
      %v3353 = vpop.f32.mrb[0].mxu0
      %v3354 = vpop.f32.mrb[0].mxu0
      %v3355 = vadd.f32 0.0, %v3354
      %v3356 = vpop.f32.mrb[0].mxu0
      %3357 = vmatprep.mubr.bf16.mxu0 0
      %3358 = vmatmul.mubr.bf16.gmra.mrb[0].mxu0 %v1708
      %v3359 = vpop.f32.mrb[0].mxu0
      %v3360 = vadd.f32 0.0, %v3359
      %v3361 = vpop.f32.mrb[0].mxu0
      %v3362 = vpop.f32.mrb[0].mxu0
      %v3363 = vadd.f32 0.0, %v3362
      %v3364 = vpop.f32.mrb[0].mxu0
      %3365 = vmatprep.mubr.bf16.mxu0 0
      %3366 = vmatmul.mubr.bf16.gmra.mrb[0].mxu0 %v1715
      %v3367 = vpop.f32.mrb[0].mxu0
      %v3368 = vadd.f32 0.0, %v3367
      %v3369 = vpop.f32.mrb[0].mxu0
      %v3370 = vpop.f32.mrb[0].mxu0
      %v3371 = vadd.f32 0.0, %v3370
      %v3372 = vpop.f32.mrb[0].mxu0
      %3373 = vmatprep.mubr.bf16.mxu0 0
      %3374 = vmatmul.mubr.bf16.gmra.mrb[0].mxu0 %v1722
      %v3375 = vpop.f32.mrb[0].mxu0
      %v3376 = vadd.f32 0.0, %v3375
      %v3377 = vpop.f32.mrb[0].mxu0
      %v3378 = vpop.f32.mrb[0].mxu0
      %v3379 = vadd.f32 0.0, %v3378
      %v3380 = vpop.f32.mrb[0].mxu0
      %3381 = vmatprep.mubr.bf16.mxu0 0
      %3382 = vmatmul.mubr.bf16.gmra.mrb[0].mxu0 %v1729
      %v3383 = vpop.f32.mrb[0].mxu0
      %v3384 = vadd.f32 0.0, %v3383
      %v3385 = vpop.f32.mrb[0].mxu0
      %v3386 = vpop.f32.mrb[0].mxu0
      %v3387 = vadd.f32 0.0, %v3386
      %v3388 = vpop.f32.mrb[0].mxu0
      %3389 = vmatprep.mubr.bf16.mxu0 0
      %3390 = vmatmul.mubr.bf16.gmra.mrb[0].mxu0 %v1736
      %v3391 = vpop.f32.mrb[0].mxu0
      %v3392 = vadd.f32 0.0, %v3391
      %v3393 = vpop.f32.mrb[0].mxu0
      %v3394 = vpop.f32.mrb[0].mxu0
      %v3395 = vadd.f32 0.0, %v3394
      %v3396 = vpop.f32.mrb[0].mxu0
      %3397 = vmatprep.mubr.bf16.mxu0 0
      %3398 = vmatmul.mubr.bf16.gmra.mrb[0].mxu0 %v1743
      %v3399 = vpop.f32.mrb[0].mxu0
      %v3400 = vadd.f32 0.0, %v3399
      %v3401 = vpop.f32.mrb[0].mxu0
      %v3402 = vpop.f32.mrb[0].mxu0
      %v3403 = vadd.f32 0.0, %v3402
      %v3404 = vpop.f32.mrb[0].mxu0
      %3405 = vmatprep.mubr.bf16.mxu0 0
      %3406 = vmatmul.mubr.bf16.gmra.mrb[0].mxu0 %v1750
      %v3407 = vpop.f32.mrb[0].mxu0
      %v3408 = vadd.f32 0.0, %v3407
      %v3409 = vpop.f32.mrb[0].mxu0
      %v3410 = vpop.f32.mrb[0].mxu0
      %v3411 = vadd.f32 0.0, %v3410
      %v3412 = vpop.f32.mrb[0].mxu0
      %3413 = vmatprep.mubr.bf16.mxu0 0
      %3414 = vmatmul.mubr.bf16.gmra.mrb[0].mxu0 %v1757
      %v3415 = vpop.f32.mrb[0].mxu0
      %v3416 = vadd.f32 0.0, %v3415
      %v3417 = vpop.f32.mrb[0].mxu0
      %v3418 = vpop.f32.mrb[0].mxu0
      %v3419 = vadd.f32 0.0, %v3418
      %v3420 = vpop.f32.mrb[0].mxu0
      %3421 = vmatprep.mubr.bf16.mxu0 0
      %3422 = vmatmul.mubr.bf16.gmra.mrb[0].mxu0 %v1764
      %v3423 = vpop.f32.mrb[0].mxu0
      %v3424 = vadd.f32 0.0, %v3423
      %v3425 = vpop.f32.mrb[0].mxu0
      %v3426 = vpop.f32.mrb[0].mxu0
      %v3427 = vadd.f32 0.0, %v3426
      %v3428 = vpop.f32.mrb[0].mxu0
      %3429 = vmatprep.mubr.bf16.mxu0 0
      %3430 = vmatmul.mubr.bf16.gmra.mrb[0].mxu0 %v1771
      %v3431 = vpop.f32.mrb[0].mxu0
      %v3432 = vadd.f32 0.0, %v3431
      %v3433 = vpop.f32.mrb[0].mxu0
      %v3434 = vpop.f32.mrb[0].mxu0
      %v3435 = vadd.f32 0.0, %v3434
      %v3436 = vpop.f32.mrb[0].mxu0
      %3437 = vmatprep.mubr.bf16.mxu0 0
      %3438 = vmatmul.mubr.bf16.gmra.mrb[0].mxu0 %v1778
      %v3439 = vpop.f32.mrb[0].mxu0
      %v3440 = vadd.f32 0.0, %v3439
      %v3441 = vpop.f32.mrb[0].mxu0
      %v3442 = vpop.f32.mrb[0].mxu0
      %v3443 = vadd.f32 0.0, %v3442
      %v3444 = vpop.f32.mrb[0].mxu0
      %3445 = vmatprep.mubr.bf16.mxu0 0
      %3446 = vmatmul.mubr.bf16.gmra.mrb[0].mxu0 %v1785
      %v3447 = vpop.f32.mrb[0].mxu0
      %v3448 = vadd.f32 0.0, %v3447
      %v3449 = vpop.f32.mrb[0].mxu0
      %v3450 = vpop.f32.mrb[0].mxu0
      %v3451 = vadd.f32 0.0, %v3450
      %v3452 = vpop.f32.mrb[0].mxu0
      %3453 = vmatprep.mubr.bf16.mxu0 0
      %3454 = vmatmul.mubr.bf16.gmra.mrb[0].mxu0 %v1792
      %v3455 = vpop.f32.mrb[0].mxu0
      %v3456 = vadd.f32 0.0, %v3455
      %v3457 = vpop.f32.mrb[0].mxu0
      %v3458 = vpop.f32.mrb[0].mxu0
      %v3459 = vadd.f32 0.0, %v3458
      %v3460 = vpop.f32.mrb[0].mxu0
      %3461 = vmatprep.mubr.bf16.mxu0 0
      %3462 = vmatmul.mubr.bf16.gmra.mrb[0].mxu0 %v1799
      %v3463 = vpop.f32.mrb[0].mxu0
      %v3464 = vadd.f32 0.0, %v3463
      %v3465 = vpop.f32.mrb[0].mxu0
      %v3466 = vpop.f32.mrb[0].mxu0
      %v3467 = vadd.f32 0.0, %v3466
      %v3468 = vpop.f32.mrb[0].mxu0
      %3469 = vmatprep.mubr.bf16.mxu0 0
      %3470 = vmatmul.mubr.bf16.gmra.mrb[0].mxu0 %v1806
      %v3471 = vpop.f32.mrb[0].mxu0
      %v3472 = vadd.f32 0.0, %v3471
      %v3473 = vpop.f32.mrb[0].mxu0
      %v3474 = vpop.f32.mrb[0].mxu0
      %v3475 = vadd.f32 0.0, %v3474
      %v3476 = vpop.f32.mrb[0].mxu0
      %3477 = vmatprep.mubr.bf16.mxu0 0
      %3478 = vmatmul.mubr.bf16.gmra.mrb[0].mxu0 %v1813
      %v3479 = vpop.f32.mrb[0].mxu0
      %v3480 = vadd.f32 0.0, %v3479
      %v3481 = vpop.f32.mrb[0].mxu0
      %v3482 = vpop.f32.mrb[0].mxu0
      %v3483 = vadd.f32 0.0, %v3482
      %v3484 = vpop.f32.mrb[0].mxu0
      %3485 = vmatprep.mubr.bf16.mxu0 0
      %3486 = vmatmul.mubr.bf16.gmra.mrb[0].mxu0 %v1820
      %v3487 = vpop.f32.mrb[0].mxu0
      %v3488 = vadd.f32 0.0, %v3487
      %v3489 = vpop.f32.mrb[0].mxu0
      %v3490 = vpop.f32.mrb[0].mxu0
      %v3491 = vadd.f32 0.0, %v3490
      %v3492 = vpop.f32.mrb[0].mxu0
      %3493 = vmatprep.mubr.bf16.mxu0 0
      %3494 = vmatmul.mubr.bf16.gmra.mrb[0].mxu0 %v2576
      %v3495 = vpop.f32.mrb[0].mxu0
      %v3496 = vadd.f32 0.0, %v3495
      %v3497 = vpop.f32.mrb[0].mxu0
      %v3498 = vpop.f32.mrb[0].mxu0
      %v3499 = vadd.f32 0.0, %v3498
      %v3500 = vpop.f32.mrb[0].mxu0
      %3501 = vmatprep.mubr.bf16.mxu0 0
      %3502 = vmatmul.mubr.bf16.gmra.mrb[0].mxu0 %v3313
      %v3503 = vpop.f32.mrb[0].mxu0
      %v3504 = vadd.f32 0.0, %v3503
      %v3505 = vpop.f32.mrb[0].mxu0
      %v3506 = vpop.f32.mrb[0].mxu0
      %v3507 = vadd.f32 0.0, %v3506
      %v3508 = vpop.f32.mrb[0].mxu0
      %3509 = vdwg.mxu0
      %v3510 = vadd.f32 %v3267, %v3352
      %v3511 = vadd.f32 %v3268, %v3355
      %v3512 = vadd.f32 %v3269, %v3360
      %v3513 = vadd.f32 %v3270, %v3363
      %v3514 = vadd.f32 %v3271, %v3368
      %v3515 = vadd.f32 %v3272, %v3371
      %v3516 = vadd.f32 %v3273, %v3376
      %v3517 = vadd.f32 %v3274, %v3379
      %v3518 = vadd.f32 %v3275, %v3384
      %v3519 = vadd.f32 %v3276, %v3387
      %v3520 = vadd.f32 %v3277, %v3392
      %v3521 = vadd.f32 %v3278, %v3395
      %v3522 = vadd.f32 %v3279, %v3400
      %v3523 = vadd.f32 %v3280, %v3403
      %v3524 = vadd.f32 %v3281, %v3408
      %v3525 = vadd.f32 %v3282, %v3411
      %v3526 = vadd.f32 %v3283, %v3416
      %v3527 = vadd.f32 %v3284, %v3419
      %v3528 = vadd.f32 %v3285, %v3424
      %v3529 = vadd.f32 %v3286, %v3427
      %v3530 = vadd.f32 %v3287, %v3432
      %v3531 = vadd.f32 %v3288, %v3435
      %v3532 = vadd.f32 %v3289, %v3440
      %v3533 = vadd.f32 %v3290, %v3443
      %v3534 = vadd.f32 %v3291, %v3448
      %v3535 = vadd.f32 %v3292, %v3451
      %v3536 = vadd.f32 %v3293, %v3456
      %v3537 = vadd.f32 %v3294, %v3459
      %v3538 = vadd.f32 %v3295, %v3464
      %v3539 = vadd.f32 %v3296, %v3467
      %v3540 = vadd.f32 %v3297, %v3472
      %v3541 = vadd.f32 %v3298, %v3475
      %v3542 = vadd.f32 %v3299, %v3480
      %v3543 = vadd.f32 %v3300, %v3483
      %v3544 = vadd.f32 %v3301, %v3488
      %v3545 = vadd.f32 %v3302, %v3491
      %v3546 = vadd.f32 %v3303, %v3496
      %v3547 = vadd.f32 %v3304, %v3499
      %v3548 = vadd.f32 %v3305, %v3504
      %v3549 = vadd.f32 %v3306, %v3507
      %3590 = vrot.lane.b32.xlu0 %v3510, 4
      %v3591 = vpop.permute.xlu0 %3590
      %3592 = vrot.lane.b32.xlu0 %v3511, 4
      %v3593 = vpop.permute.xlu0 %3592
      %3594 = vrot.lane.b32.xlu0 %v3512, 4
      %v3595 = vpop.permute.xlu0 %3594
      %3596 = vrot.lane.b32.xlu0 %v3513, 4
      %v3597 = vpop.permute.xlu0 %3596
      %3598 = vrot.lane.b32.xlu0 %v3514, 4
      %v3599 = vpop.permute.xlu0 %3598
      %3600 = vrot.lane.b32.xlu0 %v3515, 4
      %v3601 = vpop.permute.xlu0 %3600
      %3602 = vrot.lane.b32.xlu0 %v3516, 4
      %v3603 = vpop.permute.xlu0 %3602
      %3604 = vrot.lane.b32.xlu0 %v3517, 4
      %v3605 = vpop.permute.xlu0 %3604
      %3606 = vrot.lane.b32.xlu0 %v3518, 4
      %v3607 = vpop.permute.xlu0 %3606
      %3608 = vrot.lane.b32.xlu0 %v3519, 4
      %v3609 = vpop.permute.xlu0 %3608
      %3610 = vrot.lane.b32.xlu0 %v3520, 4
      %v3611 = vpop.permute.xlu0 %3610
      %3612 = vrot.lane.b32.xlu0 %v3521, 4
      %v3613 = vpop.permute.xlu0 %3612
      %3614 = vrot.lane.b32.xlu0 %v3522, 4
      %v3615 = vpop.permute.xlu0 %3614
      %3616 = vrot.lane.b32.xlu0 %v3523, 4
      %v3617 = vpop.permute.xlu0 %3616
      %3618 = vrot.lane.b32.xlu0 %v3524, 4
      %v3619 = vpop.permute.xlu0 %3618
      %3620 = vrot.lane.b32.xlu0 %v3525, 4
      %v3621 = vpop.permute.xlu0 %3620
      %3622 = vrot.lane.b32.xlu0 %v3526, 4
      %v3623 = vpop.permute.xlu0 %3622
      %3624 = vrot.lane.b32.xlu0 %v3527, 4
      %v3625 = vpop.permute.xlu0 %3624
      %3626 = vrot.lane.b32.xlu0 %v3528, 4
      %v3627 = vpop.permute.xlu0 %3626
      %3628 = vrot.lane.b32.xlu0 %v3529, 4
      %v3629 = vpop.permute.xlu0 %3628
      %3630 = vrot.lane.b32.xlu0 %v3530, 4
      %v3631 = vpop.permute.xlu0 %3630
      %3632 = vrot.lane.b32.xlu0 %v3531, 4
      %v3633 = vpop.permute.xlu0 %3632
      %3634 = vrot.lane.b32.xlu0 %v3532, 4
      %v3635 = vpop.permute.xlu0 %3634
      %3636 = vrot.lane.b32.xlu0 %v3533, 4
      %v3637 = vpop.permute.xlu0 %3636
      %3638 = vrot.lane.b32.xlu0 %v3534, 4
      %v3639 = vpop.permute.xlu0 %3638
      %3640 = vrot.lane.b32.xlu0 %v3535, 4
      %v3641 = vpop.permute.xlu0 %3640
      %3642 = vrot.lane.b32.xlu0 %v3536, 4
      %v3643 = vpop.permute.xlu0 %3642
      %3644 = vrot.lane.b32.xlu0 %v3537, 4
      %v3645 = vpop.permute.xlu0 %3644
      %3646 = vrot.lane.b32.xlu0 %v3538, 4
      %v3647 = vpop.permute.xlu0 %3646
      %3648 = vrot.lane.b32.xlu0 %v3539, 4
      %v3649 = vpop.permute.xlu0 %3648
      %3650 = vrot.lane.b32.xlu0 %v3540, 4
      %v3651 = vpop.permute.xlu0 %3650
      %3652 = vrot.lane.b32.xlu0 %v3541, 4
      %v3653 = vpop.permute.xlu0 %3652
      %3654 = vrot.lane.b32.xlu0 %v3542, 4
      %v3655 = vpop.permute.xlu0 %3654
      %3656 = vrot.lane.b32.xlu0 %v3543, 4
      %v3657 = vpop.permute.xlu0 %3656
      %3658 = vrot.lane.b32.xlu0 %v3544, 4
      %v3659 = vpop.permute.xlu0 %3658
      %3660 = vrot.lane.b32.xlu0 %v3545, 4
      %v3661 = vpop.permute.xlu0 %3660
      %3662 = vrot.lane.b32.xlu0 %v3546, 4
      %v3663 = vpop.permute.xlu0 %3662
      %3664 = vrot.lane.b32.xlu0 %v3547, 4
      %v3665 = vpop.permute.xlu0 %3664
      %3666 = vrot.lane.b32.xlu0 %v3548, 4
      %v3667 = vpop.permute.xlu0 %3666
      %3668 = vrot.lane.b32.xlu0 %v3549, 4
      %v3669 = vpop.permute.xlu0 %3668
      %s3710 = scalar_lea.vmem [#allocation2], 32
      %vm3711 = vcmask 64544
      %3712 = vst.msk [vmem:[%s3710 + $0x8] sm:$0xff] %vm3711, %v3591
      %3713 = vst.msk [vmem:[%s3710 + $0x10] sm:$0xff] %vm3711, %v3593
      %3714 = vst.msk [vmem:[%s3710 + $0x28] sm:$0xff] %vm3711, %v3595
      %3715 = vst.msk [vmem:[%s3710 + $0x30] sm:$0xff] %vm3711, %v3597
      %3716 = vst.msk [vmem:[%s3710 + $0x48] sm:$0xff] %vm3711, %v3599
      %3717 = vst.msk [vmem:[%s3710 + $0x50] sm:$0xff] %vm3711, %v3601
      %3718 = vst.msk [vmem:[%s3710 + $0x68] sm:$0xff] %vm3711, %v3603
      %3719 = vst.msk [vmem:[%s3710 + $0x70] sm:$0xff] %vm3711, %v3605
      %3720 = vst.msk [vmem:[%s3710 + $0x88] sm:$0xff] %vm3711, %v3607
      %3721 = vst.msk [vmem:[%s3710 + $0x90] sm:$0xff] %vm3711, %v3609
      %3722 = vst.msk [vmem:[%s3710 + $0xa8] sm:$0xff] %vm3711, %v3611
      %3723 = vst.msk [vmem:[%s3710 + $0xb0] sm:$0xff] %vm3711, %v3613
      %3724 = vst.msk [vmem:[%s3710 + $0xc8] sm:$0xff] %vm3711, %v3615
      %3725 = vst.msk [vmem:[%s3710 + $0xd0] sm:$0xff] %vm3711, %v3617
      %3726 = vst.msk [vmem:[%s3710 + $0xe8] sm:$0xff] %vm3711, %v3619
      %3727 = vst.msk [vmem:[%s3710 + $0xf0] sm:$0xff] %vm3711, %v3621
      %3728 = vst.msk [vmem:[%s3710 + $0x108] sm:$0xff] %vm3711, %v3623
      %3729 = vst.msk [vmem:[%s3710 + $0x110] sm:$0xff] %vm3711, %v3625
      %3730 = vst.msk [vmem:[%s3710 + $0x128] sm:$0xff] %vm3711, %v3627
      %3731 = vst.msk [vmem:[%s3710 + $0x130] sm:$0xff] %vm3711, %v3629
      %3732 = vst.msk [vmem:[%s3710 + $0x148] sm:$0xff] %vm3711, %v3631
      %3733 = vst.msk [vmem:[%s3710 + $0x150] sm:$0xff] %vm3711, %v3633
      %3734 = vst.msk [vmem:[%s3710 + $0x168] sm:$0xff] %vm3711, %v3635
      %3735 = vst.msk [vmem:[%s3710 + $0x170] sm:$0xff] %vm3711, %v3637
      %3736 = vst.msk [vmem:[%s3710 + $0x188] sm:$0xff] %vm3711, %v3639
      %3737 = vst.msk [vmem:[%s3710 + $0x190] sm:$0xff] %vm3711, %v3641
      %3738 = vst.msk [vmem:[%s3710 + $0x1a8] sm:$0xff] %vm3711, %v3643
      %3739 = vst.msk [vmem:[%s3710 + $0x1b0] sm:$0xff] %vm3711, %v3645
      %3740 = vst.msk [vmem:[%s3710 + $0x1c8] sm:$0xff] %vm3711, %v3647
      %3741 = vst.msk [vmem:[%s3710 + $0x1d0] sm:$0xff] %vm3711, %v3649
      %3742 = vst.msk [vmem:[%s3710 + $0x1e8] sm:$0xff] %vm3711, %v3651
      %3743 = vst.msk [vmem:[%s3710 + $0x1f0] sm:$0xff] %vm3711, %v3653
      %3744 = vst.msk [vmem:[%s3710 + $0x208] sm:$0xff] %vm3711, %v3655
      %3745 = vst.msk [vmem:[%s3710 + $0x210] sm:$0xff] %vm3711, %v3657
      %3746 = vst.msk [vmem:[%s3710 + $0x228] sm:$0xff] %vm3711, %v3659
      %3747 = vst.msk [vmem:[%s3710 + $0x230] sm:$0xff] %vm3711, %v3661
      %3748 = vst.msk [vmem:[%s3710 + $0x248] sm:$0xff] %vm3711, %v3663
      %3749 = vst.msk [vmem:[%s3710 + $0x250] sm:$0xff] %vm3711, %v3665
      %3750 = vst.msk [vmem:[%s3710 + $0x268] sm:$0xff] %vm3711, %v3667
      %3751 = vst.msk [vmem:[%s3710 + $0x270] sm:$0xff] %vm3711, %v3669
      %vm3752 = vcmask 57376
      %3753 = vst.msk [vmem:[%s3710 + $0x7] sm:$0x1] %vm3752, %v3591
      %3754 = vst.msk [vmem:[%s3710 + $0x27] sm:$0x1] %vm3752, %v3595
      %3755 = vst.msk [vmem:[%s3710 + $0x47] sm:$0x1] %vm3752, %v3599
      %3756 = vst.msk [vmem:[%s3710 + $0x67] sm:$0x1] %vm3752, %v3603
      %3757 = vst.msk [vmem:[%s3710 + $0x87] sm:$0x1] %vm3752, %v3607
      %3758 = vst.msk [vmem:[%s3710 + $0xa7] sm:$0x1] %vm3752, %v3611
      %3759 = vst.msk [vmem:[%s3710 + $0xc7] sm:$0x1] %vm3752, %v3615
      %3760 = vst.msk [vmem:[%s3710 + $0xe7] sm:$0x1] %vm3752, %v3619
      %3761 = vst.msk [vmem:[%s3710 + $0x107] sm:$0x1] %vm3752, %v3623
      %3762 = vst.msk [vmem:[%s3710 + $0x127] sm:$0x1] %vm3752, %v3627
      %3763 = vst.msk [vmem:[%s3710 + $0x147] sm:$0x1] %vm3752, %v3631
      %3764 = vst.msk [vmem:[%s3710 + $0x167] sm:$0x1] %vm3752, %v3635
      %3765 = vst.msk [vmem:[%s3710 + $0x187] sm:$0x1] %vm3752, %v3639
      %3766 = vst.msk [vmem:[%s3710 + $0x1a7] sm:$0x1] %vm3752, %v3643
      %3767 = vst.msk [vmem:[%s3710 + $0x1c7] sm:$0x1] %vm3752, %v3647
      %3768 = vst.msk [vmem:[%s3710 + $0x1e7] sm:$0x1] %vm3752, %v3651
      %3769 = vst.msk [vmem:[%s3710 + $0x207] sm:$0x1] %vm3752, %v3655
      %3770 = vst.msk [vmem:[%s3710 + $0x227] sm:$0x1] %vm3752, %v3659
      %3771 = vst.msk [vmem:[%s3710 + $0x247] sm:$0x1] %vm3752, %v3663
      %3772 = vst.msk [vmem:[%s3710 + $0x267] sm:$0x1] %vm3752, %v3667
      %vm3773 = vcmask 64551
      %3774 = vst.msk [vmem:[%s3710 + $0x11] sm:$0x80] %vm3773, %v3593
      %3775 = vst.msk [vmem:[%s3710 + $0x31] sm:$0x80] %vm3773, %v3597
      %3776 = vst.msk [vmem:[%s3710 + $0x51] sm:$0x80] %vm3773, %v3601
      %3777 = vst.msk [vmem:[%s3710 + $0x71] sm:$0x80] %vm3773, %v3605
      %3778 = vst.msk [vmem:[%s3710 + $0x91] sm:$0x80] %vm3773, %v3609
      %3779 = vst.msk [vmem:[%s3710 + $0xb1] sm:$0x80] %vm3773, %v3613
      %3780 = vst.msk [vmem:[%s3710 + $0xd1] sm:$0x80] %vm3773, %v3617
      %3781 = vst.msk [vmem:[%s3710 + $0xf1] sm:$0x80] %vm3773, %v3621
      %3782 = vst.msk [vmem:[%s3710 + $0x111] sm:$0x80] %vm3773, %v3625
      %3783 = vst.msk [vmem:[%s3710 + $0x131] sm:$0x80] %vm3773, %v3629
      %3784 = vst.msk [vmem:[%s3710 + $0x151] sm:$0x80] %vm3773, %v3633
      %3785 = vst.msk [vmem:[%s3710 + $0x171] sm:$0x80] %vm3773, %v3637
      %3786 = vst.msk [vmem:[%s3710 + $0x191] sm:$0x80] %vm3773, %v3641
      %3787 = vst.msk [vmem:[%s3710 + $0x1b1] sm:$0x80] %vm3773, %v3645
      %3788 = vst.msk [vmem:[%s3710 + $0x1d1] sm:$0x80] %vm3773, %v3649
      %3789 = vst.msk [vmem:[%s3710 + $0x1f1] sm:$0x80] %vm3773, %v3653
      %3790 = vst.msk [vmem:[%s3710 + $0x211] sm:$0x80] %vm3773, %v3657
      %3791 = vst.msk [vmem:[%s3710 + $0x231] sm:$0x80] %vm3773, %v3661
      %3792 = vst.msk [vmem:[%s3710 + $0x251] sm:$0x80] %vm3773, %v3665
      %3793 = vst.msk [vmem:[%s3710 + $0x271] sm:$0x80] %vm3773, %v3669
      %p3794 = scmp.eq.s32.totalorder %s20, 0
      // Predicated region
      $region67: #{dense_block_forward.1} parent=31 // pred_check
        %p3795 = pneg %p3794
      $region68: #{dense_block_forward.1} parent=31 // pred_check_branch
        %3797 = sbr.rel (%p3795) target = $region70
      $region69: #{dense_block_forward.1} parent=31 // pred_region
        %s3798 = scalar_lea.vmem [#allocation2], 96
        %v3799 = vld [vmem:[%s3798] sm:$0xff]
        %v3800 = vld [vmem:[%s3798 + $0x8] sm:$0xff]
        %v3801 = vld [vmem:[%s3798 + $0x10] sm:$0xff]
        %v3802 = vld [vmem:[%s3798 + $0x18] sm:$0xff]
        %3803 = vst.msk [vmem:[#allocation2] sm:$0xff] %vm3711, %v3799
        %3804 = vst.msk [vmem:[#allocation2 + $0x8] sm:$0xff] %vm3711, %v3800
        %3805 = vst.msk [vmem:[#allocation2 + $0x10] sm:$0xff] %vm3711, %v3801
        %3806 = vst.msk [vmem:[#allocation2 + $0x18] sm:$0xff] %vm3711, %v3802
        %3807 = vst.msk [vmem:[#allocation2 + $0x20] sm:$0xff] %vm3711, %v3799
        %3808 = vst.msk [vmem:[#allocation2 + $0x28] sm:$0xff] %vm3711, %v3800
        %3809 = vst.msk [vmem:[#allocation2 + $0x30] sm:$0xff] %vm3711, %v3801
        %3810 = vst.msk [vmem:[#allocation2 + $0x38] sm:$0xff] %vm3711, %v3802
        %3811 = vst.msk [vmem:[#allocation2 + $0x40] sm:$0xff] %vm3711, %v3799
        %3812 = vst.msk [vmem:[#allocation2 + $0x48] sm:$0xff] %vm3711, %v3800
        %3813 = vst.msk [vmem:[#allocation2 + $0x50] sm:$0xff] %vm3711, %v3801
        %3814 = vst.msk [vmem:[#allocation2 + $0x58] sm:$0xff] %vm3711, %v3802
        %s3815 = scalar_lea.vmem [#allocation2], 576
        %v3816 = vld [vmem:[%s3815] sm:$0xff]
        %v3817 = vld [vmem:[%s3815 + $0x8] sm:$0xff]
        %v3818 = vld [vmem:[%s3815 + $0x10] sm:$0xff]
        %v3819 = vld [vmem:[%s3815 + $0x18] sm:$0xff]
        %s3820 = scalar_lea.vmem [#allocation2], 608
        %3821 = vst.msk [vmem:[%s3820] sm:$0xff] %vm3711, %v3816
        %3822 = vst.msk [vmem:[%s3820 + $0x8] sm:$0xff] %vm3711, %v3817
        %3823 = vst.msk [vmem:[%s3820 + $0x10] sm:$0xff] %vm3711, %v3818
        %3824 = vst.msk [vmem:[%s3820 + $0x18] sm:$0xff] %vm3711, %v3819
        %3825 = vst.msk [vmem:[%s3820 + $0x20] sm:$0xff] %vm3711, %v3816
        %3826 = vst.msk [vmem:[%s3820 + $0x28] sm:$0xff] %vm3711, %v3817
        %3827 = vst.msk [vmem:[%s3820 + $0x30] sm:$0xff] %vm3711, %v3818
        %3828 = vst.msk [vmem:[%s3820 + $0x38] sm:$0xff] %vm3711, %v3819
        %3829 = vst.msk [vmem:[%s3820 + $0x40] sm:$0xff] %vm3711, %v3816
        %3830 = vst.msk [vmem:[%s3820 + $0x48] sm:$0xff] %vm3711, %v3817
        %3831 = vst.msk [vmem:[%s3820 + $0x50] sm:$0xff] %vm3711, %v3818
        %3832 = vst.msk [vmem:[%s3820 + $0x58] sm:$0xff] %vm3711, %v3819
      $region70: #{dense_block_forward.1} parent=31 // pred_fallthru
        _
      %v3833 = vld [vmem:[%s1 + $0x1] sm:$0x1]
      %v3834 = vld [vmem:[%s2 + $0x1] sm:$0x1]
      %v3835 = vld [vmem:[#allocation2] sm:$0xff]
      %v3836 = vld [vmem:[#allocation2 + $0x8] sm:$0xff]
      %v3837 = vld [vmem:[#allocation2 + $0x10] sm:$0xff]
      %v3838 = vld [vmem:[#allocation2 + $0x18] sm:$0xff]
      %v3839 = vld [vmem:[#allocation2 + $0x20] sm:$0xff]
      %v3840 = vld [vmem:[#allocation2 + $0x28] sm:$0xff]
      %v3841 = vld [vmem:[#allocation2 + $0x30] sm:$0xff]
      %v3842 = vld [vmem:[#allocation2 + $0x38] sm:$0xff]
      %v3843 = vld [vmem:[#allocation2 + $0x40] sm:$0xff]
      %v3844 = vld [vmem:[#allocation2 + $0x48] sm:$0xff]
      %v3845 = vld [vmem:[#allocation2 + $0x50] sm:$0xff]
      %v3846 = vld [vmem:[#allocation2 + $0x58] sm:$0xff]
      %v3847 = vld [vmem:[#allocation2 + $0x60] sm:$0xff]
      %v3848 = vld [vmem:[#allocation2 + $0x68] sm:$0xff]
      %v3849 = vld [vmem:[#allocation2 + $0x70] sm:$0xff]
      %v3850 = vld [vmem:[#allocation2 + $0x78] sm:$0xff]
      %v3851 = vld [vmem:[#allocation2 + $0x80] sm:$0xff]
      %v3852 = vld [vmem:[#allocation2 + $0x88] sm:$0xff]
      %v3853 = vld [vmem:[#allocation2 + $0x90] sm:$0xff]
      %v3854 = vld [vmem:[#allocation2 + $0x98] sm:$0xff]
      %v3855 = vld [vmem:[#allocation2 + $0xa0] sm:$0xff]
      %v3856 = vld [vmem:[#allocation2 + $0xa8] sm:$0xff]
      %v3857 = vld [vmem:[#allocation2 + $0xb0] sm:$0xff]
      %v3858 = vld [vmem:[#allocation2 + $0xb8] sm:$0xff]
      %v3859 = vld [vmem:[#allocation2 + $0xc0] sm:$0xff]
      %v3860 = vld [vmem:[#allocation2 + $0xc8] sm:$0xff]
      %v3861 = vld [vmem:[#allocation2 + $0xd0] sm:$0xff]
      %v3862 = vld [vmem:[#allocation2 + $0xd8] sm:$0xff]
      %v3863 = vld [vmem:[#allocation2 + $0xe0] sm:$0xff]
      %v3864 = vld [vmem:[#allocation2 + $0xe8] sm:$0xff]
      %v3865 = vld [vmem:[#allocation2 + $0xf0] sm:$0xff]
      %v3866 = vld [vmem:[#allocation2 + $0xf8] sm:$0xff]
      %v3867 = vld [vmem:[#allocation2 + $0x100] sm:$0xff]
      %v3868 = vld [vmem:[#allocation2 + $0x108] sm:$0xff]
      %v3869 = vld [vmem:[#allocation2 + $0x110] sm:$0xff]
      %v3870 = vld [vmem:[#allocation2 + $0x118] sm:$0xff]
      %v3871 = vld [vmem:[#allocation2 + $0x120] sm:$0xff]
      %v3872 = vld [vmem:[#allocation2 + $0x128] sm:$0xff]
      %v3873 = vld [vmem:[#allocation2 + $0x130] sm:$0xff]
      %v3874 = vld [vmem:[#allocation2 + $0x138] sm:$0xff]
      %v3875 = vld [vmem:[#allocation2 + $0x140] sm:$0xff]
      %v3876 = vld [vmem:[#allocation2 + $0x148] sm:$0xff]
      %v3877 = vld [vmem:[#allocation2 + $0x150] sm:$0xff]
      %v3878 = vld [vmem:[#allocation2 + $0x158] sm:$0xff]
      %v3879 = vld [vmem:[#allocation2 + $0x160] sm:$0xff]
      %v3880 = vld [vmem:[#allocation2 + $0x168] sm:$0xff]
      %v3881 = vld [vmem:[#allocation2 + $0x170] sm:$0xff]
      %v3882 = vld [vmem:[#allocation2 + $0x178] sm:$0xff]
      %v3883 = vld [vmem:[#allocation2 + $0x180] sm:$0xff]
      %v3884 = vld [vmem:[#allocation2 + $0x188] sm:$0xff]
      %v3885 = vld [vmem:[#allocation2 + $0x190] sm:$0xff]
      %v3886 = vld [vmem:[#allocation2 + $0x198] sm:$0xff]
      %v3887 = vld [vmem:[#allocation2 + $0x1a0] sm:$0xff]
      %v3888 = vld [vmem:[#allocation2 + $0x1a8] sm:$0xff]
      %v3889 = vld [vmem:[#allocation2 + $0x1b0] sm:$0xff]
      %v3890 = vld [vmem:[#allocation2 + $0x1b8] sm:$0xff]
      %v3891 = vld [vmem:[#allocation2 + $0x1c0] sm:$0xff]
      %v3892 = vld [vmem:[#allocation2 + $0x1c8] sm:$0xff]
      %v3893 = vld [vmem:[#allocation2 + $0x1d0] sm:$0xff]
      %v3894 = vld [vmem:[#allocation2 + $0x1d8] sm:$0xff]
      %v3895 = vld [vmem:[#allocation2 + $0x1e0] sm:$0xff]
      %v3896 = vld [vmem:[#allocation2 + $0x1e8] sm:$0xff]
      %v3897 = vld [vmem:[#allocation2 + $0x1f0] sm:$0xff]
      %v3898 = vld [vmem:[#allocation2 + $0x1f8] sm:$0xff]
      %v3899 = vld [vmem:[#allocation2 + $0x200] sm:$0xff]
      %v3900 = vld [vmem:[#allocation2 + $0x208] sm:$0xff]
      %v3901 = vld [vmem:[#allocation2 + $0x210] sm:$0xff]
      %v3902 = vld [vmem:[#allocation2 + $0x218] sm:$0xff]
      %v3903 = vld [vmem:[#allocation2 + $0x220] sm:$0xff]
      %v3904 = vld [vmem:[#allocation2 + $0x228] sm:$0xff]
      %v3905 = vld [vmem:[#allocation2 + $0x230] sm:$0xff]
      %v3906 = vld [vmem:[#allocation2 + $0x238] sm:$0xff]
      %v3907 = vld [vmem:[#allocation2 + $0x240] sm:$0xff]
      %v3908 = vld [vmem:[#allocation2 + $0x248] sm:$0xff]
      %v3909 = vld [vmem:[#allocation2 + $0x250] sm:$0xff]
      %v3910 = vld [vmem:[#allocation2 + $0x258] sm:$0xff]
      %v3911 = vld [vmem:[#allocation2 + $0x260] sm:$0xff]
      %v3912 = vld [vmem:[#allocation2 + $0x268] sm:$0xff]
      %v3913 = vld [vmem:[#allocation2 + $0x270] sm:$0xff]
      %v3914 = vld [vmem:[#allocation2 + $0x278] sm:$0xff]
      %v3915 = vld [vmem:[#allocation2 + $0x280] sm:$0xff]
      %v3916 = vld [vmem:[#allocation2 + $0x288] sm:$0xff]
      %v3917 = vld [vmem:[#allocation2 + $0x290] sm:$0xff]
      %v3918 = vld [vmem:[#allocation2 + $0x298] sm:$0xff]
      %v3919 = vld [vmem:[#allocation2 + $0x2a0] sm:$0xff]
      %v3920 = vld [vmem:[#allocation2 + $0x2a8] sm:$0xff]
      %v3921 = vld [vmem:[#allocation2 + $0x2b0] sm:$0xff]
      %v3922 = vld [vmem:[#allocation2 + $0x2b8] sm:$0xff]
      %v3923 = vlaneseq
      %v3924 = vshrl.u32 %v3923, 7
      %v3925 = vsub.s32 0, %v3924
      %v3926 = vrot.slane %v3833, %v3925
      %v3927 = vmul.f32 %v3835, %v3926
      %v3928 = vmul.f32 %v3836, %v3926
      %v3929 = vmul.f32 %v3837, %v3926
      %v3930 = vmul.f32 %v3838, %v3926
      %v3931 = vmul.f32 %v3839, %v3926
      %v3932 = vmul.f32 %v3840, %v3926
      %v3933 = vmul.f32 %v3841, %v3926
      %v3934 = vmul.f32 %v3842, %v3926
      %v3935 = vmul.f32 %v3843, %v3926
      %v3936 = vmul.f32 %v3844, %v3926
      %v3937 = vmul.f32 %v3845, %v3926
      %v3938 = vmul.f32 %v3846, %v3926
      %v3939 = vmul.f32 %v3847, %v3926
      %v3940 = vmul.f32 %v3848, %v3926
      %v3941 = vmul.f32 %v3849, %v3926
      %v3942 = vmul.f32 %v3850, %v3926
      %v3943 = vmul.f32 %v3851, %v3926
      %v3944 = vmul.f32 %v3852, %v3926
      %v3945 = vmul.f32 %v3853, %v3926
      %v3946 = vmul.f32 %v3854, %v3926
      %v3947 = vmul.f32 %v3855, %v3926
      %v3948 = vmul.f32 %v3856, %v3926
      %v3949 = vmul.f32 %v3857, %v3926
      %v3950 = vmul.f32 %v3858, %v3926
      %v3951 = vmul.f32 %v3859, %v3926
      %v3952 = vmul.f32 %v3860, %v3926
      %v3953 = vmul.f32 %v3861, %v3926
      %v3954 = vmul.f32 %v3862, %v3926
      %v3955 = vmul.f32 %v3863, %v3926
      %v3956 = vmul.f32 %v3864, %v3926
      %v3957 = vmul.f32 %v3865, %v3926
      %v3958 = vmul.f32 %v3866, %v3926
      %v3959 = vmul.f32 %v3867, %v3926
      %v3960 = vmul.f32 %v3868, %v3926
      %v3961 = vmul.f32 %v3869, %v3926
      %v3962 = vmul.f32 %v3870, %v3926
      %v3963 = vmul.f32 %v3871, %v3926
      %v3964 = vmul.f32 %v3872, %v3926
      %v3965 = vmul.f32 %v3873, %v3926
      %v3966 = vmul.f32 %v3874, %v3926
      %v3967 = vmul.f32 %v3875, %v3926
      %v3968 = vmul.f32 %v3876, %v3926
      %v3969 = vmul.f32 %v3877, %v3926
      %v3970 = vmul.f32 %v3878, %v3926
      %v3971 = vmul.f32 %v3879, %v3926
      %v3972 = vmul.f32 %v3880, %v3926
      %v3973 = vmul.f32 %v3881, %v3926
      %v3974 = vmul.f32 %v3882, %v3926
      %v3975 = vmul.f32 %v3883, %v3926
      %v3976 = vmul.f32 %v3884, %v3926
      %v3977 = vmul.f32 %v3885, %v3926
      %v3978 = vmul.f32 %v3886, %v3926
      %v3979 = vmul.f32 %v3887, %v3926
      %v3980 = vmul.f32 %v3888, %v3926
      %v3981 = vmul.f32 %v3889, %v3926
      %v3982 = vmul.f32 %v3890, %v3926
      %v3983 = vmul.f32 %v3891, %v3926
      %v3984 = vmul.f32 %v3892, %v3926
      %v3985 = vmul.f32 %v3893, %v3926
      %v3986 = vmul.f32 %v3894, %v3926
      %v3987 = vmul.f32 %v3895, %v3926
      %v3988 = vmul.f32 %v3896, %v3926
      %v3989 = vmul.f32 %v3897, %v3926
      %v3990 = vmul.f32 %v3898, %v3926
      %v3991 = vmul.f32 %v3899, %v3926
      %v3992 = vmul.f32 %v3900, %v3926
      %v3993 = vmul.f32 %v3901, %v3926
      %v3994 = vmul.f32 %v3902, %v3926
      %v3995 = vmul.f32 %v3903, %v3926
      %v3996 = vmul.f32 %v3904, %v3926
      %v3997 = vmul.f32 %v3905, %v3926
      %v3998 = vmul.f32 %v3906, %v3926
      %v3999 = vmul.f32 %v3907, %v3926
      %v4000 = vmul.f32 %v3908, %v3926
      %v4001 = vmul.f32 %v3909, %v3926
      %v4002 = vmul.f32 %v3910, %v3926
      %v4003 = vmul.f32 %v3911, %v3926
      %v4004 = vmul.f32 %v3912, %v3926
      %v4005 = vmul.f32 %v3913, %v3926
      %v4006 = vmul.f32 %v3914, %v3926
      %v4007 = vmul.f32 %v3915, %v3926
      %v4008 = vmul.f32 %v3916, %v3926
      %v4009 = vmul.f32 %v3917, %v3926
      %v4010 = vmul.f32 %v3918, %v3926
      %v4011 = vmul.f32 %v3919, %v3926
      %v4012 = vmul.f32 %v3920, %v3926
      %v4013 = vmul.f32 %v3921, %v3926
      %v4014 = vmul.f32 %v3922, %v3926
      %v4015 = vlaneseq
      %v4016 = vshrl.u32 %v4015, 7
      %v4017 = vsub.s32 0, %v4016
      %v4018 = vrot.slane %v3834, %v4017
      %v4019 = vadd.f32 %v3927, %v4018
      %v4020 = vadd.f32 %v3928, %v4018
      %v4021 = vadd.f32 %v3929, %v4018
      %v4022 = vadd.f32 %v3930, %v4018
      %v4023 = vadd.f32 %v3931, %v4018
      %v4024 = vadd.f32 %v3932, %v4018
      %v4025 = vadd.f32 %v3933, %v4018
      %v4026 = vadd.f32 %v3934, %v4018
      %v4027 = vadd.f32 %v3935, %v4018
      %v4028 = vadd.f32 %v3936, %v4018
      %v4029 = vadd.f32 %v3937, %v4018
      %v4030 = vadd.f32 %v3938, %v4018
      %v4031 = vadd.f32 %v3939, %v4018
      %v4032 = vadd.f32 %v3940, %v4018
      %v4033 = vadd.f32 %v3941, %v4018
      %v4034 = vadd.f32 %v3942, %v4018
      %v4035 = vadd.f32 %v3943, %v4018
      %v4036 = vadd.f32 %v3944, %v4018
      %v4037 = vadd.f32 %v3945, %v4018
      %v4038 = vadd.f32 %v3946, %v4018
      %v4039 = vadd.f32 %v3947, %v4018
      %v4040 = vadd.f32 %v3948, %v4018
      %v4041 = vadd.f32 %v3949, %v4018
      %v4042 = vadd.f32 %v3950, %v4018
      %v4043 = vadd.f32 %v3951, %v4018
      %v4044 = vadd.f32 %v3952, %v4018
      %v4045 = vadd.f32 %v3953, %v4018
      %v4046 = vadd.f32 %v3954, %v4018
      %v4047 = vadd.f32 %v3955, %v4018
      %v4048 = vadd.f32 %v3956, %v4018
      %v4049 = vadd.f32 %v3957, %v4018
      %v4050 = vadd.f32 %v3958, %v4018
      %v4051 = vadd.f32 %v3959, %v4018
      %v4052 = vadd.f32 %v3960, %v4018
      %v4053 = vadd.f32 %v3961, %v4018
      %v4054 = vadd.f32 %v3962, %v4018
      %v4055 = vadd.f32 %v3963, %v4018
      %v4056 = vadd.f32 %v3964, %v4018
      %v4057 = vadd.f32 %v3965, %v4018
      %v4058 = vadd.f32 %v3966, %v4018
      %v4059 = vadd.f32 %v3967, %v4018
      %v4060 = vadd.f32 %v3968, %v4018
      %v4061 = vadd.f32 %v3969, %v4018
      %v4062 = vadd.f32 %v3970, %v4018
      %v4063 = vadd.f32 %v3971, %v4018
      %v4064 = vadd.f32 %v3972, %v4018
      %v4065 = vadd.f32 %v3973, %v4018
      %v4066 = vadd.f32 %v3974, %v4018
      %v4067 = vadd.f32 %v3975, %v4018
      %v4068 = vadd.f32 %v3976, %v4018
      %v4069 = vadd.f32 %v3977, %v4018
      %v4070 = vadd.f32 %v3978, %v4018
      %v4071 = vadd.f32 %v3979, %v4018
      %v4072 = vadd.f32 %v3980, %v4018
      %v4073 = vadd.f32 %v3981, %v4018
      %v4074 = vadd.f32 %v3982, %v4018
      %v4075 = vadd.f32 %v3983, %v4018
      %v4076 = vadd.f32 %v3984, %v4018
      %v4077 = vadd.f32 %v3985, %v4018
      %v4078 = vadd.f32 %v3986, %v4018
      %v4079 = vadd.f32 %v3987, %v4018
      %v4080 = vadd.f32 %v3988, %v4018
      %v4081 = vadd.f32 %v3989, %v4018
      %v4082 = vadd.f32 %v3990, %v4018
      %v4083 = vadd.f32 %v3991, %v4018
      %v4084 = vadd.f32 %v3992, %v4018
      %v4085 = vadd.f32 %v3993, %v4018
      %v4086 = vadd.f32 %v3994, %v4018
      %v4087 = vadd.f32 %v3995, %v4018
      %v4088 = vadd.f32 %v3996, %v4018
      %v4089 = vadd.f32 %v3997, %v4018
      %v4090 = vadd.f32 %v3998, %v4018
      %v4091 = vadd.f32 %v3999, %v4018
      %v4092 = vadd.f32 %v4000, %v4018
      %v4093 = vadd.f32 %v4001, %v4018
      %v4094 = vadd.f32 %v4002, %v4018
      %v4095 = vadd.f32 %v4003, %v4018
      %v4096 = vadd.f32 %v4004, %v4018
      %v4097 = vadd.f32 %v4005, %v4018
      %v4098 = vadd.f32 %v4006, %v4018
      %v4099 = vadd.f32 %v4007, %v4018
      %v4100 = vadd.f32 %v4008, %v4018
      %v4101 = vadd.f32 %v4009, %v4018
      %v4102 = vadd.f32 %v4010, %v4018
      %v4103 = vadd.f32 %v4011, %v4018
      %v4104 = vadd.f32 %v4012, %v4018
      %v4105 = vadd.f32 %v4013, %v4018
      %v4106 = vadd.f32 %v4014, %v4018
      %v4107 = vmax.f32 %v4019, 0.0
      %v4108 = vmax.f32 %v4020, 0.0
      %v4109 = vmax.f32 %v4021, 0.0
      %v4110 = vmax.f32 %v4022, 0.0
      %v4111 = vmax.f32 %v4023, 0.0
      %v4112 = vmax.f32 %v4024, 0.0
      %v4113 = vmax.f32 %v4025, 0.0
      %v4114 = vmax.f32 %v4026, 0.0
      %v4115 = vmax.f32 %v4027, 0.0
      %v4116 = vmax.f32 %v4028, 0.0
      %v4117 = vmax.f32 %v4029, 0.0
      %v4118 = vmax.f32 %v4030, 0.0
      %v4119 = vmax.f32 %v4031, 0.0
      %v4120 = vmax.f32 %v4032, 0.0
      %v4121 = vmax.f32 %v4033, 0.0
      %v4122 = vmax.f32 %v4034, 0.0
      %v4123 = vmax.f32 %v4035, 0.0
      %v4124 = vmax.f32 %v4036, 0.0
      %v4125 = vmax.f32 %v4037, 0.0
      %v4126 = vmax.f32 %v4038, 0.0
      %v4127 = vmax.f32 %v4039, 0.0
      %v4128 = vmax.f32 %v4040, 0.0
      %v4129 = vmax.f32 %v4041, 0.0
      %v4130 = vmax.f32 %v4042, 0.0
      %v4131 = vmax.f32 %v4043, 0.0
      %v4132 = vmax.f32 %v4044, 0.0
      %v4133 = vmax.f32 %v4045, 0.0
      %v4134 = vmax.f32 %v4046, 0.0
      %v4135 = vmax.f32 %v4047, 0.0
      %v4136 = vmax.f32 %v4048, 0.0
      %v4137 = vmax.f32 %v4049, 0.0
      %v4138 = vmax.f32 %v4050, 0.0
      %v4139 = vmax.f32 %v4051, 0.0
      %v4140 = vmax.f32 %v4052, 0.0
      %v4141 = vmax.f32 %v4053, 0.0
      %v4142 = vmax.f32 %v4054, 0.0
      %v4143 = vmax.f32 %v4055, 0.0
      %v4144 = vmax.f32 %v4056, 0.0
      %v4145 = vmax.f32 %v4057, 0.0
      %v4146 = vmax.f32 %v4058, 0.0
      %v4147 = vmax.f32 %v4059, 0.0
      %v4148 = vmax.f32 %v4060, 0.0
      %v4149 = vmax.f32 %v4061, 0.0
      %v4150 = vmax.f32 %v4062, 0.0
      %v4151 = vmax.f32 %v4063, 0.0
      %v4152 = vmax.f32 %v4064, 0.0
      %v4153 = vmax.f32 %v4065, 0.0
      %v4154 = vmax.f32 %v4066, 0.0
      %v4155 = vmax.f32 %v4067, 0.0
      %v4156 = vmax.f32 %v4068, 0.0
      %v4157 = vmax.f32 %v4069, 0.0
      %v4158 = vmax.f32 %v4070, 0.0
      %v4159 = vmax.f32 %v4071, 0.0
      %v4160 = vmax.f32 %v4072, 0.0
      %v4161 = vmax.f32 %v4073, 0.0
      %v4162 = vmax.f32 %v4074, 0.0
      %v4163 = vmax.f32 %v4075, 0.0
      %v4164 = vmax.f32 %v4076, 0.0
      %v4165 = vmax.f32 %v4077, 0.0
      %v4166 = vmax.f32 %v4078, 0.0
      %v4167 = vmax.f32 %v4079, 0.0
      %v4168 = vmax.f32 %v4080, 0.0
      %v4169 = vmax.f32 %v4081, 0.0
      %v4170 = vmax.f32 %v4082, 0.0
      %v4171 = vmax.f32 %v4083, 0.0
      %v4172 = vmax.f32 %v4084, 0.0
      %v4173 = vmax.f32 %v4085, 0.0
      %v4174 = vmax.f32 %v4086, 0.0
      %v4175 = vmax.f32 %v4087, 0.0
      %v4176 = vmax.f32 %v4088, 0.0
      %v4177 = vmax.f32 %v4089, 0.0
      %v4178 = vmax.f32 %v4090, 0.0
      %v4179 = vmax.f32 %v4091, 0.0
      %v4180 = vmax.f32 %v4092, 0.0
      %v4181 = vmax.f32 %v4093, 0.0
      %v4182 = vmax.f32 %v4094, 0.0
      %v4183 = vmax.f32 %v4095, 0.0
      %v4184 = vmax.f32 %v4096, 0.0
      %v4185 = vmax.f32 %v4097, 0.0
      %v4186 = vmax.f32 %v4098, 0.0
      %v4187 = vmax.f32 %v4099, 0.0
      %v4188 = vmax.f32 %v4100, 0.0
      %v4189 = vmax.f32 %v4101, 0.0
      %v4190 = vmax.f32 %v4102, 0.0
      %v4191 = vmax.f32 %v4103, 0.0
      %v4192 = vmax.f32 %v4104, 0.0
      %v4193 = vmax.f32 %v4105, 0.0
      %v4194 = vmax.f32 %v4106, 0.0
      %v4195 = vpack.c.bf16 %v4108, %v4107
      %v4196 = vpack.c.bf16 %v4110, %v4109
      %v4197 = vpack.c.bf16 %v4112, %v4111
      %v4198 = vpack.c.bf16 %v4114, %v4113
      %v4199 = vpack.c.bf16 %v4116, %v4115
      %v4200 = vpack.c.bf16 %v4118, %v4117
      %v4201 = vpack.c.bf16 %v4120, %v4119
      %v4202 = vpack.c.bf16 %v4122, %v4121
      %v4203 = vpack.c.bf16 %v4124, %v4123
      %v4204 = vpack.c.bf16 %v4126, %v4125
      %v4205 = vpack.c.bf16 %v4128, %v4127
      %v4206 = vpack.c.bf16 %v4130, %v4129
      %v4207 = vpack.c.bf16 %v4132, %v4131
      %v4208 = vpack.c.bf16 %v4134, %v4133
      %v4209 = vpack.c.bf16 %v4136, %v4135
      %v4210 = vpack.c.bf16 %v4138, %v4137
      %v4211 = vpack.c.bf16 %v4140, %v4139
      %v4212 = vpack.c.bf16 %v4142, %v4141
      %v4213 = vpack.c.bf16 %v4144, %v4143
      %v4214 = vpack.c.bf16 %v4146, %v4145
      %v4215 = vpack.c.bf16 %v4148, %v4147
      %v4216 = vpack.c.bf16 %v4150, %v4149
      %v4217 = vpack.c.bf16 %v4152, %v4151
      %v4218 = vpack.c.bf16 %v4154, %v4153
      %v4219 = vpack.c.bf16 %v4156, %v4155
      %v4220 = vpack.c.bf16 %v4158, %v4157
      %v4221 = vpack.c.bf16 %v4160, %v4159
      %v4222 = vpack.c.bf16 %v4162, %v4161
      %v4223 = vpack.c.bf16 %v4164, %v4163
      %v4224 = vpack.c.bf16 %v4166, %v4165
      %v4225 = vpack.c.bf16 %v4168, %v4167
      %v4226 = vpack.c.bf16 %v4170, %v4169
      %v4227 = vpack.c.bf16 %v4172, %v4171
      %v4228 = vpack.c.bf16 %v4174, %v4173
      %v4229 = vpack.c.bf16 %v4176, %v4175
      %v4230 = vpack.c.bf16 %v4178, %v4177
      %v4231 = vpack.c.bf16 %v4180, %v4179
      %v4232 = vpack.c.bf16 %v4182, %v4181
      %v4233 = vpack.c.bf16 %v4184, %v4183
      %v4234 = vpack.c.bf16 %v4186, %v4185
      %v4235 = vpack.c.bf16 %v4188, %v4187
      %v4236 = vpack.c.bf16 %v4190, %v4189
      %v4237 = vpack.c.bf16 %v4192, %v4191
      %v4238 = vpack.c.bf16 %v4194, %v4193
      %v4240 = vshrl.u32 %v4195, 16
      %v4242 = vrot.slane %v4240, 3
      %v4243 = vshll.u32 %v4195, 16
      %v4245 = vrot.slane %v4243, 4
      %v4246 = vor.u32 %v4242, %v4245
      %v4248 = vshrl.u32 %v4196, 16
      %v4250 = vrot.slane %v4248, 3
      %v4251 = vshll.u32 %v4196, 16
      %v4253 = vrot.slane %v4251, 4
      %v4254 = vor.u32 %v4250, %v4253
      %v4255 = vsel %vm809, %v4246, %v4254
      %v4257 = vshrl.u32 %v4197, 16
      %v4259 = vrot.slane %v4257, 3
      %v4260 = vshll.u32 %v4197, 16
      %v4262 = vrot.slane %v4260, 4
      %v4263 = vor.u32 %v4259, %v4262
      %v4265 = vshrl.u32 %v4198, 16
      %v4267 = vrot.slane %v4265, 3
      %v4268 = vshll.u32 %v4198, 16
      %v4270 = vrot.slane %v4268, 4
      %v4271 = vor.u32 %v4267, %v4270
      %v4272 = vsel %vm809, %v4263, %v4271
      %v4274 = vshrl.u32 %v4199, 16
      %v4276 = vrot.slane %v4274, 3
      %v4277 = vshll.u32 %v4199, 16
      %v4279 = vrot.slane %v4277, 4
      %v4280 = vor.u32 %v4276, %v4279
      %v4282 = vshrl.u32 %v4200, 16
      %v4284 = vrot.slane %v4282, 3
      %v4285 = vshll.u32 %v4200, 16
      %v4287 = vrot.slane %v4285, 4
      %v4288 = vor.u32 %v4284, %v4287
      %v4289 = vsel %vm809, %v4280, %v4288
      %v4291 = vshrl.u32 %v4201, 16
      %v4293 = vrot.slane %v4291, 3
      %v4294 = vshll.u32 %v4201, 16
      %v4296 = vrot.slane %v4294, 4
      %v4297 = vor.u32 %v4293, %v4296
      %v4299 = vshrl.u32 %v4202, 16
      %v4301 = vrot.slane %v4299, 3
      %v4302 = vshll.u32 %v4202, 16
      %v4304 = vrot.slane %v4302, 4
      %v4305 = vor.u32 %v4301, %v4304
      %v4306 = vsel %vm809, %v4297, %v4305
      %v4308 = vshrl.u32 %v4203, 16
      %v4310 = vrot.slane %v4308, 3
      %v4311 = vshll.u32 %v4203, 16
      %v4313 = vrot.slane %v4311, 4
      %v4314 = vor.u32 %v4310, %v4313
      %v4316 = vshrl.u32 %v4204, 16
      %v4318 = vrot.slane %v4316, 3
      %v4319 = vshll.u32 %v4204, 16
      %v4321 = vrot.slane %v4319, 4
      %v4322 = vor.u32 %v4318, %v4321
      %v4323 = vsel %vm809, %v4314, %v4322
      %v4325 = vshrl.u32 %v4205, 16
      %v4327 = vrot.slane %v4325, 3
      %v4328 = vshll.u32 %v4205, 16
      %v4330 = vrot.slane %v4328, 4
      %v4331 = vor.u32 %v4327, %v4330
      %v4333 = vshrl.u32 %v4206, 16
      %v4335 = vrot.slane %v4333, 3
      %v4336 = vshll.u32 %v4206, 16
      %v4338 = vrot.slane %v4336, 4
      %v4339 = vor.u32 %v4335, %v4338
      %v4340 = vsel %vm809, %v4331, %v4339
      %v4342 = vshrl.u32 %v4207, 16
      %v4344 = vrot.slane %v4342, 3
      %v4345 = vshll.u32 %v4207, 16
      %v4347 = vrot.slane %v4345, 4
      %v4348 = vor.u32 %v4344, %v4347
      %v4350 = vshrl.u32 %v4208, 16
      %v4352 = vrot.slane %v4350, 3
      %v4353 = vshll.u32 %v4208, 16
      %v4355 = vrot.slane %v4353, 4
      %v4356 = vor.u32 %v4352, %v4355
      %v4357 = vsel %vm809, %v4348, %v4356
      %v4359 = vshrl.u32 %v4209, 16
      %v4361 = vrot.slane %v4359, 3
      %v4362 = vshll.u32 %v4209, 16
      %v4364 = vrot.slane %v4362, 4
      %v4365 = vor.u32 %v4361, %v4364
      %v4367 = vshrl.u32 %v4210, 16
      %v4369 = vrot.slane %v4367, 3
      %v4370 = vshll.u32 %v4210, 16
      %v4372 = vrot.slane %v4370, 4
      %v4373 = vor.u32 %v4369, %v4372
      %v4374 = vsel %vm809, %v4365, %v4373
      %v4376 = vshrl.u32 %v4211, 16
      %v4378 = vrot.slane %v4376, 3
      %v4379 = vshll.u32 %v4211, 16
      %v4381 = vrot.slane %v4379, 4
      %v4382 = vor.u32 %v4378, %v4381
      %v4384 = vshrl.u32 %v4212, 16
      %v4386 = vrot.slane %v4384, 3
      %v4387 = vshll.u32 %v4212, 16
      %v4389 = vrot.slane %v4387, 4
      %v4390 = vor.u32 %v4386, %v4389
      %v4391 = vsel %vm809, %v4382, %v4390
      %v4393 = vshrl.u32 %v4213, 16
      %v4395 = vrot.slane %v4393, 3
      %v4396 = vshll.u32 %v4213, 16
      %v4398 = vrot.slane %v4396, 4
      %v4399 = vor.u32 %v4395, %v4398
      %v4401 = vshrl.u32 %v4214, 16
      %v4403 = vrot.slane %v4401, 3
      %v4404 = vshll.u32 %v4214, 16
      %v4406 = vrot.slane %v4404, 4
      %v4407 = vor.u32 %v4403, %v4406
      %v4408 = vsel %vm809, %v4399, %v4407
      %v4410 = vshrl.u32 %v4215, 16
      %v4412 = vrot.slane %v4410, 3
      %v4413 = vshll.u32 %v4215, 16
      %v4415 = vrot.slane %v4413, 4
      %v4416 = vor.u32 %v4412, %v4415
      %v4418 = vshrl.u32 %v4216, 16
      %v4420 = vrot.slane %v4418, 3
      %v4421 = vshll.u32 %v4216, 16
      %v4423 = vrot.slane %v4421, 4
      %v4424 = vor.u32 %v4420, %v4423
      %v4425 = vsel %vm809, %v4416, %v4424
      %v4427 = vshrl.u32 %v4217, 16
      %v4429 = vrot.slane %v4427, 3
      %v4430 = vshll.u32 %v4217, 16
      %v4432 = vrot.slane %v4430, 4
      %v4433 = vor.u32 %v4429, %v4432
      %v4435 = vshrl.u32 %v4218, 16
      %v4437 = vrot.slane %v4435, 3
      %v4438 = vshll.u32 %v4218, 16
      %v4440 = vrot.slane %v4438, 4
      %v4441 = vor.u32 %v4437, %v4440
      %v4442 = vsel %vm809, %v4433, %v4441
      %v4444 = vshrl.u32 %v4219, 16
      %v4446 = vrot.slane %v4444, 3
      %v4447 = vshll.u32 %v4219, 16
      %v4449 = vrot.slane %v4447, 4
      %v4450 = vor.u32 %v4446, %v4449
      %v4452 = vshrl.u32 %v4220, 16
      %v4454 = vrot.slane %v4452, 3
      %v4455 = vshll.u32 %v4220, 16
      %v4457 = vrot.slane %v4455, 4
      %v4458 = vor.u32 %v4454, %v4457
      %v4459 = vsel %vm809, %v4450, %v4458
      %v4461 = vshrl.u32 %v4221, 16
      %v4463 = vrot.slane %v4461, 3
      %v4464 = vshll.u32 %v4221, 16
      %v4466 = vrot.slane %v4464, 4
      %v4467 = vor.u32 %v4463, %v4466
      %v4469 = vshrl.u32 %v4222, 16
      %v4471 = vrot.slane %v4469, 3
      %v4472 = vshll.u32 %v4222, 16
      %v4474 = vrot.slane %v4472, 4
      %v4475 = vor.u32 %v4471, %v4474
      %v4476 = vsel %vm809, %v4467, %v4475
      %v4478 = vshrl.u32 %v4223, 16
      %v4480 = vrot.slane %v4478, 3
      %v4481 = vshll.u32 %v4223, 16
      %v4483 = vrot.slane %v4481, 4
      %v4484 = vor.u32 %v4480, %v4483
      %v4486 = vshrl.u32 %v4224, 16
      %v4488 = vrot.slane %v4486, 3
      %v4489 = vshll.u32 %v4224, 16
      %v4491 = vrot.slane %v4489, 4
      %v4492 = vor.u32 %v4488, %v4491
      %v4493 = vsel %vm809, %v4484, %v4492
      %v4495 = vshrl.u32 %v4225, 16
      %v4497 = vrot.slane %v4495, 3
      %v4498 = vshll.u32 %v4225, 16
      %v4500 = vrot.slane %v4498, 4
      %v4501 = vor.u32 %v4497, %v4500
      %v4503 = vshrl.u32 %v4226, 16
      %v4505 = vrot.slane %v4503, 3
      %v4506 = vshll.u32 %v4226, 16
      %v4508 = vrot.slane %v4506, 4
      %v4509 = vor.u32 %v4505, %v4508
      %v4510 = vsel %vm809, %v4501, %v4509
      %v4512 = vshrl.u32 %v4227, 16
      %v4514 = vrot.slane %v4512, 3
      %v4515 = vshll.u32 %v4227, 16
      %v4517 = vrot.slane %v4515, 4
      %v4518 = vor.u32 %v4514, %v4517
      %v4520 = vshrl.u32 %v4228, 16
      %v4522 = vrot.slane %v4520, 3
      %v4523 = vshll.u32 %v4228, 16
      %v4525 = vrot.slane %v4523, 4
      %v4526 = vor.u32 %v4522, %v4525
      %v4527 = vsel %vm809, %v4518, %v4526
      %v4529 = vshrl.u32 %v4229, 16
      %v4531 = vrot.slane %v4529, 3
      %v4532 = vshll.u32 %v4229, 16
      %v4534 = vrot.slane %v4532, 4
      %v4535 = vor.u32 %v4531, %v4534
      %v4537 = vshrl.u32 %v4230, 16
      %v4539 = vrot.slane %v4537, 3
      %v4540 = vshll.u32 %v4230, 16
      %v4542 = vrot.slane %v4540, 4
      %v4543 = vor.u32 %v4539, %v4542
      %v4544 = vsel %vm809, %v4535, %v4543
      %v4546 = vshrl.u32 %v4231, 16
      %v4548 = vrot.slane %v4546, 3
      %v4549 = vshll.u32 %v4231, 16
      %v4551 = vrot.slane %v4549, 4
      %v4552 = vor.u32 %v4548, %v4551
      %v4554 = vshrl.u32 %v4232, 16
      %v4556 = vrot.slane %v4554, 3
      %v4557 = vshll.u32 %v4232, 16
      %v4559 = vrot.slane %v4557, 4
      %v4560 = vor.u32 %v4556, %v4559
      %v4561 = vsel %vm809, %v4552, %v4560
      %v4563 = vshrl.u32 %v4233, 16
      %v4565 = vrot.slane %v4563, 3
      %v4566 = vshll.u32 %v4233, 16
      %v4568 = vrot.slane %v4566, 4
      %v4569 = vor.u32 %v4565, %v4568
      %v4571 = vshrl.u32 %v4234, 16
      %v4573 = vrot.slane %v4571, 3
      %v4574 = vshll.u32 %v4234, 16
      %v4576 = vrot.slane %v4574, 4
      %v4577 = vor.u32 %v4573, %v4576
      %v4578 = vsel %vm809, %v4569, %v4577
      %s4599 = scalar_lea.vmem %s3, 18
      %v4600 = vld [vmem:[%s4599] sm:$0x3]
      %v4641 = vrot.slane %v4195, 4
      %v4642 = vrot.slane %v4196, 4
      %v4643 = vsel %vm1211, %v4641, %v4642
      %v4644 = vrot.slane %v4197, 4
      %v4645 = vrot.slane %v4198, 4
      %v4646 = vsel %vm1211, %v4644, %v4645
      %v4647 = vrot.slane %v4199, 4
      %v4648 = vrot.slane %v4200, 4
      %v4649 = vsel %vm1211, %v4647, %v4648
      %v4650 = vrot.slane %v4201, 4
      %v4651 = vrot.slane %v4202, 4
      %v4652 = vsel %vm1211, %v4650, %v4651
      %v4653 = vrot.slane %v4203, 4
      %v4654 = vrot.slane %v4204, 4
      %v4655 = vsel %vm1211, %v4653, %v4654
      %v4656 = vrot.slane %v4205, 4
      %v4657 = vrot.slane %v4206, 4
      %v4658 = vsel %vm1211, %v4656, %v4657
      %v4659 = vrot.slane %v4207, 4
      %v4660 = vrot.slane %v4208, 4
      %v4661 = vsel %vm1211, %v4659, %v4660
      %v4662 = vrot.slane %v4209, 4
      %v4663 = vrot.slane %v4210, 4
      %v4664 = vsel %vm1211, %v4662, %v4663
      %v4665 = vrot.slane %v4211, 4
      %v4666 = vrot.slane %v4212, 4
      %v4667 = vsel %vm1211, %v4665, %v4666
      %v4668 = vrot.slane %v4213, 4
      %v4669 = vrot.slane %v4214, 4
      %v4670 = vsel %vm1211, %v4668, %v4669
      %v4671 = vrot.slane %v4215, 4
      %v4672 = vrot.slane %v4216, 4
      %v4673 = vsel %vm1211, %v4671, %v4672
      %v4674 = vrot.slane %v4217, 4
      %v4675 = vrot.slane %v4218, 4
      %v4676 = vsel %vm1211, %v4674, %v4675
      %v4677 = vrot.slane %v4219, 4
      %v4678 = vrot.slane %v4220, 4
      %v4679 = vsel %vm1211, %v4677, %v4678
      %v4680 = vrot.slane %v4221, 4
      %v4681 = vrot.slane %v4222, 4
      %v4682 = vsel %vm1211, %v4680, %v4681
      %v4683 = vrot.slane %v4223, 4
      %v4684 = vrot.slane %v4224, 4
      %v4685 = vsel %vm1211, %v4683, %v4684
      %v4686 = vrot.slane %v4225, 4
      %v4687 = vrot.slane %v4226, 4
      %v4688 = vsel %vm1211, %v4686, %v4687
      %v4689 = vrot.slane %v4227, 4
      %v4690 = vrot.slane %v4228, 4
      %v4691 = vsel %vm1211, %v4689, %v4690
      %v4692 = vrot.slane %v4229, 4
      %v4693 = vrot.slane %v4230, 4
      %v4694 = vsel %vm1211, %v4692, %v4693
      %v4695 = vrot.slane %v4231, 4
      %v4696 = vrot.slane %v4232, 4
      %v4697 = vsel %vm1211, %v4695, %v4696
      %v4698 = vrot.slane %v4233, 4
      %v4699 = vrot.slane %v4234, 4
      %v4700 = vsel %vm1211, %v4698, %v4699
      %s4721 = scalar_lea.vmem %s3, 20
      %v4722 = vld [vmem:[%s4721] sm:$0x3]
      %4723 = vmatprep.subr.bf16.mxu0 0
      %4724 = vmatpush1.bf16.xpose.msra.mxu0 %v4722
      %4725 = vmatprep.subr.bf16.mxu0 0
      %4726 = vmatpush1.bf16.xpose.msra.mxu0 0
      %4727 = vmatprep.subr.bf16.mxu0 0
      %4728 = vmatpush1.bf16.xpose.msra.mxu0 0
      %4729 = vmatprep.subr.bf16.mxu0 0
      %4730 = vmatpush1.bf16.xpose.msra.mxu0 0
      %4731 = vmatprep.subr.bf16.mxu0 0
      %4732 = vmatpush1.bf16.xpose.msra.mxu0 0
      %4733 = vmatprep.subr.bf16.mxu0 0
      %4734 = vmatpush1.bf16.xpose.msra.mxu0 0
      %4735 = vmatprep.subr.bf16.mxu0 0
      %4736 = vmatpush1.bf16.xpose.msra.mxu0 0
      %4737 = vmatprep.subr.bf16.mxu0 0
      %4738 = vmatpush1.bf16.xpose.msra.mxu0 0
      %4739 = vmatprep.subr.bf16.mxu0 0
      %4740 = vmatpush1.bf16.xpose.msra.mxu0 0
      %4741 = vmatprep.subr.bf16.mxu0 0
      %4742 = vmatpush1.bf16.xpose.msra.mxu0 0
      %4743 = vmatprep.subr.bf16.mxu0 0
      %4744 = vmatpush1.bf16.xpose.msra.mxu0 0
      %4745 = vmatprep.subr.bf16.mxu0 0
      %4746 = vmatpush1.bf16.xpose.msra.mxu0 0
      %4747 = vmatprep.subr.bf16.mxu0 0
      %4748 = vmatpush1.bf16.xpose.msra.mxu0 0
      %4749 = vmatprep.subr.bf16.mxu0 0
      %4750 = vmatpush1.bf16.xpose.msra.mxu0 0
      %4751 = vmatprep.subr.bf16.mxu0 0
      %4752 = vmatpush1.bf16.xpose.msra.mxu0 0
      %4753 = vmatprep.subr.bf16.mxu0 0
      %4754 = vmatpush1.bf16.xpose.msra.mxu0 0
      %4755 = vmatprep.mubr.bf16.mxu0 0
      %4756 = vmatmul.mubr.bf16.gmra.mrb[0].mxu0 %v4643
      %v4757 = vpop.f32.mrb[0].mxu0
      %v4758 = vadd.f32 0.0, %v4757
      %v4759 = vpop.f32.mrb[0].mxu0
      %v4760 = vpop.f32.mrb[0].mxu0
      %v4761 = vadd.f32 0.0, %v4760
      %v4762 = vpop.f32.mrb[0].mxu0
      %4763 = vmatprep.mubr.bf16.mxu0 0
      %4764 = vmatmul.mubr.bf16.gmra.mrb[0].mxu0 %v4646
      %v4765 = vpop.f32.mrb[0].mxu0
      %v4766 = vadd.f32 0.0, %v4765
      %v4767 = vpop.f32.mrb[0].mxu0
      %v4768 = vpop.f32.mrb[0].mxu0
      %v4769 = vadd.f32 0.0, %v4768
      %v4770 = vpop.f32.mrb[0].mxu0
      %4771 = vmatprep.mubr.bf16.mxu0 0
      %4772 = vmatmul.mubr.bf16.gmra.mrb[0].mxu0 %v4649
      %v4773 = vpop.f32.mrb[0].mxu0
      %v4774 = vadd.f32 0.0, %v4773
      %v4775 = vpop.f32.mrb[0].mxu0
      %v4776 = vpop.f32.mrb[0].mxu0
      %v4777 = vadd.f32 0.0, %v4776
      %v4778 = vpop.f32.mrb[0].mxu0
      %4779 = vmatprep.mubr.bf16.mxu0 0
      %4780 = vmatmul.mubr.bf16.gmra.mrb[0].mxu0 %v4652
      %v4781 = vpop.f32.mrb[0].mxu0
      %v4782 = vadd.f32 0.0, %v4781
      %v4783 = vpop.f32.mrb[0].mxu0
      %v4784 = vpop.f32.mrb[0].mxu0
      %v4785 = vadd.f32 0.0, %v4784
      %v4786 = vpop.f32.mrb[0].mxu0
      %4787 = vmatprep.mubr.bf16.mxu0 0
      %4788 = vmatmul.mubr.bf16.gmra.mrb[0].mxu0 %v4655
      %v4789 = vpop.f32.mrb[0].mxu0
      %v4790 = vadd.f32 0.0, %v4789
      %v4791 = vpop.f32.mrb[0].mxu0
      %v4792 = vpop.f32.mrb[0].mxu0
      %v4793 = vadd.f32 0.0, %v4792
      %v4794 = vpop.f32.mrb[0].mxu0
      %4795 = vmatprep.mubr.bf16.mxu0 0
      %4796 = vmatmul.mubr.bf16.gmra.mrb[0].mxu0 %v4658
      %v4797 = vpop.f32.mrb[0].mxu0
      %v4798 = vadd.f32 0.0, %v4797
      %v4799 = vpop.f32.mrb[0].mxu0
      %v4800 = vpop.f32.mrb[0].mxu0
      %v4801 = vadd.f32 0.0, %v4800
      %v4802 = vpop.f32.mrb[0].mxu0
      %4803 = vmatprep.mubr.bf16.mxu0 0
      %4804 = vmatmul.mubr.bf16.gmra.mrb[0].mxu0 %v4661
      %v4805 = vpop.f32.mrb[0].mxu0
      %v4806 = vadd.f32 0.0, %v4805
      %v4807 = vpop.f32.mrb[0].mxu0
      %v4808 = vpop.f32.mrb[0].mxu0
      %v4809 = vadd.f32 0.0, %v4808
      %v4810 = vpop.f32.mrb[0].mxu0
      %4811 = vmatprep.mubr.bf16.mxu0 0
      %4812 = vmatmul.mubr.bf16.gmra.mrb[0].mxu0 %v4664
      %v4813 = vpop.f32.mrb[0].mxu0
      %v4814 = vadd.f32 0.0, %v4813
      %v4815 = vpop.f32.mrb[0].mxu0
      %v4816 = vpop.f32.mrb[0].mxu0
      %v4817 = vadd.f32 0.0, %v4816
      %v4818 = vpop.f32.mrb[0].mxu0
      %4819 = vmatprep.mubr.bf16.mxu0 0
      %4820 = vmatmul.mubr.bf16.gmra.mrb[0].mxu0 %v4667
      %v4821 = vpop.f32.mrb[0].mxu0
      %v4822 = vadd.f32 0.0, %v4821
      %v4823 = vpop.f32.mrb[0].mxu0
      %v4824 = vpop.f32.mrb[0].mxu0
      %v4825 = vadd.f32 0.0, %v4824
      %v4826 = vpop.f32.mrb[0].mxu0
      %4827 = vmatprep.mubr.bf16.mxu0 0
      %4828 = vmatmul.mubr.bf16.gmra.mrb[0].mxu0 %v4670
      %v4829 = vpop.f32.mrb[0].mxu0
      %v4830 = vadd.f32 0.0, %v4829
      %v4831 = vpop.f32.mrb[0].mxu0
      %v4832 = vpop.f32.mrb[0].mxu0
      %v4833 = vadd.f32 0.0, %v4832
      %v4834 = vpop.f32.mrb[0].mxu0
      %4835 = vmatprep.mubr.bf16.mxu0 0
      %4836 = vmatmul.mubr.bf16.gmra.mrb[0].mxu0 %v4673
      %v4837 = vpop.f32.mrb[0].mxu0
      %v4838 = vadd.f32 0.0, %v4837
      %v4839 = vpop.f32.mrb[0].mxu0
      %v4840 = vpop.f32.mrb[0].mxu0
      %v4841 = vadd.f32 0.0, %v4840
      %v4842 = vpop.f32.mrb[0].mxu0
      %4843 = vmatprep.mubr.bf16.mxu0 0
      %4844 = vmatmul.mubr.bf16.gmra.mrb[0].mxu0 %v4676
      %v4845 = vpop.f32.mrb[0].mxu0
      %v4846 = vadd.f32 0.0, %v4845
      %v4847 = vpop.f32.mrb[0].mxu0
      %v4848 = vpop.f32.mrb[0].mxu0
      %v4849 = vadd.f32 0.0, %v4848
      %v4850 = vpop.f32.mrb[0].mxu0
      %4851 = vmatprep.mubr.bf16.mxu0 0
      %4852 = vmatmul.mubr.bf16.gmra.mrb[0].mxu0 %v4679
      %v4853 = vpop.f32.mrb[0].mxu0
      %v4854 = vadd.f32 0.0, %v4853
      %v4855 = vpop.f32.mrb[0].mxu0
      %v4856 = vpop.f32.mrb[0].mxu0
      %v4857 = vadd.f32 0.0, %v4856
      %v4858 = vpop.f32.mrb[0].mxu0
      %4859 = vmatprep.mubr.bf16.mxu0 0
      %4860 = vmatmul.mubr.bf16.gmra.mrb[0].mxu0 %v4682
      %v4861 = vpop.f32.mrb[0].mxu0
      %v4862 = vadd.f32 0.0, %v4861
      %v4863 = vpop.f32.mrb[0].mxu0
      %v4864 = vpop.f32.mrb[0].mxu0
      %v4865 = vadd.f32 0.0, %v4864
      %v4866 = vpop.f32.mrb[0].mxu0
      %4867 = vmatprep.mubr.bf16.mxu0 0
      %4868 = vmatmul.mubr.bf16.gmra.mrb[0].mxu0 %v4685
      %v4869 = vpop.f32.mrb[0].mxu0
      %v4870 = vadd.f32 0.0, %v4869
      %v4871 = vpop.f32.mrb[0].mxu0
      %v4872 = vpop.f32.mrb[0].mxu0
      %v4873 = vadd.f32 0.0, %v4872
      %v4874 = vpop.f32.mrb[0].mxu0
      %4875 = vmatprep.mubr.bf16.mxu0 0
      %4876 = vmatmul.mubr.bf16.gmra.mrb[0].mxu0 %v4688
      %v4877 = vpop.f32.mrb[0].mxu0
      %v4878 = vadd.f32 0.0, %v4877
      %v4879 = vpop.f32.mrb[0].mxu0
      %v4880 = vpop.f32.mrb[0].mxu0
      %v4881 = vadd.f32 0.0, %v4880
      %v4882 = vpop.f32.mrb[0].mxu0
      %4883 = vmatprep.mubr.bf16.mxu0 0
      %4884 = vmatmul.mubr.bf16.gmra.mrb[0].mxu0 %v4691
      %v4885 = vpop.f32.mrb[0].mxu0
      %v4886 = vadd.f32 0.0, %v4885
      %v4887 = vpop.f32.mrb[0].mxu0
      %v4888 = vpop.f32.mrb[0].mxu0
      %v4889 = vadd.f32 0.0, %v4888
      %v4890 = vpop.f32.mrb[0].mxu0
      %4891 = vmatprep.mubr.bf16.mxu0 0
      %4892 = vmatmul.mubr.bf16.gmra.mrb[0].mxu0 %v4694
      %v4893 = vpop.f32.mrb[0].mxu0
      %v4894 = vadd.f32 0.0, %v4893
      %v4895 = vpop.f32.mrb[0].mxu0
      %v4896 = vpop.f32.mrb[0].mxu0
      %v4897 = vadd.f32 0.0, %v4896
      %v4898 = vpop.f32.mrb[0].mxu0
      %4899 = vmatprep.mubr.bf16.mxu0 0
      %4900 = vmatmul.mubr.bf16.gmra.mrb[0].mxu0 %v4697
      %v4901 = vpop.f32.mrb[0].mxu0
      %v4902 = vadd.f32 0.0, %v4901
      %v4903 = vpop.f32.mrb[0].mxu0
      %v4904 = vpop.f32.mrb[0].mxu0
      %v4905 = vadd.f32 0.0, %v4904
      %v4906 = vpop.f32.mrb[0].mxu0
      %4907 = vmatprep.mubr.bf16.mxu0 0
      %4908 = vmatmul.mubr.bf16.gmra.mrb[0].mxu0 %v4700
      %v4909 = vpop.f32.mrb[0].mxu0
      %v4910 = vadd.f32 0.0, %v4909
      %v4911 = vpop.f32.mrb[0].mxu0
      %v4912 = vpop.f32.mrb[0].mxu0
      %v4913 = vadd.f32 0.0, %v4912
      %v4914 = vpop.f32.mrb[0].mxu0
      %4915 = vdwg.mxu0
      %4916 = vmatprep.subr.bf16.mxu0 0
      %4917 = vmatpush1.bf16.xpose.msra.mxu0 %v4600
      %4918 = vmatprep.subr.bf16.mxu0 0
      %4919 = vmatpush1.bf16.xpose.msra.mxu0 0
      %4920 = vmatprep.subr.bf16.mxu0 0
      %4921 = vmatpush1.bf16.xpose.msra.mxu0 0
      %4922 = vmatprep.subr.bf16.mxu0 0
      %4923 = vmatpush1.bf16.xpose.msra.mxu0 0
      %4924 = vmatprep.subr.bf16.mxu0 0
      %4925 = vmatpush1.bf16.xpose.msra.mxu0 0
      %4926 = vmatprep.subr.bf16.mxu0 0
      %4927 = vmatpush1.bf16.xpose.msra.mxu0 0
      %4928 = vmatprep.subr.bf16.mxu0 0
      %4929 = vmatpush1.bf16.xpose.msra.mxu0 0
      %4930 = vmatprep.subr.bf16.mxu0 0
      %4931 = vmatpush1.bf16.xpose.msra.mxu0 0
      %4932 = vmatprep.subr.bf16.mxu0 0
      %4933 = vmatpush1.bf16.xpose.msra.mxu0 0
      %4934 = vmatprep.subr.bf16.mxu0 0
      %4935 = vmatpush1.bf16.xpose.msra.mxu0 0
      %4936 = vmatprep.subr.bf16.mxu0 0
      %4937 = vmatpush1.bf16.xpose.msra.mxu0 0
      %4938 = vmatprep.subr.bf16.mxu0 0
      %4939 = vmatpush1.bf16.xpose.msra.mxu0 0
      %4940 = vmatprep.subr.bf16.mxu0 0
      %4941 = vmatpush1.bf16.xpose.msra.mxu0 0
      %4942 = vmatprep.subr.bf16.mxu0 0
      %4943 = vmatpush1.bf16.xpose.msra.mxu0 0
      %4944 = vmatprep.subr.bf16.mxu0 0
      %4945 = vmatpush1.bf16.xpose.msra.mxu0 0
      %4946 = vmatprep.subr.bf16.mxu0 0
      %4947 = vmatpush1.bf16.xpose.msra.mxu0 0
      %4948 = vmatprep.mubr.bf16.mxu0 0
      %4949 = vmatmul.mubr.bf16.gmra.mrb[0].mxu0 %v4255
      %v4950 = vpop.f32.mrb[0].mxu0
      %v4951 = vadd.f32 %v4758, %v4950
      %v4952 = vpop.f32.mrb[0].mxu0
      %v4953 = vpop.f32.mrb[0].mxu0
      %v4954 = vadd.f32 %v4761, %v4953
      %v4955 = vpop.f32.mrb[0].mxu0
      %4956 = vmatprep.mubr.bf16.mxu0 0
      %4957 = vmatmul.mubr.bf16.gmra.mrb[0].mxu0 %v4272
      %v4958 = vpop.f32.mrb[0].mxu0
      %v4959 = vadd.f32 %v4766, %v4958
      %v4960 = vpop.f32.mrb[0].mxu0
      %v4961 = vpop.f32.mrb[0].mxu0
      %v4962 = vadd.f32 %v4769, %v4961
      %v4963 = vpop.f32.mrb[0].mxu0
      %4964 = vmatprep.mubr.bf16.mxu0 0
      %4965 = vmatmul.mubr.bf16.gmra.mrb[0].mxu0 %v4289
      %v4966 = vpop.f32.mrb[0].mxu0
      %v4967 = vadd.f32 %v4774, %v4966
      %v4968 = vpop.f32.mrb[0].mxu0
      %v4969 = vpop.f32.mrb[0].mxu0
      %v4970 = vadd.f32 %v4777, %v4969
      %v4971 = vpop.f32.mrb[0].mxu0
      %4972 = vmatprep.mubr.bf16.mxu0 0
      %4973 = vmatmul.mubr.bf16.gmra.mrb[0].mxu0 %v4306
      %v4974 = vpop.f32.mrb[0].mxu0
      %v4975 = vadd.f32 %v4782, %v4974
      %v4976 = vpop.f32.mrb[0].mxu0
      %v4977 = vpop.f32.mrb[0].mxu0
      %v4978 = vadd.f32 %v4785, %v4977
      %v4979 = vpop.f32.mrb[0].mxu0
      %4980 = vmatprep.mubr.bf16.mxu0 0
      %4981 = vmatmul.mubr.bf16.gmra.mrb[0].mxu0 %v4323
      %v4982 = vpop.f32.mrb[0].mxu0
      %v4983 = vadd.f32 %v4790, %v4982
      %v4984 = vpop.f32.mrb[0].mxu0
      %v4985 = vpop.f32.mrb[0].mxu0
      %v4986 = vadd.f32 %v4793, %v4985
      %v4987 = vpop.f32.mrb[0].mxu0
      %4988 = vmatprep.mubr.bf16.mxu0 0
      %4989 = vmatmul.mubr.bf16.gmra.mrb[0].mxu0 %v4340
      %v4990 = vpop.f32.mrb[0].mxu0
      %v4991 = vadd.f32 %v4798, %v4990
      %v4992 = vpop.f32.mrb[0].mxu0
      %v4993 = vpop.f32.mrb[0].mxu0
      %v4994 = vadd.f32 %v4801, %v4993
      %v4995 = vpop.f32.mrb[0].mxu0
      %4996 = vmatprep.mubr.bf16.mxu0 0
      %4997 = vmatmul.mubr.bf16.gmra.mrb[0].mxu0 %v4357
      %v4998 = vpop.f32.mrb[0].mxu0
      %v4999 = vadd.f32 %v4806, %v4998
      %v5000 = vpop.f32.mrb[0].mxu0
      %v5001 = vpop.f32.mrb[0].mxu0
      %v5002 = vadd.f32 %v4809, %v5001
      %v5003 = vpop.f32.mrb[0].mxu0
      %5004 = vmatprep.mubr.bf16.mxu0 0
      %5005 = vmatmul.mubr.bf16.gmra.mrb[0].mxu0 %v4374
      %v5006 = vpop.f32.mrb[0].mxu0
      %v5007 = vadd.f32 %v4814, %v5006
      %v5008 = vpop.f32.mrb[0].mxu0
      %v5009 = vpop.f32.mrb[0].mxu0
      %v5010 = vadd.f32 %v4817, %v5009
      %v5011 = vpop.f32.mrb[0].mxu0
      %5012 = vmatprep.mubr.bf16.mxu0 0
      %5013 = vmatmul.mubr.bf16.gmra.mrb[0].mxu0 %v4391
      %v5014 = vpop.f32.mrb[0].mxu0
      %v5015 = vadd.f32 %v4822, %v5014
      %v5016 = vpop.f32.mrb[0].mxu0
      %v5017 = vpop.f32.mrb[0].mxu0
      %v5018 = vadd.f32 %v4825, %v5017
      %v5019 = vpop.f32.mrb[0].mxu0
      %5020 = vmatprep.mubr.bf16.mxu0 0
      %5021 = vmatmul.mubr.bf16.gmra.mrb[0].mxu0 %v4408
      %v5022 = vpop.f32.mrb[0].mxu0
      %v5023 = vadd.f32 %v4830, %v5022
      %v5024 = vpop.f32.mrb[0].mxu0
      %v5025 = vpop.f32.mrb[0].mxu0
      %v5026 = vadd.f32 %v4833, %v5025
      %v5027 = vpop.f32.mrb[0].mxu0
      %5028 = vmatprep.mubr.bf16.mxu0 0
      %5029 = vmatmul.mubr.bf16.gmra.mrb[0].mxu0 %v4425
      %v5030 = vpop.f32.mrb[0].mxu0
      %v5031 = vadd.f32 %v4838, %v5030
      %v5032 = vpop.f32.mrb[0].mxu0
      %v5033 = vpop.f32.mrb[0].mxu0
      %v5034 = vadd.f32 %v4841, %v5033
      %v5035 = vpop.f32.mrb[0].mxu0
      %5036 = vmatprep.mubr.bf16.mxu0 0
      %5037 = vmatmul.mubr.bf16.gmra.mrb[0].mxu0 %v4442
      %v5038 = vpop.f32.mrb[0].mxu0
      %v5039 = vadd.f32 %v4846, %v5038
      %v5040 = vpop.f32.mrb[0].mxu0
      %v5041 = vpop.f32.mrb[0].mxu0
      %v5042 = vadd.f32 %v4849, %v5041
      %v5043 = vpop.f32.mrb[0].mxu0
      %5044 = vmatprep.mubr.bf16.mxu0 0
      %5045 = vmatmul.mubr.bf16.gmra.mrb[0].mxu0 %v4459
      %v5046 = vpop.f32.mrb[0].mxu0
      %v5047 = vadd.f32 %v4854, %v5046
      %v5048 = vpop.f32.mrb[0].mxu0
      %v5049 = vpop.f32.mrb[0].mxu0
      %v5050 = vadd.f32 %v4857, %v5049
      %v5051 = vpop.f32.mrb[0].mxu0
      %5052 = vmatprep.mubr.bf16.mxu0 0
      %5053 = vmatmul.mubr.bf16.gmra.mrb[0].mxu0 %v4476
      %v5054 = vpop.f32.mrb[0].mxu0
      %v5055 = vadd.f32 %v4862, %v5054
      %v5056 = vpop.f32.mrb[0].mxu0
      %v5057 = vpop.f32.mrb[0].mxu0
      %v5058 = vadd.f32 %v4865, %v5057
      %v5059 = vpop.f32.mrb[0].mxu0
      %5060 = vmatprep.mubr.bf16.mxu0 0
      %5061 = vmatmul.mubr.bf16.gmra.mrb[0].mxu0 %v4493
      %v5062 = vpop.f32.mrb[0].mxu0
      %v5063 = vadd.f32 %v4870, %v5062
      %v5064 = vpop.f32.mrb[0].mxu0
      %v5065 = vpop.f32.mrb[0].mxu0
      %v5066 = vadd.f32 %v4873, %v5065
      %v5067 = vpop.f32.mrb[0].mxu0
      %5068 = vmatprep.mubr.bf16.mxu0 0
      %5069 = vmatmul.mubr.bf16.gmra.mrb[0].mxu0 %v4510
      %v5070 = vpop.f32.mrb[0].mxu0
      %v5071 = vadd.f32 %v4878, %v5070
      %v5072 = vpop.f32.mrb[0].mxu0
      %v5073 = vpop.f32.mrb[0].mxu0
      %v5074 = vadd.f32 %v4881, %v5073
      %v5075 = vpop.f32.mrb[0].mxu0
      %5076 = vmatprep.mubr.bf16.mxu0 0
      %5077 = vmatmul.mubr.bf16.gmra.mrb[0].mxu0 %v4527
      %v5078 = vpop.f32.mrb[0].mxu0
      %v5079 = vadd.f32 %v4886, %v5078
      %v5080 = vpop.f32.mrb[0].mxu0
      %v5081 = vpop.f32.mrb[0].mxu0
      %v5082 = vadd.f32 %v4889, %v5081
      %v5083 = vpop.f32.mrb[0].mxu0
      %5084 = vmatprep.mubr.bf16.mxu0 0
      %5085 = vmatmul.mubr.bf16.gmra.mrb[0].mxu0 %v4544
      %v5086 = vpop.f32.mrb[0].mxu0
      %v5087 = vadd.f32 %v4894, %v5086
      %v5088 = vpop.f32.mrb[0].mxu0
      %v5089 = vpop.f32.mrb[0].mxu0
      %v5090 = vadd.f32 %v4897, %v5089
      %v5091 = vpop.f32.mrb[0].mxu0
      %5092 = vmatprep.mubr.bf16.mxu0 0
      %5093 = vmatmul.mubr.bf16.gmra.mrb[0].mxu0 %v4561
      %v5094 = vpop.f32.mrb[0].mxu0
      %v5095 = vadd.f32 %v4902, %v5094
      %v5096 = vpop.f32.mrb[0].mxu0
      %v5097 = vpop.f32.mrb[0].mxu0
      %v5098 = vadd.f32 %v4905, %v5097
      %v5099 = vpop.f32.mrb[0].mxu0
      %5100 = vmatprep.mubr.bf16.mxu0 0
      %5101 = vmatmul.mubr.bf16.gmra.mrb[0].mxu0 %v4578
      %v5102 = vpop.f32.mrb[0].mxu0
      %v5103 = vadd.f32 %v4910, %v5102
      %v5104 = vpop.f32.mrb[0].mxu0
      %v5105 = vpop.f32.mrb[0].mxu0
      %v5106 = vadd.f32 %v4913, %v5105
      %v5107 = vpop.f32.mrb[0].mxu0
      %5108 = vdwg.mxu0
      %v5109 = vrot.slane %v4240, 4
      %v5110 = vrot.slane %v4243, 5
      %v5111 = vor.u32 %v5109, %v5110
      %v5112 = vrot.slane %v4248, 4
      %v5113 = vrot.slane %v4251, 5
      %v5114 = vor.u32 %v5112, %v5113
      %v5115 = vsel %vm1680, %v5111, %v5114
      %v5116 = vrot.slane %v4257, 4
      %v5117 = vrot.slane %v4260, 5
      %v5118 = vor.u32 %v5116, %v5117
      %v5119 = vrot.slane %v4265, 4
      %v5120 = vrot.slane %v4268, 5
      %v5121 = vor.u32 %v5119, %v5120
      %v5122 = vsel %vm1680, %v5118, %v5121
      %v5123 = vrot.slane %v4274, 4
      %v5124 = vrot.slane %v4277, 5
      %v5125 = vor.u32 %v5123, %v5124
      %v5126 = vrot.slane %v4282, 4
      %v5127 = vrot.slane %v4285, 5
      %v5128 = vor.u32 %v5126, %v5127
      %v5129 = vsel %vm1680, %v5125, %v5128
      %v5130 = vrot.slane %v4291, 4
      %v5131 = vrot.slane %v4294, 5
      %v5132 = vor.u32 %v5130, %v5131
      %v5133 = vrot.slane %v4299, 4
      %v5134 = vrot.slane %v4302, 5
      %v5135 = vor.u32 %v5133, %v5134
      %v5136 = vsel %vm1680, %v5132, %v5135
      %v5137 = vrot.slane %v4308, 4
      %v5138 = vrot.slane %v4311, 5
      %v5139 = vor.u32 %v5137, %v5138
      %v5140 = vrot.slane %v4316, 4
      %v5141 = vrot.slane %v4319, 5
      %v5142 = vor.u32 %v5140, %v5141
      %v5143 = vsel %vm1680, %v5139, %v5142
      %v5144 = vrot.slane %v4325, 4
      %v5145 = vrot.slane %v4328, 5
      %v5146 = vor.u32 %v5144, %v5145
      %v5147 = vrot.slane %v4333, 4
      %v5148 = vrot.slane %v4336, 5
      %v5149 = vor.u32 %v5147, %v5148
      %v5150 = vsel %vm1680, %v5146, %v5149
      %v5151 = vrot.slane %v4342, 4
      %v5152 = vrot.slane %v4345, 5
      %v5153 = vor.u32 %v5151, %v5152
      %v5154 = vrot.slane %v4350, 4
      %v5155 = vrot.slane %v4353, 5
      %v5156 = vor.u32 %v5154, %v5155
      %v5157 = vsel %vm1680, %v5153, %v5156
      %v5158 = vrot.slane %v4359, 4
      %v5159 = vrot.slane %v4362, 5
      %v5160 = vor.u32 %v5158, %v5159
      %v5161 = vrot.slane %v4367, 4
      %v5162 = vrot.slane %v4370, 5
      %v5163 = vor.u32 %v5161, %v5162
      %v5164 = vsel %vm1680, %v5160, %v5163
      %v5165 = vrot.slane %v4376, 4
      %v5166 = vrot.slane %v4379, 5
      %v5167 = vor.u32 %v5165, %v5166
      %v5168 = vrot.slane %v4384, 4
      %v5169 = vrot.slane %v4387, 5
      %v5170 = vor.u32 %v5168, %v5169
      %v5171 = vsel %vm1680, %v5167, %v5170
      %v5172 = vrot.slane %v4393, 4
      %v5173 = vrot.slane %v4396, 5
      %v5174 = vor.u32 %v5172, %v5173
      %v5175 = vrot.slane %v4401, 4
      %v5176 = vrot.slane %v4404, 5
      %v5177 = vor.u32 %v5175, %v5176
      %v5178 = vsel %vm1680, %v5174, %v5177
      %v5179 = vrot.slane %v4410, 4
      %v5180 = vrot.slane %v4413, 5
      %v5181 = vor.u32 %v5179, %v5180
      %v5182 = vrot.slane %v4418, 4
      %v5183 = vrot.slane %v4421, 5
      %v5184 = vor.u32 %v5182, %v5183
      %v5185 = vsel %vm1680, %v5181, %v5184
      %v5186 = vrot.slane %v4427, 4
      %v5187 = vrot.slane %v4430, 5
      %v5188 = vor.u32 %v5186, %v5187
      %v5189 = vrot.slane %v4435, 4
      %v5190 = vrot.slane %v4438, 5
      %v5191 = vor.u32 %v5189, %v5190
      %v5192 = vsel %vm1680, %v5188, %v5191
      %v5193 = vrot.slane %v4444, 4
      %v5194 = vrot.slane %v4447, 5
      %v5195 = vor.u32 %v5193, %v5194
      %v5196 = vrot.slane %v4452, 4
      %v5197 = vrot.slane %v4455, 5
      %v5198 = vor.u32 %v5196, %v5197
      %v5199 = vsel %vm1680, %v5195, %v5198
      %v5200 = vrot.slane %v4461, 4
      %v5201 = vrot.slane %v4464, 5
      %v5202 = vor.u32 %v5200, %v5201
      %v5203 = vrot.slane %v4469, 4
      %v5204 = vrot.slane %v4472, 5
      %v5205 = vor.u32 %v5203, %v5204
      %v5206 = vsel %vm1680, %v5202, %v5205
      %v5207 = vrot.slane %v4478, 4
      %v5208 = vrot.slane %v4481, 5
      %v5209 = vor.u32 %v5207, %v5208
      %v5210 = vrot.slane %v4486, 4
      %v5211 = vrot.slane %v4489, 5
      %v5212 = vor.u32 %v5210, %v5211
      %v5213 = vsel %vm1680, %v5209, %v5212
      %v5214 = vrot.slane %v4495, 4
      %v5215 = vrot.slane %v4498, 5
      %v5216 = vor.u32 %v5214, %v5215
      %v5217 = vrot.slane %v4503, 4
      %v5218 = vrot.slane %v4506, 5
      %v5219 = vor.u32 %v5217, %v5218
      %v5220 = vsel %vm1680, %v5216, %v5219
      %v5221 = vrot.slane %v4512, 4
      %v5222 = vrot.slane %v4515, 5
      %v5223 = vor.u32 %v5221, %v5222
      %v5224 = vrot.slane %v4520, 4
      %v5225 = vrot.slane %v4523, 5
      %v5226 = vor.u32 %v5224, %v5225
      %v5227 = vsel %vm1680, %v5223, %v5226
      %v5228 = vrot.slane %v4529, 4
      %v5229 = vrot.slane %v4532, 5
      %v5230 = vor.u32 %v5228, %v5229
      %v5231 = vrot.slane %v4537, 4
      %v5232 = vrot.slane %v4540, 5
      %v5233 = vor.u32 %v5231, %v5232
      %v5234 = vsel %vm1680, %v5230, %v5233
      %v5235 = vrot.slane %v4546, 4
      %v5236 = vrot.slane %v4549, 5
      %v5237 = vor.u32 %v5235, %v5236
      %v5238 = vrot.slane %v4554, 4
      %v5239 = vrot.slane %v4557, 5
      %v5240 = vor.u32 %v5238, %v5239
      %v5241 = vsel %vm1680, %v5237, %v5240
      %v5242 = vrot.slane %v4563, 4
      %v5243 = vrot.slane %v4566, 5
      %v5244 = vor.u32 %v5242, %v5243
      %v5245 = vrot.slane %v4571, 4
      %v5246 = vrot.slane %v4574, 5
      %v5247 = vor.u32 %v5245, %v5246
      %v5248 = vsel %vm1680, %v5244, %v5247
      %s5269 = scalar_lea.vmem %s3, 22
      %v5270 = vld [vmem:[%s5269] sm:$0x3]
      %5271 = vmatprep.subr.bf16.mxu0 0
      %5272 = vmatpush1.bf16.xpose.msra.mxu0 %v5270
      %5273 = vmatprep.subr.bf16.mxu0 0
      %5274 = vmatpush1.bf16.xpose.msra.mxu0 0
      %5275 = vmatprep.subr.bf16.mxu0 0
      %5276 = vmatpush1.bf16.xpose.msra.mxu0 0
      %5277 = vmatprep.subr.bf16.mxu0 0
      %5278 = vmatpush1.bf16.xpose.msra.mxu0 0
      %5279 = vmatprep.subr.bf16.mxu0 0
      %5280 = vmatpush1.bf16.xpose.msra.mxu0 0
      %5281 = vmatprep.subr.bf16.mxu0 0
      %5282 = vmatpush1.bf16.xpose.msra.mxu0 0
      %5283 = vmatprep.subr.bf16.mxu0 0
      %5284 = vmatpush1.bf16.xpose.msra.mxu0 0
      %5285 = vmatprep.subr.bf16.mxu0 0
      %5286 = vmatpush1.bf16.xpose.msra.mxu0 0
      %5287 = vmatprep.subr.bf16.mxu0 0
      %5288 = vmatpush1.bf16.xpose.msra.mxu0 0
      %5289 = vmatprep.subr.bf16.mxu0 0
      %5290 = vmatpush1.bf16.xpose.msra.mxu0 0
      %5291 = vmatprep.subr.bf16.mxu0 0
      %5292 = vmatpush1.bf16.xpose.msra.mxu0 0
      %5293 = vmatprep.subr.bf16.mxu0 0
      %5294 = vmatpush1.bf16.xpose.msra.mxu0 0
      %5295 = vmatprep.subr.bf16.mxu0 0
      %5296 = vmatpush1.bf16.xpose.msra.mxu0 0
      %5297 = vmatprep.subr.bf16.mxu0 0
      %5298 = vmatpush1.bf16.xpose.msra.mxu0 0
      %5299 = vmatprep.subr.bf16.mxu0 0
      %5300 = vmatpush1.bf16.xpose.msra.mxu0 0
      %5301 = vmatprep.subr.bf16.mxu0 0
      %5302 = vmatpush1.bf16.xpose.msra.mxu0 0
      %5303 = vmatprep.mubr.bf16.mxu0 0
      %5304 = vmatmul.mubr.bf16.gmra.mrb[0].mxu0 %v5115
      %v5305 = vpop.f32.mrb[0].mxu0
      %v5306 = vadd.f32 0.0, %v5305
      %v5307 = vpop.f32.mrb[0].mxu0
      %v5308 = vpop.f32.mrb[0].mxu0
      %v5309 = vadd.f32 0.0, %v5308
      %v5310 = vpop.f32.mrb[0].mxu0
      %5311 = vmatprep.mubr.bf16.mxu0 0
      %5312 = vmatmul.mubr.bf16.gmra.mrb[0].mxu0 %v5122
      %v5313 = vpop.f32.mrb[0].mxu0
      %v5314 = vadd.f32 0.0, %v5313
      %v5315 = vpop.f32.mrb[0].mxu0
      %v5316 = vpop.f32.mrb[0].mxu0
      %v5317 = vadd.f32 0.0, %v5316
      %v5318 = vpop.f32.mrb[0].mxu0
      %5319 = vmatprep.mubr.bf16.mxu0 0
      %5320 = vmatmul.mubr.bf16.gmra.mrb[0].mxu0 %v5129
      %v5321 = vpop.f32.mrb[0].mxu0
      %v5322 = vadd.f32 0.0, %v5321
      %v5323 = vpop.f32.mrb[0].mxu0
      %v5324 = vpop.f32.mrb[0].mxu0
      %v5325 = vadd.f32 0.0, %v5324
      %v5326 = vpop.f32.mrb[0].mxu0
      %5327 = vmatprep.mubr.bf16.mxu0 0
      %5328 = vmatmul.mubr.bf16.gmra.mrb[0].mxu0 %v5136
      %v5329 = vpop.f32.mrb[0].mxu0
      %v5330 = vadd.f32 0.0, %v5329
      %v5331 = vpop.f32.mrb[0].mxu0
      %v5332 = vpop.f32.mrb[0].mxu0
      %v5333 = vadd.f32 0.0, %v5332
      %v5334 = vpop.f32.mrb[0].mxu0
      %5335 = vmatprep.mubr.bf16.mxu0 0
      %5336 = vmatmul.mubr.bf16.gmra.mrb[0].mxu0 %v5143
      %v5337 = vpop.f32.mrb[0].mxu0
      %v5338 = vadd.f32 0.0, %v5337
      %v5339 = vpop.f32.mrb[0].mxu0
      %v5340 = vpop.f32.mrb[0].mxu0
      %v5341 = vadd.f32 0.0, %v5340
      %v5342 = vpop.f32.mrb[0].mxu0
      %5343 = vmatprep.mubr.bf16.mxu0 0
      %5344 = vmatmul.mubr.bf16.gmra.mrb[0].mxu0 %v5150
      %v5345 = vpop.f32.mrb[0].mxu0
      %v5346 = vadd.f32 0.0, %v5345
      %v5347 = vpop.f32.mrb[0].mxu0
      %v5348 = vpop.f32.mrb[0].mxu0
      %v5349 = vadd.f32 0.0, %v5348
      %v5350 = vpop.f32.mrb[0].mxu0
      %5351 = vmatprep.mubr.bf16.mxu0 0
      %5352 = vmatmul.mubr.bf16.gmra.mrb[0].mxu0 %v5157
      %v5353 = vpop.f32.mrb[0].mxu0
      %v5354 = vadd.f32 0.0, %v5353
      %v5355 = vpop.f32.mrb[0].mxu0
      %v5356 = vpop.f32.mrb[0].mxu0
      %v5357 = vadd.f32 0.0, %v5356
      %v5358 = vpop.f32.mrb[0].mxu0
      %5359 = vmatprep.mubr.bf16.mxu0 0
      %5360 = vmatmul.mubr.bf16.gmra.mrb[0].mxu0 %v5164
      %v5361 = vpop.f32.mrb[0].mxu0
      %v5362 = vadd.f32 0.0, %v5361
      %v5363 = vpop.f32.mrb[0].mxu0
      %v5364 = vpop.f32.mrb[0].mxu0
      %v5365 = vadd.f32 0.0, %v5364
      %v5366 = vpop.f32.mrb[0].mxu0
      %5367 = vmatprep.mubr.bf16.mxu0 0
      %5368 = vmatmul.mubr.bf16.gmra.mrb[0].mxu0 %v5171
      %v5369 = vpop.f32.mrb[0].mxu0
      %v5370 = vadd.f32 0.0, %v5369
      %v5371 = vpop.f32.mrb[0].mxu0
      %v5372 = vpop.f32.mrb[0].mxu0
      %v5373 = vadd.f32 0.0, %v5372
      %v5374 = vpop.f32.mrb[0].mxu0
      %5375 = vmatprep.mubr.bf16.mxu0 0
      %5376 = vmatmul.mubr.bf16.gmra.mrb[0].mxu0 %v5178
      %v5377 = vpop.f32.mrb[0].mxu0
      %v5378 = vadd.f32 0.0, %v5377
      %v5379 = vpop.f32.mrb[0].mxu0
      %v5380 = vpop.f32.mrb[0].mxu0
      %v5381 = vadd.f32 0.0, %v5380
      %v5382 = vpop.f32.mrb[0].mxu0
      %5383 = vmatprep.mubr.bf16.mxu0 0
      %5384 = vmatmul.mubr.bf16.gmra.mrb[0].mxu0 %v5185
      %v5385 = vpop.f32.mrb[0].mxu0
      %v5386 = vadd.f32 0.0, %v5385
      %v5387 = vpop.f32.mrb[0].mxu0
      %v5388 = vpop.f32.mrb[0].mxu0
      %v5389 = vadd.f32 0.0, %v5388
      %v5390 = vpop.f32.mrb[0].mxu0
      %5391 = vmatprep.mubr.bf16.mxu0 0
      %5392 = vmatmul.mubr.bf16.gmra.mrb[0].mxu0 %v5192
      %v5393 = vpop.f32.mrb[0].mxu0
      %v5394 = vadd.f32 0.0, %v5393
      %v5395 = vpop.f32.mrb[0].mxu0
      %v5396 = vpop.f32.mrb[0].mxu0
      %v5397 = vadd.f32 0.0, %v5396
      %v5398 = vpop.f32.mrb[0].mxu0
      %5399 = vmatprep.mubr.bf16.mxu0 0
      %5400 = vmatmul.mubr.bf16.gmra.mrb[0].mxu0 %v5199
      %v5401 = vpop.f32.mrb[0].mxu0
      %v5402 = vadd.f32 0.0, %v5401
      %v5403 = vpop.f32.mrb[0].mxu0
      %v5404 = vpop.f32.mrb[0].mxu0
      %v5405 = vadd.f32 0.0, %v5404
      %v5406 = vpop.f32.mrb[0].mxu0
      %5407 = vmatprep.mubr.bf16.mxu0 0
      %5408 = vmatmul.mubr.bf16.gmra.mrb[0].mxu0 %v5206
      %v5409 = vpop.f32.mrb[0].mxu0
      %v5410 = vadd.f32 0.0, %v5409
      %v5411 = vpop.f32.mrb[0].mxu0
      %v5412 = vpop.f32.mrb[0].mxu0
      %v5413 = vadd.f32 0.0, %v5412
      %v5414 = vpop.f32.mrb[0].mxu0
      %5415 = vmatprep.mubr.bf16.mxu0 0
      %5416 = vmatmul.mubr.bf16.gmra.mrb[0].mxu0 %v5213
      %v5417 = vpop.f32.mrb[0].mxu0
      %v5418 = vadd.f32 0.0, %v5417
      %v5419 = vpop.f32.mrb[0].mxu0
      %v5420 = vpop.f32.mrb[0].mxu0
      %v5421 = vadd.f32 0.0, %v5420
      %v5422 = vpop.f32.mrb[0].mxu0
      %5423 = vmatprep.mubr.bf16.mxu0 0
      %5424 = vmatmul.mubr.bf16.gmra.mrb[0].mxu0 %v5220
      %v5425 = vpop.f32.mrb[0].mxu0
      %v5426 = vadd.f32 0.0, %v5425
      %v5427 = vpop.f32.mrb[0].mxu0
      %v5428 = vpop.f32.mrb[0].mxu0
      %v5429 = vadd.f32 0.0, %v5428
      %v5430 = vpop.f32.mrb[0].mxu0
      %5431 = vmatprep.mubr.bf16.mxu0 0
      %5432 = vmatmul.mubr.bf16.gmra.mrb[0].mxu0 %v5227
      %v5433 = vpop.f32.mrb[0].mxu0
      %v5434 = vadd.f32 0.0, %v5433
      %v5435 = vpop.f32.mrb[0].mxu0
      %v5436 = vpop.f32.mrb[0].mxu0
      %v5437 = vadd.f32 0.0, %v5436
      %v5438 = vpop.f32.mrb[0].mxu0
      %5439 = vmatprep.mubr.bf16.mxu0 0
      %5440 = vmatmul.mubr.bf16.gmra.mrb[0].mxu0 %v5234
      %v5441 = vpop.f32.mrb[0].mxu0
      %v5442 = vadd.f32 0.0, %v5441
      %v5443 = vpop.f32.mrb[0].mxu0
      %v5444 = vpop.f32.mrb[0].mxu0
      %v5445 = vadd.f32 0.0, %v5444
      %v5446 = vpop.f32.mrb[0].mxu0
      %5447 = vmatprep.mubr.bf16.mxu0 0
      %5448 = vmatmul.mubr.bf16.gmra.mrb[0].mxu0 %v5241
      %v5449 = vpop.f32.mrb[0].mxu0
      %v5450 = vadd.f32 0.0, %v5449
      %v5451 = vpop.f32.mrb[0].mxu0
      %v5452 = vpop.f32.mrb[0].mxu0
      %v5453 = vadd.f32 0.0, %v5452
      %v5454 = vpop.f32.mrb[0].mxu0
      %5455 = vmatprep.mubr.bf16.mxu0 0
      %5456 = vmatmul.mubr.bf16.gmra.mrb[0].mxu0 %v5248
      %v5457 = vpop.f32.mrb[0].mxu0
      %v5458 = vadd.f32 0.0, %v5457
      %v5459 = vpop.f32.mrb[0].mxu0
      %v5460 = vpop.f32.mrb[0].mxu0
      %v5461 = vadd.f32 0.0, %v5460
      %v5462 = vpop.f32.mrb[0].mxu0
      %5463 = vdwg.mxu0
      %v5464 = vadd.f32 %v4951, %v5306
      %v5465 = vadd.f32 %v4954, %v5309
      %v5466 = vadd.f32 %v4959, %v5314
      %v5467 = vadd.f32 %v4962, %v5317
      %v5468 = vadd.f32 %v4967, %v5322
      %v5469 = vadd.f32 %v4970, %v5325
      %v5470 = vadd.f32 %v4975, %v5330
      %v5471 = vadd.f32 %v4978, %v5333
      %v5472 = vadd.f32 %v4983, %v5338
      %v5473 = vadd.f32 %v4986, %v5341
      %v5474 = vadd.f32 %v4991, %v5346
      %v5475 = vadd.f32 %v4994, %v5349
      %v5476 = vadd.f32 %v4999, %v5354
      %v5477 = vadd.f32 %v5002, %v5357
      %v5478 = vadd.f32 %v5007, %v5362
      %v5479 = vadd.f32 %v5010, %v5365
      %v5480 = vadd.f32 %v5015, %v5370
      %v5481 = vadd.f32 %v5018, %v5373
      %v5482 = vadd.f32 %v5023, %v5378
      %v5483 = vadd.f32 %v5026, %v5381
      %v5484 = vadd.f32 %v5031, %v5386
      %v5485 = vadd.f32 %v5034, %v5389
      %v5486 = vadd.f32 %v5039, %v5394
      %v5487 = vadd.f32 %v5042, %v5397
      %v5488 = vadd.f32 %v5047, %v5402
      %v5489 = vadd.f32 %v5050, %v5405
      %v5490 = vadd.f32 %v5055, %v5410
      %v5491 = vadd.f32 %v5058, %v5413
      %v5492 = vadd.f32 %v5063, %v5418
      %v5493 = vadd.f32 %v5066, %v5421
      %v5494 = vadd.f32 %v5071, %v5426
      %v5495 = vadd.f32 %v5074, %v5429
      %v5496 = vadd.f32 %v5079, %v5434
      %v5497 = vadd.f32 %v5082, %v5437
      %v5498 = vadd.f32 %v5087, %v5442
      %v5499 = vadd.f32 %v5090, %v5445
      %v5500 = vadd.f32 %v5095, %v5450
      %v5501 = vadd.f32 %v5098, %v5453
      %v5502 = vadd.f32 %v5103, %v5458
      %v5503 = vadd.f32 %v5106, %v5461
      %v5505 = vshrl.u32 %v4235, 16
      %v5507 = vrot.slane %v5505, 3
      %v5508 = vshll.u32 %v4235, 16
      %v5510 = vrot.slane %v5508, 4
      %v5511 = vor.u32 %v5507, %v5510
      %v5513 = vshrl.u32 %v4236, 16
      %v5515 = vrot.slane %v5513, 3
      %v5516 = vshll.u32 %v4236, 16
      %v5518 = vrot.slane %v5516, 4
      %v5519 = vor.u32 %v5515, %v5518
      %v5520 = vsel %vm809, %v5511, %v5519
      %s5522 = scalar_lea.vmem %s3, 24
      %v5523 = vld [vmem:[%s5522] sm:$0x3]
      %5524 = vmatprep.subr.bf16.mxu0 0
      %5525 = vmatpush1.bf16.xpose.msra.mxu0 %v5523
      %5526 = vmatprep.subr.bf16.mxu0 0
      %5527 = vmatpush1.bf16.xpose.msra.mxu0 0
      %5528 = vmatprep.subr.bf16.mxu0 0
      %5529 = vmatpush1.bf16.xpose.msra.mxu0 0
      %5530 = vmatprep.subr.bf16.mxu0 0
      %5531 = vmatpush1.bf16.xpose.msra.mxu0 0
      %5532 = vmatprep.subr.bf16.mxu0 0
      %5533 = vmatpush1.bf16.xpose.msra.mxu0 0
      %5534 = vmatprep.subr.bf16.mxu0 0
      %5535 = vmatpush1.bf16.xpose.msra.mxu0 0
      %5536 = vmatprep.subr.bf16.mxu0 0
      %5537 = vmatpush1.bf16.xpose.msra.mxu0 0
      %5538 = vmatprep.subr.bf16.mxu0 0
      %5539 = vmatpush1.bf16.xpose.msra.mxu0 0
      %5540 = vmatprep.subr.bf16.mxu0 0
      %5541 = vmatpush1.bf16.xpose.msra.mxu0 0
      %5542 = vmatprep.subr.bf16.mxu0 0
      %5543 = vmatpush1.bf16.xpose.msra.mxu0 0
      %5544 = vmatprep.subr.bf16.mxu0 0
      %5545 = vmatpush1.bf16.xpose.msra.mxu0 0
      %5546 = vmatprep.subr.bf16.mxu0 0
      %5547 = vmatpush1.bf16.xpose.msra.mxu0 0
      %5548 = vmatprep.subr.bf16.mxu0 0
      %5549 = vmatpush1.bf16.xpose.msra.mxu0 0
      %5550 = vmatprep.subr.bf16.mxu0 0
      %5551 = vmatpush1.bf16.xpose.msra.mxu0 0
      %5552 = vmatprep.subr.bf16.mxu0 0
      %5553 = vmatpush1.bf16.xpose.msra.mxu0 0
      %5554 = vmatprep.subr.bf16.mxu0 0
      %5555 = vmatpush1.bf16.xpose.msra.mxu0 0
      %5556 = vmatprep.mubr.bf16.mxu0 0
      %5557 = vmatmul.mubr.bf16.gmra.mrb[0].mxu0 %v4272
      %v5558 = vpop.f32.mrb[0].mxu0
      %v5559 = vadd.f32 0.0, %v5558
      %v5560 = vpop.f32.mrb[0].mxu0
      %v5561 = vpop.f32.mrb[0].mxu0
      %v5562 = vadd.f32 0.0, %v5561
      %v5563 = vpop.f32.mrb[0].mxu0
      %5564 = vmatprep.mubr.bf16.mxu0 0
      %5565 = vmatmul.mubr.bf16.gmra.mrb[0].mxu0 %v4289
      %v5566 = vpop.f32.mrb[0].mxu0
      %v5567 = vadd.f32 0.0, %v5566
      %v5568 = vpop.f32.mrb[0].mxu0
      %v5569 = vpop.f32.mrb[0].mxu0
      %v5570 = vadd.f32 0.0, %v5569
      %v5571 = vpop.f32.mrb[0].mxu0
      %5572 = vmatprep.mubr.bf16.mxu0 0
      %5573 = vmatmul.mubr.bf16.gmra.mrb[0].mxu0 %v4306
      %v5574 = vpop.f32.mrb[0].mxu0
      %v5575 = vadd.f32 0.0, %v5574
      %v5576 = vpop.f32.mrb[0].mxu0
      %v5577 = vpop.f32.mrb[0].mxu0
      %v5578 = vadd.f32 0.0, %v5577
      %v5579 = vpop.f32.mrb[0].mxu0
      %5580 = vmatprep.mubr.bf16.mxu0 0
      %5581 = vmatmul.mubr.bf16.gmra.mrb[0].mxu0 %v4323
      %v5582 = vpop.f32.mrb[0].mxu0
      %v5583 = vadd.f32 0.0, %v5582
      %v5584 = vpop.f32.mrb[0].mxu0
      %v5585 = vpop.f32.mrb[0].mxu0
      %v5586 = vadd.f32 0.0, %v5585
      %v5587 = vpop.f32.mrb[0].mxu0
      %5588 = vmatprep.mubr.bf16.mxu0 0
      %5589 = vmatmul.mubr.bf16.gmra.mrb[0].mxu0 %v4340
      %v5590 = vpop.f32.mrb[0].mxu0
      %v5591 = vadd.f32 0.0, %v5590
      %v5592 = vpop.f32.mrb[0].mxu0
      %v5593 = vpop.f32.mrb[0].mxu0
      %v5594 = vadd.f32 0.0, %v5593
      %v5595 = vpop.f32.mrb[0].mxu0
      %5596 = vmatprep.mubr.bf16.mxu0 0
      %5597 = vmatmul.mubr.bf16.gmra.mrb[0].mxu0 %v4357
      %v5598 = vpop.f32.mrb[0].mxu0
      %v5599 = vadd.f32 0.0, %v5598
      %v5600 = vpop.f32.mrb[0].mxu0
      %v5601 = vpop.f32.mrb[0].mxu0
      %v5602 = vadd.f32 0.0, %v5601
      %v5603 = vpop.f32.mrb[0].mxu0
      %5604 = vmatprep.mubr.bf16.mxu0 0
      %5605 = vmatmul.mubr.bf16.gmra.mrb[0].mxu0 %v4374
      %v5606 = vpop.f32.mrb[0].mxu0
      %v5607 = vadd.f32 0.0, %v5606
      %v5608 = vpop.f32.mrb[0].mxu0
      %v5609 = vpop.f32.mrb[0].mxu0
      %v5610 = vadd.f32 0.0, %v5609
      %v5611 = vpop.f32.mrb[0].mxu0
      %5612 = vmatprep.mubr.bf16.mxu0 0
      %5613 = vmatmul.mubr.bf16.gmra.mrb[0].mxu0 %v4391
      %v5614 = vpop.f32.mrb[0].mxu0
      %v5615 = vadd.f32 0.0, %v5614
      %v5616 = vpop.f32.mrb[0].mxu0
      %v5617 = vpop.f32.mrb[0].mxu0
      %v5618 = vadd.f32 0.0, %v5617
      %v5619 = vpop.f32.mrb[0].mxu0
      %5620 = vmatprep.mubr.bf16.mxu0 0
      %5621 = vmatmul.mubr.bf16.gmra.mrb[0].mxu0 %v4408
      %v5622 = vpop.f32.mrb[0].mxu0
      %v5623 = vadd.f32 0.0, %v5622
      %v5624 = vpop.f32.mrb[0].mxu0
      %v5625 = vpop.f32.mrb[0].mxu0
      %v5626 = vadd.f32 0.0, %v5625
      %v5627 = vpop.f32.mrb[0].mxu0
      %5628 = vmatprep.mubr.bf16.mxu0 0
      %5629 = vmatmul.mubr.bf16.gmra.mrb[0].mxu0 %v4425
      %v5630 = vpop.f32.mrb[0].mxu0
      %v5631 = vadd.f32 0.0, %v5630
      %v5632 = vpop.f32.mrb[0].mxu0
      %v5633 = vpop.f32.mrb[0].mxu0
      %v5634 = vadd.f32 0.0, %v5633
      %v5635 = vpop.f32.mrb[0].mxu0
      %5636 = vmatprep.mubr.bf16.mxu0 0
      %5637 = vmatmul.mubr.bf16.gmra.mrb[0].mxu0 %v4442
      %v5638 = vpop.f32.mrb[0].mxu0
      %v5639 = vadd.f32 0.0, %v5638
      %v5640 = vpop.f32.mrb[0].mxu0
      %v5641 = vpop.f32.mrb[0].mxu0
      %v5642 = vadd.f32 0.0, %v5641
      %v5643 = vpop.f32.mrb[0].mxu0
      %5644 = vmatprep.mubr.bf16.mxu0 0
      %5645 = vmatmul.mubr.bf16.gmra.mrb[0].mxu0 %v4459
      %v5646 = vpop.f32.mrb[0].mxu0
      %v5647 = vadd.f32 0.0, %v5646
      %v5648 = vpop.f32.mrb[0].mxu0
      %v5649 = vpop.f32.mrb[0].mxu0
      %v5650 = vadd.f32 0.0, %v5649
      %v5651 = vpop.f32.mrb[0].mxu0
      %5652 = vmatprep.mubr.bf16.mxu0 0
      %5653 = vmatmul.mubr.bf16.gmra.mrb[0].mxu0 %v4476
      %v5654 = vpop.f32.mrb[0].mxu0
      %v5655 = vadd.f32 0.0, %v5654
      %v5656 = vpop.f32.mrb[0].mxu0
      %v5657 = vpop.f32.mrb[0].mxu0
      %v5658 = vadd.f32 0.0, %v5657
      %v5659 = vpop.f32.mrb[0].mxu0
      %5660 = vmatprep.mubr.bf16.mxu0 0
      %5661 = vmatmul.mubr.bf16.gmra.mrb[0].mxu0 %v4493
      %v5662 = vpop.f32.mrb[0].mxu0
      %v5663 = vadd.f32 0.0, %v5662
      %v5664 = vpop.f32.mrb[0].mxu0
      %v5665 = vpop.f32.mrb[0].mxu0
      %v5666 = vadd.f32 0.0, %v5665
      %v5667 = vpop.f32.mrb[0].mxu0
      %5668 = vmatprep.mubr.bf16.mxu0 0
      %5669 = vmatmul.mubr.bf16.gmra.mrb[0].mxu0 %v4510
      %v5670 = vpop.f32.mrb[0].mxu0
      %v5671 = vadd.f32 0.0, %v5670
      %v5672 = vpop.f32.mrb[0].mxu0
      %v5673 = vpop.f32.mrb[0].mxu0
      %v5674 = vadd.f32 0.0, %v5673
      %v5675 = vpop.f32.mrb[0].mxu0
      %5676 = vmatprep.mubr.bf16.mxu0 0
      %5677 = vmatmul.mubr.bf16.gmra.mrb[0].mxu0 %v4527
      %v5678 = vpop.f32.mrb[0].mxu0
      %v5679 = vadd.f32 0.0, %v5678
      %v5680 = vpop.f32.mrb[0].mxu0
      %v5681 = vpop.f32.mrb[0].mxu0
      %v5682 = vadd.f32 0.0, %v5681
      %v5683 = vpop.f32.mrb[0].mxu0
      %5684 = vmatprep.mubr.bf16.mxu0 0
      %5685 = vmatmul.mubr.bf16.gmra.mrb[0].mxu0 %v4544
      %v5686 = vpop.f32.mrb[0].mxu0
      %v5687 = vadd.f32 0.0, %v5686
      %v5688 = vpop.f32.mrb[0].mxu0
      %v5689 = vpop.f32.mrb[0].mxu0
      %v5690 = vadd.f32 0.0, %v5689
      %v5691 = vpop.f32.mrb[0].mxu0
      %5692 = vmatprep.mubr.bf16.mxu0 0
      %5693 = vmatmul.mubr.bf16.gmra.mrb[0].mxu0 %v4561
      %v5694 = vpop.f32.mrb[0].mxu0
      %v5695 = vadd.f32 0.0, %v5694
      %v5696 = vpop.f32.mrb[0].mxu0
      %v5697 = vpop.f32.mrb[0].mxu0
      %v5698 = vadd.f32 0.0, %v5697
      %v5699 = vpop.f32.mrb[0].mxu0
      %5700 = vmatprep.mubr.bf16.mxu0 0
      %5701 = vmatmul.mubr.bf16.gmra.mrb[0].mxu0 %v4578
      %v5702 = vpop.f32.mrb[0].mxu0
      %v5703 = vadd.f32 0.0, %v5702
      %v5704 = vpop.f32.mrb[0].mxu0
      %v5705 = vpop.f32.mrb[0].mxu0
      %v5706 = vadd.f32 0.0, %v5705
      %v5707 = vpop.f32.mrb[0].mxu0
      %5708 = vmatprep.mubr.bf16.mxu0 0
      %5709 = vmatmul.mubr.bf16.gmra.mrb[0].mxu0 %v5520
      %v5710 = vpop.f32.mrb[0].mxu0
      %v5711 = vadd.f32 0.0, %v5710
      %v5712 = vpop.f32.mrb[0].mxu0
      %v5713 = vpop.f32.mrb[0].mxu0
      %v5714 = vadd.f32 0.0, %v5713
      %v5715 = vpop.f32.mrb[0].mxu0
      %5716 = vdwg.mxu0
      %v5717 = vadd.f32 %v5464, %v5559
      %v5718 = vadd.f32 %v5465, %v5562
      %v5719 = vadd.f32 %v5466, %v5567
      %v5720 = vadd.f32 %v5467, %v5570
      %v5721 = vadd.f32 %v5468, %v5575
      %v5722 = vadd.f32 %v5469, %v5578
      %v5723 = vadd.f32 %v5470, %v5583
      %v5724 = vadd.f32 %v5471, %v5586
      %v5725 = vadd.f32 %v5472, %v5591
      %v5726 = vadd.f32 %v5473, %v5594
      %v5727 = vadd.f32 %v5474, %v5599
      %v5728 = vadd.f32 %v5475, %v5602
      %v5729 = vadd.f32 %v5476, %v5607
      %v5730 = vadd.f32 %v5477, %v5610
      %v5731 = vadd.f32 %v5478, %v5615
      %v5732 = vadd.f32 %v5479, %v5618
      %v5733 = vadd.f32 %v5480, %v5623
      %v5734 = vadd.f32 %v5481, %v5626
      %v5735 = vadd.f32 %v5482, %v5631
      %v5736 = vadd.f32 %v5483, %v5634
      %v5737 = vadd.f32 %v5484, %v5639
      %v5738 = vadd.f32 %v5485, %v5642
      %v5739 = vadd.f32 %v5486, %v5647
      %v5740 = vadd.f32 %v5487, %v5650
      %v5741 = vadd.f32 %v5488, %v5655
      %v5742 = vadd.f32 %v5489, %v5658
      %v5743 = vadd.f32 %v5490, %v5663
      %v5744 = vadd.f32 %v5491, %v5666
      %v5745 = vadd.f32 %v5492, %v5671
      %v5746 = vadd.f32 %v5493, %v5674
      %v5747 = vadd.f32 %v5494, %v5679
      %v5748 = vadd.f32 %v5495, %v5682
      %v5749 = vadd.f32 %v5496, %v5687
      %v5750 = vadd.f32 %v5497, %v5690
      %v5751 = vadd.f32 %v5498, %v5695
      %v5752 = vadd.f32 %v5499, %v5698
      %v5753 = vadd.f32 %v5500, %v5703
      %v5754 = vadd.f32 %v5501, %v5706
      %v5755 = vadd.f32 %v5502, %v5711
      %v5756 = vadd.f32 %v5503, %v5714
      %v5759 = vrot.slane %v4235, 4
      %v5760 = vrot.slane %v4236, 4
      %v5761 = vsel %vm1211, %v5759, %v5760
      %s5763 = scalar_lea.vmem %s3, 26
      %v5764 = vld [vmem:[%s5763] sm:$0x3]
      %5765 = vmatprep.subr.bf16.mxu0 0
      %5766 = vmatpush1.bf16.xpose.msra.mxu0 %v5764
      %5767 = vmatprep.subr.bf16.mxu0 0
      %5768 = vmatpush1.bf16.xpose.msra.mxu0 0
      %5769 = vmatprep.subr.bf16.mxu0 0
      %5770 = vmatpush1.bf16.xpose.msra.mxu0 0
      %5771 = vmatprep.subr.bf16.mxu0 0
      %5772 = vmatpush1.bf16.xpose.msra.mxu0 0
      %5773 = vmatprep.subr.bf16.mxu0 0
      %5774 = vmatpush1.bf16.xpose.msra.mxu0 0
      %5775 = vmatprep.subr.bf16.mxu0 0
      %5776 = vmatpush1.bf16.xpose.msra.mxu0 0
      %5777 = vmatprep.subr.bf16.mxu0 0
      %5778 = vmatpush1.bf16.xpose.msra.mxu0 0
      %5779 = vmatprep.subr.bf16.mxu0 0
      %5780 = vmatpush1.bf16.xpose.msra.mxu0 0
      %5781 = vmatprep.subr.bf16.mxu0 0
      %5782 = vmatpush1.bf16.xpose.msra.mxu0 0
      %5783 = vmatprep.subr.bf16.mxu0 0
      %5784 = vmatpush1.bf16.xpose.msra.mxu0 0
      %5785 = vmatprep.subr.bf16.mxu0 0
      %5786 = vmatpush1.bf16.xpose.msra.mxu0 0
      %5787 = vmatprep.subr.bf16.mxu0 0
      %5788 = vmatpush1.bf16.xpose.msra.mxu0 0
      %5789 = vmatprep.subr.bf16.mxu0 0
      %5790 = vmatpush1.bf16.xpose.msra.mxu0 0
      %5791 = vmatprep.subr.bf16.mxu0 0
      %5792 = vmatpush1.bf16.xpose.msra.mxu0 0
      %5793 = vmatprep.subr.bf16.mxu0 0
      %5794 = vmatpush1.bf16.xpose.msra.mxu0 0
      %5795 = vmatprep.subr.bf16.mxu0 0
      %5796 = vmatpush1.bf16.xpose.msra.mxu0 0
      %5797 = vmatprep.mubr.bf16.mxu0 0
      %5798 = vmatmul.mubr.bf16.gmra.mrb[0].mxu0 %v4646
      %v5799 = vpop.f32.mrb[0].mxu0
      %v5800 = vadd.f32 0.0, %v5799
      %v5801 = vpop.f32.mrb[0].mxu0
      %v5802 = vpop.f32.mrb[0].mxu0
      %v5803 = vadd.f32 0.0, %v5802
      %v5804 = vpop.f32.mrb[0].mxu0
      %5805 = vmatprep.mubr.bf16.mxu0 0
      %5806 = vmatmul.mubr.bf16.gmra.mrb[0].mxu0 %v4649
      %v5807 = vpop.f32.mrb[0].mxu0
      %v5808 = vadd.f32 0.0, %v5807
      %v5809 = vpop.f32.mrb[0].mxu0
      %v5810 = vpop.f32.mrb[0].mxu0
      %v5811 = vadd.f32 0.0, %v5810
      %v5812 = vpop.f32.mrb[0].mxu0
      %5813 = vmatprep.mubr.bf16.mxu0 0
      %5814 = vmatmul.mubr.bf16.gmra.mrb[0].mxu0 %v4652
      %v5815 = vpop.f32.mrb[0].mxu0
      %v5816 = vadd.f32 0.0, %v5815
      %v5817 = vpop.f32.mrb[0].mxu0
      %v5818 = vpop.f32.mrb[0].mxu0
      %v5819 = vadd.f32 0.0, %v5818
      %v5820 = vpop.f32.mrb[0].mxu0
      %5821 = vmatprep.mubr.bf16.mxu0 0
      %5822 = vmatmul.mubr.bf16.gmra.mrb[0].mxu0 %v4655
      %v5823 = vpop.f32.mrb[0].mxu0
      %v5824 = vadd.f32 0.0, %v5823
      %v5825 = vpop.f32.mrb[0].mxu0
      %v5826 = vpop.f32.mrb[0].mxu0
      %v5827 = vadd.f32 0.0, %v5826
      %v5828 = vpop.f32.mrb[0].mxu0
      %5829 = vmatprep.mubr.bf16.mxu0 0
      %5830 = vmatmul.mubr.bf16.gmra.mrb[0].mxu0 %v4658
      %v5831 = vpop.f32.mrb[0].mxu0
      %v5832 = vadd.f32 0.0, %v5831
      %v5833 = vpop.f32.mrb[0].mxu0
      %v5834 = vpop.f32.mrb[0].mxu0
      %v5835 = vadd.f32 0.0, %v5834
      %v5836 = vpop.f32.mrb[0].mxu0
      %5837 = vmatprep.mubr.bf16.mxu0 0
      %5838 = vmatmul.mubr.bf16.gmra.mrb[0].mxu0 %v4661
      %v5839 = vpop.f32.mrb[0].mxu0
      %v5840 = vadd.f32 0.0, %v5839
      %v5841 = vpop.f32.mrb[0].mxu0
      %v5842 = vpop.f32.mrb[0].mxu0
      %v5843 = vadd.f32 0.0, %v5842
      %v5844 = vpop.f32.mrb[0].mxu0
      %5845 = vmatprep.mubr.bf16.mxu0 0
      %5846 = vmatmul.mubr.bf16.gmra.mrb[0].mxu0 %v4664
      %v5847 = vpop.f32.mrb[0].mxu0
      %v5848 = vadd.f32 0.0, %v5847
      %v5849 = vpop.f32.mrb[0].mxu0
      %v5850 = vpop.f32.mrb[0].mxu0
      %v5851 = vadd.f32 0.0, %v5850
      %v5852 = vpop.f32.mrb[0].mxu0
      %5853 = vmatprep.mubr.bf16.mxu0 0
      %5854 = vmatmul.mubr.bf16.gmra.mrb[0].mxu0 %v4667
      %v5855 = vpop.f32.mrb[0].mxu0
      %v5856 = vadd.f32 0.0, %v5855
      %v5857 = vpop.f32.mrb[0].mxu0
      %v5858 = vpop.f32.mrb[0].mxu0
      %v5859 = vadd.f32 0.0, %v5858
      %v5860 = vpop.f32.mrb[0].mxu0
      %5861 = vmatprep.mubr.bf16.mxu0 0
      %5862 = vmatmul.mubr.bf16.gmra.mrb[0].mxu0 %v4670
      %v5863 = vpop.f32.mrb[0].mxu0
      %v5864 = vadd.f32 0.0, %v5863
      %v5865 = vpop.f32.mrb[0].mxu0
      %v5866 = vpop.f32.mrb[0].mxu0
      %v5867 = vadd.f32 0.0, %v5866
      %v5868 = vpop.f32.mrb[0].mxu0
      %5869 = vmatprep.mubr.bf16.mxu0 0
      %5870 = vmatmul.mubr.bf16.gmra.mrb[0].mxu0 %v4673
      %v5871 = vpop.f32.mrb[0].mxu0
      %v5872 = vadd.f32 0.0, %v5871
      %v5873 = vpop.f32.mrb[0].mxu0
      %v5874 = vpop.f32.mrb[0].mxu0
      %v5875 = vadd.f32 0.0, %v5874
      %v5876 = vpop.f32.mrb[0].mxu0
      %5877 = vmatprep.mubr.bf16.mxu0 0
      %5878 = vmatmul.mubr.bf16.gmra.mrb[0].mxu0 %v4676
      %v5879 = vpop.f32.mrb[0].mxu0
      %v5880 = vadd.f32 0.0, %v5879
      %v5881 = vpop.f32.mrb[0].mxu0
      %v5882 = vpop.f32.mrb[0].mxu0
      %v5883 = vadd.f32 0.0, %v5882
      %v5884 = vpop.f32.mrb[0].mxu0
      %5885 = vmatprep.mubr.bf16.mxu0 0
      %5886 = vmatmul.mubr.bf16.gmra.mrb[0].mxu0 %v4679
      %v5887 = vpop.f32.mrb[0].mxu0
      %v5888 = vadd.f32 0.0, %v5887
      %v5889 = vpop.f32.mrb[0].mxu0
      %v5890 = vpop.f32.mrb[0].mxu0
      %v5891 = vadd.f32 0.0, %v5890
      %v5892 = vpop.f32.mrb[0].mxu0
      %5893 = vmatprep.mubr.bf16.mxu0 0
      %5894 = vmatmul.mubr.bf16.gmra.mrb[0].mxu0 %v4682
      %v5895 = vpop.f32.mrb[0].mxu0
      %v5896 = vadd.f32 0.0, %v5895
      %v5897 = vpop.f32.mrb[0].mxu0
      %v5898 = vpop.f32.mrb[0].mxu0
      %v5899 = vadd.f32 0.0, %v5898
      %v5900 = vpop.f32.mrb[0].mxu0
      %5901 = vmatprep.mubr.bf16.mxu0 0
      %5902 = vmatmul.mubr.bf16.gmra.mrb[0].mxu0 %v4685
      %v5903 = vpop.f32.mrb[0].mxu0
      %v5904 = vadd.f32 0.0, %v5903
      %v5905 = vpop.f32.mrb[0].mxu0
      %v5906 = vpop.f32.mrb[0].mxu0
      %v5907 = vadd.f32 0.0, %v5906
      %v5908 = vpop.f32.mrb[0].mxu0
      %5909 = vmatprep.mubr.bf16.mxu0 0
      %5910 = vmatmul.mubr.bf16.gmra.mrb[0].mxu0 %v4688
      %v5911 = vpop.f32.mrb[0].mxu0
      %v5912 = vadd.f32 0.0, %v5911
      %v5913 = vpop.f32.mrb[0].mxu0
      %v5914 = vpop.f32.mrb[0].mxu0
      %v5915 = vadd.f32 0.0, %v5914
      %v5916 = vpop.f32.mrb[0].mxu0
      %5917 = vmatprep.mubr.bf16.mxu0 0
      %5918 = vmatmul.mubr.bf16.gmra.mrb[0].mxu0 %v4691
      %v5919 = vpop.f32.mrb[0].mxu0
      %v5920 = vadd.f32 0.0, %v5919
      %v5921 = vpop.f32.mrb[0].mxu0
      %v5922 = vpop.f32.mrb[0].mxu0
      %v5923 = vadd.f32 0.0, %v5922
      %v5924 = vpop.f32.mrb[0].mxu0
      %5925 = vmatprep.mubr.bf16.mxu0 0
      %5926 = vmatmul.mubr.bf16.gmra.mrb[0].mxu0 %v4694
      %v5927 = vpop.f32.mrb[0].mxu0
      %v5928 = vadd.f32 0.0, %v5927
      %v5929 = vpop.f32.mrb[0].mxu0
      %v5930 = vpop.f32.mrb[0].mxu0
      %v5931 = vadd.f32 0.0, %v5930
      %v5932 = vpop.f32.mrb[0].mxu0
      %5933 = vmatprep.mubr.bf16.mxu0 0
      %5934 = vmatmul.mubr.bf16.gmra.mrb[0].mxu0 %v4697
      %v5935 = vpop.f32.mrb[0].mxu0
      %v5936 = vadd.f32 0.0, %v5935
      %v5937 = vpop.f32.mrb[0].mxu0
      %v5938 = vpop.f32.mrb[0].mxu0
      %v5939 = vadd.f32 0.0, %v5938
      %v5940 = vpop.f32.mrb[0].mxu0
      %5941 = vmatprep.mubr.bf16.mxu0 0
      %5942 = vmatmul.mubr.bf16.gmra.mrb[0].mxu0 %v4700
      %v5943 = vpop.f32.mrb[0].mxu0
      %v5944 = vadd.f32 0.0, %v5943
      %v5945 = vpop.f32.mrb[0].mxu0
      %v5946 = vpop.f32.mrb[0].mxu0
      %v5947 = vadd.f32 0.0, %v5946
      %v5948 = vpop.f32.mrb[0].mxu0
      %5949 = vmatprep.mubr.bf16.mxu0 0
      %5950 = vmatmul.mubr.bf16.gmra.mrb[0].mxu0 %v5761
      %v5951 = vpop.f32.mrb[0].mxu0
      %v5952 = vadd.f32 0.0, %v5951
      %v5953 = vpop.f32.mrb[0].mxu0
      %v5954 = vpop.f32.mrb[0].mxu0
      %v5955 = vadd.f32 0.0, %v5954
      %v5956 = vpop.f32.mrb[0].mxu0
      %5957 = vdwg.mxu0
      %v5958 = vadd.f32 %v5717, %v5800
      %v5959 = vadd.f32 %v5718, %v5803
      %v5960 = vadd.f32 %v5719, %v5808
      %v5961 = vadd.f32 %v5720, %v5811
      %v5962 = vadd.f32 %v5721, %v5816
      %v5963 = vadd.f32 %v5722, %v5819
      %v5964 = vadd.f32 %v5723, %v5824
      %v5965 = vadd.f32 %v5724, %v5827
      %v5966 = vadd.f32 %v5725, %v5832
      %v5967 = vadd.f32 %v5726, %v5835
      %v5968 = vadd.f32 %v5727, %v5840
      %v5969 = vadd.f32 %v5728, %v5843
      %v5970 = vadd.f32 %v5729, %v5848
      %v5971 = vadd.f32 %v5730, %v5851
      %v5972 = vadd.f32 %v5731, %v5856
      %v5973 = vadd.f32 %v5732, %v5859
      %v5974 = vadd.f32 %v5733, %v5864
      %v5975 = vadd.f32 %v5734, %v5867
      %v5976 = vadd.f32 %v5735, %v5872
      %v5977 = vadd.f32 %v5736, %v5875
      %v5978 = vadd.f32 %v5737, %v5880
      %v5979 = vadd.f32 %v5738, %v5883
      %v5980 = vadd.f32 %v5739, %v5888
      %v5981 = vadd.f32 %v5740, %v5891
      %v5982 = vadd.f32 %v5741, %v5896
      %v5983 = vadd.f32 %v5742, %v5899
      %v5984 = vadd.f32 %v5743, %v5904
      %v5985 = vadd.f32 %v5744, %v5907
      %v5986 = vadd.f32 %v5745, %v5912
      %v5987 = vadd.f32 %v5746, %v5915
      %v5988 = vadd.f32 %v5747, %v5920
      %v5989 = vadd.f32 %v5748, %v5923
      %v5990 = vadd.f32 %v5749, %v5928
      %v5991 = vadd.f32 %v5750, %v5931
      %v5992 = vadd.f32 %v5751, %v5936
      %v5993 = vadd.f32 %v5752, %v5939
      %v5994 = vadd.f32 %v5753, %v5944
      %v5995 = vadd.f32 %v5754, %v5947
      %v5996 = vadd.f32 %v5755, %v5952
      %v5997 = vadd.f32 %v5756, %v5955
      %v5998 = vrot.slane %v5505, 4
      %v5999 = vrot.slane %v5508, 5
      %v6000 = vor.u32 %v5998, %v5999
      %v6001 = vrot.slane %v5513, 4
      %v6002 = vrot.slane %v5516, 5
      %v6003 = vor.u32 %v6001, %v6002
      %v6004 = vsel %vm1680, %v6000, %v6003
      %s6006 = scalar_lea.vmem %s3, 28
      %v6007 = vld [vmem:[%s6006] sm:$0x3]
      %6008 = vmatprep.subr.bf16.mxu0 0
      %6009 = vmatpush1.bf16.xpose.msra.mxu0 %v6007
      %6010 = vmatprep.subr.bf16.mxu0 0
      %6011 = vmatpush1.bf16.xpose.msra.mxu0 0
      %6012 = vmatprep.subr.bf16.mxu0 0
      %6013 = vmatpush1.bf16.xpose.msra.mxu0 0
      %6014 = vmatprep.subr.bf16.mxu0 0
      %6015 = vmatpush1.bf16.xpose.msra.mxu0 0
      %6016 = vmatprep.subr.bf16.mxu0 0
      %6017 = vmatpush1.bf16.xpose.msra.mxu0 0
      %6018 = vmatprep.subr.bf16.mxu0 0
      %6019 = vmatpush1.bf16.xpose.msra.mxu0 0
      %6020 = vmatprep.subr.bf16.mxu0 0
      %6021 = vmatpush1.bf16.xpose.msra.mxu0 0
      %6022 = vmatprep.subr.bf16.mxu0 0
      %6023 = vmatpush1.bf16.xpose.msra.mxu0 0
      %6024 = vmatprep.subr.bf16.mxu0 0
      %6025 = vmatpush1.bf16.xpose.msra.mxu0 0
      %6026 = vmatprep.subr.bf16.mxu0 0
      %6027 = vmatpush1.bf16.xpose.msra.mxu0 0
      %6028 = vmatprep.subr.bf16.mxu0 0
      %6029 = vmatpush1.bf16.xpose.msra.mxu0 0
      %6030 = vmatprep.subr.bf16.mxu0 0
      %6031 = vmatpush1.bf16.xpose.msra.mxu0 0
      %6032 = vmatprep.subr.bf16.mxu0 0
      %6033 = vmatpush1.bf16.xpose.msra.mxu0 0
      %6034 = vmatprep.subr.bf16.mxu0 0
      %6035 = vmatpush1.bf16.xpose.msra.mxu0 0
      %6036 = vmatprep.subr.bf16.mxu0 0
      %6037 = vmatpush1.bf16.xpose.msra.mxu0 0
      %6038 = vmatprep.subr.bf16.mxu0 0
      %6039 = vmatpush1.bf16.xpose.msra.mxu0 0
      %6040 = vmatprep.mubr.bf16.mxu0 0
      %6041 = vmatmul.mubr.bf16.gmra.mrb[0].mxu0 %v5122
      %v6042 = vpop.f32.mrb[0].mxu0
      %v6043 = vadd.f32 0.0, %v6042
      %v6044 = vpop.f32.mrb[0].mxu0
      %v6045 = vpop.f32.mrb[0].mxu0
      %v6046 = vadd.f32 0.0, %v6045
      %v6047 = vpop.f32.mrb[0].mxu0
      %6048 = vmatprep.mubr.bf16.mxu0 0
      %6049 = vmatmul.mubr.bf16.gmra.mrb[0].mxu0 %v5129
      %v6050 = vpop.f32.mrb[0].mxu0
      %v6051 = vadd.f32 0.0, %v6050
      %v6052 = vpop.f32.mrb[0].mxu0
      %v6053 = vpop.f32.mrb[0].mxu0
      %v6054 = vadd.f32 0.0, %v6053
      %v6055 = vpop.f32.mrb[0].mxu0
      %6056 = vmatprep.mubr.bf16.mxu0 0
      %6057 = vmatmul.mubr.bf16.gmra.mrb[0].mxu0 %v5136
      %v6058 = vpop.f32.mrb[0].mxu0
      %v6059 = vadd.f32 0.0, %v6058
      %v6060 = vpop.f32.mrb[0].mxu0
      %v6061 = vpop.f32.mrb[0].mxu0
      %v6062 = vadd.f32 0.0, %v6061
      %v6063 = vpop.f32.mrb[0].mxu0
      %6064 = vmatprep.mubr.bf16.mxu0 0
      %6065 = vmatmul.mubr.bf16.gmra.mrb[0].mxu0 %v5143
      %v6066 = vpop.f32.mrb[0].mxu0
      %v6067 = vadd.f32 0.0, %v6066
      %v6068 = vpop.f32.mrb[0].mxu0
      %v6069 = vpop.f32.mrb[0].mxu0
      %v6070 = vadd.f32 0.0, %v6069
      %v6071 = vpop.f32.mrb[0].mxu0
      %6072 = vmatprep.mubr.bf16.mxu0 0
      %6073 = vmatmul.mubr.bf16.gmra.mrb[0].mxu0 %v5150
      %v6074 = vpop.f32.mrb[0].mxu0
      %v6075 = vadd.f32 0.0, %v6074
      %v6076 = vpop.f32.mrb[0].mxu0
      %v6077 = vpop.f32.mrb[0].mxu0
      %v6078 = vadd.f32 0.0, %v6077
      %v6079 = vpop.f32.mrb[0].mxu0
      %6080 = vmatprep.mubr.bf16.mxu0 0
      %6081 = vmatmul.mubr.bf16.gmra.mrb[0].mxu0 %v5157
      %v6082 = vpop.f32.mrb[0].mxu0
      %v6083 = vadd.f32 0.0, %v6082
      %v6084 = vpop.f32.mrb[0].mxu0
      %v6085 = vpop.f32.mrb[0].mxu0
      %v6086 = vadd.f32 0.0, %v6085
      %v6087 = vpop.f32.mrb[0].mxu0
      %6088 = vmatprep.mubr.bf16.mxu0 0
      %6089 = vmatmul.mubr.bf16.gmra.mrb[0].mxu0 %v5164
      %v6090 = vpop.f32.mrb[0].mxu0
      %v6091 = vadd.f32 0.0, %v6090
      %v6092 = vpop.f32.mrb[0].mxu0
      %v6093 = vpop.f32.mrb[0].mxu0
      %v6094 = vadd.f32 0.0, %v6093
      %v6095 = vpop.f32.mrb[0].mxu0
      %6096 = vmatprep.mubr.bf16.mxu0 0
      %6097 = vmatmul.mubr.bf16.gmra.mrb[0].mxu0 %v5171
      %v6098 = vpop.f32.mrb[0].mxu0
      %v6099 = vadd.f32 0.0, %v6098
      %v6100 = vpop.f32.mrb[0].mxu0
      %v6101 = vpop.f32.mrb[0].mxu0
      %v6102 = vadd.f32 0.0, %v6101
      %v6103 = vpop.f32.mrb[0].mxu0
      %6104 = vmatprep.mubr.bf16.mxu0 0
      %6105 = vmatmul.mubr.bf16.gmra.mrb[0].mxu0 %v5178
      %v6106 = vpop.f32.mrb[0].mxu0
      %v6107 = vadd.f32 0.0, %v6106
      %v6108 = vpop.f32.mrb[0].mxu0
      %v6109 = vpop.f32.mrb[0].mxu0
      %v6110 = vadd.f32 0.0, %v6109
      %v6111 = vpop.f32.mrb[0].mxu0
      %6112 = vmatprep.mubr.bf16.mxu0 0
      %6113 = vmatmul.mubr.bf16.gmra.mrb[0].mxu0 %v5185
      %v6114 = vpop.f32.mrb[0].mxu0
      %v6115 = vadd.f32 0.0, %v6114
      %v6116 = vpop.f32.mrb[0].mxu0
      %v6117 = vpop.f32.mrb[0].mxu0
      %v6118 = vadd.f32 0.0, %v6117
      %v6119 = vpop.f32.mrb[0].mxu0
      %6120 = vmatprep.mubr.bf16.mxu0 0
      %6121 = vmatmul.mubr.bf16.gmra.mrb[0].mxu0 %v5192
      %v6122 = vpop.f32.mrb[0].mxu0
      %v6123 = vadd.f32 0.0, %v6122
      %v6124 = vpop.f32.mrb[0].mxu0
      %v6125 = vpop.f32.mrb[0].mxu0
      %v6126 = vadd.f32 0.0, %v6125
      %v6127 = vpop.f32.mrb[0].mxu0
      %6128 = vmatprep.mubr.bf16.mxu0 0
      %6129 = vmatmul.mubr.bf16.gmra.mrb[0].mxu0 %v5199
      %v6130 = vpop.f32.mrb[0].mxu0
      %v6131 = vadd.f32 0.0, %v6130
      %v6132 = vpop.f32.mrb[0].mxu0
      %v6133 = vpop.f32.mrb[0].mxu0
      %v6134 = vadd.f32 0.0, %v6133
      %v6135 = vpop.f32.mrb[0].mxu0
      %6136 = vmatprep.mubr.bf16.mxu0 0
      %6137 = vmatmul.mubr.bf16.gmra.mrb[0].mxu0 %v5206
      %v6138 = vpop.f32.mrb[0].mxu0
      %v6139 = vadd.f32 0.0, %v6138
      %v6140 = vpop.f32.mrb[0].mxu0
      %v6141 = vpop.f32.mrb[0].mxu0
      %v6142 = vadd.f32 0.0, %v6141
      %v6143 = vpop.f32.mrb[0].mxu0
      %6144 = vmatprep.mubr.bf16.mxu0 0
      %6145 = vmatmul.mubr.bf16.gmra.mrb[0].mxu0 %v5213
      %v6146 = vpop.f32.mrb[0].mxu0
      %v6147 = vadd.f32 0.0, %v6146
      %v6148 = vpop.f32.mrb[0].mxu0
      %v6149 = vpop.f32.mrb[0].mxu0
      %v6150 = vadd.f32 0.0, %v6149
      %v6151 = vpop.f32.mrb[0].mxu0
      %6152 = vmatprep.mubr.bf16.mxu0 0
      %6153 = vmatmul.mubr.bf16.gmra.mrb[0].mxu0 %v5220
      %v6154 = vpop.f32.mrb[0].mxu0
      %v6155 = vadd.f32 0.0, %v6154
      %v6156 = vpop.f32.mrb[0].mxu0
      %v6157 = vpop.f32.mrb[0].mxu0
      %v6158 = vadd.f32 0.0, %v6157
      %v6159 = vpop.f32.mrb[0].mxu0
      %6160 = vmatprep.mubr.bf16.mxu0 0
      %6161 = vmatmul.mubr.bf16.gmra.mrb[0].mxu0 %v5227
      %v6162 = vpop.f32.mrb[0].mxu0
      %v6163 = vadd.f32 0.0, %v6162
      %v6164 = vpop.f32.mrb[0].mxu0
      %v6165 = vpop.f32.mrb[0].mxu0
      %v6166 = vadd.f32 0.0, %v6165
      %v6167 = vpop.f32.mrb[0].mxu0
      %6168 = vmatprep.mubr.bf16.mxu0 0
      %6169 = vmatmul.mubr.bf16.gmra.mrb[0].mxu0 %v5234
      %v6170 = vpop.f32.mrb[0].mxu0
      %v6171 = vadd.f32 0.0, %v6170
      %v6172 = vpop.f32.mrb[0].mxu0
      %v6173 = vpop.f32.mrb[0].mxu0
      %v6174 = vadd.f32 0.0, %v6173
      %v6175 = vpop.f32.mrb[0].mxu0
      %6176 = vmatprep.mubr.bf16.mxu0 0
      %6177 = vmatmul.mubr.bf16.gmra.mrb[0].mxu0 %v5241
      %v6178 = vpop.f32.mrb[0].mxu0
      %v6179 = vadd.f32 0.0, %v6178
      %v6180 = vpop.f32.mrb[0].mxu0
      %v6181 = vpop.f32.mrb[0].mxu0
      %v6182 = vadd.f32 0.0, %v6181
      %v6183 = vpop.f32.mrb[0].mxu0
      %6184 = vmatprep.mubr.bf16.mxu0 0
      %6185 = vmatmul.mubr.bf16.gmra.mrb[0].mxu0 %v5248
      %v6186 = vpop.f32.mrb[0].mxu0
      %v6187 = vadd.f32 0.0, %v6186
      %v6188 = vpop.f32.mrb[0].mxu0
      %v6189 = vpop.f32.mrb[0].mxu0
      %v6190 = vadd.f32 0.0, %v6189
      %v6191 = vpop.f32.mrb[0].mxu0
      %6192 = vmatprep.mubr.bf16.mxu0 0
      %6193 = vmatmul.mubr.bf16.gmra.mrb[0].mxu0 %v6004
      %v6194 = vpop.f32.mrb[0].mxu0
      %v6195 = vadd.f32 0.0, %v6194
      %v6196 = vpop.f32.mrb[0].mxu0
      %v6197 = vpop.f32.mrb[0].mxu0
      %v6198 = vadd.f32 0.0, %v6197
      %v6199 = vpop.f32.mrb[0].mxu0
      %6200 = vdwg.mxu0
      %v6201 = vadd.f32 %v5958, %v6043
      %v6202 = vadd.f32 %v5959, %v6046
      %v6203 = vadd.f32 %v5960, %v6051
      %v6204 = vadd.f32 %v5961, %v6054
      %v6205 = vadd.f32 %v5962, %v6059
      %v6206 = vadd.f32 %v5963, %v6062
      %v6207 = vadd.f32 %v5964, %v6067
      %v6208 = vadd.f32 %v5965, %v6070
      %v6209 = vadd.f32 %v5966, %v6075
      %v6210 = vadd.f32 %v5967, %v6078
      %v6211 = vadd.f32 %v5968, %v6083
      %v6212 = vadd.f32 %v5969, %v6086
      %v6213 = vadd.f32 %v5970, %v6091
      %v6214 = vadd.f32 %v5971, %v6094
      %v6215 = vadd.f32 %v5972, %v6099
      %v6216 = vadd.f32 %v5973, %v6102
      %v6217 = vadd.f32 %v5974, %v6107
      %v6218 = vadd.f32 %v5975, %v6110
      %v6219 = vadd.f32 %v5976, %v6115
      %v6220 = vadd.f32 %v5977, %v6118
      %v6221 = vadd.f32 %v5978, %v6123
      %v6222 = vadd.f32 %v5979, %v6126
      %v6223 = vadd.f32 %v5980, %v6131
      %v6224 = vadd.f32 %v5981, %v6134
      %v6225 = vadd.f32 %v5982, %v6139
      %v6226 = vadd.f32 %v5983, %v6142
      %v6227 = vadd.f32 %v5984, %v6147
      %v6228 = vadd.f32 %v5985, %v6150
      %v6229 = vadd.f32 %v5986, %v6155
      %v6230 = vadd.f32 %v5987, %v6158
      %v6231 = vadd.f32 %v5988, %v6163
      %v6232 = vadd.f32 %v5989, %v6166
      %v6233 = vadd.f32 %v5990, %v6171
      %v6234 = vadd.f32 %v5991, %v6174
      %v6235 = vadd.f32 %v5992, %v6179
      %v6236 = vadd.f32 %v5993, %v6182
      %v6237 = vadd.f32 %v5994, %v6187
      %v6238 = vadd.f32 %v5995, %v6190
      %v6239 = vadd.f32 %v5996, %v6195
      %v6240 = vadd.f32 %v5997, %v6198
      %v6242 = vshrl.u32 %v4237, 16
      %v6244 = vrot.slane %v6242, 3
      %v6245 = vshll.u32 %v4237, 16
      %v6247 = vrot.slane %v6245, 4
      %v6248 = vor.u32 %v6244, %v6247
      %v6250 = vshrl.u32 %v4238, 16
      %v6252 = vrot.slane %v6250, 3
      %v6253 = vshll.u32 %v4238, 16
      %v6255 = vrot.slane %v6253, 4
      %v6256 = vor.u32 %v6252, %v6255
      %v6257 = vsel %vm809, %v6248, %v6256
      %s6259 = scalar_lea.vmem %s3, 30
      %v6260 = vld [vmem:[%s6259] sm:$0x3]
      %6261 = vmatprep.subr.bf16.mxu0 0
      %6262 = vmatpush1.bf16.xpose.msra.mxu0 %v6260
      %6263 = vmatprep.subr.bf16.mxu0 0
      %6264 = vmatpush1.bf16.xpose.msra.mxu0 0
      %6265 = vmatprep.subr.bf16.mxu0 0
      %6266 = vmatpush1.bf16.xpose.msra.mxu0 0
      %6267 = vmatprep.subr.bf16.mxu0 0
      %6268 = vmatpush1.bf16.xpose.msra.mxu0 0
      %6269 = vmatprep.subr.bf16.mxu0 0
      %6270 = vmatpush1.bf16.xpose.msra.mxu0 0
      %6271 = vmatprep.subr.bf16.mxu0 0
      %6272 = vmatpush1.bf16.xpose.msra.mxu0 0
      %6273 = vmatprep.subr.bf16.mxu0 0
      %6274 = vmatpush1.bf16.xpose.msra.mxu0 0
      %6275 = vmatprep.subr.bf16.mxu0 0
      %6276 = vmatpush1.bf16.xpose.msra.mxu0 0
      %6277 = vmatprep.subr.bf16.mxu0 0
      %6278 = vmatpush1.bf16.xpose.msra.mxu0 0
      %6279 = vmatprep.subr.bf16.mxu0 0
      %6280 = vmatpush1.bf16.xpose.msra.mxu0 0
      %6281 = vmatprep.subr.bf16.mxu0 0
      %6282 = vmatpush1.bf16.xpose.msra.mxu0 0
      %6283 = vmatprep.subr.bf16.mxu0 0
      %6284 = vmatpush1.bf16.xpose.msra.mxu0 0
      %6285 = vmatprep.subr.bf16.mxu0 0
      %6286 = vmatpush1.bf16.xpose.msra.mxu0 0
      %6287 = vmatprep.subr.bf16.mxu0 0
      %6288 = vmatpush1.bf16.xpose.msra.mxu0 0
      %6289 = vmatprep.subr.bf16.mxu0 0
      %6290 = vmatpush1.bf16.xpose.msra.mxu0 0
      %6291 = vmatprep.subr.bf16.mxu0 0
      %6292 = vmatpush1.bf16.xpose.msra.mxu0 0
      %6293 = vmatprep.mubr.bf16.mxu0 0
      %6294 = vmatmul.mubr.bf16.gmra.mrb[0].mxu0 %v4289
      %v6295 = vpop.f32.mrb[0].mxu0
      %v6296 = vadd.f32 0.0, %v6295
      %v6297 = vpop.f32.mrb[0].mxu0
      %v6298 = vpop.f32.mrb[0].mxu0
      %v6299 = vadd.f32 0.0, %v6298
      %v6300 = vpop.f32.mrb[0].mxu0
      %6301 = vmatprep.mubr.bf16.mxu0 0
      %6302 = vmatmul.mubr.bf16.gmra.mrb[0].mxu0 %v4306
      %v6303 = vpop.f32.mrb[0].mxu0
      %v6304 = vadd.f32 0.0, %v6303
      %v6305 = vpop.f32.mrb[0].mxu0
      %v6306 = vpop.f32.mrb[0].mxu0
      %v6307 = vadd.f32 0.0, %v6306
      %v6308 = vpop.f32.mrb[0].mxu0
      %6309 = vmatprep.mubr.bf16.mxu0 0
      %6310 = vmatmul.mubr.bf16.gmra.mrb[0].mxu0 %v4323
      %v6311 = vpop.f32.mrb[0].mxu0
      %v6312 = vadd.f32 0.0, %v6311
      %v6313 = vpop.f32.mrb[0].mxu0
      %v6314 = vpop.f32.mrb[0].mxu0
      %v6315 = vadd.f32 0.0, %v6314
      %v6316 = vpop.f32.mrb[0].mxu0
      %6317 = vmatprep.mubr.bf16.mxu0 0
      %6318 = vmatmul.mubr.bf16.gmra.mrb[0].mxu0 %v4340
      %v6319 = vpop.f32.mrb[0].mxu0
      %v6320 = vadd.f32 0.0, %v6319
      %v6321 = vpop.f32.mrb[0].mxu0
      %v6322 = vpop.f32.mrb[0].mxu0
      %v6323 = vadd.f32 0.0, %v6322
      %v6324 = vpop.f32.mrb[0].mxu0
      %6325 = vmatprep.mubr.bf16.mxu0 0
      %6326 = vmatmul.mubr.bf16.gmra.mrb[0].mxu0 %v4357
      %v6327 = vpop.f32.mrb[0].mxu0
      %v6328 = vadd.f32 0.0, %v6327
      %v6329 = vpop.f32.mrb[0].mxu0
      %v6330 = vpop.f32.mrb[0].mxu0
      %v6331 = vadd.f32 0.0, %v6330
      %v6332 = vpop.f32.mrb[0].mxu0
      %6333 = vmatprep.mubr.bf16.mxu0 0
      %6334 = vmatmul.mubr.bf16.gmra.mrb[0].mxu0 %v4374
      %v6335 = vpop.f32.mrb[0].mxu0
      %v6336 = vadd.f32 0.0, %v6335
      %v6337 = vpop.f32.mrb[0].mxu0
      %v6338 = vpop.f32.mrb[0].mxu0
      %v6339 = vadd.f32 0.0, %v6338
      %v6340 = vpop.f32.mrb[0].mxu0
      %6341 = vmatprep.mubr.bf16.mxu0 0
      %6342 = vmatmul.mubr.bf16.gmra.mrb[0].mxu0 %v4391
      %v6343 = vpop.f32.mrb[0].mxu0
      %v6344 = vadd.f32 0.0, %v6343
      %v6345 = vpop.f32.mrb[0].mxu0
      %v6346 = vpop.f32.mrb[0].mxu0
      %v6347 = vadd.f32 0.0, %v6346
      %v6348 = vpop.f32.mrb[0].mxu0
      %6349 = vmatprep.mubr.bf16.mxu0 0
      %6350 = vmatmul.mubr.bf16.gmra.mrb[0].mxu0 %v4408
      %v6351 = vpop.f32.mrb[0].mxu0
      %v6352 = vadd.f32 0.0, %v6351
      %v6353 = vpop.f32.mrb[0].mxu0
      %v6354 = vpop.f32.mrb[0].mxu0
      %v6355 = vadd.f32 0.0, %v6354
      %v6356 = vpop.f32.mrb[0].mxu0
      %6357 = vmatprep.mubr.bf16.mxu0 0
      %6358 = vmatmul.mubr.bf16.gmra.mrb[0].mxu0 %v4425
      %v6359 = vpop.f32.mrb[0].mxu0
      %v6360 = vadd.f32 0.0, %v6359
      %v6361 = vpop.f32.mrb[0].mxu0
      %v6362 = vpop.f32.mrb[0].mxu0
      %v6363 = vadd.f32 0.0, %v6362
      %v6364 = vpop.f32.mrb[0].mxu0
      %6365 = vmatprep.mubr.bf16.mxu0 0
      %6366 = vmatmul.mubr.bf16.gmra.mrb[0].mxu0 %v4442
      %v6367 = vpop.f32.mrb[0].mxu0
      %v6368 = vadd.f32 0.0, %v6367
      %v6369 = vpop.f32.mrb[0].mxu0
      %v6370 = vpop.f32.mrb[0].mxu0
      %v6371 = vadd.f32 0.0, %v6370
      %v6372 = vpop.f32.mrb[0].mxu0
      %6373 = vmatprep.mubr.bf16.mxu0 0
      %6374 = vmatmul.mubr.bf16.gmra.mrb[0].mxu0 %v4459
      %v6375 = vpop.f32.mrb[0].mxu0
      %v6376 = vadd.f32 0.0, %v6375
      %v6377 = vpop.f32.mrb[0].mxu0
      %v6378 = vpop.f32.mrb[0].mxu0
      %v6379 = vadd.f32 0.0, %v6378
      %v6380 = vpop.f32.mrb[0].mxu0
      %6381 = vmatprep.mubr.bf16.mxu0 0
      %6382 = vmatmul.mubr.bf16.gmra.mrb[0].mxu0 %v4476
      %v6383 = vpop.f32.mrb[0].mxu0
      %v6384 = vadd.f32 0.0, %v6383
      %v6385 = vpop.f32.mrb[0].mxu0
      %v6386 = vpop.f32.mrb[0].mxu0
      %v6387 = vadd.f32 0.0, %v6386
      %v6388 = vpop.f32.mrb[0].mxu0
      %6389 = vmatprep.mubr.bf16.mxu0 0
      %6390 = vmatmul.mubr.bf16.gmra.mrb[0].mxu0 %v4493
      %v6391 = vpop.f32.mrb[0].mxu0
      %v6392 = vadd.f32 0.0, %v6391
      %v6393 = vpop.f32.mrb[0].mxu0
      %v6394 = vpop.f32.mrb[0].mxu0
      %v6395 = vadd.f32 0.0, %v6394
      %v6396 = vpop.f32.mrb[0].mxu0
      %6397 = vmatprep.mubr.bf16.mxu0 0
      %6398 = vmatmul.mubr.bf16.gmra.mrb[0].mxu0 %v4510
      %v6399 = vpop.f32.mrb[0].mxu0
      %v6400 = vadd.f32 0.0, %v6399
      %v6401 = vpop.f32.mrb[0].mxu0
      %v6402 = vpop.f32.mrb[0].mxu0
      %v6403 = vadd.f32 0.0, %v6402
      %v6404 = vpop.f32.mrb[0].mxu0
      %6405 = vmatprep.mubr.bf16.mxu0 0
      %6406 = vmatmul.mubr.bf16.gmra.mrb[0].mxu0 %v4527
      %v6407 = vpop.f32.mrb[0].mxu0
      %v6408 = vadd.f32 0.0, %v6407
      %v6409 = vpop.f32.mrb[0].mxu0
      %v6410 = vpop.f32.mrb[0].mxu0
      %v6411 = vadd.f32 0.0, %v6410
      %v6412 = vpop.f32.mrb[0].mxu0
      %6413 = vmatprep.mubr.bf16.mxu0 0
      %6414 = vmatmul.mubr.bf16.gmra.mrb[0].mxu0 %v4544
      %v6415 = vpop.f32.mrb[0].mxu0
      %v6416 = vadd.f32 0.0, %v6415
      %v6417 = vpop.f32.mrb[0].mxu0
      %v6418 = vpop.f32.mrb[0].mxu0
      %v6419 = vadd.f32 0.0, %v6418
      %v6420 = vpop.f32.mrb[0].mxu0
      %6421 = vmatprep.mubr.bf16.mxu0 0
      %6422 = vmatmul.mubr.bf16.gmra.mrb[0].mxu0 %v4561
      %v6423 = vpop.f32.mrb[0].mxu0
      %v6424 = vadd.f32 0.0, %v6423
      %v6425 = vpop.f32.mrb[0].mxu0
      %v6426 = vpop.f32.mrb[0].mxu0
      %v6427 = vadd.f32 0.0, %v6426
      %v6428 = vpop.f32.mrb[0].mxu0
      %6429 = vmatprep.mubr.bf16.mxu0 0
      %6430 = vmatmul.mubr.bf16.gmra.mrb[0].mxu0 %v4578
      %v6431 = vpop.f32.mrb[0].mxu0
      %v6432 = vadd.f32 0.0, %v6431
      %v6433 = vpop.f32.mrb[0].mxu0
      %v6434 = vpop.f32.mrb[0].mxu0
      %v6435 = vadd.f32 0.0, %v6434
      %v6436 = vpop.f32.mrb[0].mxu0
      %6437 = vmatprep.mubr.bf16.mxu0 0
      %6438 = vmatmul.mubr.bf16.gmra.mrb[0].mxu0 %v5520
      %v6439 = vpop.f32.mrb[0].mxu0
      %v6440 = vadd.f32 0.0, %v6439
      %v6441 = vpop.f32.mrb[0].mxu0
      %v6442 = vpop.f32.mrb[0].mxu0
      %v6443 = vadd.f32 0.0, %v6442
      %v6444 = vpop.f32.mrb[0].mxu0
      %6445 = vmatprep.mubr.bf16.mxu0 0
      %6446 = vmatmul.mubr.bf16.gmra.mrb[0].mxu0 %v6257
      %v6447 = vpop.f32.mrb[0].mxu0
      %v6448 = vadd.f32 0.0, %v6447
      %v6449 = vpop.f32.mrb[0].mxu0
      %v6450 = vpop.f32.mrb[0].mxu0
      %v6451 = vadd.f32 0.0, %v6450
      %v6452 = vpop.f32.mrb[0].mxu0
      %6453 = vdwg.mxu0
      %v6454 = vadd.f32 %v6201, %v6296
      %v6455 = vadd.f32 %v6202, %v6299
      %v6456 = vadd.f32 %v6203, %v6304
      %v6457 = vadd.f32 %v6204, %v6307
      %v6458 = vadd.f32 %v6205, %v6312
      %v6459 = vadd.f32 %v6206, %v6315
      %v6460 = vadd.f32 %v6207, %v6320
      %v6461 = vadd.f32 %v6208, %v6323
      %v6462 = vadd.f32 %v6209, %v6328
      %v6463 = vadd.f32 %v6210, %v6331
      %v6464 = vadd.f32 %v6211, %v6336
      %v6465 = vadd.f32 %v6212, %v6339
      %v6466 = vadd.f32 %v6213, %v6344
      %v6467 = vadd.f32 %v6214, %v6347
      %v6468 = vadd.f32 %v6215, %v6352
      %v6469 = vadd.f32 %v6216, %v6355
      %v6470 = vadd.f32 %v6217, %v6360
      %v6471 = vadd.f32 %v6218, %v6363
      %v6472 = vadd.f32 %v6219, %v6368
      %v6473 = vadd.f32 %v6220, %v6371
      %v6474 = vadd.f32 %v6221, %v6376
      %v6475 = vadd.f32 %v6222, %v6379
      %v6476 = vadd.f32 %v6223, %v6384
      %v6477 = vadd.f32 %v6224, %v6387
      %v6478 = vadd.f32 %v6225, %v6392
      %v6479 = vadd.f32 %v6226, %v6395
      %v6480 = vadd.f32 %v6227, %v6400
      %v6481 = vadd.f32 %v6228, %v6403
      %v6482 = vadd.f32 %v6229, %v6408
      %v6483 = vadd.f32 %v6230, %v6411
      %v6484 = vadd.f32 %v6231, %v6416
      %v6485 = vadd.f32 %v6232, %v6419
      %v6486 = vadd.f32 %v6233, %v6424
      %v6487 = vadd.f32 %v6234, %v6427
      %v6488 = vadd.f32 %v6235, %v6432
      %v6489 = vadd.f32 %v6236, %v6435
      %v6490 = vadd.f32 %v6237, %v6440
      %v6491 = vadd.f32 %v6238, %v6443
      %v6492 = vadd.f32 %v6239, %v6448
      %v6493 = vadd.f32 %v6240, %v6451
      %v6496 = vrot.slane %v4237, 4
      %v6497 = vrot.slane %v4238, 4
      %v6498 = vsel %vm1211, %v6496, %v6497
      %s6500 = scalar_lea.vmem %s3, 32
      %v6501 = vld [vmem:[%s6500] sm:$0x3]
      %6502 = vmatprep.subr.bf16.mxu0 0
      %6503 = vmatpush1.bf16.xpose.msra.mxu0 %v6501
      %6504 = vmatprep.subr.bf16.mxu0 0
      %6505 = vmatpush1.bf16.xpose.msra.mxu0 0
      %6506 = vmatprep.subr.bf16.mxu0 0
      %6507 = vmatpush1.bf16.xpose.msra.mxu0 0
      %6508 = vmatprep.subr.bf16.mxu0 0
      %6509 = vmatpush1.bf16.xpose.msra.mxu0 0
      %6510 = vmatprep.subr.bf16.mxu0 0
      %6511 = vmatpush1.bf16.xpose.msra.mxu0 0
      %6512 = vmatprep.subr.bf16.mxu0 0
      %6513 = vmatpush1.bf16.xpose.msra.mxu0 0
      %6514 = vmatprep.subr.bf16.mxu0 0
      %6515 = vmatpush1.bf16.xpose.msra.mxu0 0
      %6516 = vmatprep.subr.bf16.mxu0 0
      %6517 = vmatpush1.bf16.xpose.msra.mxu0 0
      %6518 = vmatprep.subr.bf16.mxu0 0
      %6519 = vmatpush1.bf16.xpose.msra.mxu0 0
      %6520 = vmatprep.subr.bf16.mxu0 0
      %6521 = vmatpush1.bf16.xpose.msra.mxu0 0
      %6522 = vmatprep.subr.bf16.mxu0 0
      %6523 = vmatpush1.bf16.xpose.msra.mxu0 0
      %6524 = vmatprep.subr.bf16.mxu0 0
      %6525 = vmatpush1.bf16.xpose.msra.mxu0 0
      %6526 = vmatprep.subr.bf16.mxu0 0
      %6527 = vmatpush1.bf16.xpose.msra.mxu0 0
      %6528 = vmatprep.subr.bf16.mxu0 0
      %6529 = vmatpush1.bf16.xpose.msra.mxu0 0
      %6530 = vmatprep.subr.bf16.mxu0 0
      %6531 = vmatpush1.bf16.xpose.msra.mxu0 0
      %6532 = vmatprep.subr.bf16.mxu0 0
      %6533 = vmatpush1.bf16.xpose.msra.mxu0 0
      %6534 = vmatprep.mubr.bf16.mxu0 0
      %6535 = vmatmul.mubr.bf16.gmra.mrb[0].mxu0 %v4649
      %v6536 = vpop.f32.mrb[0].mxu0
      %v6537 = vadd.f32 0.0, %v6536
      %v6538 = vpop.f32.mrb[0].mxu0
      %v6539 = vpop.f32.mrb[0].mxu0
      %v6540 = vadd.f32 0.0, %v6539
      %v6541 = vpop.f32.mrb[0].mxu0
      %6542 = vmatprep.mubr.bf16.mxu0 0
      %6543 = vmatmul.mubr.bf16.gmra.mrb[0].mxu0 %v4652
      %v6544 = vpop.f32.mrb[0].mxu0
      %v6545 = vadd.f32 0.0, %v6544
      %v6546 = vpop.f32.mrb[0].mxu0
      %v6547 = vpop.f32.mrb[0].mxu0
      %v6548 = vadd.f32 0.0, %v6547
      %v6549 = vpop.f32.mrb[0].mxu0
      %6550 = vmatprep.mubr.bf16.mxu0 0
      %6551 = vmatmul.mubr.bf16.gmra.mrb[0].mxu0 %v4655
      %v6552 = vpop.f32.mrb[0].mxu0
      %v6553 = vadd.f32 0.0, %v6552
      %v6554 = vpop.f32.mrb[0].mxu0
      %v6555 = vpop.f32.mrb[0].mxu0
      %v6556 = vadd.f32 0.0, %v6555
      %v6557 = vpop.f32.mrb[0].mxu0
      %6558 = vmatprep.mubr.bf16.mxu0 0
      %6559 = vmatmul.mubr.bf16.gmra.mrb[0].mxu0 %v4658
      %v6560 = vpop.f32.mrb[0].mxu0
      %v6561 = vadd.f32 0.0, %v6560
      %v6562 = vpop.f32.mrb[0].mxu0
      %v6563 = vpop.f32.mrb[0].mxu0
      %v6564 = vadd.f32 0.0, %v6563
      %v6565 = vpop.f32.mrb[0].mxu0
      %6566 = vmatprep.mubr.bf16.mxu0 0
      %6567 = vmatmul.mubr.bf16.gmra.mrb[0].mxu0 %v4661
      %v6568 = vpop.f32.mrb[0].mxu0
      %v6569 = vadd.f32 0.0, %v6568
      %v6570 = vpop.f32.mrb[0].mxu0
      %v6571 = vpop.f32.mrb[0].mxu0
      %v6572 = vadd.f32 0.0, %v6571
      %v6573 = vpop.f32.mrb[0].mxu0
      %6574 = vmatprep.mubr.bf16.mxu0 0
      %6575 = vmatmul.mubr.bf16.gmra.mrb[0].mxu0 %v4664
      %v6576 = vpop.f32.mrb[0].mxu0
      %v6577 = vadd.f32 0.0, %v6576
      %v6578 = vpop.f32.mrb[0].mxu0
      %v6579 = vpop.f32.mrb[0].mxu0
      %v6580 = vadd.f32 0.0, %v6579
      %v6581 = vpop.f32.mrb[0].mxu0
      %6582 = vmatprep.mubr.bf16.mxu0 0
      %6583 = vmatmul.mubr.bf16.gmra.mrb[0].mxu0 %v4667
      %v6584 = vpop.f32.mrb[0].mxu0
      %v6585 = vadd.f32 0.0, %v6584
      %v6586 = vpop.f32.mrb[0].mxu0
      %v6587 = vpop.f32.mrb[0].mxu0
      %v6588 = vadd.f32 0.0, %v6587
      %v6589 = vpop.f32.mrb[0].mxu0
      %6590 = vmatprep.mubr.bf16.mxu0 0
      %6591 = vmatmul.mubr.bf16.gmra.mrb[0].mxu0 %v4670
      %v6592 = vpop.f32.mrb[0].mxu0
      %v6593 = vadd.f32 0.0, %v6592
      %v6594 = vpop.f32.mrb[0].mxu0
      %v6595 = vpop.f32.mrb[0].mxu0
      %v6596 = vadd.f32 0.0, %v6595
      %v6597 = vpop.f32.mrb[0].mxu0
      %6598 = vmatprep.mubr.bf16.mxu0 0
      %6599 = vmatmul.mubr.bf16.gmra.mrb[0].mxu0 %v4673
      %v6600 = vpop.f32.mrb[0].mxu0
      %v6601 = vadd.f32 0.0, %v6600
      %v6602 = vpop.f32.mrb[0].mxu0
      %v6603 = vpop.f32.mrb[0].mxu0
      %v6604 = vadd.f32 0.0, %v6603
      %v6605 = vpop.f32.mrb[0].mxu0
      %6606 = vmatprep.mubr.bf16.mxu0 0
      %6607 = vmatmul.mubr.bf16.gmra.mrb[0].mxu0 %v4676
      %v6608 = vpop.f32.mrb[0].mxu0
      %v6609 = vadd.f32 0.0, %v6608
      %v6610 = vpop.f32.mrb[0].mxu0
      %v6611 = vpop.f32.mrb[0].mxu0
      %v6612 = vadd.f32 0.0, %v6611
      %v6613 = vpop.f32.mrb[0].mxu0
      %6614 = vmatprep.mubr.bf16.mxu0 0
      %6615 = vmatmul.mubr.bf16.gmra.mrb[0].mxu0 %v4679
      %v6616 = vpop.f32.mrb[0].mxu0
      %v6617 = vadd.f32 0.0, %v6616
      %v6618 = vpop.f32.mrb[0].mxu0
      %v6619 = vpop.f32.mrb[0].mxu0
      %v6620 = vadd.f32 0.0, %v6619
      %v6621 = vpop.f32.mrb[0].mxu0
      %6622 = vmatprep.mubr.bf16.mxu0 0
      %6623 = vmatmul.mubr.bf16.gmra.mrb[0].mxu0 %v4682
      %v6624 = vpop.f32.mrb[0].mxu0
      %v6625 = vadd.f32 0.0, %v6624
      %v6626 = vpop.f32.mrb[0].mxu0
      %v6627 = vpop.f32.mrb[0].mxu0
      %v6628 = vadd.f32 0.0, %v6627
      %v6629 = vpop.f32.mrb[0].mxu0
      %6630 = vmatprep.mubr.bf16.mxu0 0
      %6631 = vmatmul.mubr.bf16.gmra.mrb[0].mxu0 %v4685
      %v6632 = vpop.f32.mrb[0].mxu0
      %v6633 = vadd.f32 0.0, %v6632
      %v6634 = vpop.f32.mrb[0].mxu0
      %v6635 = vpop.f32.mrb[0].mxu0
      %v6636 = vadd.f32 0.0, %v6635
      %v6637 = vpop.f32.mrb[0].mxu0
      %6638 = vmatprep.mubr.bf16.mxu0 0
      %6639 = vmatmul.mubr.bf16.gmra.mrb[0].mxu0 %v4688
      %v6640 = vpop.f32.mrb[0].mxu0
      %v6641 = vadd.f32 0.0, %v6640
      %v6642 = vpop.f32.mrb[0].mxu0
      %v6643 = vpop.f32.mrb[0].mxu0
      %v6644 = vadd.f32 0.0, %v6643
      %v6645 = vpop.f32.mrb[0].mxu0
      %6646 = vmatprep.mubr.bf16.mxu0 0
      %6647 = vmatmul.mubr.bf16.gmra.mrb[0].mxu0 %v4691
      %v6648 = vpop.f32.mrb[0].mxu0
      %v6649 = vadd.f32 0.0, %v6648
      %v6650 = vpop.f32.mrb[0].mxu0
      %v6651 = vpop.f32.mrb[0].mxu0
      %v6652 = vadd.f32 0.0, %v6651
      %v6653 = vpop.f32.mrb[0].mxu0
      %6654 = vmatprep.mubr.bf16.mxu0 0
      %6655 = vmatmul.mubr.bf16.gmra.mrb[0].mxu0 %v4694
      %v6656 = vpop.f32.mrb[0].mxu0
      %v6657 = vadd.f32 0.0, %v6656
      %v6658 = vpop.f32.mrb[0].mxu0
      %v6659 = vpop.f32.mrb[0].mxu0
      %v6660 = vadd.f32 0.0, %v6659
      %v6661 = vpop.f32.mrb[0].mxu0
      %6662 = vmatprep.mubr.bf16.mxu0 0
      %6663 = vmatmul.mubr.bf16.gmra.mrb[0].mxu0 %v4697
      %v6664 = vpop.f32.mrb[0].mxu0
      %v6665 = vadd.f32 0.0, %v6664
      %v6666 = vpop.f32.mrb[0].mxu0
      %v6667 = vpop.f32.mrb[0].mxu0
      %v6668 = vadd.f32 0.0, %v6667
      %v6669 = vpop.f32.mrb[0].mxu0
      %6670 = vmatprep.mubr.bf16.mxu0 0
      %6671 = vmatmul.mubr.bf16.gmra.mrb[0].mxu0 %v4700
      %v6672 = vpop.f32.mrb[0].mxu0
      %v6673 = vadd.f32 0.0, %v6672
      %v6674 = vpop.f32.mrb[0].mxu0
      %v6675 = vpop.f32.mrb[0].mxu0
      %v6676 = vadd.f32 0.0, %v6675
      %v6677 = vpop.f32.mrb[0].mxu0
      %6678 = vmatprep.mubr.bf16.mxu0 0
      %6679 = vmatmul.mubr.bf16.gmra.mrb[0].mxu0 %v5761
      %v6680 = vpop.f32.mrb[0].mxu0
      %v6681 = vadd.f32 0.0, %v6680
      %v6682 = vpop.f32.mrb[0].mxu0
      %v6683 = vpop.f32.mrb[0].mxu0
      %v6684 = vadd.f32 0.0, %v6683
      %v6685 = vpop.f32.mrb[0].mxu0
      %6686 = vmatprep.mubr.bf16.mxu0 0
      %6687 = vmatmul.mubr.bf16.gmra.mrb[0].mxu0 %v6498
      %v6688 = vpop.f32.mrb[0].mxu0
      %v6689 = vadd.f32 0.0, %v6688
      %v6690 = vpop.f32.mrb[0].mxu0
      %v6691 = vpop.f32.mrb[0].mxu0
      %v6692 = vadd.f32 0.0, %v6691
      %v6693 = vpop.f32.mrb[0].mxu0
      %6694 = vdwg.mxu0
      %v6695 = vadd.f32 %v6454, %v6537
      %v6696 = vadd.f32 %v6455, %v6540
      %v6697 = vadd.f32 %v6456, %v6545
      %v6698 = vadd.f32 %v6457, %v6548
      %v6699 = vadd.f32 %v6458, %v6553
      %v6700 = vadd.f32 %v6459, %v6556
      %v6701 = vadd.f32 %v6460, %v6561
      %v6702 = vadd.f32 %v6461, %v6564
      %v6703 = vadd.f32 %v6462, %v6569
      %v6704 = vadd.f32 %v6463, %v6572
      %v6705 = vadd.f32 %v6464, %v6577
      %v6706 = vadd.f32 %v6465, %v6580
      %v6707 = vadd.f32 %v6466, %v6585
      %v6708 = vadd.f32 %v6467, %v6588
      %v6709 = vadd.f32 %v6468, %v6593
      %v6710 = vadd.f32 %v6469, %v6596
      %v6711 = vadd.f32 %v6470, %v6601
      %v6712 = vadd.f32 %v6471, %v6604
      %v6713 = vadd.f32 %v6472, %v6609
      %v6714 = vadd.f32 %v6473, %v6612
      %v6715 = vadd.f32 %v6474, %v6617
      %v6716 = vadd.f32 %v6475, %v6620
      %v6717 = vadd.f32 %v6476, %v6625
      %v6718 = vadd.f32 %v6477, %v6628
      %v6719 = vadd.f32 %v6478, %v6633
      %v6720 = vadd.f32 %v6479, %v6636
      %v6721 = vadd.f32 %v6480, %v6641
      %v6722 = vadd.f32 %v6481, %v6644
      %v6723 = vadd.f32 %v6482, %v6649
      %v6724 = vadd.f32 %v6483, %v6652
      %v6725 = vadd.f32 %v6484, %v6657
      %v6726 = vadd.f32 %v6485, %v6660
      %v6727 = vadd.f32 %v6486, %v6665
      %v6728 = vadd.f32 %v6487, %v6668
      %v6729 = vadd.f32 %v6488, %v6673
      %v6730 = vadd.f32 %v6489, %v6676
      %v6731 = vadd.f32 %v6490, %v6681
      %v6732 = vadd.f32 %v6491, %v6684
      %v6733 = vadd.f32 %v6492, %v6689
      %v6734 = vadd.f32 %v6493, %v6692
      %v6735 = vrot.slane %v6242, 4
      %v6736 = vrot.slane %v6245, 5
      %v6737 = vor.u32 %v6735, %v6736
      %v6738 = vrot.slane %v6250, 4
      %v6739 = vrot.slane %v6253, 5
      %v6740 = vor.u32 %v6738, %v6739
      %v6741 = vsel %vm1680, %v6737, %v6740
      %s6743 = scalar_lea.vmem %s3, 34
      %v6744 = vld [vmem:[%s6743] sm:$0x3]
      %6745 = vmatprep.subr.bf16.mxu0 0
      %6746 = vmatpush1.bf16.xpose.msra.mxu0 %v6744
      %6747 = vmatprep.subr.bf16.mxu0 0
      %6748 = vmatpush1.bf16.xpose.msra.mxu0 0
      %6749 = vmatprep.subr.bf16.mxu0 0
      %6750 = vmatpush1.bf16.xpose.msra.mxu0 0
      %6751 = vmatprep.subr.bf16.mxu0 0
      %6752 = vmatpush1.bf16.xpose.msra.mxu0 0
      %6753 = vmatprep.subr.bf16.mxu0 0
      %6754 = vmatpush1.bf16.xpose.msra.mxu0 0
      %6755 = vmatprep.subr.bf16.mxu0 0
      %6756 = vmatpush1.bf16.xpose.msra.mxu0 0
      %6757 = vmatprep.subr.bf16.mxu0 0
      %6758 = vmatpush1.bf16.xpose.msra.mxu0 0
      %6759 = vmatprep.subr.bf16.mxu0 0
      %6760 = vmatpush1.bf16.xpose.msra.mxu0 0
      %6761 = vmatprep.subr.bf16.mxu0 0
      %6762 = vmatpush1.bf16.xpose.msra.mxu0 0
      %6763 = vmatprep.subr.bf16.mxu0 0
      %6764 = vmatpush1.bf16.xpose.msra.mxu0 0
      %6765 = vmatprep.subr.bf16.mxu0 0
      %6766 = vmatpush1.bf16.xpose.msra.mxu0 0
      %6767 = vmatprep.subr.bf16.mxu0 0
      %6768 = vmatpush1.bf16.xpose.msra.mxu0 0
      %6769 = vmatprep.subr.bf16.mxu0 0
      %6770 = vmatpush1.bf16.xpose.msra.mxu0 0
      %6771 = vmatprep.subr.bf16.mxu0 0
      %6772 = vmatpush1.bf16.xpose.msra.mxu0 0
      %6773 = vmatprep.subr.bf16.mxu0 0
      %6774 = vmatpush1.bf16.xpose.msra.mxu0 0
      %6775 = vmatprep.subr.bf16.mxu0 0
      %6776 = vmatpush1.bf16.xpose.msra.mxu0 0
      %6777 = vmatprep.mubr.bf16.mxu0 0
      %6778 = vmatmul.mubr.bf16.gmra.mrb[0].mxu0 %v5129
      %v6779 = vpop.f32.mrb[0].mxu0
      %v6780 = vadd.f32 0.0, %v6779
      %v6781 = vpop.f32.mrb[0].mxu0
      %v6782 = vpop.f32.mrb[0].mxu0
      %v6783 = vadd.f32 0.0, %v6782
      %v6784 = vpop.f32.mrb[0].mxu0
      %6785 = vmatprep.mubr.bf16.mxu0 0
      %6786 = vmatmul.mubr.bf16.gmra.mrb[0].mxu0 %v5136
      %v6787 = vpop.f32.mrb[0].mxu0
      %v6788 = vadd.f32 0.0, %v6787
      %v6789 = vpop.f32.mrb[0].mxu0
      %v6790 = vpop.f32.mrb[0].mxu0
      %v6791 = vadd.f32 0.0, %v6790
      %v6792 = vpop.f32.mrb[0].mxu0
      %6793 = vmatprep.mubr.bf16.mxu0 0
      %6794 = vmatmul.mubr.bf16.gmra.mrb[0].mxu0 %v5143
      %v6795 = vpop.f32.mrb[0].mxu0
      %v6796 = vadd.f32 0.0, %v6795
      %v6797 = vpop.f32.mrb[0].mxu0
      %v6798 = vpop.f32.mrb[0].mxu0
      %v6799 = vadd.f32 0.0, %v6798
      %v6800 = vpop.f32.mrb[0].mxu0
      %6801 = vmatprep.mubr.bf16.mxu0 0
      %6802 = vmatmul.mubr.bf16.gmra.mrb[0].mxu0 %v5150
      %v6803 = vpop.f32.mrb[0].mxu0
      %v6804 = vadd.f32 0.0, %v6803
      %v6805 = vpop.f32.mrb[0].mxu0
      %v6806 = vpop.f32.mrb[0].mxu0
      %v6807 = vadd.f32 0.0, %v6806
      %v6808 = vpop.f32.mrb[0].mxu0
      %6809 = vmatprep.mubr.bf16.mxu0 0
      %6810 = vmatmul.mubr.bf16.gmra.mrb[0].mxu0 %v5157
      %v6811 = vpop.f32.mrb[0].mxu0
      %v6812 = vadd.f32 0.0, %v6811
      %v6813 = vpop.f32.mrb[0].mxu0
      %v6814 = vpop.f32.mrb[0].mxu0
      %v6815 = vadd.f32 0.0, %v6814
      %v6816 = vpop.f32.mrb[0].mxu0
      %6817 = vmatprep.mubr.bf16.mxu0 0
      %6818 = vmatmul.mubr.bf16.gmra.mrb[0].mxu0 %v5164
      %v6819 = vpop.f32.mrb[0].mxu0
      %v6820 = vadd.f32 0.0, %v6819
      %v6821 = vpop.f32.mrb[0].mxu0
      %v6822 = vpop.f32.mrb[0].mxu0
      %v6823 = vadd.f32 0.0, %v6822
      %v6824 = vpop.f32.mrb[0].mxu0
      %6825 = vmatprep.mubr.bf16.mxu0 0
      %6826 = vmatmul.mubr.bf16.gmra.mrb[0].mxu0 %v5171
      %v6827 = vpop.f32.mrb[0].mxu0
      %v6828 = vadd.f32 0.0, %v6827
      %v6829 = vpop.f32.mrb[0].mxu0
      %v6830 = vpop.f32.mrb[0].mxu0
      %v6831 = vadd.f32 0.0, %v6830
      %v6832 = vpop.f32.mrb[0].mxu0
      %6833 = vmatprep.mubr.bf16.mxu0 0
      %6834 = vmatmul.mubr.bf16.gmra.mrb[0].mxu0 %v5178
      %v6835 = vpop.f32.mrb[0].mxu0
      %v6836 = vadd.f32 0.0, %v6835
      %v6837 = vpop.f32.mrb[0].mxu0
      %v6838 = vpop.f32.mrb[0].mxu0
      %v6839 = vadd.f32 0.0, %v6838
      %v6840 = vpop.f32.mrb[0].mxu0
      %6841 = vmatprep.mubr.bf16.mxu0 0
      %6842 = vmatmul.mubr.bf16.gmra.mrb[0].mxu0 %v5185
      %v6843 = vpop.f32.mrb[0].mxu0
      %v6844 = vadd.f32 0.0, %v6843
      %v6845 = vpop.f32.mrb[0].mxu0
      %v6846 = vpop.f32.mrb[0].mxu0
      %v6847 = vadd.f32 0.0, %v6846
      %v6848 = vpop.f32.mrb[0].mxu0
      %6849 = vmatprep.mubr.bf16.mxu0 0
      %6850 = vmatmul.mubr.bf16.gmra.mrb[0].mxu0 %v5192
      %v6851 = vpop.f32.mrb[0].mxu0
      %v6852 = vadd.f32 0.0, %v6851
      %v6853 = vpop.f32.mrb[0].mxu0
      %v6854 = vpop.f32.mrb[0].mxu0
      %v6855 = vadd.f32 0.0, %v6854
      %v6856 = vpop.f32.mrb[0].mxu0
      %6857 = vmatprep.mubr.bf16.mxu0 0
      %6858 = vmatmul.mubr.bf16.gmra.mrb[0].mxu0 %v5199
      %v6859 = vpop.f32.mrb[0].mxu0
      %v6860 = vadd.f32 0.0, %v6859
      %v6861 = vpop.f32.mrb[0].mxu0
      %v6862 = vpop.f32.mrb[0].mxu0
      %v6863 = vadd.f32 0.0, %v6862
      %v6864 = vpop.f32.mrb[0].mxu0
      %6865 = vmatprep.mubr.bf16.mxu0 0
      %6866 = vmatmul.mubr.bf16.gmra.mrb[0].mxu0 %v5206
      %v6867 = vpop.f32.mrb[0].mxu0
      %v6868 = vadd.f32 0.0, %v6867
      %v6869 = vpop.f32.mrb[0].mxu0
      %v6870 = vpop.f32.mrb[0].mxu0
      %v6871 = vadd.f32 0.0, %v6870
      %v6872 = vpop.f32.mrb[0].mxu0
      %6873 = vmatprep.mubr.bf16.mxu0 0
      %6874 = vmatmul.mubr.bf16.gmra.mrb[0].mxu0 %v5213
      %v6875 = vpop.f32.mrb[0].mxu0
      %v6876 = vadd.f32 0.0, %v6875
      %v6877 = vpop.f32.mrb[0].mxu0
      %v6878 = vpop.f32.mrb[0].mxu0
      %v6879 = vadd.f32 0.0, %v6878
      %v6880 = vpop.f32.mrb[0].mxu0
      %6881 = vmatprep.mubr.bf16.mxu0 0
      %6882 = vmatmul.mubr.bf16.gmra.mrb[0].mxu0 %v5220
      %v6883 = vpop.f32.mrb[0].mxu0
      %v6884 = vadd.f32 0.0, %v6883
      %v6885 = vpop.f32.mrb[0].mxu0
      %v6886 = vpop.f32.mrb[0].mxu0
      %v6887 = vadd.f32 0.0, %v6886
      %v6888 = vpop.f32.mrb[0].mxu0
      %6889 = vmatprep.mubr.bf16.mxu0 0
      %6890 = vmatmul.mubr.bf16.gmra.mrb[0].mxu0 %v5227
      %v6891 = vpop.f32.mrb[0].mxu0
      %v6892 = vadd.f32 0.0, %v6891
      %v6893 = vpop.f32.mrb[0].mxu0
      %v6894 = vpop.f32.mrb[0].mxu0
      %v6895 = vadd.f32 0.0, %v6894
      %v6896 = vpop.f32.mrb[0].mxu0
      %6897 = vmatprep.mubr.bf16.mxu0 0
      %6898 = vmatmul.mubr.bf16.gmra.mrb[0].mxu0 %v5234
      %v6899 = vpop.f32.mrb[0].mxu0
      %v6900 = vadd.f32 0.0, %v6899
      %v6901 = vpop.f32.mrb[0].mxu0
      %v6902 = vpop.f32.mrb[0].mxu0
      %v6903 = vadd.f32 0.0, %v6902
      %v6904 = vpop.f32.mrb[0].mxu0
      %6905 = vmatprep.mubr.bf16.mxu0 0
      %6906 = vmatmul.mubr.bf16.gmra.mrb[0].mxu0 %v5241
      %v6907 = vpop.f32.mrb[0].mxu0
      %v6908 = vadd.f32 0.0, %v6907
      %v6909 = vpop.f32.mrb[0].mxu0
      %v6910 = vpop.f32.mrb[0].mxu0
      %v6911 = vadd.f32 0.0, %v6910
      %v6912 = vpop.f32.mrb[0].mxu0
      %6913 = vmatprep.mubr.bf16.mxu0 0
      %6914 = vmatmul.mubr.bf16.gmra.mrb[0].mxu0 %v5248
      %v6915 = vpop.f32.mrb[0].mxu0
      %v6916 = vadd.f32 0.0, %v6915
      %v6917 = vpop.f32.mrb[0].mxu0
      %v6918 = vpop.f32.mrb[0].mxu0
      %v6919 = vadd.f32 0.0, %v6918
      %v6920 = vpop.f32.mrb[0].mxu0
      %6921 = vmatprep.mubr.bf16.mxu0 0
      %6922 = vmatmul.mubr.bf16.gmra.mrb[0].mxu0 %v6004
      %v6923 = vpop.f32.mrb[0].mxu0
      %v6924 = vadd.f32 0.0, %v6923
      %v6925 = vpop.f32.mrb[0].mxu0
      %v6926 = vpop.f32.mrb[0].mxu0
      %v6927 = vadd.f32 0.0, %v6926
      %v6928 = vpop.f32.mrb[0].mxu0
      %6929 = vmatprep.mubr.bf16.mxu0 0
      %6930 = vmatmul.mubr.bf16.gmra.mrb[0].mxu0 %v6741
      %v6931 = vpop.f32.mrb[0].mxu0
      %v6932 = vadd.f32 0.0, %v6931
      %v6933 = vpop.f32.mrb[0].mxu0
      %v6934 = vpop.f32.mrb[0].mxu0
      %v6935 = vadd.f32 0.0, %v6934
      %v6936 = vpop.f32.mrb[0].mxu0
      %6937 = vdwg.mxu0
      %v6938 = vadd.f32 %v6695, %v6780
      %v6939 = vadd.f32 %v6696, %v6783
      %v6940 = vadd.f32 %v6697, %v6788
      %v6941 = vadd.f32 %v6698, %v6791
      %v6942 = vadd.f32 %v6699, %v6796
      %v6943 = vadd.f32 %v6700, %v6799
      %v6944 = vadd.f32 %v6701, %v6804
      %v6945 = vadd.f32 %v6702, %v6807
      %v6946 = vadd.f32 %v6703, %v6812
      %v6947 = vadd.f32 %v6704, %v6815
      %v6948 = vadd.f32 %v6705, %v6820
      %v6949 = vadd.f32 %v6706, %v6823
      %v6950 = vadd.f32 %v6707, %v6828
      %v6951 = vadd.f32 %v6708, %v6831
      %v6952 = vadd.f32 %v6709, %v6836
      %v6953 = vadd.f32 %v6710, %v6839
      %v6954 = vadd.f32 %v6711, %v6844
      %v6955 = vadd.f32 %v6712, %v6847
      %v6956 = vadd.f32 %v6713, %v6852
      %v6957 = vadd.f32 %v6714, %v6855
      %v6958 = vadd.f32 %v6715, %v6860
      %v6959 = vadd.f32 %v6716, %v6863
      %v6960 = vadd.f32 %v6717, %v6868
      %v6961 = vadd.f32 %v6718, %v6871
      %v6962 = vadd.f32 %v6719, %v6876
      %v6963 = vadd.f32 %v6720, %v6879
      %v6964 = vadd.f32 %v6721, %v6884
      %v6965 = vadd.f32 %v6722, %v6887
      %v6966 = vadd.f32 %v6723, %v6892
      %v6967 = vadd.f32 %v6724, %v6895
      %v6968 = vadd.f32 %v6725, %v6900
      %v6969 = vadd.f32 %v6726, %v6903
      %v6970 = vadd.f32 %v6727, %v6908
      %v6971 = vadd.f32 %v6728, %v6911
      %v6972 = vadd.f32 %v6729, %v6916
      %v6973 = vadd.f32 %v6730, %v6919
      %v6974 = vadd.f32 %v6731, %v6924
      %v6975 = vadd.f32 %v6732, %v6927
      %v6976 = vadd.f32 %v6733, %v6932
      %v6977 = vadd.f32 %v6734, %v6935
      %7018 = vrot.lane.b32.xlu0 %v6938, 8
      %v7019 = vpop.permute.xlu0 %7018
      %7020 = vrot.lane.b32.xlu0 %v6939, 8
      %v7021 = vpop.permute.xlu0 %7020
      %7022 = vrot.lane.b32.xlu0 %v6940, 8
      %v7023 = vpop.permute.xlu0 %7022
      %7024 = vrot.lane.b32.xlu0 %v6941, 8
      %v7025 = vpop.permute.xlu0 %7024
      %7026 = vrot.lane.b32.xlu0 %v6942, 8
      %v7027 = vpop.permute.xlu0 %7026
      %7028 = vrot.lane.b32.xlu0 %v6943, 8
      %v7029 = vpop.permute.xlu0 %7028
      %7030 = vrot.lane.b32.xlu0 %v6944, 8
      %v7031 = vpop.permute.xlu0 %7030
      %7032 = vrot.lane.b32.xlu0 %v6945, 8
      %v7033 = vpop.permute.xlu0 %7032
      %7034 = vrot.lane.b32.xlu0 %v6946, 8
      %v7035 = vpop.permute.xlu0 %7034
      %7036 = vrot.lane.b32.xlu0 %v6947, 8
      %v7037 = vpop.permute.xlu0 %7036
      %7038 = vrot.lane.b32.xlu0 %v6948, 8
      %v7039 = vpop.permute.xlu0 %7038
      %7040 = vrot.lane.b32.xlu0 %v6949, 8
      %v7041 = vpop.permute.xlu0 %7040
      %7042 = vrot.lane.b32.xlu0 %v6950, 8
      %v7043 = vpop.permute.xlu0 %7042
      %7044 = vrot.lane.b32.xlu0 %v6951, 8
      %v7045 = vpop.permute.xlu0 %7044
      %7046 = vrot.lane.b32.xlu0 %v6952, 8
      %v7047 = vpop.permute.xlu0 %7046
      %7048 = vrot.lane.b32.xlu0 %v6953, 8
      %v7049 = vpop.permute.xlu0 %7048
      %7050 = vrot.lane.b32.xlu0 %v6954, 8
      %v7051 = vpop.permute.xlu0 %7050
      %7052 = vrot.lane.b32.xlu0 %v6955, 8
      %v7053 = vpop.permute.xlu0 %7052
      %7054 = vrot.lane.b32.xlu0 %v6956, 8
      %v7055 = vpop.permute.xlu0 %7054
      %7056 = vrot.lane.b32.xlu0 %v6957, 8
      %v7057 = vpop.permute.xlu0 %7056
      %7058 = vrot.lane.b32.xlu0 %v6958, 8
      %v7059 = vpop.permute.xlu0 %7058
      %7060 = vrot.lane.b32.xlu0 %v6959, 8
      %v7061 = vpop.permute.xlu0 %7060
      %7062 = vrot.lane.b32.xlu0 %v6960, 8
      %v7063 = vpop.permute.xlu0 %7062
      %7064 = vrot.lane.b32.xlu0 %v6961, 8
      %v7065 = vpop.permute.xlu0 %7064
      %7066 = vrot.lane.b32.xlu0 %v6962, 8
      %v7067 = vpop.permute.xlu0 %7066
      %7068 = vrot.lane.b32.xlu0 %v6963, 8
      %v7069 = vpop.permute.xlu0 %7068
      %7070 = vrot.lane.b32.xlu0 %v6964, 8
      %v7071 = vpop.permute.xlu0 %7070
      %7072 = vrot.lane.b32.xlu0 %v6965, 8
      %v7073 = vpop.permute.xlu0 %7072
      %7074 = vrot.lane.b32.xlu0 %v6966, 8
      %v7075 = vpop.permute.xlu0 %7074
      %7076 = vrot.lane.b32.xlu0 %v6967, 8
      %v7077 = vpop.permute.xlu0 %7076
      %7078 = vrot.lane.b32.xlu0 %v6968, 8
      %v7079 = vpop.permute.xlu0 %7078
      %7080 = vrot.lane.b32.xlu0 %v6969, 8
      %v7081 = vpop.permute.xlu0 %7080
      %7082 = vrot.lane.b32.xlu0 %v6970, 8
      %v7083 = vpop.permute.xlu0 %7082
      %7084 = vrot.lane.b32.xlu0 %v6971, 8
      %v7085 = vpop.permute.xlu0 %7084
      %7086 = vrot.lane.b32.xlu0 %v6972, 8
      %v7087 = vpop.permute.xlu0 %7086
      %7088 = vrot.lane.b32.xlu0 %v6973, 8
      %v7089 = vpop.permute.xlu0 %7088
      %7090 = vrot.lane.b32.xlu0 %v6974, 8
      %v7091 = vpop.permute.xlu0 %7090
      %7092 = vrot.lane.b32.xlu0 %v6975, 8
      %v7093 = vpop.permute.xlu0 %7092
      %7094 = vrot.lane.b32.xlu0 %v6976, 8
      %v7095 = vpop.permute.xlu0 %7094
      %7096 = vrot.lane.b32.xlu0 %v6977, 8
      %v7097 = vpop.permute.xlu0 %7096
      %vm7138 = vcmask 97344
      %7139 = vst.msk [vmem:[%s3710 + $0x8] sm:$0xff] %vm7138, %v7019
      %7140 = vst.msk [vmem:[%s3710 + $0x10] sm:$0xff] %vm7138, %v7021
      %7141 = vst.msk [vmem:[%s3710 + $0x28] sm:$0xff] %vm7138, %v7023
      %7142 = vst.msk [vmem:[%s3710 + $0x30] sm:$0xff] %vm7138, %v7025
      %7143 = vst.msk [vmem:[%s3710 + $0x48] sm:$0xff] %vm7138, %v7027
      %7144 = vst.msk [vmem:[%s3710 + $0x50] sm:$0xff] %vm7138, %v7029
      %7145 = vst.msk [vmem:[%s3710 + $0x68] sm:$0xff] %vm7138, %v7031
      %7146 = vst.msk [vmem:[%s3710 + $0x70] sm:$0xff] %vm7138, %v7033
      %7147 = vst.msk [vmem:[%s3710 + $0x88] sm:$0xff] %vm7138, %v7035
      %7148 = vst.msk [vmem:[%s3710 + $0x90] sm:$0xff] %vm7138, %v7037
      %7149 = vst.msk [vmem:[%s3710 + $0xa8] sm:$0xff] %vm7138, %v7039
      %7150 = vst.msk [vmem:[%s3710 + $0xb0] sm:$0xff] %vm7138, %v7041
      %7151 = vst.msk [vmem:[%s3710 + $0xc8] sm:$0xff] %vm7138, %v7043
      %7152 = vst.msk [vmem:[%s3710 + $0xd0] sm:$0xff] %vm7138, %v7045
      %7153 = vst.msk [vmem:[%s3710 + $0xe8] sm:$0xff] %vm7138, %v7047
      %7154 = vst.msk [vmem:[%s3710 + $0xf0] sm:$0xff] %vm7138, %v7049
      %7155 = vst.msk [vmem:[%s3710 + $0x108] sm:$0xff] %vm7138, %v7051
      %7156 = vst.msk [vmem:[%s3710 + $0x110] sm:$0xff] %vm7138, %v7053
      %7157 = vst.msk [vmem:[%s3710 + $0x128] sm:$0xff] %vm7138, %v7055
      %7158 = vst.msk [vmem:[%s3710 + $0x130] sm:$0xff] %vm7138, %v7057
      %7159 = vst.msk [vmem:[%s3710 + $0x148] sm:$0xff] %vm7138, %v7059
      %7160 = vst.msk [vmem:[%s3710 + $0x150] sm:$0xff] %vm7138, %v7061
      %7161 = vst.msk [vmem:[%s3710 + $0x168] sm:$0xff] %vm7138, %v7063
      %7162 = vst.msk [vmem:[%s3710 + $0x170] sm:$0xff] %vm7138, %v7065
      %7163 = vst.msk [vmem:[%s3710 + $0x188] sm:$0xff] %vm7138, %v7067
      %7164 = vst.msk [vmem:[%s3710 + $0x190] sm:$0xff] %vm7138, %v7069
      %7165 = vst.msk [vmem:[%s3710 + $0x1a8] sm:$0xff] %vm7138, %v7071
      %7166 = vst.msk [vmem:[%s3710 + $0x1b0] sm:$0xff] %vm7138, %v7073
      %7167 = vst.msk [vmem:[%s3710 + $0x1c8] sm:$0xff] %vm7138, %v7075
      %7168 = vst.msk [vmem:[%s3710 + $0x1d0] sm:$0xff] %vm7138, %v7077
      %7169 = vst.msk [vmem:[%s3710 + $0x1e8] sm:$0xff] %vm7138, %v7079
      %7170 = vst.msk [vmem:[%s3710 + $0x1f0] sm:$0xff] %vm7138, %v7081
      %7171 = vst.msk [vmem:[%s3710 + $0x208] sm:$0xff] %vm7138, %v7083
      %7172 = vst.msk [vmem:[%s3710 + $0x210] sm:$0xff] %vm7138, %v7085
      %7173 = vst.msk [vmem:[%s3710 + $0x228] sm:$0xff] %vm7138, %v7087
      %7174 = vst.msk [vmem:[%s3710 + $0x230] sm:$0xff] %vm7138, %v7089
      %7175 = vst.msk [vmem:[%s3710 + $0x248] sm:$0xff] %vm7138, %v7091
      %7176 = vst.msk [vmem:[%s3710 + $0x250] sm:$0xff] %vm7138, %v7093
      %7177 = vst.msk [vmem:[%s3710 + $0x268] sm:$0xff] %vm7138, %v7095
      %7178 = vst.msk [vmem:[%s3710 + $0x270] sm:$0xff] %vm7138, %v7097
      %vm7179 = vcmask 90176
      %7180 = vst.msk [vmem:[%s3710 + $0x7] sm:$0x1] %vm7179, %v7019
      %7181 = vst.msk [vmem:[%s3710 + $0x27] sm:$0x1] %vm7179, %v7023
      %7182 = vst.msk [vmem:[%s3710 + $0x47] sm:$0x1] %vm7179, %v7027
      %7183 = vst.msk [vmem:[%s3710 + $0x67] sm:$0x1] %vm7179, %v7031
      %7184 = vst.msk [vmem:[%s3710 + $0x87] sm:$0x1] %vm7179, %v7035
      %7185 = vst.msk [vmem:[%s3710 + $0xa7] sm:$0x1] %vm7179, %v7039
      %7186 = vst.msk [vmem:[%s3710 + $0xc7] sm:$0x1] %vm7179, %v7043
      %7187 = vst.msk [vmem:[%s3710 + $0xe7] sm:$0x1] %vm7179, %v7047
      %7188 = vst.msk [vmem:[%s3710 + $0x107] sm:$0x1] %vm7179, %v7051
      %7189 = vst.msk [vmem:[%s3710 + $0x127] sm:$0x1] %vm7179, %v7055
      %7190 = vst.msk [vmem:[%s3710 + $0x147] sm:$0x1] %vm7179, %v7059
      %7191 = vst.msk [vmem:[%s3710 + $0x167] sm:$0x1] %vm7179, %v7063
      %7192 = vst.msk [vmem:[%s3710 + $0x187] sm:$0x1] %vm7179, %v7067
      %7193 = vst.msk [vmem:[%s3710 + $0x1a7] sm:$0x1] %vm7179, %v7071
      %7194 = vst.msk [vmem:[%s3710 + $0x1c7] sm:$0x1] %vm7179, %v7075
      %7195 = vst.msk [vmem:[%s3710 + $0x1e7] sm:$0x1] %vm7179, %v7079
      %7196 = vst.msk [vmem:[%s3710 + $0x207] sm:$0x1] %vm7179, %v7083
      %7197 = vst.msk [vmem:[%s3710 + $0x227] sm:$0x1] %vm7179, %v7087
      %7198 = vst.msk [vmem:[%s3710 + $0x247] sm:$0x1] %vm7179, %v7091
      %7199 = vst.msk [vmem:[%s3710 + $0x267] sm:$0x1] %vm7179, %v7095
      %vm7200 = vcmask 97351
      %7201 = vst.msk [vmem:[%s3710 + $0x11] sm:$0x80] %vm7200, %v7021
      %7202 = vst.msk [vmem:[%s3710 + $0x31] sm:$0x80] %vm7200, %v7025
      %7203 = vst.msk [vmem:[%s3710 + $0x51] sm:$0x80] %vm7200, %v7029
      %7204 = vst.msk [vmem:[%s3710 + $0x71] sm:$0x80] %vm7200, %v7033
      %7205 = vst.msk [vmem:[%s3710 + $0x91] sm:$0x80] %vm7200, %v7037
      %7206 = vst.msk [vmem:[%s3710 + $0xb1] sm:$0x80] %vm7200, %v7041
      %7207 = vst.msk [vmem:[%s3710 + $0xd1] sm:$0x80] %vm7200, %v7045
      %7208 = vst.msk [vmem:[%s3710 + $0xf1] sm:$0x80] %vm7200, %v7049
      %7209 = vst.msk [vmem:[%s3710 + $0x111] sm:$0x80] %vm7200, %v7053
      %7210 = vst.msk [vmem:[%s3710 + $0x131] sm:$0x80] %vm7200, %v7057
      %7211 = vst.msk [vmem:[%s3710 + $0x151] sm:$0x80] %vm7200, %v7061
      %7212 = vst.msk [vmem:[%s3710 + $0x171] sm:$0x80] %vm7200, %v7065
      %7213 = vst.msk [vmem:[%s3710 + $0x191] sm:$0x80] %vm7200, %v7069
      %7214 = vst.msk [vmem:[%s3710 + $0x1b1] sm:$0x80] %vm7200, %v7073
      %7215 = vst.msk [vmem:[%s3710 + $0x1d1] sm:$0x80] %vm7200, %v7077
      %7216 = vst.msk [vmem:[%s3710 + $0x1f1] sm:$0x80] %vm7200, %v7081
      %7217 = vst.msk [vmem:[%s3710 + $0x211] sm:$0x80] %vm7200, %v7085
      %7218 = vst.msk [vmem:[%s3710 + $0x231] sm:$0x80] %vm7200, %v7089
      %7219 = vst.msk [vmem:[%s3710 + $0x251] sm:$0x80] %vm7200, %v7093
      %7220 = vst.msk [vmem:[%s3710 + $0x271] sm:$0x80] %vm7200, %v7097
      // Predicated region
      $region71: #{dense_block_forward.1} parent=31 // pred_check
        %p7221 = pneg %p3794
      $region72: #{dense_block_forward.1} parent=31 // pred_check_branch
        %7223 = sbr.rel (%p7221) target = $region74
      $region73: #{dense_block_forward.1} parent=31 // pred_region
        %s7224 = scalar_lea.vmem [#allocation2], 96
        %v7225 = vld [vmem:[%s7224] sm:$0xff]
        %v7226 = vld [vmem:[%s7224 + $0x8] sm:$0xff]
        %v7227 = vld [vmem:[%s7224 + $0x10] sm:$0xff]
        %v7228 = vld [vmem:[%s7224 + $0x18] sm:$0xff]
        %7229 = vst.msk [vmem:[#allocation2] sm:$0xff] %vm7138, %v7225
        %7230 = vst.msk [vmem:[#allocation2 + $0x8] sm:$0xff] %vm7138, %v7226
        %7231 = vst.msk [vmem:[#allocation2 + $0x10] sm:$0xff] %vm7138, %v7227
        %7232 = vst.msk [vmem:[#allocation2 + $0x18] sm:$0xff] %vm7138, %v7228
        %7233 = vst.msk [vmem:[#allocation2 + $0x20] sm:$0xff] %vm7138, %v7225
        %7234 = vst.msk [vmem:[#allocation2 + $0x28] sm:$0xff] %vm7138, %v7226
        %7235 = vst.msk [vmem:[#allocation2 + $0x30] sm:$0xff] %vm7138, %v7227
        %7236 = vst.msk [vmem:[#allocation2 + $0x38] sm:$0xff] %vm7138, %v7228
        %7237 = vst.msk [vmem:[#allocation2 + $0x40] sm:$0xff] %vm7138, %v7225
        %7238 = vst.msk [vmem:[#allocation2 + $0x48] sm:$0xff] %vm7138, %v7226
        %7239 = vst.msk [vmem:[#allocation2 + $0x50] sm:$0xff] %vm7138, %v7227
        %7240 = vst.msk [vmem:[#allocation2 + $0x58] sm:$0xff] %vm7138, %v7228
        %s7241 = scalar_lea.vmem [#allocation2], 576
        %v7242 = vld [vmem:[%s7241] sm:$0xff]
        %v7243 = vld [vmem:[%s7241 + $0x8] sm:$0xff]
        %v7244 = vld [vmem:[%s7241 + $0x10] sm:$0xff]
        %v7245 = vld [vmem:[%s7241 + $0x18] sm:$0xff]
        %s7246 = scalar_lea.vmem [#allocation2], 608
        %7247 = vst.msk [vmem:[%s7246] sm:$0xff] %vm7138, %v7242
        %7248 = vst.msk [vmem:[%s7246 + $0x8] sm:$0xff] %vm7138, %v7243
        %7249 = vst.msk [vmem:[%s7246 + $0x10] sm:$0xff] %vm7138, %v7244
        %7250 = vst.msk [vmem:[%s7246 + $0x18] sm:$0xff] %vm7138, %v7245
        %7251 = vst.msk [vmem:[%s7246 + $0x20] sm:$0xff] %vm7138, %v7242
        %7252 = vst.msk [vmem:[%s7246 + $0x28] sm:$0xff] %vm7138, %v7243
        %7253 = vst.msk [vmem:[%s7246 + $0x30] sm:$0xff] %vm7138, %v7244
        %7254 = vst.msk [vmem:[%s7246 + $0x38] sm:$0xff] %vm7138, %v7245
        %7255 = vst.msk [vmem:[%s7246 + $0x40] sm:$0xff] %vm7138, %v7242
        %7256 = vst.msk [vmem:[%s7246 + $0x48] sm:$0xff] %vm7138, %v7243
        %7257 = vst.msk [vmem:[%s7246 + $0x50] sm:$0xff] %vm7138, %v7244
        %7258 = vst.msk [vmem:[%s7246 + $0x58] sm:$0xff] %vm7138, %v7245
      $region74: #{dense_block_forward.1} parent=31 // pred_fallthru
        _
      %v7259 = vld [vmem:[%s1 + $0x2] sm:$0x1]
      %v7260 = vld [vmem:[%s2 + $0x2] sm:$0x1]
      %v7261 = vld [vmem:[#allocation2] sm:$0xff]
      %v7262 = vld [vmem:[#allocation2 + $0x8] sm:$0xff]
      %v7263 = vld [vmem:[#allocation2 + $0x10] sm:$0xff]
      %v7264 = vld [vmem:[#allocation2 + $0x18] sm:$0xff]
      %v7265 = vld [vmem:[#allocation2 + $0x20] sm:$0xff]
      %v7266 = vld [vmem:[#allocation2 + $0x28] sm:$0xff]
      %v7267 = vld [vmem:[#allocation2 + $0x30] sm:$0xff]
      %v7268 = vld [vmem:[#allocation2 + $0x38] sm:$0xff]
      %v7269 = vld [vmem:[#allocation2 + $0x40] sm:$0xff]
      %v7270 = vld [vmem:[#allocation2 + $0x48] sm:$0xff]
      %v7271 = vld [vmem:[#allocation2 + $0x50] sm:$0xff]
      %v7272 = vld [vmem:[#allocation2 + $0x58] sm:$0xff]
      %v7273 = vld [vmem:[#allocation2 + $0x60] sm:$0xff]
      %v7274 = vld [vmem:[#allocation2 + $0x68] sm:$0xff]
      %v7275 = vld [vmem:[#allocation2 + $0x70] sm:$0xff]
      %v7276 = vld [vmem:[#allocation2 + $0x78] sm:$0xff]
      %v7277 = vld [vmem:[#allocation2 + $0x80] sm:$0xff]
      %v7278 = vld [vmem:[#allocation2 + $0x88] sm:$0xff]
      %v7279 = vld [vmem:[#allocation2 + $0x90] sm:$0xff]
      %v7280 = vld [vmem:[#allocation2 + $0x98] sm:$0xff]
      %v7281 = vld [vmem:[#allocation2 + $0xa0] sm:$0xff]
      %v7282 = vld [vmem:[#allocation2 + $0xa8] sm:$0xff]
      %v7283 = vld [vmem:[#allocation2 + $0xb0] sm:$0xff]
      %v7284 = vld [vmem:[#allocation2 + $0xb8] sm:$0xff]
      %v7285 = vld [vmem:[#allocation2 + $0xc0] sm:$0xff]
      %v7286 = vld [vmem:[#allocation2 + $0xc8] sm:$0xff]
      %v7287 = vld [vmem:[#allocation2 + $0xd0] sm:$0xff]
      %v7288 = vld [vmem:[#allocation2 + $0xd8] sm:$0xff]
      %v7289 = vld [vmem:[#allocation2 + $0xe0] sm:$0xff]
      %v7290 = vld [vmem:[#allocation2 + $0xe8] sm:$0xff]
      %v7291 = vld [vmem:[#allocation2 + $0xf0] sm:$0xff]
      %v7292 = vld [vmem:[#allocation2 + $0xf8] sm:$0xff]
      %v7293 = vld [vmem:[#allocation2 + $0x100] sm:$0xff]
      %v7294 = vld [vmem:[#allocation2 + $0x108] sm:$0xff]
      %v7295 = vld [vmem:[#allocation2 + $0x110] sm:$0xff]
      %v7296 = vld [vmem:[#allocation2 + $0x118] sm:$0xff]
      %v7297 = vld [vmem:[#allocation2 + $0x120] sm:$0xff]
      %v7298 = vld [vmem:[#allocation2 + $0x128] sm:$0xff]
      %v7299 = vld [vmem:[#allocation2 + $0x130] sm:$0xff]
      %v7300 = vld [vmem:[#allocation2 + $0x138] sm:$0xff]
      %v7301 = vld [vmem:[#allocation2 + $0x140] sm:$0xff]
      %v7302 = vld [vmem:[#allocation2 + $0x148] sm:$0xff]
      %v7303 = vld [vmem:[#allocation2 + $0x150] sm:$0xff]
      %v7304 = vld [vmem:[#allocation2 + $0x158] sm:$0xff]
      %v7305 = vld [vmem:[#allocation2 + $0x160] sm:$0xff]
      %v7306 = vld [vmem:[#allocation2 + $0x168] sm:$0xff]
      %v7307 = vld [vmem:[#allocation2 + $0x170] sm:$0xff]
      %v7308 = vld [vmem:[#allocation2 + $0x178] sm:$0xff]
      %v7309 = vld [vmem:[#allocation2 + $0x180] sm:$0xff]
      %v7310 = vld [vmem:[#allocation2 + $0x188] sm:$0xff]
      %v7311 = vld [vmem:[#allocation2 + $0x190] sm:$0xff]
      %v7312 = vld [vmem:[#allocation2 + $0x198] sm:$0xff]
      %v7313 = vld [vmem:[#allocation2 + $0x1a0] sm:$0xff]
      %v7314 = vld [vmem:[#allocation2 + $0x1a8] sm:$0xff]
      %v7315 = vld [vmem:[#allocation2 + $0x1b0] sm:$0xff]
      %v7316 = vld [vmem:[#allocation2 + $0x1b8] sm:$0xff]
      %v7317 = vld [vmem:[#allocation2 + $0x1c0] sm:$0xff]
      %v7318 = vld [vmem:[#allocation2 + $0x1c8] sm:$0xff]
      %v7319 = vld [vmem:[#allocation2 + $0x1d0] sm:$0xff]
      %v7320 = vld [vmem:[#allocation2 + $0x1d8] sm:$0xff]
      %v7321 = vld [vmem:[#allocation2 + $0x1e0] sm:$0xff]
      %v7322 = vld [vmem:[#allocation2 + $0x1e8] sm:$0xff]
      %v7323 = vld [vmem:[#allocation2 + $0x1f0] sm:$0xff]
      %v7324 = vld [vmem:[#allocation2 + $0x1f8] sm:$0xff]
      %v7325 = vld [vmem:[#allocation2 + $0x200] sm:$0xff]
      %v7326 = vld [vmem:[#allocation2 + $0x208] sm:$0xff]
      %v7327 = vld [vmem:[#allocation2 + $0x210] sm:$0xff]
      %v7328 = vld [vmem:[#allocation2 + $0x218] sm:$0xff]
      %v7329 = vld [vmem:[#allocation2 + $0x220] sm:$0xff]
      %v7330 = vld [vmem:[#allocation2 + $0x228] sm:$0xff]
      %v7331 = vld [vmem:[#allocation2 + $0x230] sm:$0xff]
      %v7332 = vld [vmem:[#allocation2 + $0x238] sm:$0xff]
      %v7333 = vld [vmem:[#allocation2 + $0x240] sm:$0xff]
      %v7334 = vld [vmem:[#allocation2 + $0x248] sm:$0xff]
      %v7335 = vld [vmem:[#allocation2 + $0x250] sm:$0xff]
      %v7336 = vld [vmem:[#allocation2 + $0x258] sm:$0xff]
      %v7337 = vld [vmem:[#allocation2 + $0x260] sm:$0xff]
      %v7338 = vld [vmem:[#allocation2 + $0x268] sm:$0xff]
      %v7339 = vld [vmem:[#allocation2 + $0x270] sm:$0xff]
      %v7340 = vld [vmem:[#allocation2 + $0x278] sm:$0xff]
      %v7341 = vld [vmem:[#allocation2 + $0x280] sm:$0xff]
      %v7342 = vld [vmem:[#allocation2 + $0x288] sm:$0xff]
      %v7343 = vld [vmem:[#allocation2 + $0x290] sm:$0xff]
      %v7344 = vld [vmem:[#allocation2 + $0x298] sm:$0xff]
      %v7345 = vld [vmem:[#allocation2 + $0x2a0] sm:$0xff]
      %v7346 = vld [vmem:[#allocation2 + $0x2a8] sm:$0xff]
      %v7347 = vld [vmem:[#allocation2 + $0x2b0] sm:$0xff]
      %v7348 = vld [vmem:[#allocation2 + $0x2b8] sm:$0xff]
      %v7349 = vlaneseq
      %v7350 = vshrl.u32 %v7349, 7
      %v7351 = vsub.s32 0, %v7350
      %v7352 = vrot.slane %v7259, %v7351
      %v7353 = vmul.f32 %v7261, %v7352
      %v7354 = vmul.f32 %v7262, %v7352
      %v7355 = vmul.f32 %v7263, %v7352
      %v7356 = vmul.f32 %v7264, %v7352
      %v7357 = vmul.f32 %v7265, %v7352
      %v7358 = vmul.f32 %v7266, %v7352
      %v7359 = vmul.f32 %v7267, %v7352
      %v7360 = vmul.f32 %v7268, %v7352
      %v7361 = vmul.f32 %v7269, %v7352
      %v7362 = vmul.f32 %v7270, %v7352
      %v7363 = vmul.f32 %v7271, %v7352
      %v7364 = vmul.f32 %v7272, %v7352
      %v7365 = vmul.f32 %v7273, %v7352
      %v7366 = vmul.f32 %v7274, %v7352
      %v7367 = vmul.f32 %v7275, %v7352
      %v7368 = vmul.f32 %v7276, %v7352
      %v7369 = vmul.f32 %v7277, %v7352
      %v7370 = vmul.f32 %v7278, %v7352
      %v7371 = vmul.f32 %v7279, %v7352
      %v7372 = vmul.f32 %v7280, %v7352
      %v7373 = vmul.f32 %v7281, %v7352
      %v7374 = vmul.f32 %v7282, %v7352
      %v7375 = vmul.f32 %v7283, %v7352
      %v7376 = vmul.f32 %v7284, %v7352
      %v7377 = vmul.f32 %v7285, %v7352
      %v7378 = vmul.f32 %v7286, %v7352
      %v7379 = vmul.f32 %v7287, %v7352
      %v7380 = vmul.f32 %v7288, %v7352
      %v7381 = vmul.f32 %v7289, %v7352
      %v7382 = vmul.f32 %v7290, %v7352
      %v7383 = vmul.f32 %v7291, %v7352
      %v7384 = vmul.f32 %v7292, %v7352
      %v7385 = vmul.f32 %v7293, %v7352
      %v7386 = vmul.f32 %v7294, %v7352
      %v7387 = vmul.f32 %v7295, %v7352
      %v7388 = vmul.f32 %v7296, %v7352
      %v7389 = vmul.f32 %v7297, %v7352
      %v7390 = vmul.f32 %v7298, %v7352
      %v7391 = vmul.f32 %v7299, %v7352
      %v7392 = vmul.f32 %v7300, %v7352
      %v7393 = vmul.f32 %v7301, %v7352
      %v7394 = vmul.f32 %v7302, %v7352
      %v7395 = vmul.f32 %v7303, %v7352
      %v7396 = vmul.f32 %v7304, %v7352
      %v7397 = vmul.f32 %v7305, %v7352
      %v7398 = vmul.f32 %v7306, %v7352
      %v7399 = vmul.f32 %v7307, %v7352
      %v7400 = vmul.f32 %v7308, %v7352
      %v7401 = vmul.f32 %v7309, %v7352
      %v7402 = vmul.f32 %v7310, %v7352
      %v7403 = vmul.f32 %v7311, %v7352
      %v7404 = vmul.f32 %v7312, %v7352
      %v7405 = vmul.f32 %v7313, %v7352
      %v7406 = vmul.f32 %v7314, %v7352
      %v7407 = vmul.f32 %v7315, %v7352
      %v7408 = vmul.f32 %v7316, %v7352
      %v7409 = vmul.f32 %v7317, %v7352
      %v7410 = vmul.f32 %v7318, %v7352
      %v7411 = vmul.f32 %v7319, %v7352
      %v7412 = vmul.f32 %v7320, %v7352
      %v7413 = vmul.f32 %v7321, %v7352
      %v7414 = vmul.f32 %v7322, %v7352
      %v7415 = vmul.f32 %v7323, %v7352
      %v7416 = vmul.f32 %v7324, %v7352
      %v7417 = vmul.f32 %v7325, %v7352
      %v7418 = vmul.f32 %v7326, %v7352
      %v7419 = vmul.f32 %v7327, %v7352
      %v7420 = vmul.f32 %v7328, %v7352
      %v7421 = vmul.f32 %v7329, %v7352
      %v7422 = vmul.f32 %v7330, %v7352
      %v7423 = vmul.f32 %v7331, %v7352
      %v7424 = vmul.f32 %v7332, %v7352
      %v7425 = vmul.f32 %v7333, %v7352
      %v7426 = vmul.f32 %v7334, %v7352
      %v7427 = vmul.f32 %v7335, %v7352
      %v7428 = vmul.f32 %v7336, %v7352
      %v7429 = vmul.f32 %v7337, %v7352
      %v7430 = vmul.f32 %v7338, %v7352
      %v7431 = vmul.f32 %v7339, %v7352
      %v7432 = vmul.f32 %v7340, %v7352
      %v7433 = vmul.f32 %v7341, %v7352
      %v7434 = vmul.f32 %v7342, %v7352
      %v7435 = vmul.f32 %v7343, %v7352
      %v7436 = vmul.f32 %v7344, %v7352
      %v7437 = vmul.f32 %v7345, %v7352
      %v7438 = vmul.f32 %v7346, %v7352
      %v7439 = vmul.f32 %v7347, %v7352
      %v7440 = vmul.f32 %v7348, %v7352
      %v7441 = vlaneseq
      %v7442 = vshrl.u32 %v7441, 7
      %v7443 = vsub.s32 0, %v7442
      %v7444 = vrot.slane %v7260, %v7443
      %v7445 = vadd.f32 %v7353, %v7444
      %v7446 = vadd.f32 %v7354, %v7444
      %v7447 = vadd.f32 %v7355, %v7444
      %v7448 = vadd.f32 %v7356, %v7444
      %v7449 = vadd.f32 %v7357, %v7444
      %v7450 = vadd.f32 %v7358, %v7444
      %v7451 = vadd.f32 %v7359, %v7444
      %v7452 = vadd.f32 %v7360, %v7444
      %v7453 = vadd.f32 %v7361, %v7444
      %v7454 = vadd.f32 %v7362, %v7444
      %v7455 = vadd.f32 %v7363, %v7444
      %v7456 = vadd.f32 %v7364, %v7444
      %v7457 = vadd.f32 %v7365, %v7444
      %v7458 = vadd.f32 %v7366, %v7444
      %v7459 = vadd.f32 %v7367, %v7444
      %v7460 = vadd.f32 %v7368, %v7444
      %v7461 = vadd.f32 %v7369, %v7444
      %v7462 = vadd.f32 %v7370, %v7444
      %v7463 = vadd.f32 %v7371, %v7444
      %v7464 = vadd.f32 %v7372, %v7444
      %v7465 = vadd.f32 %v7373, %v7444
      %v7466 = vadd.f32 %v7374, %v7444
      %v7467 = vadd.f32 %v7375, %v7444
      %v7468 = vadd.f32 %v7376, %v7444
      %v7469 = vadd.f32 %v7377, %v7444
      %v7470 = vadd.f32 %v7378, %v7444
      %v7471 = vadd.f32 %v7379, %v7444
      %v7472 = vadd.f32 %v7380, %v7444
      %v7473 = vadd.f32 %v7381, %v7444
      %v7474 = vadd.f32 %v7382, %v7444
      %v7475 = vadd.f32 %v7383, %v7444
      %v7476 = vadd.f32 %v7384, %v7444
      %v7477 = vadd.f32 %v7385, %v7444
      %v7478 = vadd.f32 %v7386, %v7444
      %v7479 = vadd.f32 %v7387, %v7444
      %v7480 = vadd.f32 %v7388, %v7444
      %v7481 = vadd.f32 %v7389, %v7444
      %v7482 = vadd.f32 %v7390, %v7444
      %v7483 = vadd.f32 %v7391, %v7444
      %v7484 = vadd.f32 %v7392, %v7444
      %v7485 = vadd.f32 %v7393, %v7444
      %v7486 = vadd.f32 %v7394, %v7444
      %v7487 = vadd.f32 %v7395, %v7444
      %v7488 = vadd.f32 %v7396, %v7444
      %v7489 = vadd.f32 %v7397, %v7444
      %v7490 = vadd.f32 %v7398, %v7444
      %v7491 = vadd.f32 %v7399, %v7444
      %v7492 = vadd.f32 %v7400, %v7444
      %v7493 = vadd.f32 %v7401, %v7444
      %v7494 = vadd.f32 %v7402, %v7444
      %v7495 = vadd.f32 %v7403, %v7444
      %v7496 = vadd.f32 %v7404, %v7444
      %v7497 = vadd.f32 %v7405, %v7444
      %v7498 = vadd.f32 %v7406, %v7444
      %v7499 = vadd.f32 %v7407, %v7444
      %v7500 = vadd.f32 %v7408, %v7444
      %v7501 = vadd.f32 %v7409, %v7444
      %v7502 = vadd.f32 %v7410, %v7444
      %v7503 = vadd.f32 %v7411, %v7444
      %v7504 = vadd.f32 %v7412, %v7444
      %v7505 = vadd.f32 %v7413, %v7444
      %v7506 = vadd.f32 %v7414, %v7444
      %v7507 = vadd.f32 %v7415, %v7444
      %v7508 = vadd.f32 %v7416, %v7444
      %v7509 = vadd.f32 %v7417, %v7444
      %v7510 = vadd.f32 %v7418, %v7444
      %v7511 = vadd.f32 %v7419, %v7444
      %v7512 = vadd.f32 %v7420, %v7444
      %v7513 = vadd.f32 %v7421, %v7444
      %v7514 = vadd.f32 %v7422, %v7444
      %v7515 = vadd.f32 %v7423, %v7444
      %v7516 = vadd.f32 %v7424, %v7444
      %v7517 = vadd.f32 %v7425, %v7444
      %v7518 = vadd.f32 %v7426, %v7444
      %v7519 = vadd.f32 %v7427, %v7444
      %v7520 = vadd.f32 %v7428, %v7444
      %v7521 = vadd.f32 %v7429, %v7444
      %v7522 = vadd.f32 %v7430, %v7444
      %v7523 = vadd.f32 %v7431, %v7444
      %v7524 = vadd.f32 %v7432, %v7444
      %v7525 = vadd.f32 %v7433, %v7444
      %v7526 = vadd.f32 %v7434, %v7444
      %v7527 = vadd.f32 %v7435, %v7444
      %v7528 = vadd.f32 %v7436, %v7444
      %v7529 = vadd.f32 %v7437, %v7444
      %v7530 = vadd.f32 %v7438, %v7444
      %v7531 = vadd.f32 %v7439, %v7444
      %v7532 = vadd.f32 %v7440, %v7444
      %v7533 = vmax.f32 %v7445, 0.0
      %v7534 = vmax.f32 %v7446, 0.0
      %v7535 = vmax.f32 %v7447, 0.0
      %v7536 = vmax.f32 %v7448, 0.0
      %v7537 = vmax.f32 %v7449, 0.0
      %v7538 = vmax.f32 %v7450, 0.0
      %v7539 = vmax.f32 %v7451, 0.0
      %v7540 = vmax.f32 %v7452, 0.0
      %v7541 = vmax.f32 %v7453, 0.0
      %v7542 = vmax.f32 %v7454, 0.0
      %v7543 = vmax.f32 %v7455, 0.0
      %v7544 = vmax.f32 %v7456, 0.0
      %v7545 = vmax.f32 %v7457, 0.0
      %v7546 = vmax.f32 %v7458, 0.0
      %v7547 = vmax.f32 %v7459, 0.0
      %v7548 = vmax.f32 %v7460, 0.0
      %v7549 = vmax.f32 %v7461, 0.0
      %v7550 = vmax.f32 %v7462, 0.0
      %v7551 = vmax.f32 %v7463, 0.0
      %v7552 = vmax.f32 %v7464, 0.0
      %v7553 = vmax.f32 %v7465, 0.0
      %v7554 = vmax.f32 %v7466, 0.0
      %v7555 = vmax.f32 %v7467, 0.0
      %v7556 = vmax.f32 %v7468, 0.0
      %v7557 = vmax.f32 %v7469, 0.0
      %v7558 = vmax.f32 %v7470, 0.0
      %v7559 = vmax.f32 %v7471, 0.0
      %v7560 = vmax.f32 %v7472, 0.0
      %v7561 = vmax.f32 %v7473, 0.0
      %v7562 = vmax.f32 %v7474, 0.0
      %v7563 = vmax.f32 %v7475, 0.0
      %v7564 = vmax.f32 %v7476, 0.0
      %v7565 = vmax.f32 %v7477, 0.0
      %v7566 = vmax.f32 %v7478, 0.0
      %v7567 = vmax.f32 %v7479, 0.0
      %v7568 = vmax.f32 %v7480, 0.0
      %v7569 = vmax.f32 %v7481, 0.0
      %v7570 = vmax.f32 %v7482, 0.0
      %v7571 = vmax.f32 %v7483, 0.0
      %v7572 = vmax.f32 %v7484, 0.0
      %v7573 = vmax.f32 %v7485, 0.0
      %v7574 = vmax.f32 %v7486, 0.0
      %v7575 = vmax.f32 %v7487, 0.0
      %v7576 = vmax.f32 %v7488, 0.0
      %v7577 = vmax.f32 %v7489, 0.0
      %v7578 = vmax.f32 %v7490, 0.0
      %v7579 = vmax.f32 %v7491, 0.0
      %v7580 = vmax.f32 %v7492, 0.0
      %v7581 = vmax.f32 %v7493, 0.0
      %v7582 = vmax.f32 %v7494, 0.0
      %v7583 = vmax.f32 %v7495, 0.0
      %v7584 = vmax.f32 %v7496, 0.0
      %v7585 = vmax.f32 %v7497, 0.0
      %v7586 = vmax.f32 %v7498, 0.0
      %v7587 = vmax.f32 %v7499, 0.0
      %v7588 = vmax.f32 %v7500, 0.0
      %v7589 = vmax.f32 %v7501, 0.0
      %v7590 = vmax.f32 %v7502, 0.0
      %v7591 = vmax.f32 %v7503, 0.0
      %v7592 = vmax.f32 %v7504, 0.0
      %v7593 = vmax.f32 %v7505, 0.0
      %v7594 = vmax.f32 %v7506, 0.0
      %v7595 = vmax.f32 %v7507, 0.0
      %v7596 = vmax.f32 %v7508, 0.0
      %v7597 = vmax.f32 %v7509, 0.0
      %v7598 = vmax.f32 %v7510, 0.0
      %v7599 = vmax.f32 %v7511, 0.0
      %v7600 = vmax.f32 %v7512, 0.0
      %v7601 = vmax.f32 %v7513, 0.0
      %v7602 = vmax.f32 %v7514, 0.0
      %v7603 = vmax.f32 %v7515, 0.0
      %v7604 = vmax.f32 %v7516, 0.0
      %v7605 = vmax.f32 %v7517, 0.0
      %v7606 = vmax.f32 %v7518, 0.0
      %v7607 = vmax.f32 %v7519, 0.0
      %v7608 = vmax.f32 %v7520, 0.0
      %v7609 = vmax.f32 %v7521, 0.0
      %v7610 = vmax.f32 %v7522, 0.0
      %v7611 = vmax.f32 %v7523, 0.0
      %v7612 = vmax.f32 %v7524, 0.0
      %v7613 = vmax.f32 %v7525, 0.0
      %v7614 = vmax.f32 %v7526, 0.0
      %v7615 = vmax.f32 %v7527, 0.0
      %v7616 = vmax.f32 %v7528, 0.0
      %v7617 = vmax.f32 %v7529, 0.0
      %v7618 = vmax.f32 %v7530, 0.0
      %v7619 = vmax.f32 %v7531, 0.0
      %v7620 = vmax.f32 %v7532, 0.0
      %v7621 = vpack.c.bf16 %v7534, %v7533
      %v7622 = vpack.c.bf16 %v7536, %v7535
      %v7623 = vpack.c.bf16 %v7538, %v7537
      %v7624 = vpack.c.bf16 %v7540, %v7539
      %v7625 = vpack.c.bf16 %v7542, %v7541
      %v7626 = vpack.c.bf16 %v7544, %v7543
      %v7627 = vpack.c.bf16 %v7546, %v7545
      %v7628 = vpack.c.bf16 %v7548, %v7547
      %v7629 = vpack.c.bf16 %v7550, %v7549
      %v7630 = vpack.c.bf16 %v7552, %v7551
      %v7631 = vpack.c.bf16 %v7554, %v7553
      %v7632 = vpack.c.bf16 %v7556, %v7555
      %v7633 = vpack.c.bf16 %v7558, %v7557
      %v7634 = vpack.c.bf16 %v7560, %v7559
      %v7635 = vpack.c.bf16 %v7562, %v7561
      %v7636 = vpack.c.bf16 %v7564, %v7563
      %v7637 = vpack.c.bf16 %v7566, %v7565
      %v7638 = vpack.c.bf16 %v7568, %v7567
      %v7639 = vpack.c.bf16 %v7570, %v7569
      %v7640 = vpack.c.bf16 %v7572, %v7571
      %v7641 = vpack.c.bf16 %v7574, %v7573
      %v7642 = vpack.c.bf16 %v7576, %v7575
      %v7643 = vpack.c.bf16 %v7578, %v7577
      %v7644 = vpack.c.bf16 %v7580, %v7579
      %v7645 = vpack.c.bf16 %v7582, %v7581
      %v7646 = vpack.c.bf16 %v7584, %v7583
      %v7647 = vpack.c.bf16 %v7586, %v7585
      %v7648 = vpack.c.bf16 %v7588, %v7587
      %v7649 = vpack.c.bf16 %v7590, %v7589
      %v7650 = vpack.c.bf16 %v7592, %v7591
      %v7651 = vpack.c.bf16 %v7594, %v7593
      %v7652 = vpack.c.bf16 %v7596, %v7595
      %v7653 = vpack.c.bf16 %v7598, %v7597
      %v7654 = vpack.c.bf16 %v7600, %v7599
      %v7655 = vpack.c.bf16 %v7602, %v7601
      %v7656 = vpack.c.bf16 %v7604, %v7603
      %v7657 = vpack.c.bf16 %v7606, %v7605
      %v7658 = vpack.c.bf16 %v7608, %v7607
      %v7659 = vpack.c.bf16 %v7610, %v7609
      %v7660 = vpack.c.bf16 %v7612, %v7611
      %v7661 = vpack.c.bf16 %v7614, %v7613
      %v7662 = vpack.c.bf16 %v7616, %v7615
      %v7663 = vpack.c.bf16 %v7618, %v7617
      %v7664 = vpack.c.bf16 %v7620, %v7619
      %v7666 = vshrl.u32 %v7621, 16
      %v7668 = vrot.slane %v7666, 3
      %v7669 = vshll.u32 %v7621, 16
      %v7671 = vrot.slane %v7669, 4
      %v7672 = vor.u32 %v7668, %v7671
      %v7674 = vshrl.u32 %v7622, 16
      %v7676 = vrot.slane %v7674, 3
      %v7677 = vshll.u32 %v7622, 16
      %v7679 = vrot.slane %v7677, 4
      %v7680 = vor.u32 %v7676, %v7679
      %v7681 = vsel %vm809, %v7672, %v7680
      %v7683 = vshrl.u32 %v7623, 16
      %v7685 = vrot.slane %v7683, 3
      %v7686 = vshll.u32 %v7623, 16
      %v7688 = vrot.slane %v7686, 4
      %v7689 = vor.u32 %v7685, %v7688
      %v7691 = vshrl.u32 %v7624, 16
      %v7693 = vrot.slane %v7691, 3
      %v7694 = vshll.u32 %v7624, 16
      %v7696 = vrot.slane %v7694, 4
      %v7697 = vor.u32 %v7693, %v7696
      %v7698 = vsel %vm809, %v7689, %v7697
      %v7700 = vshrl.u32 %v7625, 16
      %v7702 = vrot.slane %v7700, 3
      %v7703 = vshll.u32 %v7625, 16
      %v7705 = vrot.slane %v7703, 4
      %v7706 = vor.u32 %v7702, %v7705
      %v7708 = vshrl.u32 %v7626, 16
      %v7710 = vrot.slane %v7708, 3
      %v7711 = vshll.u32 %v7626, 16
      %v7713 = vrot.slane %v7711, 4
      %v7714 = vor.u32 %v7710, %v7713
      %v7715 = vsel %vm809, %v7706, %v7714
      %v7717 = vshrl.u32 %v7627, 16
      %v7719 = vrot.slane %v7717, 3
      %v7720 = vshll.u32 %v7627, 16
      %v7722 = vrot.slane %v7720, 4
      %v7723 = vor.u32 %v7719, %v7722
      %v7725 = vshrl.u32 %v7628, 16
      %v7727 = vrot.slane %v7725, 3
      %v7728 = vshll.u32 %v7628, 16
      %v7730 = vrot.slane %v7728, 4
      %v7731 = vor.u32 %v7727, %v7730
      %v7732 = vsel %vm809, %v7723, %v7731
      %v7734 = vshrl.u32 %v7629, 16
      %v7736 = vrot.slane %v7734, 3
      %v7737 = vshll.u32 %v7629, 16
      %v7739 = vrot.slane %v7737, 4
      %v7740 = vor.u32 %v7736, %v7739
      %v7742 = vshrl.u32 %v7630, 16
      %v7744 = vrot.slane %v7742, 3
      %v7745 = vshll.u32 %v7630, 16
      %v7747 = vrot.slane %v7745, 4
      %v7748 = vor.u32 %v7744, %v7747
      %v7749 = vsel %vm809, %v7740, %v7748
      %v7751 = vshrl.u32 %v7631, 16
      %v7753 = vrot.slane %v7751, 3
      %v7754 = vshll.u32 %v7631, 16
      %v7756 = vrot.slane %v7754, 4
      %v7757 = vor.u32 %v7753, %v7756
      %v7759 = vshrl.u32 %v7632, 16
      %v7761 = vrot.slane %v7759, 3
      %v7762 = vshll.u32 %v7632, 16
      %v7764 = vrot.slane %v7762, 4
      %v7765 = vor.u32 %v7761, %v7764
      %v7766 = vsel %vm809, %v7757, %v7765
      %v7768 = vshrl.u32 %v7633, 16
      %v7770 = vrot.slane %v7768, 3
      %v7771 = vshll.u32 %v7633, 16
      %v7773 = vrot.slane %v7771, 4
      %v7774 = vor.u32 %v7770, %v7773
      %v7776 = vshrl.u32 %v7634, 16
      %v7778 = vrot.slane %v7776, 3
      %v7779 = vshll.u32 %v7634, 16
      %v7781 = vrot.slane %v7779, 4
      %v7782 = vor.u32 %v7778, %v7781
      %v7783 = vsel %vm809, %v7774, %v7782
      %v7785 = vshrl.u32 %v7635, 16
      %v7787 = vrot.slane %v7785, 3
      %v7788 = vshll.u32 %v7635, 16
      %v7790 = vrot.slane %v7788, 4
      %v7791 = vor.u32 %v7787, %v7790
      %v7793 = vshrl.u32 %v7636, 16
      %v7795 = vrot.slane %v7793, 3
      %v7796 = vshll.u32 %v7636, 16
      %v7798 = vrot.slane %v7796, 4
      %v7799 = vor.u32 %v7795, %v7798
      %v7800 = vsel %vm809, %v7791, %v7799
      %v7802 = vshrl.u32 %v7637, 16
      %v7804 = vrot.slane %v7802, 3
      %v7805 = vshll.u32 %v7637, 16
      %v7807 = vrot.slane %v7805, 4
      %v7808 = vor.u32 %v7804, %v7807
      %v7810 = vshrl.u32 %v7638, 16
      %v7812 = vrot.slane %v7810, 3
      %v7813 = vshll.u32 %v7638, 16
      %v7815 = vrot.slane %v7813, 4
      %v7816 = vor.u32 %v7812, %v7815
      %v7817 = vsel %vm809, %v7808, %v7816
      %v7819 = vshrl.u32 %v7639, 16
      %v7821 = vrot.slane %v7819, 3
      %v7822 = vshll.u32 %v7639, 16
      %v7824 = vrot.slane %v7822, 4
      %v7825 = vor.u32 %v7821, %v7824
      %v7827 = vshrl.u32 %v7640, 16
      %v7829 = vrot.slane %v7827, 3
      %v7830 = vshll.u32 %v7640, 16
      %v7832 = vrot.slane %v7830, 4
      %v7833 = vor.u32 %v7829, %v7832
      %v7834 = vsel %vm809, %v7825, %v7833
      %v7836 = vshrl.u32 %v7641, 16
      %v7838 = vrot.slane %v7836, 3
      %v7839 = vshll.u32 %v7641, 16
      %v7841 = vrot.slane %v7839, 4
      %v7842 = vor.u32 %v7838, %v7841
      %v7844 = vshrl.u32 %v7642, 16
      %v7846 = vrot.slane %v7844, 3
      %v7847 = vshll.u32 %v7642, 16
      %v7849 = vrot.slane %v7847, 4
      %v7850 = vor.u32 %v7846, %v7849
      %v7851 = vsel %vm809, %v7842, %v7850
      %v7853 = vshrl.u32 %v7643, 16
      %v7855 = vrot.slane %v7853, 3
      %v7856 = vshll.u32 %v7643, 16
      %v7858 = vrot.slane %v7856, 4
      %v7859 = vor.u32 %v7855, %v7858
      %v7861 = vshrl.u32 %v7644, 16
      %v7863 = vrot.slane %v7861, 3
      %v7864 = vshll.u32 %v7644, 16
      %v7866 = vrot.slane %v7864, 4
      %v7867 = vor.u32 %v7863, %v7866
      %v7868 = vsel %vm809, %v7859, %v7867
      %v7870 = vshrl.u32 %v7645, 16
      %v7872 = vrot.slane %v7870, 3
      %v7873 = vshll.u32 %v7645, 16
      %v7875 = vrot.slane %v7873, 4
      %v7876 = vor.u32 %v7872, %v7875
      %v7878 = vshrl.u32 %v7646, 16
      %v7880 = vrot.slane %v7878, 3
      %v7881 = vshll.u32 %v7646, 16
      %v7883 = vrot.slane %v7881, 4
      %v7884 = vor.u32 %v7880, %v7883
      %v7885 = vsel %vm809, %v7876, %v7884
      %v7887 = vshrl.u32 %v7647, 16
      %v7889 = vrot.slane %v7887, 3
      %v7890 = vshll.u32 %v7647, 16
      %v7892 = vrot.slane %v7890, 4
      %v7893 = vor.u32 %v7889, %v7892
      %v7895 = vshrl.u32 %v7648, 16
      %v7897 = vrot.slane %v7895, 3
      %v7898 = vshll.u32 %v7648, 16
      %v7900 = vrot.slane %v7898, 4
      %v7901 = vor.u32 %v7897, %v7900
      %v7902 = vsel %vm809, %v7893, %v7901
      %v7904 = vshrl.u32 %v7649, 16
      %v7906 = vrot.slane %v7904, 3
      %v7907 = vshll.u32 %v7649, 16
      %v7909 = vrot.slane %v7907, 4
      %v7910 = vor.u32 %v7906, %v7909
      %v7912 = vshrl.u32 %v7650, 16
      %v7914 = vrot.slane %v7912, 3
      %v7915 = vshll.u32 %v7650, 16
      %v7917 = vrot.slane %v7915, 4
      %v7918 = vor.u32 %v7914, %v7917
      %v7919 = vsel %vm809, %v7910, %v7918
      %v7921 = vshrl.u32 %v7651, 16
      %v7923 = vrot.slane %v7921, 3
      %v7924 = vshll.u32 %v7651, 16
      %v7926 = vrot.slane %v7924, 4
      %v7927 = vor.u32 %v7923, %v7926
      %v7929 = vshrl.u32 %v7652, 16
      %v7931 = vrot.slane %v7929, 3
      %v7932 = vshll.u32 %v7652, 16
      %v7934 = vrot.slane %v7932, 4
      %v7935 = vor.u32 %v7931, %v7934
      %v7936 = vsel %vm809, %v7927, %v7935
      %v7938 = vshrl.u32 %v7653, 16
      %v7940 = vrot.slane %v7938, 3
      %v7941 = vshll.u32 %v7653, 16
      %v7943 = vrot.slane %v7941, 4
      %v7944 = vor.u32 %v7940, %v7943
      %v7946 = vshrl.u32 %v7654, 16
      %v7948 = vrot.slane %v7946, 3
      %v7949 = vshll.u32 %v7654, 16
      %v7951 = vrot.slane %v7949, 4
      %v7952 = vor.u32 %v7948, %v7951
      %v7953 = vsel %vm809, %v7944, %v7952
      %v7955 = vshrl.u32 %v7655, 16
      %v7957 = vrot.slane %v7955, 3
      %v7958 = vshll.u32 %v7655, 16
      %v7960 = vrot.slane %v7958, 4
      %v7961 = vor.u32 %v7957, %v7960
      %v7963 = vshrl.u32 %v7656, 16
      %v7965 = vrot.slane %v7963, 3
      %v7966 = vshll.u32 %v7656, 16
      %v7968 = vrot.slane %v7966, 4
      %v7969 = vor.u32 %v7965, %v7968
      %v7970 = vsel %vm809, %v7961, %v7969
      %v7972 = vshrl.u32 %v7657, 16
      %v7974 = vrot.slane %v7972, 3
      %v7975 = vshll.u32 %v7657, 16
      %v7977 = vrot.slane %v7975, 4
      %v7978 = vor.u32 %v7974, %v7977
      %v7980 = vshrl.u32 %v7658, 16
      %v7982 = vrot.slane %v7980, 3
      %v7983 = vshll.u32 %v7658, 16
      %v7985 = vrot.slane %v7983, 4
      %v7986 = vor.u32 %v7982, %v7985
      %v7987 = vsel %vm809, %v7978, %v7986
      %v7989 = vshrl.u32 %v7659, 16
      %v7991 = vrot.slane %v7989, 3
      %v7992 = vshll.u32 %v7659, 16
      %v7994 = vrot.slane %v7992, 4
      %v7995 = vor.u32 %v7991, %v7994
      %v7997 = vshrl.u32 %v7660, 16
      %v7999 = vrot.slane %v7997, 3
      %v8000 = vshll.u32 %v7660, 16
      %v8002 = vrot.slane %v8000, 4
      %v8003 = vor.u32 %v7999, %v8002
      %v8004 = vsel %vm809, %v7995, %v8003
      %s8025 = scalar_lea.vmem %s3, 36
      %v8026 = vld [vmem:[%s8025] sm:$0x3]
      %v8067 = vrot.slane %v7621, 4
      %v8068 = vrot.slane %v7622, 4
      %v8069 = vsel %vm1211, %v8067, %v8068
      %v8070 = vrot.slane %v7623, 4
      %v8071 = vrot.slane %v7624, 4
      %v8072 = vsel %vm1211, %v8070, %v8071
      %v8073 = vrot.slane %v7625, 4
      %v8074 = vrot.slane %v7626, 4
      %v8075 = vsel %vm1211, %v8073, %v8074
      %v8076 = vrot.slane %v7627, 4
      %v8077 = vrot.slane %v7628, 4
      %v8078 = vsel %vm1211, %v8076, %v8077
      %v8079 = vrot.slane %v7629, 4
      %v8080 = vrot.slane %v7630, 4
      %v8081 = vsel %vm1211, %v8079, %v8080
      %v8082 = vrot.slane %v7631, 4
      %v8083 = vrot.slane %v7632, 4
      %v8084 = vsel %vm1211, %v8082, %v8083
      %v8085 = vrot.slane %v7633, 4
      %v8086 = vrot.slane %v7634, 4
      %v8087 = vsel %vm1211, %v8085, %v8086
      %v8088 = vrot.slane %v7635, 4
      %v8089 = vrot.slane %v7636, 4
      %v8090 = vsel %vm1211, %v8088, %v8089
      %v8091 = vrot.slane %v7637, 4
      %v8092 = vrot.slane %v7638, 4
      %v8093 = vsel %vm1211, %v8091, %v8092
      %v8094 = vrot.slane %v7639, 4
      %v8095 = vrot.slane %v7640, 4
      %v8096 = vsel %vm1211, %v8094, %v8095
      %v8097 = vrot.slane %v7641, 4
      %v8098 = vrot.slane %v7642, 4
      %v8099 = vsel %vm1211, %v8097, %v8098
      %v8100 = vrot.slane %v7643, 4
      %v8101 = vrot.slane %v7644, 4
      %v8102 = vsel %vm1211, %v8100, %v8101
      %v8103 = vrot.slane %v7645, 4
      %v8104 = vrot.slane %v7646, 4
      %v8105 = vsel %vm1211, %v8103, %v8104
      %v8106 = vrot.slane %v7647, 4
      %v8107 = vrot.slane %v7648, 4
      %v8108 = vsel %vm1211, %v8106, %v8107
      %v8109 = vrot.slane %v7649, 4
      %v8110 = vrot.slane %v7650, 4
      %v8111 = vsel %vm1211, %v8109, %v8110
      %v8112 = vrot.slane %v7651, 4
      %v8113 = vrot.slane %v7652, 4
      %v8114 = vsel %vm1211, %v8112, %v8113
      %v8115 = vrot.slane %v7653, 4
      %v8116 = vrot.slane %v7654, 4
      %v8117 = vsel %vm1211, %v8115, %v8116
      %v8118 = vrot.slane %v7655, 4
      %v8119 = vrot.slane %v7656, 4
      %v8120 = vsel %vm1211, %v8118, %v8119
      %v8121 = vrot.slane %v7657, 4
      %v8122 = vrot.slane %v7658, 4
      %v8123 = vsel %vm1211, %v8121, %v8122
      %v8124 = vrot.slane %v7659, 4
      %v8125 = vrot.slane %v7660, 4
      %v8126 = vsel %vm1211, %v8124, %v8125
      %s8147 = scalar_lea.vmem %s3, 38
      %v8148 = vld [vmem:[%s8147] sm:$0x3]
      %8149 = vmatprep.subr.bf16.mxu0 0
      %8150 = vmatpush1.bf16.xpose.msra.mxu0 %v8148
      %8151 = vmatprep.subr.bf16.mxu0 0
      %8152 = vmatpush1.bf16.xpose.msra.mxu0 0
      %8153 = vmatprep.subr.bf16.mxu0 0
      %8154 = vmatpush1.bf16.xpose.msra.mxu0 0
      %8155 = vmatprep.subr.bf16.mxu0 0
      %8156 = vmatpush1.bf16.xpose.msra.mxu0 0
      %8157 = vmatprep.subr.bf16.mxu0 0
      %8158 = vmatpush1.bf16.xpose.msra.mxu0 0
      %8159 = vmatprep.subr.bf16.mxu0 0
      %8160 = vmatpush1.bf16.xpose.msra.mxu0 0
      %8161 = vmatprep.subr.bf16.mxu0 0
      %8162 = vmatpush1.bf16.xpose.msra.mxu0 0
      %8163 = vmatprep.subr.bf16.mxu0 0
      %8164 = vmatpush1.bf16.xpose.msra.mxu0 0
      %8165 = vmatprep.subr.bf16.mxu0 0
      %8166 = vmatpush1.bf16.xpose.msra.mxu0 0
      %8167 = vmatprep.subr.bf16.mxu0 0
      %8168 = vmatpush1.bf16.xpose.msra.mxu0 0
      %8169 = vmatprep.subr.bf16.mxu0 0
      %8170 = vmatpush1.bf16.xpose.msra.mxu0 0
      %8171 = vmatprep.subr.bf16.mxu0 0
      %8172 = vmatpush1.bf16.xpose.msra.mxu0 0
      %8173 = vmatprep.subr.bf16.mxu0 0
      %8174 = vmatpush1.bf16.xpose.msra.mxu0 0
      %8175 = vmatprep.subr.bf16.mxu0 0
      %8176 = vmatpush1.bf16.xpose.msra.mxu0 0
      %8177 = vmatprep.subr.bf16.mxu0 0
      %8178 = vmatpush1.bf16.xpose.msra.mxu0 0
      %8179 = vmatprep.subr.bf16.mxu0 0
      %8180 = vmatpush1.bf16.xpose.msra.mxu0 0
      %8181 = vmatprep.mubr.bf16.mxu0 0
      %8182 = vmatmul.mubr.bf16.gmra.mrb[0].mxu0 %v8069
      %v8183 = vpop.f32.mrb[0].mxu0
      %v8184 = vadd.f32 0.0, %v8183
      %v8185 = vpop.f32.mrb[0].mxu0
      %v8186 = vpop.f32.mrb[0].mxu0
      %v8187 = vadd.f32 0.0, %v8186
      %v8188 = vpop.f32.mrb[0].mxu0
      %8189 = vmatprep.mubr.bf16.mxu0 0
      %8190 = vmatmul.mubr.bf16.gmra.mrb[0].mxu0 %v8072
      %v8191 = vpop.f32.mrb[0].mxu0
      %v8192 = vadd.f32 0.0, %v8191
      %v8193 = vpop.f32.mrb[0].mxu0
      %v8194 = vpop.f32.mrb[0].mxu0
      %v8195 = vadd.f32 0.0, %v8194
      %v8196 = vpop.f32.mrb[0].mxu0
      %8197 = vmatprep.mubr.bf16.mxu0 0
      %8198 = vmatmul.mubr.bf16.gmra.mrb[0].mxu0 %v8075
      %v8199 = vpop.f32.mrb[0].mxu0
      %v8200 = vadd.f32 0.0, %v8199
      %v8201 = vpop.f32.mrb[0].mxu0
      %v8202 = vpop.f32.mrb[0].mxu0
      %v8203 = vadd.f32 0.0, %v8202
      %v8204 = vpop.f32.mrb[0].mxu0
      %8205 = vmatprep.mubr.bf16.mxu0 0
      %8206 = vmatmul.mubr.bf16.gmra.mrb[0].mxu0 %v8078
      %v8207 = vpop.f32.mrb[0].mxu0
      %v8208 = vadd.f32 0.0, %v8207
      %v8209 = vpop.f32.mrb[0].mxu0
      %v8210 = vpop.f32.mrb[0].mxu0
      %v8211 = vadd.f32 0.0, %v8210
      %v8212 = vpop.f32.mrb[0].mxu0
      %8213 = vmatprep.mubr.bf16.mxu0 0
      %8214 = vmatmul.mubr.bf16.gmra.mrb[0].mxu0 %v8081
      %v8215 = vpop.f32.mrb[0].mxu0
      %v8216 = vadd.f32 0.0, %v8215
      %v8217 = vpop.f32.mrb[0].mxu0
      %v8218 = vpop.f32.mrb[0].mxu0
      %v8219 = vadd.f32 0.0, %v8218
      %v8220 = vpop.f32.mrb[0].mxu0
      %8221 = vmatprep.mubr.bf16.mxu0 0
      %8222 = vmatmul.mubr.bf16.gmra.mrb[0].mxu0 %v8084
      %v8223 = vpop.f32.mrb[0].mxu0
      %v8224 = vadd.f32 0.0, %v8223
      %v8225 = vpop.f32.mrb[0].mxu0
      %v8226 = vpop.f32.mrb[0].mxu0
      %v8227 = vadd.f32 0.0, %v8226
      %v8228 = vpop.f32.mrb[0].mxu0
      %8229 = vmatprep.mubr.bf16.mxu0 0
      %8230 = vmatmul.mubr.bf16.gmra.mrb[0].mxu0 %v8087
      %v8231 = vpop.f32.mrb[0].mxu0
      %v8232 = vadd.f32 0.0, %v8231
      %v8233 = vpop.f32.mrb[0].mxu0
      %v8234 = vpop.f32.mrb[0].mxu0
      %v8235 = vadd.f32 0.0, %v8234
      %v8236 = vpop.f32.mrb[0].mxu0
      %8237 = vmatprep.mubr.bf16.mxu0 0
      %8238 = vmatmul.mubr.bf16.gmra.mrb[0].mxu0 %v8090
      %v8239 = vpop.f32.mrb[0].mxu0
      %v8240 = vadd.f32 0.0, %v8239
      %v8241 = vpop.f32.mrb[0].mxu0
      %v8242 = vpop.f32.mrb[0].mxu0
      %v8243 = vadd.f32 0.0, %v8242
      %v8244 = vpop.f32.mrb[0].mxu0
      %8245 = vmatprep.mubr.bf16.mxu0 0
      %8246 = vmatmul.mubr.bf16.gmra.mrb[0].mxu0 %v8093
      %v8247 = vpop.f32.mrb[0].mxu0
      %v8248 = vadd.f32 0.0, %v8247
      %v8249 = vpop.f32.mrb[0].mxu0
      %v8250 = vpop.f32.mrb[0].mxu0
      %v8251 = vadd.f32 0.0, %v8250
      %v8252 = vpop.f32.mrb[0].mxu0
      %8253 = vmatprep.mubr.bf16.mxu0 0
      %8254 = vmatmul.mubr.bf16.gmra.mrb[0].mxu0 %v8096
      %v8255 = vpop.f32.mrb[0].mxu0
      %v8256 = vadd.f32 0.0, %v8255
      %v8257 = vpop.f32.mrb[0].mxu0
      %v8258 = vpop.f32.mrb[0].mxu0
      %v8259 = vadd.f32 0.0, %v8258
      %v8260 = vpop.f32.mrb[0].mxu0
      %8261 = vmatprep.mubr.bf16.mxu0 0
      %8262 = vmatmul.mubr.bf16.gmra.mrb[0].mxu0 %v8099
      %v8263 = vpop.f32.mrb[0].mxu0
      %v8264 = vadd.f32 0.0, %v8263
      %v8265 = vpop.f32.mrb[0].mxu0
      %v8266 = vpop.f32.mrb[0].mxu0
      %v8267 = vadd.f32 0.0, %v8266
      %v8268 = vpop.f32.mrb[0].mxu0
      %8269 = vmatprep.mubr.bf16.mxu0 0
      %8270 = vmatmul.mubr.bf16.gmra.mrb[0].mxu0 %v8102
      %v8271 = vpop.f32.mrb[0].mxu0
      %v8272 = vadd.f32 0.0, %v8271
      %v8273 = vpop.f32.mrb[0].mxu0
      %v8274 = vpop.f32.mrb[0].mxu0
      %v8275 = vadd.f32 0.0, %v8274
      %v8276 = vpop.f32.mrb[0].mxu0
      %8277 = vmatprep.mubr.bf16.mxu0 0
      %8278 = vmatmul.mubr.bf16.gmra.mrb[0].mxu0 %v8105
      %v8279 = vpop.f32.mrb[0].mxu0
      %v8280 = vadd.f32 0.0, %v8279
      %v8281 = vpop.f32.mrb[0].mxu0
      %v8282 = vpop.f32.mrb[0].mxu0
      %v8283 = vadd.f32 0.0, %v8282
      %v8284 = vpop.f32.mrb[0].mxu0
      %8285 = vmatprep.mubr.bf16.mxu0 0
      %8286 = vmatmul.mubr.bf16.gmra.mrb[0].mxu0 %v8108
      %v8287 = vpop.f32.mrb[0].mxu0
      %v8288 = vadd.f32 0.0, %v8287
      %v8289 = vpop.f32.mrb[0].mxu0
      %v8290 = vpop.f32.mrb[0].mxu0
      %v8291 = vadd.f32 0.0, %v8290
      %v8292 = vpop.f32.mrb[0].mxu0
      %8293 = vmatprep.mubr.bf16.mxu0 0
      %8294 = vmatmul.mubr.bf16.gmra.mrb[0].mxu0 %v8111
      %v8295 = vpop.f32.mrb[0].mxu0
      %v8296 = vadd.f32 0.0, %v8295
      %v8297 = vpop.f32.mrb[0].mxu0
      %v8298 = vpop.f32.mrb[0].mxu0
      %v8299 = vadd.f32 0.0, %v8298
      %v8300 = vpop.f32.mrb[0].mxu0
      %8301 = vmatprep.mubr.bf16.mxu0 0
      %8302 = vmatmul.mubr.bf16.gmra.mrb[0].mxu0 %v8114
      %v8303 = vpop.f32.mrb[0].mxu0
      %v8304 = vadd.f32 0.0, %v8303
      %v8305 = vpop.f32.mrb[0].mxu0
      %v8306 = vpop.f32.mrb[0].mxu0
      %v8307 = vadd.f32 0.0, %v8306
      %v8308 = vpop.f32.mrb[0].mxu0
      %8309 = vmatprep.mubr.bf16.mxu0 0
      %8310 = vmatmul.mubr.bf16.gmra.mrb[0].mxu0 %v8117
      %v8311 = vpop.f32.mrb[0].mxu0
      %v8312 = vadd.f32 0.0, %v8311
      %v8313 = vpop.f32.mrb[0].mxu0
      %v8314 = vpop.f32.mrb[0].mxu0
      %v8315 = vadd.f32 0.0, %v8314
      %v8316 = vpop.f32.mrb[0].mxu0
      %8317 = vmatprep.mubr.bf16.mxu0 0
      %8318 = vmatmul.mubr.bf16.gmra.mrb[0].mxu0 %v8120
      %v8319 = vpop.f32.mrb[0].mxu0
      %v8320 = vadd.f32 0.0, %v8319
      %v8321 = vpop.f32.mrb[0].mxu0
      %v8322 = vpop.f32.mrb[0].mxu0
      %v8323 = vadd.f32 0.0, %v8322
      %v8324 = vpop.f32.mrb[0].mxu0
      %8325 = vmatprep.mubr.bf16.mxu0 0
      %8326 = vmatmul.mubr.bf16.gmra.mrb[0].mxu0 %v8123
      %v8327 = vpop.f32.mrb[0].mxu0
      %v8328 = vadd.f32 0.0, %v8327
      %v8329 = vpop.f32.mrb[0].mxu0
      %v8330 = vpop.f32.mrb[0].mxu0
      %v8331 = vadd.f32 0.0, %v8330
      %v8332 = vpop.f32.mrb[0].mxu0
      %8333 = vmatprep.mubr.bf16.mxu0 0
      %8334 = vmatmul.mubr.bf16.gmra.mrb[0].mxu0 %v8126
      %v8335 = vpop.f32.mrb[0].mxu0
      %v8336 = vadd.f32 0.0, %v8335
      %v8337 = vpop.f32.mrb[0].mxu0
      %v8338 = vpop.f32.mrb[0].mxu0
      %v8339 = vadd.f32 0.0, %v8338
      %v8340 = vpop.f32.mrb[0].mxu0
      %8341 = vdwg.mxu0
      %8342 = vmatprep.subr.bf16.mxu0 0
      %8343 = vmatpush1.bf16.xpose.msra.mxu0 %v8026
      %8344 = vmatprep.subr.bf16.mxu0 0
      %8345 = vmatpush1.bf16.xpose.msra.mxu0 0
      %8346 = vmatprep.subr.bf16.mxu0 0
      %8347 = vmatpush1.bf16.xpose.msra.mxu0 0
      %8348 = vmatprep.subr.bf16.mxu0 0
      %8349 = vmatpush1.bf16.xpose.msra.mxu0 0
      %8350 = vmatprep.subr.bf16.mxu0 0
      %8351 = vmatpush1.bf16.xpose.msra.mxu0 0
      %8352 = vmatprep.subr.bf16.mxu0 0
      %8353 = vmatpush1.bf16.xpose.msra.mxu0 0
      %8354 = vmatprep.subr.bf16.mxu0 0
      %8355 = vmatpush1.bf16.xpose.msra.mxu0 0
      %8356 = vmatprep.subr.bf16.mxu0 0
      %8357 = vmatpush1.bf16.xpose.msra.mxu0 0
      %8358 = vmatprep.subr.bf16.mxu0 0
      %8359 = vmatpush1.bf16.xpose.msra.mxu0 0
      %8360 = vmatprep.subr.bf16.mxu0 0
      %8361 = vmatpush1.bf16.xpose.msra.mxu0 0
      %8362 = vmatprep.subr.bf16.mxu0 0
      %8363 = vmatpush1.bf16.xpose.msra.mxu0 0
      %8364 = vmatprep.subr.bf16.mxu0 0
      %8365 = vmatpush1.bf16.xpose.msra.mxu0 0
      %8366 = vmatprep.subr.bf16.mxu0 0
      %8367 = vmatpush1.bf16.xpose.msra.mxu0 0
      %8368 = vmatprep.subr.bf16.mxu0 0
      %8369 = vmatpush1.bf16.xpose.msra.mxu0 0
      %8370 = vmatprep.subr.bf16.mxu0 0
      %8371 = vmatpush1.bf16.xpose.msra.mxu0 0
      %8372 = vmatprep.subr.bf16.mxu0 0
      %8373 = vmatpush1.bf16.xpose.msra.mxu0 0
      %8374 = vmatprep.mubr.bf16.mxu0 0
      %8375 = vmatmul.mubr.bf16.gmra.mrb[0].mxu0 %v7681
      %v8376 = vpop.f32.mrb[0].mxu0
      %v8377 = vadd.f32 %v8184, %v8376
      %v8378 = vpop.f32.mrb[0].mxu0
      %v8379 = vpop.f32.mrb[0].mxu0
      %v8380 = vadd.f32 %v8187, %v8379
      %v8381 = vpop.f32.mrb[0].mxu0
      %8382 = vmatprep.mubr.bf16.mxu0 0
      %8383 = vmatmul.mubr.bf16.gmra.mrb[0].mxu0 %v7698
      %v8384 = vpop.f32.mrb[0].mxu0
      %v8385 = vadd.f32 %v8192, %v8384
      %v8386 = vpop.f32.mrb[0].mxu0
      %v8387 = vpop.f32.mrb[0].mxu0
      %v8388 = vadd.f32 %v8195, %v8387
      %v8389 = vpop.f32.mrb[0].mxu0
      %8390 = vmatprep.mubr.bf16.mxu0 0
      %8391 = vmatmul.mubr.bf16.gmra.mrb[0].mxu0 %v7715
      %v8392 = vpop.f32.mrb[0].mxu0
      %v8393 = vadd.f32 %v8200, %v8392
      %v8394 = vpop.f32.mrb[0].mxu0
      %v8395 = vpop.f32.mrb[0].mxu0
      %v8396 = vadd.f32 %v8203, %v8395
      %v8397 = vpop.f32.mrb[0].mxu0
      %8398 = vmatprep.mubr.bf16.mxu0 0
      %8399 = vmatmul.mubr.bf16.gmra.mrb[0].mxu0 %v7732
      %v8400 = vpop.f32.mrb[0].mxu0
      %v8401 = vadd.f32 %v8208, %v8400
      %v8402 = vpop.f32.mrb[0].mxu0
      %v8403 = vpop.f32.mrb[0].mxu0
      %v8404 = vadd.f32 %v8211, %v8403
      %v8405 = vpop.f32.mrb[0].mxu0
      %8406 = vmatprep.mubr.bf16.mxu0 0
      %8407 = vmatmul.mubr.bf16.gmra.mrb[0].mxu0 %v7749
      %v8408 = vpop.f32.mrb[0].mxu0
      %v8409 = vadd.f32 %v8216, %v8408
      %v8410 = vpop.f32.mrb[0].mxu0
      %v8411 = vpop.f32.mrb[0].mxu0
      %v8412 = vadd.f32 %v8219, %v8411
      %v8413 = vpop.f32.mrb[0].mxu0
      %8414 = vmatprep.mubr.bf16.mxu0 0
      %8415 = vmatmul.mubr.bf16.gmra.mrb[0].mxu0 %v7766
      %v8416 = vpop.f32.mrb[0].mxu0
      %v8417 = vadd.f32 %v8224, %v8416
      %v8418 = vpop.f32.mrb[0].mxu0
      %v8419 = vpop.f32.mrb[0].mxu0
      %v8420 = vadd.f32 %v8227, %v8419
      %v8421 = vpop.f32.mrb[0].mxu0
      %8422 = vmatprep.mubr.bf16.mxu0 0
      %8423 = vmatmul.mubr.bf16.gmra.mrb[0].mxu0 %v7783
      %v8424 = vpop.f32.mrb[0].mxu0
      %v8425 = vadd.f32 %v8232, %v8424
      %v8426 = vpop.f32.mrb[0].mxu0
      %v8427 = vpop.f32.mrb[0].mxu0
      %v8428 = vadd.f32 %v8235, %v8427
      %v8429 = vpop.f32.mrb[0].mxu0
      %8430 = vmatprep.mubr.bf16.mxu0 0
      %8431 = vmatmul.mubr.bf16.gmra.mrb[0].mxu0 %v7800
      %v8432 = vpop.f32.mrb[0].mxu0
      %v8433 = vadd.f32 %v8240, %v8432
      %v8434 = vpop.f32.mrb[0].mxu0
      %v8435 = vpop.f32.mrb[0].mxu0
      %v8436 = vadd.f32 %v8243, %v8435
      %v8437 = vpop.f32.mrb[0].mxu0
      %8438 = vmatprep.mubr.bf16.mxu0 0
      %8439 = vmatmul.mubr.bf16.gmra.mrb[0].mxu0 %v7817
      %v8440 = vpop.f32.mrb[0].mxu0
      %v8441 = vadd.f32 %v8248, %v8440
      %v8442 = vpop.f32.mrb[0].mxu0
      %v8443 = vpop.f32.mrb[0].mxu0
      %v8444 = vadd.f32 %v8251, %v8443
      %v8445 = vpop.f32.mrb[0].mxu0
      %8446 = vmatprep.mubr.bf16.mxu0 0
      %8447 = vmatmul.mubr.bf16.gmra.mrb[0].mxu0 %v7834
      %v8448 = vpop.f32.mrb[0].mxu0
      %v8449 = vadd.f32 %v8256, %v8448
      %v8450 = vpop.f32.mrb[0].mxu0
      %v8451 = vpop.f32.mrb[0].mxu0
      %v8452 = vadd.f32 %v8259, %v8451
      %v8453 = vpop.f32.mrb[0].mxu0
      %8454 = vmatprep.mubr.bf16.mxu0 0
      %8455 = vmatmul.mubr.bf16.gmra.mrb[0].mxu0 %v7851
      %v8456 = vpop.f32.mrb[0].mxu0
      %v8457 = vadd.f32 %v8264, %v8456
      %v8458 = vpop.f32.mrb[0].mxu0
      %v8459 = vpop.f32.mrb[0].mxu0
      %v8460 = vadd.f32 %v8267, %v8459
      %v8461 = vpop.f32.mrb[0].mxu0
      %8462 = vmatprep.mubr.bf16.mxu0 0
      %8463 = vmatmul.mubr.bf16.gmra.mrb[0].mxu0 %v7868
      %v8464 = vpop.f32.mrb[0].mxu0
      %v8465 = vadd.f32 %v8272, %v8464
      %v8466 = vpop.f32.mrb[0].mxu0
      %v8467 = vpop.f32.mrb[0].mxu0
      %v8468 = vadd.f32 %v8275, %v8467
      %v8469 = vpop.f32.mrb[0].mxu0
      %8470 = vmatprep.mubr.bf16.mxu0 0
      %8471 = vmatmul.mubr.bf16.gmra.mrb[0].mxu0 %v7885
      %v8472 = vpop.f32.mrb[0].mxu0
      %v8473 = vadd.f32 %v8280, %v8472
      %v8474 = vpop.f32.mrb[0].mxu0
      %v8475 = vpop.f32.mrb[0].mxu0
      %v8476 = vadd.f32 %v8283, %v8475
      %v8477 = vpop.f32.mrb[0].mxu0
      %8478 = vmatprep.mubr.bf16.mxu0 0
      %8479 = vmatmul.mubr.bf16.gmra.mrb[0].mxu0 %v7902
      %v8480 = vpop.f32.mrb[0].mxu0
      %v8481 = vadd.f32 %v8288, %v8480
      %v8482 = vpop.f32.mrb[0].mxu0
      %v8483 = vpop.f32.mrb[0].mxu0
      %v8484 = vadd.f32 %v8291, %v8483
      %v8485 = vpop.f32.mrb[0].mxu0
      %8486 = vmatprep.mubr.bf16.mxu0 0
      %8487 = vmatmul.mubr.bf16.gmra.mrb[0].mxu0 %v7919
      %v8488 = vpop.f32.mrb[0].mxu0
      %v8489 = vadd.f32 %v8296, %v8488
      %v8490 = vpop.f32.mrb[0].mxu0
      %v8491 = vpop.f32.mrb[0].mxu0
      %v8492 = vadd.f32 %v8299, %v8491
      %v8493 = vpop.f32.mrb[0].mxu0
      %8494 = vmatprep.mubr.bf16.mxu0 0
      %8495 = vmatmul.mubr.bf16.gmra.mrb[0].mxu0 %v7936
      %v8496 = vpop.f32.mrb[0].mxu0
      %v8497 = vadd.f32 %v8304, %v8496
      %v8498 = vpop.f32.mrb[0].mxu0
      %v8499 = vpop.f32.mrb[0].mxu0
      %v8500 = vadd.f32 %v8307, %v8499
      %v8501 = vpop.f32.mrb[0].mxu0
      %8502 = vmatprep.mubr.bf16.mxu0 0
      %8503 = vmatmul.mubr.bf16.gmra.mrb[0].mxu0 %v7953
      %v8504 = vpop.f32.mrb[0].mxu0
      %v8505 = vadd.f32 %v8312, %v8504
      %v8506 = vpop.f32.mrb[0].mxu0
      %v8507 = vpop.f32.mrb[0].mxu0
      %v8508 = vadd.f32 %v8315, %v8507
      %v8509 = vpop.f32.mrb[0].mxu0
      %8510 = vmatprep.mubr.bf16.mxu0 0
      %8511 = vmatmul.mubr.bf16.gmra.mrb[0].mxu0 %v7970
      %v8512 = vpop.f32.mrb[0].mxu0
      %v8513 = vadd.f32 %v8320, %v8512
      %v8514 = vpop.f32.mrb[0].mxu0
      %v8515 = vpop.f32.mrb[0].mxu0
      %v8516 = vadd.f32 %v8323, %v8515
      %v8517 = vpop.f32.mrb[0].mxu0
      %8518 = vmatprep.mubr.bf16.mxu0 0
      %8519 = vmatmul.mubr.bf16.gmra.mrb[0].mxu0 %v7987
      %v8520 = vpop.f32.mrb[0].mxu0
      %v8521 = vadd.f32 %v8328, %v8520
      %v8522 = vpop.f32.mrb[0].mxu0
      %v8523 = vpop.f32.mrb[0].mxu0
      %v8524 = vadd.f32 %v8331, %v8523
      %v8525 = vpop.f32.mrb[0].mxu0
      %8526 = vmatprep.mubr.bf16.mxu0 0
      %8527 = vmatmul.mubr.bf16.gmra.mrb[0].mxu0 %v8004
      %v8528 = vpop.f32.mrb[0].mxu0
      %v8529 = vadd.f32 %v8336, %v8528
      %v8530 = vpop.f32.mrb[0].mxu0
      %v8531 = vpop.f32.mrb[0].mxu0
      %v8532 = vadd.f32 %v8339, %v8531
      %v8533 = vpop.f32.mrb[0].mxu0
      %8534 = vdwg.mxu0
      %v8535 = vrot.slane %v7666, 4
      %v8536 = vrot.slane %v7669, 5
      %v8537 = vor.u32 %v8535, %v8536
      %v8538 = vrot.slane %v7674, 4
      %v8539 = vrot.slane %v7677, 5
      %v8540 = vor.u32 %v8538, %v8539
      %v8541 = vsel %vm1680, %v8537, %v8540
      %v8542 = vrot.slane %v7683, 4
      %v8543 = vrot.slane %v7686, 5
      %v8544 = vor.u32 %v8542, %v8543
      %v8545 = vrot.slane %v7691, 4
      %v8546 = vrot.slane %v7694, 5
      %v8547 = vor.u32 %v8545, %v8546
      %v8548 = vsel %vm1680, %v8544, %v8547
      %v8549 = vrot.slane %v7700, 4
      %v8550 = vrot.slane %v7703, 5
      %v8551 = vor.u32 %v8549, %v8550
      %v8552 = vrot.slane %v7708, 4
      %v8553 = vrot.slane %v7711, 5
      %v8554 = vor.u32 %v8552, %v8553
      %v8555 = vsel %vm1680, %v8551, %v8554
      %v8556 = vrot.slane %v7717, 4
      %v8557 = vrot.slane %v7720, 5
      %v8558 = vor.u32 %v8556, %v8557
      %v8559 = vrot.slane %v7725, 4
      %v8560 = vrot.slane %v7728, 5
      %v8561 = vor.u32 %v8559, %v8560
      %v8562 = vsel %vm1680, %v8558, %v8561
      %v8563 = vrot.slane %v7734, 4
      %v8564 = vrot.slane %v7737, 5
      %v8565 = vor.u32 %v8563, %v8564
      %v8566 = vrot.slane %v7742, 4
      %v8567 = vrot.slane %v7745, 5
      %v8568 = vor.u32 %v8566, %v8567
      %v8569 = vsel %vm1680, %v8565, %v8568
      %v8570 = vrot.slane %v7751, 4
      %v8571 = vrot.slane %v7754, 5
      %v8572 = vor.u32 %v8570, %v8571
      %v8573 = vrot.slane %v7759, 4
      %v8574 = vrot.slane %v7762, 5
      %v8575 = vor.u32 %v8573, %v8574
      %v8576 = vsel %vm1680, %v8572, %v8575
      %v8577 = vrot.slane %v7768, 4
      %v8578 = vrot.slane %v7771, 5
      %v8579 = vor.u32 %v8577, %v8578
      %v8580 = vrot.slane %v7776, 4
      %v8581 = vrot.slane %v7779, 5
      %v8582 = vor.u32 %v8580, %v8581
      %v8583 = vsel %vm1680, %v8579, %v8582
      %v8584 = vrot.slane %v7785, 4
      %v8585 = vrot.slane %v7788, 5
      %v8586 = vor.u32 %v8584, %v8585
      %v8587 = vrot.slane %v7793, 4
      %v8588 = vrot.slane %v7796, 5
      %v8589 = vor.u32 %v8587, %v8588
      %v8590 = vsel %vm1680, %v8586, %v8589
      %v8591 = vrot.slane %v7802, 4
      %v8592 = vrot.slane %v7805, 5
      %v8593 = vor.u32 %v8591, %v8592
      %v8594 = vrot.slane %v7810, 4
      %v8595 = vrot.slane %v7813, 5
      %v8596 = vor.u32 %v8594, %v8595
      %v8597 = vsel %vm1680, %v8593, %v8596
      %v8598 = vrot.slane %v7819, 4
      %v8599 = vrot.slane %v7822, 5
      %v8600 = vor.u32 %v8598, %v8599
      %v8601 = vrot.slane %v7827, 4
      %v8602 = vrot.slane %v7830, 5
      %v8603 = vor.u32 %v8601, %v8602
      %v8604 = vsel %vm1680, %v8600, %v8603
      %v8605 = vrot.slane %v7836, 4
      %v8606 = vrot.slane %v7839, 5
      %v8607 = vor.u32 %v8605, %v8606
      %v8608 = vrot.slane %v7844, 4
      %v8609 = vrot.slane %v7847, 5
      %v8610 = vor.u32 %v8608, %v8609
      %v8611 = vsel %vm1680, %v8607, %v8610
      %v8612 = vrot.slane %v7853, 4
      %v8613 = vrot.slane %v7856, 5
      %v8614 = vor.u32 %v8612, %v8613
      %v8615 = vrot.slane %v7861, 4
      %v8616 = vrot.slane %v7864, 5
      %v8617 = vor.u32 %v8615, %v8616
      %v8618 = vsel %vm1680, %v8614, %v8617
      %v8619 = vrot.slane %v7870, 4
      %v8620 = vrot.slane %v7873, 5
      %v8621 = vor.u32 %v8619, %v8620
      %v8622 = vrot.slane %v7878, 4
      %v8623 = vrot.slane %v7881, 5
      %v8624 = vor.u32 %v8622, %v8623
      %v8625 = vsel %vm1680, %v8621, %v8624
      %v8626 = vrot.slane %v7887, 4
      %v8627 = vrot.slane %v7890, 5
      %v8628 = vor.u32 %v8626, %v8627
      %v8629 = vrot.slane %v7895, 4
      %v8630 = vrot.slane %v7898, 5
      %v8631 = vor.u32 %v8629, %v8630
      %v8632 = vsel %vm1680, %v8628, %v8631
      %v8633 = vrot.slane %v7904, 4
      %v8634 = vrot.slane %v7907, 5
      %v8635 = vor.u32 %v8633, %v8634
      %v8636 = vrot.slane %v7912, 4
      %v8637 = vrot.slane %v7915, 5
      %v8638 = vor.u32 %v8636, %v8637
      %v8639 = vsel %vm1680, %v8635, %v8638
      %v8640 = vrot.slane %v7921, 4
      %v8641 = vrot.slane %v7924, 5
      %v8642 = vor.u32 %v8640, %v8641
      %v8643 = vrot.slane %v7929, 4
      %v8644 = vrot.slane %v7932, 5
      %v8645 = vor.u32 %v8643, %v8644
      %v8646 = vsel %vm1680, %v8642, %v8645
      %v8647 = vrot.slane %v7938, 4
      %v8648 = vrot.slane %v7941, 5
      %v8649 = vor.u32 %v8647, %v8648
      %v8650 = vrot.slane %v7946, 4
      %v8651 = vrot.slane %v7949, 5
      %v8652 = vor.u32 %v8650, %v8651
      %v8653 = vsel %vm1680, %v8649, %v8652
      %v8654 = vrot.slane %v7955, 4
      %v8655 = vrot.slane %v7958, 5
      %v8656 = vor.u32 %v8654, %v8655
      %v8657 = vrot.slane %v7963, 4
      %v8658 = vrot.slane %v7966, 5
      %v8659 = vor.u32 %v8657, %v8658
      %v8660 = vsel %vm1680, %v8656, %v8659
      %v8661 = vrot.slane %v7972, 4
      %v8662 = vrot.slane %v7975, 5
      %v8663 = vor.u32 %v8661, %v8662
      %v8664 = vrot.slane %v7980, 4
      %v8665 = vrot.slane %v7983, 5
      %v8666 = vor.u32 %v8664, %v8665
      %v8667 = vsel %vm1680, %v8663, %v8666
      %v8668 = vrot.slane %v7989, 4
      %v8669 = vrot.slane %v7992, 5
      %v8670 = vor.u32 %v8668, %v8669
      %v8671 = vrot.slane %v7997, 4
      %v8672 = vrot.slane %v8000, 5
      %v8673 = vor.u32 %v8671, %v8672
      %v8674 = vsel %vm1680, %v8670, %v8673
      %s8695 = scalar_lea.vmem %s3, 40
      %v8696 = vld [vmem:[%s8695] sm:$0x3]
      %8697 = vmatprep.subr.bf16.mxu0 0
      %8698 = vmatpush1.bf16.xpose.msra.mxu0 %v8696
      %8699 = vmatprep.subr.bf16.mxu0 0
      %8700 = vmatpush1.bf16.xpose.msra.mxu0 0
      %8701 = vmatprep.subr.bf16.mxu0 0
      %8702 = vmatpush1.bf16.xpose.msra.mxu0 0
      %8703 = vmatprep.subr.bf16.mxu0 0
      %8704 = vmatpush1.bf16.xpose.msra.mxu0 0
      %8705 = vmatprep.subr.bf16.mxu0 0
      %8706 = vmatpush1.bf16.xpose.msra.mxu0 0
      %8707 = vmatprep.subr.bf16.mxu0 0
      %8708 = vmatpush1.bf16.xpose.msra.mxu0 0
      %8709 = vmatprep.subr.bf16.mxu0 0
      %8710 = vmatpush1.bf16.xpose.msra.mxu0 0
      %8711 = vmatprep.subr.bf16.mxu0 0
      %8712 = vmatpush1.bf16.xpose.msra.mxu0 0
      %8713 = vmatprep.subr.bf16.mxu0 0
      %8714 = vmatpush1.bf16.xpose.msra.mxu0 0
      %8715 = vmatprep.subr.bf16.mxu0 0
      %8716 = vmatpush1.bf16.xpose.msra.mxu0 0
      %8717 = vmatprep.subr.bf16.mxu0 0
      %8718 = vmatpush1.bf16.xpose.msra.mxu0 0
      %8719 = vmatprep.subr.bf16.mxu0 0
      %8720 = vmatpush1.bf16.xpose.msra.mxu0 0
      %8721 = vmatprep.subr.bf16.mxu0 0
      %8722 = vmatpush1.bf16.xpose.msra.mxu0 0
      %8723 = vmatprep.subr.bf16.mxu0 0
      %8724 = vmatpush1.bf16.xpose.msra.mxu0 0
      %8725 = vmatprep.subr.bf16.mxu0 0
      %8726 = vmatpush1.bf16.xpose.msra.mxu0 0
      %8727 = vmatprep.subr.bf16.mxu0 0
      %8728 = vmatpush1.bf16.xpose.msra.mxu0 0
      %8729 = vmatprep.mubr.bf16.mxu0 0
      %8730 = vmatmul.mubr.bf16.gmra.mrb[0].mxu0 %v8541
      %v8731 = vpop.f32.mrb[0].mxu0
      %v8732 = vadd.f32 0.0, %v8731
      %v8733 = vpop.f32.mrb[0].mxu0
      %v8734 = vpop.f32.mrb[0].mxu0
      %v8735 = vadd.f32 0.0, %v8734
      %v8736 = vpop.f32.mrb[0].mxu0
      %8737 = vmatprep.mubr.bf16.mxu0 0
      %8738 = vmatmul.mubr.bf16.gmra.mrb[0].mxu0 %v8548
      %v8739 = vpop.f32.mrb[0].mxu0
      %v8740 = vadd.f32 0.0, %v8739
      %v8741 = vpop.f32.mrb[0].mxu0
      %v8742 = vpop.f32.mrb[0].mxu0
      %v8743 = vadd.f32 0.0, %v8742
      %v8744 = vpop.f32.mrb[0].mxu0
      %8745 = vmatprep.mubr.bf16.mxu0 0
      %8746 = vmatmul.mubr.bf16.gmra.mrb[0].mxu0 %v8555
      %v8747 = vpop.f32.mrb[0].mxu0
      %v8748 = vadd.f32 0.0, %v8747
      %v8749 = vpop.f32.mrb[0].mxu0
      %v8750 = vpop.f32.mrb[0].mxu0
      %v8751 = vadd.f32 0.0, %v8750
      %v8752 = vpop.f32.mrb[0].mxu0
      %8753 = vmatprep.mubr.bf16.mxu0 0
      %8754 = vmatmul.mubr.bf16.gmra.mrb[0].mxu0 %v8562
      %v8755 = vpop.f32.mrb[0].mxu0
      %v8756 = vadd.f32 0.0, %v8755
      %v8757 = vpop.f32.mrb[0].mxu0
      %v8758 = vpop.f32.mrb[0].mxu0
      %v8759 = vadd.f32 0.0, %v8758
      %v8760 = vpop.f32.mrb[0].mxu0
      %8761 = vmatprep.mubr.bf16.mxu0 0
      %8762 = vmatmul.mubr.bf16.gmra.mrb[0].mxu0 %v8569
      %v8763 = vpop.f32.mrb[0].mxu0
      %v8764 = vadd.f32 0.0, %v8763
      %v8765 = vpop.f32.mrb[0].mxu0
      %v8766 = vpop.f32.mrb[0].mxu0
      %v8767 = vadd.f32 0.0, %v8766
      %v8768 = vpop.f32.mrb[0].mxu0
      %8769 = vmatprep.mubr.bf16.mxu0 0
      %8770 = vmatmul.mubr.bf16.gmra.mrb[0].mxu0 %v8576
      %v8771 = vpop.f32.mrb[0].mxu0
      %v8772 = vadd.f32 0.0, %v8771
      %v8773 = vpop.f32.mrb[0].mxu0
      %v8774 = vpop.f32.mrb[0].mxu0
      %v8775 = vadd.f32 0.0, %v8774
      %v8776 = vpop.f32.mrb[0].mxu0
      %8777 = vmatprep.mubr.bf16.mxu0 0
      %8778 = vmatmul.mubr.bf16.gmra.mrb[0].mxu0 %v8583
      %v8779 = vpop.f32.mrb[0].mxu0
      %v8780 = vadd.f32 0.0, %v8779
      %v8781 = vpop.f32.mrb[0].mxu0
      %v8782 = vpop.f32.mrb[0].mxu0
      %v8783 = vadd.f32 0.0, %v8782
      %v8784 = vpop.f32.mrb[0].mxu0
      %8785 = vmatprep.mubr.bf16.mxu0 0
      %8786 = vmatmul.mubr.bf16.gmra.mrb[0].mxu0 %v8590
      %v8787 = vpop.f32.mrb[0].mxu0
      %v8788 = vadd.f32 0.0, %v8787
      %v8789 = vpop.f32.mrb[0].mxu0
      %v8790 = vpop.f32.mrb[0].mxu0
      %v8791 = vadd.f32 0.0, %v8790
      %v8792 = vpop.f32.mrb[0].mxu0
      %8793 = vmatprep.mubr.bf16.mxu0 0
      %8794 = vmatmul.mubr.bf16.gmra.mrb[0].mxu0 %v8597
      %v8795 = vpop.f32.mrb[0].mxu0
      %v8796 = vadd.f32 0.0, %v8795
      %v8797 = vpop.f32.mrb[0].mxu0
      %v8798 = vpop.f32.mrb[0].mxu0
      %v8799 = vadd.f32 0.0, %v8798
      %v8800 = vpop.f32.mrb[0].mxu0
      %8801 = vmatprep.mubr.bf16.mxu0 0
      %8802 = vmatmul.mubr.bf16.gmra.mrb[0].mxu0 %v8604
      %v8803 = vpop.f32.mrb[0].mxu0
      %v8804 = vadd.f32 0.0, %v8803
      %v8805 = vpop.f32.mrb[0].mxu0
      %v8806 = vpop.f32.mrb[0].mxu0
      %v8807 = vadd.f32 0.0, %v8806
      %v8808 = vpop.f32.mrb[0].mxu0
      %8809 = vmatprep.mubr.bf16.mxu0 0
      %8810 = vmatmul.mubr.bf16.gmra.mrb[0].mxu0 %v8611
      %v8811 = vpop.f32.mrb[0].mxu0
      %v8812 = vadd.f32 0.0, %v8811
      %v8813 = vpop.f32.mrb[0].mxu0
      %v8814 = vpop.f32.mrb[0].mxu0
      %v8815 = vadd.f32 0.0, %v8814
      %v8816 = vpop.f32.mrb[0].mxu0
      %8817 = vmatprep.mubr.bf16.mxu0 0
      %8818 = vmatmul.mubr.bf16.gmra.mrb[0].mxu0 %v8618
      %v8819 = vpop.f32.mrb[0].mxu0
      %v8820 = vadd.f32 0.0, %v8819
      %v8821 = vpop.f32.mrb[0].mxu0
      %v8822 = vpop.f32.mrb[0].mxu0
      %v8823 = vadd.f32 0.0, %v8822
      %v8824 = vpop.f32.mrb[0].mxu0
      %8825 = vmatprep.mubr.bf16.mxu0 0
      %8826 = vmatmul.mubr.bf16.gmra.mrb[0].mxu0 %v8625
      %v8827 = vpop.f32.mrb[0].mxu0
      %v8828 = vadd.f32 0.0, %v8827
      %v8829 = vpop.f32.mrb[0].mxu0
      %v8830 = vpop.f32.mrb[0].mxu0
      %v8831 = vadd.f32 0.0, %v8830
      %v8832 = vpop.f32.mrb[0].mxu0
      %8833 = vmatprep.mubr.bf16.mxu0 0
      %8834 = vmatmul.mubr.bf16.gmra.mrb[0].mxu0 %v8632
      %v8835 = vpop.f32.mrb[0].mxu0
      %v8836 = vadd.f32 0.0, %v8835
      %v8837 = vpop.f32.mrb[0].mxu0
      %v8838 = vpop.f32.mrb[0].mxu0
      %v8839 = vadd.f32 0.0, %v8838
      %v8840 = vpop.f32.mrb[0].mxu0
      %8841 = vmatprep.mubr.bf16.mxu0 0
      %8842 = vmatmul.mubr.bf16.gmra.mrb[0].mxu0 %v8639
      %v8843 = vpop.f32.mrb[0].mxu0
      %v8844 = vadd.f32 0.0, %v8843
      %v8845 = vpop.f32.mrb[0].mxu0
      %v8846 = vpop.f32.mrb[0].mxu0
      %v8847 = vadd.f32 0.0, %v8846
      %v8848 = vpop.f32.mrb[0].mxu0
      %8849 = vmatprep.mubr.bf16.mxu0 0
      %8850 = vmatmul.mubr.bf16.gmra.mrb[0].mxu0 %v8646
      %v8851 = vpop.f32.mrb[0].mxu0
      %v8852 = vadd.f32 0.0, %v8851
      %v8853 = vpop.f32.mrb[0].mxu0
      %v8854 = vpop.f32.mrb[0].mxu0
      %v8855 = vadd.f32 0.0, %v8854
      %v8856 = vpop.f32.mrb[0].mxu0
      %8857 = vmatprep.mubr.bf16.mxu0 0
      %8858 = vmatmul.mubr.bf16.gmra.mrb[0].mxu0 %v8653
      %v8859 = vpop.f32.mrb[0].mxu0
      %v8860 = vadd.f32 0.0, %v8859
      %v8861 = vpop.f32.mrb[0].mxu0
      %v8862 = vpop.f32.mrb[0].mxu0
      %v8863 = vadd.f32 0.0, %v8862
      %v8864 = vpop.f32.mrb[0].mxu0
      %8865 = vmatprep.mubr.bf16.mxu0 0
      %8866 = vmatmul.mubr.bf16.gmra.mrb[0].mxu0 %v8660
      %v8867 = vpop.f32.mrb[0].mxu0
      %v8868 = vadd.f32 0.0, %v8867
      %v8869 = vpop.f32.mrb[0].mxu0
      %v8870 = vpop.f32.mrb[0].mxu0
      %v8871 = vadd.f32 0.0, %v8870
      %v8872 = vpop.f32.mrb[0].mxu0
      %8873 = vmatprep.mubr.bf16.mxu0 0
      %8874 = vmatmul.mubr.bf16.gmra.mrb[0].mxu0 %v8667
      %v8875 = vpop.f32.mrb[0].mxu0
      %v8876 = vadd.f32 0.0, %v8875
      %v8877 = vpop.f32.mrb[0].mxu0
      %v8878 = vpop.f32.mrb[0].mxu0
      %v8879 = vadd.f32 0.0, %v8878
      %v8880 = vpop.f32.mrb[0].mxu0
      %8881 = vmatprep.mubr.bf16.mxu0 0
      %8882 = vmatmul.mubr.bf16.gmra.mrb[0].mxu0 %v8674
      %v8883 = vpop.f32.mrb[0].mxu0
      %v8884 = vadd.f32 0.0, %v8883
      %v8885 = vpop.f32.mrb[0].mxu0
      %v8886 = vpop.f32.mrb[0].mxu0
      %v8887 = vadd.f32 0.0, %v8886
      %v8888 = vpop.f32.mrb[0].mxu0
      %8889 = vdwg.mxu0
      %v8890 = vadd.f32 %v8377, %v8732
      %v8891 = vadd.f32 %v8380, %v8735
      %v8892 = vadd.f32 %v8385, %v8740
      %v8893 = vadd.f32 %v8388, %v8743
      %v8894 = vadd.f32 %v8393, %v8748
      %v8895 = vadd.f32 %v8396, %v8751
      %v8896 = vadd.f32 %v8401, %v8756
      %v8897 = vadd.f32 %v8404, %v8759
      %v8898 = vadd.f32 %v8409, %v8764
      %v8899 = vadd.f32 %v8412, %v8767
      %v8900 = vadd.f32 %v8417, %v8772
      %v8901 = vadd.f32 %v8420, %v8775
      %v8902 = vadd.f32 %v8425, %v8780
      %v8903 = vadd.f32 %v8428, %v8783
      %v8904 = vadd.f32 %v8433, %v8788
      %v8905 = vadd.f32 %v8436, %v8791
      %v8906 = vadd.f32 %v8441, %v8796
      %v8907 = vadd.f32 %v8444, %v8799
      %v8908 = vadd.f32 %v8449, %v8804
      %v8909 = vadd.f32 %v8452, %v8807
      %v8910 = vadd.f32 %v8457, %v8812
      %v8911 = vadd.f32 %v8460, %v8815
      %v8912 = vadd.f32 %v8465, %v8820
      %v8913 = vadd.f32 %v8468, %v8823
      %v8914 = vadd.f32 %v8473, %v8828
      %v8915 = vadd.f32 %v8476, %v8831
      %v8916 = vadd.f32 %v8481, %v8836
      %v8917 = vadd.f32 %v8484, %v8839
      %v8918 = vadd.f32 %v8489, %v8844
      %v8919 = vadd.f32 %v8492, %v8847
      %v8920 = vadd.f32 %v8497, %v8852
      %v8921 = vadd.f32 %v8500, %v8855
      %v8922 = vadd.f32 %v8505, %v8860
      %v8923 = vadd.f32 %v8508, %v8863
      %v8924 = vadd.f32 %v8513, %v8868
      %v8925 = vadd.f32 %v8516, %v8871
      %v8926 = vadd.f32 %v8521, %v8876
      %v8927 = vadd.f32 %v8524, %v8879
      %v8928 = vadd.f32 %v8529, %v8884
      %v8929 = vadd.f32 %v8532, %v8887
      %v8931 = vshrl.u32 %v7661, 16
      %v8933 = vrot.slane %v8931, 3
      %v8934 = vshll.u32 %v7661, 16
      %v8936 = vrot.slane %v8934, 4
      %v8937 = vor.u32 %v8933, %v8936
      %v8939 = vshrl.u32 %v7662, 16
      %v8941 = vrot.slane %v8939, 3
      %v8942 = vshll.u32 %v7662, 16
      %v8944 = vrot.slane %v8942, 4
      %v8945 = vor.u32 %v8941, %v8944
      %v8946 = vsel %vm809, %v8937, %v8945
      %s8948 = scalar_lea.vmem %s3, 42
      %v8949 = vld [vmem:[%s8948] sm:$0x3]
      %8950 = vmatprep.subr.bf16.mxu0 0
      %8951 = vmatpush1.bf16.xpose.msra.mxu0 %v8949
      %8952 = vmatprep.subr.bf16.mxu0 0
      %8953 = vmatpush1.bf16.xpose.msra.mxu0 0
      %8954 = vmatprep.subr.bf16.mxu0 0
      %8955 = vmatpush1.bf16.xpose.msra.mxu0 0
      %8956 = vmatprep.subr.bf16.mxu0 0
      %8957 = vmatpush1.bf16.xpose.msra.mxu0 0
      %8958 = vmatprep.subr.bf16.mxu0 0
      %8959 = vmatpush1.bf16.xpose.msra.mxu0 0
      %8960 = vmatprep.subr.bf16.mxu0 0
      %8961 = vmatpush1.bf16.xpose.msra.mxu0 0
      %8962 = vmatprep.subr.bf16.mxu0 0
      %8963 = vmatpush1.bf16.xpose.msra.mxu0 0
      %8964 = vmatprep.subr.bf16.mxu0 0
      %8965 = vmatpush1.bf16.xpose.msra.mxu0 0
      %8966 = vmatprep.subr.bf16.mxu0 0
      %8967 = vmatpush1.bf16.xpose.msra.mxu0 0
      %8968 = vmatprep.subr.bf16.mxu0 0
      %8969 = vmatpush1.bf16.xpose.msra.mxu0 0
      %8970 = vmatprep.subr.bf16.mxu0 0
      %8971 = vmatpush1.bf16.xpose.msra.mxu0 0
      %8972 = vmatprep.subr.bf16.mxu0 0
      %8973 = vmatpush1.bf16.xpose.msra.mxu0 0
      %8974 = vmatprep.subr.bf16.mxu0 0
      %8975 = vmatpush1.bf16.xpose.msra.mxu0 0
      %8976 = vmatprep.subr.bf16.mxu0 0
      %8977 = vmatpush1.bf16.xpose.msra.mxu0 0
      %8978 = vmatprep.subr.bf16.mxu0 0
      %8979 = vmatpush1.bf16.xpose.msra.mxu0 0
      %8980 = vmatprep.subr.bf16.mxu0 0
      %8981 = vmatpush1.bf16.xpose.msra.mxu0 0
      %8982 = vmatprep.mubr.bf16.mxu0 0
      %8983 = vmatmul.mubr.bf16.gmra.mrb[0].mxu0 %v7698
      %v8984 = vpop.f32.mrb[0].mxu0
      %v8985 = vadd.f32 0.0, %v8984
      %v8986 = vpop.f32.mrb[0].mxu0
      %v8987 = vpop.f32.mrb[0].mxu0
      %v8988 = vadd.f32 0.0, %v8987
      %v8989 = vpop.f32.mrb[0].mxu0
      %8990 = vmatprep.mubr.bf16.mxu0 0
      %8991 = vmatmul.mubr.bf16.gmra.mrb[0].mxu0 %v7715
      %v8992 = vpop.f32.mrb[0].mxu0
      %v8993 = vadd.f32 0.0, %v8992
      %v8994 = vpop.f32.mrb[0].mxu0
      %v8995 = vpop.f32.mrb[0].mxu0
      %v8996 = vadd.f32 0.0, %v8995
      %v8997 = vpop.f32.mrb[0].mxu0
      %8998 = vmatprep.mubr.bf16.mxu0 0
      %8999 = vmatmul.mubr.bf16.gmra.mrb[0].mxu0 %v7732
      %v9000 = vpop.f32.mrb[0].mxu0
      %v9001 = vadd.f32 0.0, %v9000
      %v9002 = vpop.f32.mrb[0].mxu0
      %v9003 = vpop.f32.mrb[0].mxu0
      %v9004 = vadd.f32 0.0, %v9003
      %v9005 = vpop.f32.mrb[0].mxu0
      %9006 = vmatprep.mubr.bf16.mxu0 0
      %9007 = vmatmul.mubr.bf16.gmra.mrb[0].mxu0 %v7749
      %v9008 = vpop.f32.mrb[0].mxu0
      %v9009 = vadd.f32 0.0, %v9008
      %v9010 = vpop.f32.mrb[0].mxu0
      %v9011 = vpop.f32.mrb[0].mxu0
      %v9012 = vadd.f32 0.0, %v9011
      %v9013 = vpop.f32.mrb[0].mxu0
      %9014 = vmatprep.mubr.bf16.mxu0 0
      %9015 = vmatmul.mubr.bf16.gmra.mrb[0].mxu0 %v7766
      %v9016 = vpop.f32.mrb[0].mxu0
      %v9017 = vadd.f32 0.0, %v9016
      %v9018 = vpop.f32.mrb[0].mxu0
      %v9019 = vpop.f32.mrb[0].mxu0
      %v9020 = vadd.f32 0.0, %v9019
      %v9021 = vpop.f32.mrb[0].mxu0
      %9022 = vmatprep.mubr.bf16.mxu0 0
      %9023 = vmatmul.mubr.bf16.gmra.mrb[0].mxu0 %v7783
      %v9024 = vpop.f32.mrb[0].mxu0
      %v9025 = vadd.f32 0.0, %v9024
      %v9026 = vpop.f32.mrb[0].mxu0
      %v9027 = vpop.f32.mrb[0].mxu0
      %v9028 = vadd.f32 0.0, %v9027
      %v9029 = vpop.f32.mrb[0].mxu0
      %9030 = vmatprep.mubr.bf16.mxu0 0
      %9031 = vmatmul.mubr.bf16.gmra.mrb[0].mxu0 %v7800
      %v9032 = vpop.f32.mrb[0].mxu0
      %v9033 = vadd.f32 0.0, %v9032
      %v9034 = vpop.f32.mrb[0].mxu0
      %v9035 = vpop.f32.mrb[0].mxu0
      %v9036 = vadd.f32 0.0, %v9035
      %v9037 = vpop.f32.mrb[0].mxu0
      %9038 = vmatprep.mubr.bf16.mxu0 0
      %9039 = vmatmul.mubr.bf16.gmra.mrb[0].mxu0 %v7817
      %v9040 = vpop.f32.mrb[0].mxu0
      %v9041 = vadd.f32 0.0, %v9040
      %v9042 = vpop.f32.mrb[0].mxu0
      %v9043 = vpop.f32.mrb[0].mxu0
      %v9044 = vadd.f32 0.0, %v9043
      %v9045 = vpop.f32.mrb[0].mxu0
      %9046 = vmatprep.mubr.bf16.mxu0 0
      %9047 = vmatmul.mubr.bf16.gmra.mrb[0].mxu0 %v7834
      %v9048 = vpop.f32.mrb[0].mxu0
      %v9049 = vadd.f32 0.0, %v9048
      %v9050 = vpop.f32.mrb[0].mxu0
      %v9051 = vpop.f32.mrb[0].mxu0
      %v9052 = vadd.f32 0.0, %v9051
      %v9053 = vpop.f32.mrb[0].mxu0
      %9054 = vmatprep.mubr.bf16.mxu0 0
      %9055 = vmatmul.mubr.bf16.gmra.mrb[0].mxu0 %v7851
      %v9056 = vpop.f32.mrb[0].mxu0
      %v9057 = vadd.f32 0.0, %v9056
      %v9058 = vpop.f32.mrb[0].mxu0
      %v9059 = vpop.f32.mrb[0].mxu0
      %v9060 = vadd.f32 0.0, %v9059
      %v9061 = vpop.f32.mrb[0].mxu0
      %9062 = vmatprep.mubr.bf16.mxu0 0
      %9063 = vmatmul.mubr.bf16.gmra.mrb[0].mxu0 %v7868
      %v9064 = vpop.f32.mrb[0].mxu0
      %v9065 = vadd.f32 0.0, %v9064
      %v9066 = vpop.f32.mrb[0].mxu0
      %v9067 = vpop.f32.mrb[0].mxu0
      %v9068 = vadd.f32 0.0, %v9067
      %v9069 = vpop.f32.mrb[0].mxu0
      %9070 = vmatprep.mubr.bf16.mxu0 0
      %9071 = vmatmul.mubr.bf16.gmra.mrb[0].mxu0 %v7885
      %v9072 = vpop.f32.mrb[0].mxu0
      %v9073 = vadd.f32 0.0, %v9072
      %v9074 = vpop.f32.mrb[0].mxu0
      %v9075 = vpop.f32.mrb[0].mxu0
      %v9076 = vadd.f32 0.0, %v9075
      %v9077 = vpop.f32.mrb[0].mxu0
      %9078 = vmatprep.mubr.bf16.mxu0 0
      %9079 = vmatmul.mubr.bf16.gmra.mrb[0].mxu0 %v7902
      %v9080 = vpop.f32.mrb[0].mxu0
      %v9081 = vadd.f32 0.0, %v9080
      %v9082 = vpop.f32.mrb[0].mxu0
      %v9083 = vpop.f32.mrb[0].mxu0
      %v9084 = vadd.f32 0.0, %v9083
      %v9085 = vpop.f32.mrb[0].mxu0
      %9086 = vmatprep.mubr.bf16.mxu0 0
      %9087 = vmatmul.mubr.bf16.gmra.mrb[0].mxu0 %v7919
      %v9088 = vpop.f32.mrb[0].mxu0
      %v9089 = vadd.f32 0.0, %v9088
      %v9090 = vpop.f32.mrb[0].mxu0
      %v9091 = vpop.f32.mrb[0].mxu0
      %v9092 = vadd.f32 0.0, %v9091
      %v9093 = vpop.f32.mrb[0].mxu0
      %9094 = vmatprep.mubr.bf16.mxu0 0
      %9095 = vmatmul.mubr.bf16.gmra.mrb[0].mxu0 %v7936
      %v9096 = vpop.f32.mrb[0].mxu0
      %v9097 = vadd.f32 0.0, %v9096
      %v9098 = vpop.f32.mrb[0].mxu0
      %v9099 = vpop.f32.mrb[0].mxu0
      %v9100 = vadd.f32 0.0, %v9099
      %v9101 = vpop.f32.mrb[0].mxu0
      %9102 = vmatprep.mubr.bf16.mxu0 0
      %9103 = vmatmul.mubr.bf16.gmra.mrb[0].mxu0 %v7953
      %v9104 = vpop.f32.mrb[0].mxu0
      %v9105 = vadd.f32 0.0, %v9104
      %v9106 = vpop.f32.mrb[0].mxu0
      %v9107 = vpop.f32.mrb[0].mxu0
      %v9108 = vadd.f32 0.0, %v9107
      %v9109 = vpop.f32.mrb[0].mxu0
      %9110 = vmatprep.mubr.bf16.mxu0 0
      %9111 = vmatmul.mubr.bf16.gmra.mrb[0].mxu0 %v7970
      %v9112 = vpop.f32.mrb[0].mxu0
      %v9113 = vadd.f32 0.0, %v9112
      %v9114 = vpop.f32.mrb[0].mxu0
      %v9115 = vpop.f32.mrb[0].mxu0
      %v9116 = vadd.f32 0.0, %v9115
      %v9117 = vpop.f32.mrb[0].mxu0
      %9118 = vmatprep.mubr.bf16.mxu0 0
      %9119 = vmatmul.mubr.bf16.gmra.mrb[0].mxu0 %v7987
      %v9120 = vpop.f32.mrb[0].mxu0
      %v9121 = vadd.f32 0.0, %v9120
      %v9122 = vpop.f32.mrb[0].mxu0
      %v9123 = vpop.f32.mrb[0].mxu0
      %v9124 = vadd.f32 0.0, %v9123
      %v9125 = vpop.f32.mrb[0].mxu0
      %9126 = vmatprep.mubr.bf16.mxu0 0
      %9127 = vmatmul.mubr.bf16.gmra.mrb[0].mxu0 %v8004
      %v9128 = vpop.f32.mrb[0].mxu0
      %v9129 = vadd.f32 0.0, %v9128
      %v9130 = vpop.f32.mrb[0].mxu0
      %v9131 = vpop.f32.mrb[0].mxu0
      %v9132 = vadd.f32 0.0, %v9131
      %v9133 = vpop.f32.mrb[0].mxu0
      %9134 = vmatprep.mubr.bf16.mxu0 0
      %9135 = vmatmul.mubr.bf16.gmra.mrb[0].mxu0 %v8946
      %v9136 = vpop.f32.mrb[0].mxu0
      %v9137 = vadd.f32 0.0, %v9136
      %v9138 = vpop.f32.mrb[0].mxu0
      %v9139 = vpop.f32.mrb[0].mxu0
      %v9140 = vadd.f32 0.0, %v9139
      %v9141 = vpop.f32.mrb[0].mxu0
      %9142 = vdwg.mxu0
      %v9143 = vadd.f32 %v8890, %v8985
      %v9144 = vadd.f32 %v8891, %v8988
      %v9145 = vadd.f32 %v8892, %v8993
      %v9146 = vadd.f32 %v8893, %v8996
      %v9147 = vadd.f32 %v8894, %v9001
      %v9148 = vadd.f32 %v8895, %v9004
      %v9149 = vadd.f32 %v8896, %v9009
      %v9150 = vadd.f32 %v8897, %v9012
      %v9151 = vadd.f32 %v8898, %v9017
      %v9152 = vadd.f32 %v8899, %v9020
      %v9153 = vadd.f32 %v8900, %v9025
      %v9154 = vadd.f32 %v8901, %v9028
      %v9155 = vadd.f32 %v8902, %v9033
      %v9156 = vadd.f32 %v8903, %v9036
      %v9157 = vadd.f32 %v8904, %v9041
      %v9158 = vadd.f32 %v8905, %v9044
      %v9159 = vadd.f32 %v8906, %v9049
      %v9160 = vadd.f32 %v8907, %v9052
      %v9161 = vadd.f32 %v8908, %v9057
      %v9162 = vadd.f32 %v8909, %v9060
      %v9163 = vadd.f32 %v8910, %v9065
      %v9164 = vadd.f32 %v8911, %v9068
      %v9165 = vadd.f32 %v8912, %v9073
      %v9166 = vadd.f32 %v8913, %v9076
      %v9167 = vadd.f32 %v8914, %v9081
      %v9168 = vadd.f32 %v8915, %v9084
      %v9169 = vadd.f32 %v8916, %v9089
      %v9170 = vadd.f32 %v8917, %v9092
      %v9171 = vadd.f32 %v8918, %v9097
      %v9172 = vadd.f32 %v8919, %v9100
      %v9173 = vadd.f32 %v8920, %v9105
      %v9174 = vadd.f32 %v8921, %v9108
      %v9175 = vadd.f32 %v8922, %v9113
      %v9176 = vadd.f32 %v8923, %v9116
      %v9177 = vadd.f32 %v8924, %v9121
      %v9178 = vadd.f32 %v8925, %v9124
      %v9179 = vadd.f32 %v8926, %v9129
      %v9180 = vadd.f32 %v8927, %v9132
      %v9181 = vadd.f32 %v8928, %v9137
      %v9182 = vadd.f32 %v8929, %v9140
      %v9185 = vrot.slane %v7661, 4
      %v9186 = vrot.slane %v7662, 4
      %v9187 = vsel %vm1211, %v9185, %v9186
      %s9189 = scalar_lea.vmem %s3, 44
      %v9190 = vld [vmem:[%s9189] sm:$0x3]
      %9191 = vmatprep.subr.bf16.mxu0 0
      %9192 = vmatpush1.bf16.xpose.msra.mxu0 %v9190
      %9193 = vmatprep.subr.bf16.mxu0 0
      %9194 = vmatpush1.bf16.xpose.msra.mxu0 0
      %9195 = vmatprep.subr.bf16.mxu0 0
      %9196 = vmatpush1.bf16.xpose.msra.mxu0 0
      %9197 = vmatprep.subr.bf16.mxu0 0
      %9198 = vmatpush1.bf16.xpose.msra.mxu0 0
      %9199 = vmatprep.subr.bf16.mxu0 0
      %9200 = vmatpush1.bf16.xpose.msra.mxu0 0
      %9201 = vmatprep.subr.bf16.mxu0 0
      %9202 = vmatpush1.bf16.xpose.msra.mxu0 0
      %9203 = vmatprep.subr.bf16.mxu0 0
      %9204 = vmatpush1.bf16.xpose.msra.mxu0 0
      %9205 = vmatprep.subr.bf16.mxu0 0
      %9206 = vmatpush1.bf16.xpose.msra.mxu0 0
      %9207 = vmatprep.subr.bf16.mxu0 0
      %9208 = vmatpush1.bf16.xpose.msra.mxu0 0
      %9209 = vmatprep.subr.bf16.mxu0 0
      %9210 = vmatpush1.bf16.xpose.msra.mxu0 0
      %9211 = vmatprep.subr.bf16.mxu0 0
      %9212 = vmatpush1.bf16.xpose.msra.mxu0 0
      %9213 = vmatprep.subr.bf16.mxu0 0
      %9214 = vmatpush1.bf16.xpose.msra.mxu0 0
      %9215 = vmatprep.subr.bf16.mxu0 0
      %9216 = vmatpush1.bf16.xpose.msra.mxu0 0
      %9217 = vmatprep.subr.bf16.mxu0 0
      %9218 = vmatpush1.bf16.xpose.msra.mxu0 0
      %9219 = vmatprep.subr.bf16.mxu0 0
      %9220 = vmatpush1.bf16.xpose.msra.mxu0 0
      %9221 = vmatprep.subr.bf16.mxu0 0
      %9222 = vmatpush1.bf16.xpose.msra.mxu0 0
      %9223 = vmatprep.mubr.bf16.mxu0 0
      %9224 = vmatmul.mubr.bf16.gmra.mrb[0].mxu0 %v8072
      %v9225 = vpop.f32.mrb[0].mxu0
      %v9226 = vadd.f32 0.0, %v9225
      %v9227 = vpop.f32.mrb[0].mxu0
      %v9228 = vpop.f32.mrb[0].mxu0
      %v9229 = vadd.f32 0.0, %v9228
      %v9230 = vpop.f32.mrb[0].mxu0
      %9231 = vmatprep.mubr.bf16.mxu0 0
      %9232 = vmatmul.mubr.bf16.gmra.mrb[0].mxu0 %v8075
      %v9233 = vpop.f32.mrb[0].mxu0
      %v9234 = vadd.f32 0.0, %v9233
      %v9235 = vpop.f32.mrb[0].mxu0
      %v9236 = vpop.f32.mrb[0].mxu0
      %v9237 = vadd.f32 0.0, %v9236
      %v9238 = vpop.f32.mrb[0].mxu0
      %9239 = vmatprep.mubr.bf16.mxu0 0
      %9240 = vmatmul.mubr.bf16.gmra.mrb[0].mxu0 %v8078
      %v9241 = vpop.f32.mrb[0].mxu0
      %v9242 = vadd.f32 0.0, %v9241
      %v9243 = vpop.f32.mrb[0].mxu0
      %v9244 = vpop.f32.mrb[0].mxu0
      %v9245 = vadd.f32 0.0, %v9244
      %v9246 = vpop.f32.mrb[0].mxu0
      %9247 = vmatprep.mubr.bf16.mxu0 0
      %9248 = vmatmul.mubr.bf16.gmra.mrb[0].mxu0 %v8081
      %v9249 = vpop.f32.mrb[0].mxu0
      %v9250 = vadd.f32 0.0, %v9249
      %v9251 = vpop.f32.mrb[0].mxu0
      %v9252 = vpop.f32.mrb[0].mxu0
      %v9253 = vadd.f32 0.0, %v9252
      %v9254 = vpop.f32.mrb[0].mxu0
      %9255 = vmatprep.mubr.bf16.mxu0 0
      %9256 = vmatmul.mubr.bf16.gmra.mrb[0].mxu0 %v8084
      %v9257 = vpop.f32.mrb[0].mxu0
      %v9258 = vadd.f32 0.0, %v9257
      %v9259 = vpop.f32.mrb[0].mxu0
      %v9260 = vpop.f32.mrb[0].mxu0
      %v9261 = vadd.f32 0.0, %v9260
      %v9262 = vpop.f32.mrb[0].mxu0
      %9263 = vmatprep.mubr.bf16.mxu0 0
      %9264 = vmatmul.mubr.bf16.gmra.mrb[0].mxu0 %v8087
      %v9265 = vpop.f32.mrb[0].mxu0
      %v9266 = vadd.f32 0.0, %v9265
      %v9267 = vpop.f32.mrb[0].mxu0
      %v9268 = vpop.f32.mrb[0].mxu0
      %v9269 = vadd.f32 0.0, %v9268
      %v9270 = vpop.f32.mrb[0].mxu0
      %9271 = vmatprep.mubr.bf16.mxu0 0
      %9272 = vmatmul.mubr.bf16.gmra.mrb[0].mxu0 %v8090
      %v9273 = vpop.f32.mrb[0].mxu0
      %v9274 = vadd.f32 0.0, %v9273
      %v9275 = vpop.f32.mrb[0].mxu0
      %v9276 = vpop.f32.mrb[0].mxu0
      %v9277 = vadd.f32 0.0, %v9276
      %v9278 = vpop.f32.mrb[0].mxu0
      %9279 = vmatprep.mubr.bf16.mxu0 0
      %9280 = vmatmul.mubr.bf16.gmra.mrb[0].mxu0 %v8093
      %v9281 = vpop.f32.mrb[0].mxu0
      %v9282 = vadd.f32 0.0, %v9281
      %v9283 = vpop.f32.mrb[0].mxu0
      %v9284 = vpop.f32.mrb[0].mxu0
      %v9285 = vadd.f32 0.0, %v9284
      %v9286 = vpop.f32.mrb[0].mxu0
      %9287 = vmatprep.mubr.bf16.mxu0 0
      %9288 = vmatmul.mubr.bf16.gmra.mrb[0].mxu0 %v8096
      %v9289 = vpop.f32.mrb[0].mxu0
      %v9290 = vadd.f32 0.0, %v9289
      %v9291 = vpop.f32.mrb[0].mxu0
      %v9292 = vpop.f32.mrb[0].mxu0
      %v9293 = vadd.f32 0.0, %v9292
      %v9294 = vpop.f32.mrb[0].mxu0
      %9295 = vmatprep.mubr.bf16.mxu0 0
      %9296 = vmatmul.mubr.bf16.gmra.mrb[0].mxu0 %v8099
      %v9297 = vpop.f32.mrb[0].mxu0
      %v9298 = vadd.f32 0.0, %v9297
      %v9299 = vpop.f32.mrb[0].mxu0
      %v9300 = vpop.f32.mrb[0].mxu0
      %v9301 = vadd.f32 0.0, %v9300
      %v9302 = vpop.f32.mrb[0].mxu0
      %9303 = vmatprep.mubr.bf16.mxu0 0
      %9304 = vmatmul.mubr.bf16.gmra.mrb[0].mxu0 %v8102
      %v9305 = vpop.f32.mrb[0].mxu0
      %v9306 = vadd.f32 0.0, %v9305
      %v9307 = vpop.f32.mrb[0].mxu0
      %v9308 = vpop.f32.mrb[0].mxu0
      %v9309 = vadd.f32 0.0, %v9308
      %v9310 = vpop.f32.mrb[0].mxu0
      %9311 = vmatprep.mubr.bf16.mxu0 0
      %9312 = vmatmul.mubr.bf16.gmra.mrb[0].mxu0 %v8105
      %v9313 = vpop.f32.mrb[0].mxu0
      %v9314 = vadd.f32 0.0, %v9313
      %v9315 = vpop.f32.mrb[0].mxu0
      %v9316 = vpop.f32.mrb[0].mxu0
      %v9317 = vadd.f32 0.0, %v9316
      %v9318 = vpop.f32.mrb[0].mxu0
      %9319 = vmatprep.mubr.bf16.mxu0 0
      %9320 = vmatmul.mubr.bf16.gmra.mrb[0].mxu0 %v8108
      %v9321 = vpop.f32.mrb[0].mxu0
      %v9322 = vadd.f32 0.0, %v9321
      %v9323 = vpop.f32.mrb[0].mxu0
      %v9324 = vpop.f32.mrb[0].mxu0
      %v9325 = vadd.f32 0.0, %v9324
      %v9326 = vpop.f32.mrb[0].mxu0
      %9327 = vmatprep.mubr.bf16.mxu0 0
      %9328 = vmatmul.mubr.bf16.gmra.mrb[0].mxu0 %v8111
      %v9329 = vpop.f32.mrb[0].mxu0
      %v9330 = vadd.f32 0.0, %v9329
      %v9331 = vpop.f32.mrb[0].mxu0
      %v9332 = vpop.f32.mrb[0].mxu0
      %v9333 = vadd.f32 0.0, %v9332
      %v9334 = vpop.f32.mrb[0].mxu0
      %9335 = vmatprep.mubr.bf16.mxu0 0
      %9336 = vmatmul.mubr.bf16.gmra.mrb[0].mxu0 %v8114
      %v9337 = vpop.f32.mrb[0].mxu0
      %v9338 = vadd.f32 0.0, %v9337
      %v9339 = vpop.f32.mrb[0].mxu0
      %v9340 = vpop.f32.mrb[0].mxu0
      %v9341 = vadd.f32 0.0, %v9340
      %v9342 = vpop.f32.mrb[0].mxu0
      %9343 = vmatprep.mubr.bf16.mxu0 0
      %9344 = vmatmul.mubr.bf16.gmra.mrb[0].mxu0 %v8117
      %v9345 = vpop.f32.mrb[0].mxu0
      %v9346 = vadd.f32 0.0, %v9345
      %v9347 = vpop.f32.mrb[0].mxu0
      %v9348 = vpop.f32.mrb[0].mxu0
      %v9349 = vadd.f32 0.0, %v9348
      %v9350 = vpop.f32.mrb[0].mxu0
      %9351 = vmatprep.mubr.bf16.mxu0 0
      %9352 = vmatmul.mubr.bf16.gmra.mrb[0].mxu0 %v8120
      %v9353 = vpop.f32.mrb[0].mxu0
      %v9354 = vadd.f32 0.0, %v9353
      %v9355 = vpop.f32.mrb[0].mxu0
      %v9356 = vpop.f32.mrb[0].mxu0
      %v9357 = vadd.f32 0.0, %v9356
      %v9358 = vpop.f32.mrb[0].mxu0
      %9359 = vmatprep.mubr.bf16.mxu0 0
      %9360 = vmatmul.mubr.bf16.gmra.mrb[0].mxu0 %v8123
      %v9361 = vpop.f32.mrb[0].mxu0
      %v9362 = vadd.f32 0.0, %v9361
      %v9363 = vpop.f32.mrb[0].mxu0
      %v9364 = vpop.f32.mrb[0].mxu0
      %v9365 = vadd.f32 0.0, %v9364
      %v9366 = vpop.f32.mrb[0].mxu0
      %9367 = vmatprep.mubr.bf16.mxu0 0
      %9368 = vmatmul.mubr.bf16.gmra.mrb[0].mxu0 %v8126
      %v9369 = vpop.f32.mrb[0].mxu0
      %v9370 = vadd.f32 0.0, %v9369
      %v9371 = vpop.f32.mrb[0].mxu0
      %v9372 = vpop.f32.mrb[0].mxu0
      %v9373 = vadd.f32 0.0, %v9372
      %v9374 = vpop.f32.mrb[0].mxu0
      %9375 = vmatprep.mubr.bf16.mxu0 0
      %9376 = vmatmul.mubr.bf16.gmra.mrb[0].mxu0 %v9187
      %v9377 = vpop.f32.mrb[0].mxu0
      %v9378 = vadd.f32 0.0, %v9377
      %v9379 = vpop.f32.mrb[0].mxu0
      %v9380 = vpop.f32.mrb[0].mxu0
      %v9381 = vadd.f32 0.0, %v9380
      %v9382 = vpop.f32.mrb[0].mxu0
      %9383 = vdwg.mxu0
      %v9384 = vadd.f32 %v9143, %v9226
      %v9385 = vadd.f32 %v9144, %v9229
      %v9386 = vadd.f32 %v9145, %v9234
      %v9387 = vadd.f32 %v9146, %v9237
      %v9388 = vadd.f32 %v9147, %v9242
      %v9389 = vadd.f32 %v9148, %v9245
      %v9390 = vadd.f32 %v9149, %v9250
      %v9391 = vadd.f32 %v9150, %v9253
      %v9392 = vadd.f32 %v9151, %v9258
      %v9393 = vadd.f32 %v9152, %v9261
      %v9394 = vadd.f32 %v9153, %v9266
      %v9395 = vadd.f32 %v9154, %v9269
      %v9396 = vadd.f32 %v9155, %v9274
      %v9397 = vadd.f32 %v9156, %v9277
      %v9398 = vadd.f32 %v9157, %v9282
      %v9399 = vadd.f32 %v9158, %v9285
      %v9400 = vadd.f32 %v9159, %v9290
      %v9401 = vadd.f32 %v9160, %v9293
      %v9402 = vadd.f32 %v9161, %v9298
      %v9403 = vadd.f32 %v9162, %v9301
      %v9404 = vadd.f32 %v9163, %v9306
      %v9405 = vadd.f32 %v9164, %v9309
      %v9406 = vadd.f32 %v9165, %v9314
      %v9407 = vadd.f32 %v9166, %v9317
      %v9408 = vadd.f32 %v9167, %v9322
      %v9409 = vadd.f32 %v9168, %v9325
      %v9410 = vadd.f32 %v9169, %v9330
      %v9411 = vadd.f32 %v9170, %v9333
      %v9412 = vadd.f32 %v9171, %v9338
      %v9413 = vadd.f32 %v9172, %v9341
      %v9414 = vadd.f32 %v9173, %v9346
      %v9415 = vadd.f32 %v9174, %v9349
      %v9416 = vadd.f32 %v9175, %v9354
      %v9417 = vadd.f32 %v9176, %v9357
      %v9418 = vadd.f32 %v9177, %v9362
      %v9419 = vadd.f32 %v9178, %v9365
      %v9420 = vadd.f32 %v9179, %v9370
      %v9421 = vadd.f32 %v9180, %v9373
      %v9422 = vadd.f32 %v9181, %v9378
      %v9423 = vadd.f32 %v9182, %v9381
      %v9424 = vrot.slane %v8931, 4
      %v9425 = vrot.slane %v8934, 5
      %v9426 = vor.u32 %v9424, %v9425
      %v9427 = vrot.slane %v8939, 4
      %v9428 = vrot.slane %v8942, 5
      %v9429 = vor.u32 %v9427, %v9428
      %v9430 = vsel %vm1680, %v9426, %v9429
      %s9432 = scalar_lea.vmem %s3, 46
      %v9433 = vld [vmem:[%s9432] sm:$0x3]
      %9434 = vmatprep.subr.bf16.mxu0 0
      %9435 = vmatpush1.bf16.xpose.msra.mxu0 %v9433
      %9436 = vmatprep.subr.bf16.mxu0 0
      %9437 = vmatpush1.bf16.xpose.msra.mxu0 0
      %9438 = vmatprep.subr.bf16.mxu0 0
      %9439 = vmatpush1.bf16.xpose.msra.mxu0 0
      %9440 = vmatprep.subr.bf16.mxu0 0
      %9441 = vmatpush1.bf16.xpose.msra.mxu0 0
      %9442 = vmatprep.subr.bf16.mxu0 0
      %9443 = vmatpush1.bf16.xpose.msra.mxu0 0
      %9444 = vmatprep.subr.bf16.mxu0 0
      %9445 = vmatpush1.bf16.xpose.msra.mxu0 0
      %9446 = vmatprep.subr.bf16.mxu0 0
      %9447 = vmatpush1.bf16.xpose.msra.mxu0 0
      %9448 = vmatprep.subr.bf16.mxu0 0
      %9449 = vmatpush1.bf16.xpose.msra.mxu0 0
      %9450 = vmatprep.subr.bf16.mxu0 0
      %9451 = vmatpush1.bf16.xpose.msra.mxu0 0
      %9452 = vmatprep.subr.bf16.mxu0 0
      %9453 = vmatpush1.bf16.xpose.msra.mxu0 0
      %9454 = vmatprep.subr.bf16.mxu0 0
      %9455 = vmatpush1.bf16.xpose.msra.mxu0 0
      %9456 = vmatprep.subr.bf16.mxu0 0
      %9457 = vmatpush1.bf16.xpose.msra.mxu0 0
      %9458 = vmatprep.subr.bf16.mxu0 0
      %9459 = vmatpush1.bf16.xpose.msra.mxu0 0
      %9460 = vmatprep.subr.bf16.mxu0 0
      %9461 = vmatpush1.bf16.xpose.msra.mxu0 0
      %9462 = vmatprep.subr.bf16.mxu0 0
      %9463 = vmatpush1.bf16.xpose.msra.mxu0 0
      %9464 = vmatprep.subr.bf16.mxu0 0
      %9465 = vmatpush1.bf16.xpose.msra.mxu0 0
      %9466 = vmatprep.mubr.bf16.mxu0 0
      %9467 = vmatmul.mubr.bf16.gmra.mrb[0].mxu0 %v8548
      %v9468 = vpop.f32.mrb[0].mxu0
      %v9469 = vadd.f32 0.0, %v9468
      %v9470 = vpop.f32.mrb[0].mxu0
      %v9471 = vpop.f32.mrb[0].mxu0
      %v9472 = vadd.f32 0.0, %v9471
      %v9473 = vpop.f32.mrb[0].mxu0
      %9474 = vmatprep.mubr.bf16.mxu0 0
      %9475 = vmatmul.mubr.bf16.gmra.mrb[0].mxu0 %v8555
      %v9476 = vpop.f32.mrb[0].mxu0
      %v9477 = vadd.f32 0.0, %v9476
      %v9478 = vpop.f32.mrb[0].mxu0
      %v9479 = vpop.f32.mrb[0].mxu0
      %v9480 = vadd.f32 0.0, %v9479
      %v9481 = vpop.f32.mrb[0].mxu0
      %9482 = vmatprep.mubr.bf16.mxu0 0
      %9483 = vmatmul.mubr.bf16.gmra.mrb[0].mxu0 %v8562
      %v9484 = vpop.f32.mrb[0].mxu0
      %v9485 = vadd.f32 0.0, %v9484
      %v9486 = vpop.f32.mrb[0].mxu0
      %v9487 = vpop.f32.mrb[0].mxu0
      %v9488 = vadd.f32 0.0, %v9487
      %v9489 = vpop.f32.mrb[0].mxu0
      %9490 = vmatprep.mubr.bf16.mxu0 0
      %9491 = vmatmul.mubr.bf16.gmra.mrb[0].mxu0 %v8569
      %v9492 = vpop.f32.mrb[0].mxu0
      %v9493 = vadd.f32 0.0, %v9492
      %v9494 = vpop.f32.mrb[0].mxu0
      %v9495 = vpop.f32.mrb[0].mxu0
      %v9496 = vadd.f32 0.0, %v9495
      %v9497 = vpop.f32.mrb[0].mxu0
      %9498 = vmatprep.mubr.bf16.mxu0 0
      %9499 = vmatmul.mubr.bf16.gmra.mrb[0].mxu0 %v8576
      %v9500 = vpop.f32.mrb[0].mxu0
      %v9501 = vadd.f32 0.0, %v9500
      %v9502 = vpop.f32.mrb[0].mxu0
      %v9503 = vpop.f32.mrb[0].mxu0
      %v9504 = vadd.f32 0.0, %v9503
      %v9505 = vpop.f32.mrb[0].mxu0
      %9506 = vmatprep.mubr.bf16.mxu0 0
      %9507 = vmatmul.mubr.bf16.gmra.mrb[0].mxu0 %v8583
      %v9508 = vpop.f32.mrb[0].mxu0
      %v9509 = vadd.f32 0.0, %v9508
      %v9510 = vpop.f32.mrb[0].mxu0
      %v9511 = vpop.f32.mrb[0].mxu0
      %v9512 = vadd.f32 0.0, %v9511
      %v9513 = vpop.f32.mrb[0].mxu0
      %9514 = vmatprep.mubr.bf16.mxu0 0
      %9515 = vmatmul.mubr.bf16.gmra.mrb[0].mxu0 %v8590
      %v9516 = vpop.f32.mrb[0].mxu0
      %v9517 = vadd.f32 0.0, %v9516
      %v9518 = vpop.f32.mrb[0].mxu0
      %v9519 = vpop.f32.mrb[0].mxu0
      %v9520 = vadd.f32 0.0, %v9519
      %v9521 = vpop.f32.mrb[0].mxu0
      %9522 = vmatprep.mubr.bf16.mxu0 0
      %9523 = vmatmul.mubr.bf16.gmra.mrb[0].mxu0 %v8597
      %v9524 = vpop.f32.mrb[0].mxu0
      %v9525 = vadd.f32 0.0, %v9524
      %v9526 = vpop.f32.mrb[0].mxu0
      %v9527 = vpop.f32.mrb[0].mxu0
      %v9528 = vadd.f32 0.0, %v9527
      %v9529 = vpop.f32.mrb[0].mxu0
      %9530 = vmatprep.mubr.bf16.mxu0 0
      %9531 = vmatmul.mubr.bf16.gmra.mrb[0].mxu0 %v8604
      %v9532 = vpop.f32.mrb[0].mxu0
      %v9533 = vadd.f32 0.0, %v9532
      %v9534 = vpop.f32.mrb[0].mxu0
      %v9535 = vpop.f32.mrb[0].mxu0
      %v9536 = vadd.f32 0.0, %v9535
      %v9537 = vpop.f32.mrb[0].mxu0
      %9538 = vmatprep.mubr.bf16.mxu0 0
      %9539 = vmatmul.mubr.bf16.gmra.mrb[0].mxu0 %v8611
      %v9540 = vpop.f32.mrb[0].mxu0
      %v9541 = vadd.f32 0.0, %v9540
      %v9542 = vpop.f32.mrb[0].mxu0
      %v9543 = vpop.f32.mrb[0].mxu0
      %v9544 = vadd.f32 0.0, %v9543
      %v9545 = vpop.f32.mrb[0].mxu0
      %9546 = vmatprep.mubr.bf16.mxu0 0
      %9547 = vmatmul.mubr.bf16.gmra.mrb[0].mxu0 %v8618
      %v9548 = vpop.f32.mrb[0].mxu0
      %v9549 = vadd.f32 0.0, %v9548
      %v9550 = vpop.f32.mrb[0].mxu0
      %v9551 = vpop.f32.mrb[0].mxu0
      %v9552 = vadd.f32 0.0, %v9551
      %v9553 = vpop.f32.mrb[0].mxu0
      %9554 = vmatprep.mubr.bf16.mxu0 0
      %9555 = vmatmul.mubr.bf16.gmra.mrb[0].mxu0 %v8625
      %v9556 = vpop.f32.mrb[0].mxu0
      %v9557 = vadd.f32 0.0, %v9556
      %v9558 = vpop.f32.mrb[0].mxu0
      %v9559 = vpop.f32.mrb[0].mxu0
      %v9560 = vadd.f32 0.0, %v9559
      %v9561 = vpop.f32.mrb[0].mxu0
      %9562 = vmatprep.mubr.bf16.mxu0 0
      %9563 = vmatmul.mubr.bf16.gmra.mrb[0].mxu0 %v8632
      %v9564 = vpop.f32.mrb[0].mxu0
      %v9565 = vadd.f32 0.0, %v9564
      %v9566 = vpop.f32.mrb[0].mxu0
      %v9567 = vpop.f32.mrb[0].mxu0
      %v9568 = vadd.f32 0.0, %v9567
      %v9569 = vpop.f32.mrb[0].mxu0
      %9570 = vmatprep.mubr.bf16.mxu0 0
      %9571 = vmatmul.mubr.bf16.gmra.mrb[0].mxu0 %v8639
      %v9572 = vpop.f32.mrb[0].mxu0
      %v9573 = vadd.f32 0.0, %v9572
      %v9574 = vpop.f32.mrb[0].mxu0
      %v9575 = vpop.f32.mrb[0].mxu0
      %v9576 = vadd.f32 0.0, %v9575
      %v9577 = vpop.f32.mrb[0].mxu0
      %9578 = vmatprep.mubr.bf16.mxu0 0
      %9579 = vmatmul.mubr.bf16.gmra.mrb[0].mxu0 %v8646
      %v9580 = vpop.f32.mrb[0].mxu0
      %v9581 = vadd.f32 0.0, %v9580
      %v9582 = vpop.f32.mrb[0].mxu0
      %v9583 = vpop.f32.mrb[0].mxu0
      %v9584 = vadd.f32 0.0, %v9583
      %v9585 = vpop.f32.mrb[0].mxu0
      %9586 = vmatprep.mubr.bf16.mxu0 0
      %9587 = vmatmul.mubr.bf16.gmra.mrb[0].mxu0 %v8653
      %v9588 = vpop.f32.mrb[0].mxu0
      %v9589 = vadd.f32 0.0, %v9588
      %v9590 = vpop.f32.mrb[0].mxu0
      %v9591 = vpop.f32.mrb[0].mxu0
      %v9592 = vadd.f32 0.0, %v9591
      %v9593 = vpop.f32.mrb[0].mxu0
      %9594 = vmatprep.mubr.bf16.mxu0 0
      %9595 = vmatmul.mubr.bf16.gmra.mrb[0].mxu0 %v8660
      %v9596 = vpop.f32.mrb[0].mxu0
      %v9597 = vadd.f32 0.0, %v9596
      %v9598 = vpop.f32.mrb[0].mxu0
      %v9599 = vpop.f32.mrb[0].mxu0
      %v9600 = vadd.f32 0.0, %v9599
      %v9601 = vpop.f32.mrb[0].mxu0
      %9602 = vmatprep.mubr.bf16.mxu0 0
      %9603 = vmatmul.mubr.bf16.gmra.mrb[0].mxu0 %v8667
      %v9604 = vpop.f32.mrb[0].mxu0
      %v9605 = vadd.f32 0.0, %v9604
      %v9606 = vpop.f32.mrb[0].mxu0
      %v9607 = vpop.f32.mrb[0].mxu0
      %v9608 = vadd.f32 0.0, %v9607
      %v9609 = vpop.f32.mrb[0].mxu0
      %9610 = vmatprep.mubr.bf16.mxu0 0
      %9611 = vmatmul.mubr.bf16.gmra.mrb[0].mxu0 %v8674
      %v9612 = vpop.f32.mrb[0].mxu0
      %v9613 = vadd.f32 0.0, %v9612
      %v9614 = vpop.f32.mrb[0].mxu0
      %v9615 = vpop.f32.mrb[0].mxu0
      %v9616 = vadd.f32 0.0, %v9615
      %v9617 = vpop.f32.mrb[0].mxu0
      %9618 = vmatprep.mubr.bf16.mxu0 0
      %9619 = vmatmul.mubr.bf16.gmra.mrb[0].mxu0 %v9430
      %v9620 = vpop.f32.mrb[0].mxu0
      %v9621 = vadd.f32 0.0, %v9620
      %v9622 = vpop.f32.mrb[0].mxu0
      %v9623 = vpop.f32.mrb[0].mxu0
      %v9624 = vadd.f32 0.0, %v9623
      %v9625 = vpop.f32.mrb[0].mxu0
      %9626 = vdwg.mxu0
      %v9627 = vadd.f32 %v9384, %v9469
      %v9628 = vadd.f32 %v9385, %v9472
      %v9629 = vadd.f32 %v9386, %v9477
      %v9630 = vadd.f32 %v9387, %v9480
      %v9631 = vadd.f32 %v9388, %v9485
      %v9632 = vadd.f32 %v9389, %v9488
      %v9633 = vadd.f32 %v9390, %v9493
      %v9634 = vadd.f32 %v9391, %v9496
      %v9635 = vadd.f32 %v9392, %v9501
      %v9636 = vadd.f32 %v9393, %v9504
      %v9637 = vadd.f32 %v9394, %v9509
      %v9638 = vadd.f32 %v9395, %v9512
      %v9639 = vadd.f32 %v9396, %v9517
      %v9640 = vadd.f32 %v9397, %v9520
      %v9641 = vadd.f32 %v9398, %v9525
      %v9642 = vadd.f32 %v9399, %v9528
      %v9643 = vadd.f32 %v9400, %v9533
      %v9644 = vadd.f32 %v9401, %v9536
      %v9645 = vadd.f32 %v9402, %v9541
      %v9646 = vadd.f32 %v9403, %v9544
      %v9647 = vadd.f32 %v9404, %v9549
      %v9648 = vadd.f32 %v9405, %v9552
      %v9649 = vadd.f32 %v9406, %v9557
      %v9650 = vadd.f32 %v9407, %v9560
      %v9651 = vadd.f32 %v9408, %v9565
      %v9652 = vadd.f32 %v9409, %v9568
      %v9653 = vadd.f32 %v9410, %v9573
      %v9654 = vadd.f32 %v9411, %v9576
      %v9655 = vadd.f32 %v9412, %v9581
      %v9656 = vadd.f32 %v9413, %v9584
      %v9657 = vadd.f32 %v9414, %v9589
      %v9658 = vadd.f32 %v9415, %v9592
      %v9659 = vadd.f32 %v9416, %v9597
      %v9660 = vadd.f32 %v9417, %v9600
      %v9661 = vadd.f32 %v9418, %v9605
      %v9662 = vadd.f32 %v9419, %v9608
      %v9663 = vadd.f32 %v9420, %v9613
      %v9664 = vadd.f32 %v9421, %v9616
      %v9665 = vadd.f32 %v9422, %v9621
      %v9666 = vadd.f32 %v9423, %v9624
      %v9668 = vshrl.u32 %v7663, 16
      %v9670 = vrot.slane %v9668, 3
      %v9671 = vshll.u32 %v7663, 16
      %v9673 = vrot.slane %v9671, 4
      %v9674 = vor.u32 %v9670, %v9673
      %v9676 = vshrl.u32 %v7664, 16
      %v9678 = vrot.slane %v9676, 3
      %v9679 = vshll.u32 %v7664, 16
      %v9681 = vrot.slane %v9679, 4
      %v9682 = vor.u32 %v9678, %v9681
      %v9683 = vsel %vm809, %v9674, %v9682
      %s9685 = scalar_lea.vmem %s3, 48
      %v9686 = vld [vmem:[%s9685] sm:$0x3]
      %9687 = vmatprep.subr.bf16.mxu0 0
      %9688 = vmatpush1.bf16.xpose.msra.mxu0 %v9686
      %9689 = vmatprep.subr.bf16.mxu0 0
      %9690 = vmatpush1.bf16.xpose.msra.mxu0 0
      %9691 = vmatprep.subr.bf16.mxu0 0
      %9692 = vmatpush1.bf16.xpose.msra.mxu0 0
      %9693 = vmatprep.subr.bf16.mxu0 0
      %9694 = vmatpush1.bf16.xpose.msra.mxu0 0
      %9695 = vmatprep.subr.bf16.mxu0 0
      %9696 = vmatpush1.bf16.xpose.msra.mxu0 0
      %9697 = vmatprep.subr.bf16.mxu0 0
      %9698 = vmatpush1.bf16.xpose.msra.mxu0 0
      %9699 = vmatprep.subr.bf16.mxu0 0
      %9700 = vmatpush1.bf16.xpose.msra.mxu0 0
      %9701 = vmatprep.subr.bf16.mxu0 0
      %9702 = vmatpush1.bf16.xpose.msra.mxu0 0
      %9703 = vmatprep.subr.bf16.mxu0 0
      %9704 = vmatpush1.bf16.xpose.msra.mxu0 0
      %9705 = vmatprep.subr.bf16.mxu0 0
      %9706 = vmatpush1.bf16.xpose.msra.mxu0 0
      %9707 = vmatprep.subr.bf16.mxu0 0
      %9708 = vmatpush1.bf16.xpose.msra.mxu0 0
      %9709 = vmatprep.subr.bf16.mxu0 0
      %9710 = vmatpush1.bf16.xpose.msra.mxu0 0
      %9711 = vmatprep.subr.bf16.mxu0 0
      %9712 = vmatpush1.bf16.xpose.msra.mxu0 0
      %9713 = vmatprep.subr.bf16.mxu0 0
      %9714 = vmatpush1.bf16.xpose.msra.mxu0 0
      %9715 = vmatprep.subr.bf16.mxu0 0
      %9716 = vmatpush1.bf16.xpose.msra.mxu0 0
      %9717 = vmatprep.subr.bf16.mxu0 0
      %9718 = vmatpush1.bf16.xpose.msra.mxu0 0
      %9719 = vmatprep.mubr.bf16.mxu0 0
      %9720 = vmatmul.mubr.bf16.gmra.mrb[0].mxu0 %v7715
      %v9721 = vpop.f32.mrb[0].mxu0
      %v9722 = vadd.f32 0.0, %v9721
      %v9723 = vpop.f32.mrb[0].mxu0
      %v9724 = vpop.f32.mrb[0].mxu0
      %v9725 = vadd.f32 0.0, %v9724
      %v9726 = vpop.f32.mrb[0].mxu0
      %9727 = vmatprep.mubr.bf16.mxu0 0
      %9728 = vmatmul.mubr.bf16.gmra.mrb[0].mxu0 %v7732
      %v9729 = vpop.f32.mrb[0].mxu0
      %v9730 = vadd.f32 0.0, %v9729
      %v9731 = vpop.f32.mrb[0].mxu0
      %v9732 = vpop.f32.mrb[0].mxu0
      %v9733 = vadd.f32 0.0, %v9732
      %v9734 = vpop.f32.mrb[0].mxu0
      %9735 = vmatprep.mubr.bf16.mxu0 0
      %9736 = vmatmul.mubr.bf16.gmra.mrb[0].mxu0 %v7749
      %v9737 = vpop.f32.mrb[0].mxu0
      %v9738 = vadd.f32 0.0, %v9737
      %v9739 = vpop.f32.mrb[0].mxu0
      %v9740 = vpop.f32.mrb[0].mxu0
      %v9741 = vadd.f32 0.0, %v9740
      %v9742 = vpop.f32.mrb[0].mxu0
      %9743 = vmatprep.mubr.bf16.mxu0 0
      %9744 = vmatmul.mubr.bf16.gmra.mrb[0].mxu0 %v7766
      %v9745 = vpop.f32.mrb[0].mxu0
      %v9746 = vadd.f32 0.0, %v9745
      %v9747 = vpop.f32.mrb[0].mxu0
      %v9748 = vpop.f32.mrb[0].mxu0
      %v9749 = vadd.f32 0.0, %v9748
      %v9750 = vpop.f32.mrb[0].mxu0
      %9751 = vmatprep.mubr.bf16.mxu0 0
      %9752 = vmatmul.mubr.bf16.gmra.mrb[0].mxu0 %v7783
      %v9753 = vpop.f32.mrb[0].mxu0
      %v9754 = vadd.f32 0.0, %v9753
      %v9755 = vpop.f32.mrb[0].mxu0
      %v9756 = vpop.f32.mrb[0].mxu0
      %v9757 = vadd.f32 0.0, %v9756
      %v9758 = vpop.f32.mrb[0].mxu0
      %9759 = vmatprep.mubr.bf16.mxu0 0
      %9760 = vmatmul.mubr.bf16.gmra.mrb[0].mxu0 %v7800
      %v9761 = vpop.f32.mrb[0].mxu0
      %v9762 = vadd.f32 0.0, %v9761
      %v9763 = vpop.f32.mrb[0].mxu0
      %v9764 = vpop.f32.mrb[0].mxu0
      %v9765 = vadd.f32 0.0, %v9764
      %v9766 = vpop.f32.mrb[0].mxu0
      %9767 = vmatprep.mubr.bf16.mxu0 0
      %9768 = vmatmul.mubr.bf16.gmra.mrb[0].mxu0 %v7817
      %v9769 = vpop.f32.mrb[0].mxu0
      %v9770 = vadd.f32 0.0, %v9769
      %v9771 = vpop.f32.mrb[0].mxu0
      %v9772 = vpop.f32.mrb[0].mxu0
      %v9773 = vadd.f32 0.0, %v9772
      %v9774 = vpop.f32.mrb[0].mxu0
      %9775 = vmatprep.mubr.bf16.mxu0 0
      %9776 = vmatmul.mubr.bf16.gmra.mrb[0].mxu0 %v7834
      %v9777 = vpop.f32.mrb[0].mxu0
      %v9778 = vadd.f32 0.0, %v9777
      %v9779 = vpop.f32.mrb[0].mxu0
      %v9780 = vpop.f32.mrb[0].mxu0
      %v9781 = vadd.f32 0.0, %v9780
      %v9782 = vpop.f32.mrb[0].mxu0
      %9783 = vmatprep.mubr.bf16.mxu0 0
      %9784 = vmatmul.mubr.bf16.gmra.mrb[0].mxu0 %v7851
      %v9785 = vpop.f32.mrb[0].mxu0
      %v9786 = vadd.f32 0.0, %v9785
      %v9787 = vpop.f32.mrb[0].mxu0
      %v9788 = vpop.f32.mrb[0].mxu0
      %v9789 = vadd.f32 0.0, %v9788
      %v9790 = vpop.f32.mrb[0].mxu0
      %9791 = vmatprep.mubr.bf16.mxu0 0
      %9792 = vmatmul.mubr.bf16.gmra.mrb[0].mxu0 %v7868
      %v9793 = vpop.f32.mrb[0].mxu0
      %v9794 = vadd.f32 0.0, %v9793
      %v9795 = vpop.f32.mrb[0].mxu0
      %v9796 = vpop.f32.mrb[0].mxu0
      %v9797 = vadd.f32 0.0, %v9796
      %v9798 = vpop.f32.mrb[0].mxu0
      %9799 = vmatprep.mubr.bf16.mxu0 0
      %9800 = vmatmul.mubr.bf16.gmra.mrb[0].mxu0 %v7885
      %v9801 = vpop.f32.mrb[0].mxu0
      %v9802 = vadd.f32 0.0, %v9801
      %v9803 = vpop.f32.mrb[0].mxu0
      %v9804 = vpop.f32.mrb[0].mxu0
      %v9805 = vadd.f32 0.0, %v9804
      %v9806 = vpop.f32.mrb[0].mxu0
      %9807 = vmatprep.mubr.bf16.mxu0 0
      %9808 = vmatmul.mubr.bf16.gmra.mrb[0].mxu0 %v7902
      %v9809 = vpop.f32.mrb[0].mxu0
      %v9810 = vadd.f32 0.0, %v9809
      %v9811 = vpop.f32.mrb[0].mxu0
      %v9812 = vpop.f32.mrb[0].mxu0
      %v9813 = vadd.f32 0.0, %v9812
      %v9814 = vpop.f32.mrb[0].mxu0
      %9815 = vmatprep.mubr.bf16.mxu0 0
      %9816 = vmatmul.mubr.bf16.gmra.mrb[0].mxu0 %v7919
      %v9817 = vpop.f32.mrb[0].mxu0
      %v9818 = vadd.f32 0.0, %v9817
      %v9819 = vpop.f32.mrb[0].mxu0
      %v9820 = vpop.f32.mrb[0].mxu0
      %v9821 = vadd.f32 0.0, %v9820
      %v9822 = vpop.f32.mrb[0].mxu0
      %9823 = vmatprep.mubr.bf16.mxu0 0
      %9824 = vmatmul.mubr.bf16.gmra.mrb[0].mxu0 %v7936
      %v9825 = vpop.f32.mrb[0].mxu0
      %v9826 = vadd.f32 0.0, %v9825
      %v9827 = vpop.f32.mrb[0].mxu0
      %v9828 = vpop.f32.mrb[0].mxu0
      %v9829 = vadd.f32 0.0, %v9828
      %v9830 = vpop.f32.mrb[0].mxu0
      %9831 = vmatprep.mubr.bf16.mxu0 0
      %9832 = vmatmul.mubr.bf16.gmra.mrb[0].mxu0 %v7953
      %v9833 = vpop.f32.mrb[0].mxu0
      %v9834 = vadd.f32 0.0, %v9833
      %v9835 = vpop.f32.mrb[0].mxu0
      %v9836 = vpop.f32.mrb[0].mxu0
      %v9837 = vadd.f32 0.0, %v9836
      %v9838 = vpop.f32.mrb[0].mxu0
      %9839 = vmatprep.mubr.bf16.mxu0 0
      %9840 = vmatmul.mubr.bf16.gmra.mrb[0].mxu0 %v7970
      %v9841 = vpop.f32.mrb[0].mxu0
      %v9842 = vadd.f32 0.0, %v9841
      %v9843 = vpop.f32.mrb[0].mxu0
      %v9844 = vpop.f32.mrb[0].mxu0
      %v9845 = vadd.f32 0.0, %v9844
      %v9846 = vpop.f32.mrb[0].mxu0
      %9847 = vmatprep.mubr.bf16.mxu0 0
      %9848 = vmatmul.mubr.bf16.gmra.mrb[0].mxu0 %v7987
      %v9849 = vpop.f32.mrb[0].mxu0
      %v9850 = vadd.f32 0.0, %v9849
      %v9851 = vpop.f32.mrb[0].mxu0
      %v9852 = vpop.f32.mrb[0].mxu0
      %v9853 = vadd.f32 0.0, %v9852
      %v9854 = vpop.f32.mrb[0].mxu0
      %9855 = vmatprep.mubr.bf16.mxu0 0
      %9856 = vmatmul.mubr.bf16.gmra.mrb[0].mxu0 %v8004
      %v9857 = vpop.f32.mrb[0].mxu0
      %v9858 = vadd.f32 0.0, %v9857
      %v9859 = vpop.f32.mrb[0].mxu0
      %v9860 = vpop.f32.mrb[0].mxu0
      %v9861 = vadd.f32 0.0, %v9860
      %v9862 = vpop.f32.mrb[0].mxu0
      %9863 = vmatprep.mubr.bf16.mxu0 0
      %9864 = vmatmul.mubr.bf16.gmra.mrb[0].mxu0 %v8946
      %v9865 = vpop.f32.mrb[0].mxu0
      %v9866 = vadd.f32 0.0, %v9865
      %v9867 = vpop.f32.mrb[0].mxu0
      %v9868 = vpop.f32.mrb[0].mxu0
      %v9869 = vadd.f32 0.0, %v9868
      %v9870 = vpop.f32.mrb[0].mxu0
      %9871 = vmatprep.mubr.bf16.mxu0 0
      %9872 = vmatmul.mubr.bf16.gmra.mrb[0].mxu0 %v9683
      %v9873 = vpop.f32.mrb[0].mxu0
      %v9874 = vadd.f32 0.0, %v9873
      %v9875 = vpop.f32.mrb[0].mxu0
      %v9876 = vpop.f32.mrb[0].mxu0
      %v9877 = vadd.f32 0.0, %v9876
      %v9878 = vpop.f32.mrb[0].mxu0
      %9879 = vdwg.mxu0
      %v9880 = vadd.f32 %v9627, %v9722
      %v9881 = vadd.f32 %v9628, %v9725
      %v9882 = vadd.f32 %v9629, %v9730
      %v9883 = vadd.f32 %v9630, %v9733
      %v9884 = vadd.f32 %v9631, %v9738
      %v9885 = vadd.f32 %v9632, %v9741
      %v9886 = vadd.f32 %v9633, %v9746
      %v9887 = vadd.f32 %v9634, %v9749
      %v9888 = vadd.f32 %v9635, %v9754
      %v9889 = vadd.f32 %v9636, %v9757
      %v9890 = vadd.f32 %v9637, %v9762
      %v9891 = vadd.f32 %v9638, %v9765
      %v9892 = vadd.f32 %v9639, %v9770
      %v9893 = vadd.f32 %v9640, %v9773
      %v9894 = vadd.f32 %v9641, %v9778
      %v9895 = vadd.f32 %v9642, %v9781
      %v9896 = vadd.f32 %v9643, %v9786
      %v9897 = vadd.f32 %v9644, %v9789
      %v9898 = vadd.f32 %v9645, %v9794
      %v9899 = vadd.f32 %v9646, %v9797
      %v9900 = vadd.f32 %v9647, %v9802
      %v9901 = vadd.f32 %v9648, %v9805
      %v9902 = vadd.f32 %v9649, %v9810
      %v9903 = vadd.f32 %v9650, %v9813
      %v9904 = vadd.f32 %v9651, %v9818
      %v9905 = vadd.f32 %v9652, %v9821
      %v9906 = vadd.f32 %v9653, %v9826
      %v9907 = vadd.f32 %v9654, %v9829
      %v9908 = vadd.f32 %v9655, %v9834
      %v9909 = vadd.f32 %v9656, %v9837
      %v9910 = vadd.f32 %v9657, %v9842
      %v9911 = vadd.f32 %v9658, %v9845
      %v9912 = vadd.f32 %v9659, %v9850
      %v9913 = vadd.f32 %v9660, %v9853
      %v9914 = vadd.f32 %v9661, %v9858
      %v9915 = vadd.f32 %v9662, %v9861
      %v9916 = vadd.f32 %v9663, %v9866
      %v9917 = vadd.f32 %v9664, %v9869
      %v9918 = vadd.f32 %v9665, %v9874
      %v9919 = vadd.f32 %v9666, %v9877
      %v9922 = vrot.slane %v7663, 4
      %v9923 = vrot.slane %v7664, 4
      %v9924 = vsel %vm1211, %v9922, %v9923
      %s9926 = scalar_lea.vmem %s3, 50
      %v9927 = vld [vmem:[%s9926] sm:$0x3]
      %9928 = vmatprep.subr.bf16.mxu0 0
      %9929 = vmatpush1.bf16.xpose.msra.mxu0 %v9927
      %9930 = vmatprep.subr.bf16.mxu0 0
      %9931 = vmatpush1.bf16.xpose.msra.mxu0 0
      %9932 = vmatprep.subr.bf16.mxu0 0
      %9933 = vmatpush1.bf16.xpose.msra.mxu0 0
      %9934 = vmatprep.subr.bf16.mxu0 0
      %9935 = vmatpush1.bf16.xpose.msra.mxu0 0
      %9936 = vmatprep.subr.bf16.mxu0 0
      %9937 = vmatpush1.bf16.xpose.msra.mxu0 0
      %9938 = vmatprep.subr.bf16.mxu0 0
      %9939 = vmatpush1.bf16.xpose.msra.mxu0 0
      %9940 = vmatprep.subr.bf16.mxu0 0
      %9941 = vmatpush1.bf16.xpose.msra.mxu0 0
      %9942 = vmatprep.subr.bf16.mxu0 0
      %9943 = vmatpush1.bf16.xpose.msra.mxu0 0
      %9944 = vmatprep.subr.bf16.mxu0 0
      %9945 = vmatpush1.bf16.xpose.msra.mxu0 0
      %9946 = vmatprep.subr.bf16.mxu0 0
      %9947 = vmatpush1.bf16.xpose.msra.mxu0 0
      %9948 = vmatprep.subr.bf16.mxu0 0
      %9949 = vmatpush1.bf16.xpose.msra.mxu0 0
      %9950 = vmatprep.subr.bf16.mxu0 0
      %9951 = vmatpush1.bf16.xpose.msra.mxu0 0
      %9952 = vmatprep.subr.bf16.mxu0 0
      %9953 = vmatpush1.bf16.xpose.msra.mxu0 0
      %9954 = vmatprep.subr.bf16.mxu0 0
      %9955 = vmatpush1.bf16.xpose.msra.mxu0 0
      %9956 = vmatprep.subr.bf16.mxu0 0
      %9957 = vmatpush1.bf16.xpose.msra.mxu0 0
      %9958 = vmatprep.subr.bf16.mxu0 0
      %9959 = vmatpush1.bf16.xpose.msra.mxu0 0
      %9960 = vmatprep.mubr.bf16.mxu0 0
      %9961 = vmatmul.mubr.bf16.gmra.mrb[0].mxu0 %v8075
      %v9962 = vpop.f32.mrb[0].mxu0
      %v9963 = vadd.f32 0.0, %v9962
      %v9964 = vpop.f32.mrb[0].mxu0
      %v9965 = vpop.f32.mrb[0].mxu0
      %v9966 = vadd.f32 0.0, %v9965
      %v9967 = vpop.f32.mrb[0].mxu0
      %9968 = vmatprep.mubr.bf16.mxu0 0
      %9969 = vmatmul.mubr.bf16.gmra.mrb[0].mxu0 %v8078
      %v9970 = vpop.f32.mrb[0].mxu0
      %v9971 = vadd.f32 0.0, %v9970
      %v9972 = vpop.f32.mrb[0].mxu0
      %v9973 = vpop.f32.mrb[0].mxu0
      %v9974 = vadd.f32 0.0, %v9973
      %v9975 = vpop.f32.mrb[0].mxu0
      %9976 = vmatprep.mubr.bf16.mxu0 0
      %9977 = vmatmul.mubr.bf16.gmra.mrb[0].mxu0 %v8081
      %v9978 = vpop.f32.mrb[0].mxu0
      %v9979 = vadd.f32 0.0, %v9978
      %v9980 = vpop.f32.mrb[0].mxu0
      %v9981 = vpop.f32.mrb[0].mxu0
      %v9982 = vadd.f32 0.0, %v9981
      %v9983 = vpop.f32.mrb[0].mxu0
      %9984 = vmatprep.mubr.bf16.mxu0 0
      %9985 = vmatmul.mubr.bf16.gmra.mrb[0].mxu0 %v8084
      %v9986 = vpop.f32.mrb[0].mxu0
      %v9987 = vadd.f32 0.0, %v9986
      %v9988 = vpop.f32.mrb[0].mxu0
      %v9989 = vpop.f32.mrb[0].mxu0
      %v9990 = vadd.f32 0.0, %v9989
      %v9991 = vpop.f32.mrb[0].mxu0
      %9992 = vmatprep.mubr.bf16.mxu0 0
      %9993 = vmatmul.mubr.bf16.gmra.mrb[0].mxu0 %v8087
      %v9994 = vpop.f32.mrb[0].mxu0
      %v9995 = vadd.f32 0.0, %v9994
      %v9996 = vpop.f32.mrb[0].mxu0
      %v9997 = vpop.f32.mrb[0].mxu0
      %v9998 = vadd.f32 0.0, %v9997
      %v9999 = vpop.f32.mrb[0].mxu0
      %10000 = vmatprep.mubr.bf16.mxu0 0
      %10001 = vmatmul.mubr.bf16.gmra.mrb[0].mxu0 %v8090
      %v10002 = vpop.f32.mrb[0].mxu0
      %v10003 = vadd.f32 0.0, %v10002
      %v10004 = vpop.f32.mrb[0].mxu0
      %v10005 = vpop.f32.mrb[0].mxu0
      %v10006 = vadd.f32 0.0, %v10005
      %v10007 = vpop.f32.mrb[0].mxu0
      %10008 = vmatprep.mubr.bf16.mxu0 0
      %10009 = vmatmul.mubr.bf16.gmra.mrb[0].mxu0 %v8093
      %v10010 = vpop.f32.mrb[0].mxu0
      %v10011 = vadd.f32 0.0, %v10010
      %v10012 = vpop.f32.mrb[0].mxu0
      %v10013 = vpop.f32.mrb[0].mxu0
      %v10014 = vadd.f32 0.0, %v10013
      %v10015 = vpop.f32.mrb[0].mxu0
      %10016 = vmatprep.mubr.bf16.mxu0 0
      %10017 = vmatmul.mubr.bf16.gmra.mrb[0].mxu0 %v8096
      %v10018 = vpop.f32.mrb[0].mxu0
      %v10019 = vadd.f32 0.0, %v10018
      %v10020 = vpop.f32.mrb[0].mxu0
      %v10021 = vpop.f32.mrb[0].mxu0
      %v10022 = vadd.f32 0.0, %v10021
      %v10023 = vpop.f32.mrb[0].mxu0
      %10024 = vmatprep.mubr.bf16.mxu0 0
      %10025 = vmatmul.mubr.bf16.gmra.mrb[0].mxu0 %v8099
      %v10026 = vpop.f32.mrb[0].mxu0
      %v10027 = vadd.f32 0.0, %v10026
      %v10028 = vpop.f32.mrb[0].mxu0
      %v10029 = vpop.f32.mrb[0].mxu0
      %v10030 = vadd.f32 0.0, %v10029
      %v10031 = vpop.f32.mrb[0].mxu0
      %10032 = vmatprep.mubr.bf16.mxu0 0
      %10033 = vmatmul.mubr.bf16.gmra.mrb[0].mxu0 %v8102
      %v10034 = vpop.f32.mrb[0].mxu0
      %v10035 = vadd.f32 0.0, %v10034
      %v10036 = vpop.f32.mrb[0].mxu0
      %v10037 = vpop.f32.mrb[0].mxu0
      %v10038 = vadd.f32 0.0, %v10037
      %v10039 = vpop.f32.mrb[0].mxu0
      %10040 = vmatprep.mubr.bf16.mxu0 0
      %10041 = vmatmul.mubr.bf16.gmra.mrb[0].mxu0 %v8105
      %v10042 = vpop.f32.mrb[0].mxu0
      %v10043 = vadd.f32 0.0, %v10042
      %v10044 = vpop.f32.mrb[0].mxu0
      %v10045 = vpop.f32.mrb[0].mxu0
      %v10046 = vadd.f32 0.0, %v10045
      %v10047 = vpop.f32.mrb[0].mxu0
      %10048 = vmatprep.mubr.bf16.mxu0 0
      %10049 = vmatmul.mubr.bf16.gmra.mrb[0].mxu0 %v8108
      %v10050 = vpop.f32.mrb[0].mxu0
      %v10051 = vadd.f32 0.0, %v10050
      %v10052 = vpop.f32.mrb[0].mxu0
      %v10053 = vpop.f32.mrb[0].mxu0
      %v10054 = vadd.f32 0.0, %v10053
      %v10055 = vpop.f32.mrb[0].mxu0
      %10056 = vmatprep.mubr.bf16.mxu0 0
      %10057 = vmatmul.mubr.bf16.gmra.mrb[0].mxu0 %v8111
      %v10058 = vpop.f32.mrb[0].mxu0
      %v10059 = vadd.f32 0.0, %v10058
      %v10060 = vpop.f32.mrb[0].mxu0
      %v10061 = vpop.f32.mrb[0].mxu0
      %v10062 = vadd.f32 0.0, %v10061
      %v10063 = vpop.f32.mrb[0].mxu0
      %10064 = vmatprep.mubr.bf16.mxu0 0
      %10065 = vmatmul.mubr.bf16.gmra.mrb[0].mxu0 %v8114
      %v10066 = vpop.f32.mrb[0].mxu0
      %v10067 = vadd.f32 0.0, %v10066
      %v10068 = vpop.f32.mrb[0].mxu0
      %v10069 = vpop.f32.mrb[0].mxu0
      %v10070 = vadd.f32 0.0, %v10069
      %v10071 = vpop.f32.mrb[0].mxu0
      %10072 = vmatprep.mubr.bf16.mxu0 0
      %10073 = vmatmul.mubr.bf16.gmra.mrb[0].mxu0 %v8117
      %v10074 = vpop.f32.mrb[0].mxu0
      %v10075 = vadd.f32 0.0, %v10074
      %v10076 = vpop.f32.mrb[0].mxu0
      %v10077 = vpop.f32.mrb[0].mxu0
      %v10078 = vadd.f32 0.0, %v10077
      %v10079 = vpop.f32.mrb[0].mxu0
      %10080 = vmatprep.mubr.bf16.mxu0 0
      %10081 = vmatmul.mubr.bf16.gmra.mrb[0].mxu0 %v8120
      %v10082 = vpop.f32.mrb[0].mxu0
      %v10083 = vadd.f32 0.0, %v10082
      %v10084 = vpop.f32.mrb[0].mxu0
      %v10085 = vpop.f32.mrb[0].mxu0
      %v10086 = vadd.f32 0.0, %v10085
      %v10087 = vpop.f32.mrb[0].mxu0
      %10088 = vmatprep.mubr.bf16.mxu0 0
      %10089 = vmatmul.mubr.bf16.gmra.mrb[0].mxu0 %v8123
      %v10090 = vpop.f32.mrb[0].mxu0
      %v10091 = vadd.f32 0.0, %v10090
      %v10092 = vpop.f32.mrb[0].mxu0
      %v10093 = vpop.f32.mrb[0].mxu0
      %v10094 = vadd.f32 0.0, %v10093
      %v10095 = vpop.f32.mrb[0].mxu0
      %10096 = vmatprep.mubr.bf16.mxu0 0
      %10097 = vmatmul.mubr.bf16.gmra.mrb[0].mxu0 %v8126
      %v10098 = vpop.f32.mrb[0].mxu0
      %v10099 = vadd.f32 0.0, %v10098
      %v10100 = vpop.f32.mrb[0].mxu0
      %v10101 = vpop.f32.mrb[0].mxu0
      %v10102 = vadd.f32 0.0, %v10101
      %v10103 = vpop.f32.mrb[0].mxu0
      %10104 = vmatprep.mubr.bf16.mxu0 0
      %10105 = vmatmul.mubr.bf16.gmra.mrb[0].mxu0 %v9187
      %v10106 = vpop.f32.mrb[0].mxu0
      %v10107 = vadd.f32 0.0, %v10106
      %v10108 = vpop.f32.mrb[0].mxu0
      %v10109 = vpop.f32.mrb[0].mxu0
      %v10110 = vadd.f32 0.0, %v10109
      %v10111 = vpop.f32.mrb[0].mxu0
      %10112 = vmatprep.mubr.bf16.mxu0 0
      %10113 = vmatmul.mubr.bf16.gmra.mrb[0].mxu0 %v9924
      %v10114 = vpop.f32.mrb[0].mxu0
      %v10115 = vadd.f32 0.0, %v10114
      %v10116 = vpop.f32.mrb[0].mxu0
      %v10117 = vpop.f32.mrb[0].mxu0
      %v10118 = vadd.f32 0.0, %v10117
      %v10119 = vpop.f32.mrb[0].mxu0
      %10120 = vdwg.mxu0
      %v10121 = vadd.f32 %v9880, %v9963
      %v10122 = vadd.f32 %v9881, %v9966
      %v10123 = vadd.f32 %v9882, %v9971
      %v10124 = vadd.f32 %v9883, %v9974
      %v10125 = vadd.f32 %v9884, %v9979
      %v10126 = vadd.f32 %v9885, %v9982
      %v10127 = vadd.f32 %v9886, %v9987
      %v10128 = vadd.f32 %v9887, %v9990
      %v10129 = vadd.f32 %v9888, %v9995
      %v10130 = vadd.f32 %v9889, %v9998
      %v10131 = vadd.f32 %v9890, %v10003
      %v10132 = vadd.f32 %v9891, %v10006
      %v10133 = vadd.f32 %v9892, %v10011
      %v10134 = vadd.f32 %v9893, %v10014
      %v10135 = vadd.f32 %v9894, %v10019
      %v10136 = vadd.f32 %v9895, %v10022
      %v10137 = vadd.f32 %v9896, %v10027
      %v10138 = vadd.f32 %v9897, %v10030
      %v10139 = vadd.f32 %v9898, %v10035
      %v10140 = vadd.f32 %v9899, %v10038
      %v10141 = vadd.f32 %v9900, %v10043
      %v10142 = vadd.f32 %v9901, %v10046
      %v10143 = vadd.f32 %v9902, %v10051
      %v10144 = vadd.f32 %v9903, %v10054
      %v10145 = vadd.f32 %v9904, %v10059
      %v10146 = vadd.f32 %v9905, %v10062
      %v10147 = vadd.f32 %v9906, %v10067
      %v10148 = vadd.f32 %v9907, %v10070
      %v10149 = vadd.f32 %v9908, %v10075
      %v10150 = vadd.f32 %v9909, %v10078
      %v10151 = vadd.f32 %v9910, %v10083
      %v10152 = vadd.f32 %v9911, %v10086
      %v10153 = vadd.f32 %v9912, %v10091
      %v10154 = vadd.f32 %v9913, %v10094
      %v10155 = vadd.f32 %v9914, %v10099
      %v10156 = vadd.f32 %v9915, %v10102
      %v10157 = vadd.f32 %v9916, %v10107
      %v10158 = vadd.f32 %v9917, %v10110
      %v10159 = vadd.f32 %v9918, %v10115
      %v10160 = vadd.f32 %v9919, %v10118
      %v10161 = vrot.slane %v9668, 4
      %v10162 = vrot.slane %v9671, 5
      %v10163 = vor.u32 %v10161, %v10162
      %v10164 = vrot.slane %v9676, 4
      %v10165 = vrot.slane %v9679, 5
      %v10166 = vor.u32 %v10164, %v10165
      %v10167 = vsel %vm1680, %v10163, %v10166
      %s10169 = scalar_lea.vmem %s3, 52
      %v10170 = vld [vmem:[%s10169] sm:$0x3]
      %10171 = vmatprep.subr.bf16.mxu0 0
      %10172 = vmatpush1.bf16.xpose.msra.mxu0 %v10170
      %10173 = vmatprep.subr.bf16.mxu0 0
      %10174 = vmatpush1.bf16.xpose.msra.mxu0 0
      %10175 = vmatprep.subr.bf16.mxu0 0
      %10176 = vmatpush1.bf16.xpose.msra.mxu0 0
      %10177 = vmatprep.subr.bf16.mxu0 0
      %10178 = vmatpush1.bf16.xpose.msra.mxu0 0
      %10179 = vmatprep.subr.bf16.mxu0 0
      %10180 = vmatpush1.bf16.xpose.msra.mxu0 0
      %10181 = vmatprep.subr.bf16.mxu0 0
      %10182 = vmatpush1.bf16.xpose.msra.mxu0 0
      %10183 = vmatprep.subr.bf16.mxu0 0
      %10184 = vmatpush1.bf16.xpose.msra.mxu0 0
      %10185 = vmatprep.subr.bf16.mxu0 0
      %10186 = vmatpush1.bf16.xpose.msra.mxu0 0
      %10187 = vmatprep.subr.bf16.mxu0 0
      %10188 = vmatpush1.bf16.xpose.msra.mxu0 0
      %10189 = vmatprep.subr.bf16.mxu0 0
      %10190 = vmatpush1.bf16.xpose.msra.mxu0 0
      %10191 = vmatprep.subr.bf16.mxu0 0
      %10192 = vmatpush1.bf16.xpose.msra.mxu0 0
      %10193 = vmatprep.subr.bf16.mxu0 0
      %10194 = vmatpush1.bf16.xpose.msra.mxu0 0
      %10195 = vmatprep.subr.bf16.mxu0 0
      %10196 = vmatpush1.bf16.xpose.msra.mxu0 0
      %10197 = vmatprep.subr.bf16.mxu0 0
      %10198 = vmatpush1.bf16.xpose.msra.mxu0 0
      %10199 = vmatprep.subr.bf16.mxu0 0
      %10200 = vmatpush1.bf16.xpose.msra.mxu0 0
      %10201 = vmatprep.subr.bf16.mxu0 0
      %10202 = vmatpush1.bf16.xpose.msra.mxu0 0
      %10203 = vmatprep.mubr.bf16.mxu0 0
      %10204 = vmatmul.mubr.bf16.gmra.mrb[0].mxu0 %v8555
      %v10205 = vpop.f32.mrb[0].mxu0
      %v10206 = vadd.f32 0.0, %v10205
      %v10207 = vpop.f32.mrb[0].mxu0
      %v10208 = vpop.f32.mrb[0].mxu0
      %v10209 = vadd.f32 0.0, %v10208
      %v10210 = vpop.f32.mrb[0].mxu0
      %10211 = vmatprep.mubr.bf16.mxu0 0
      %10212 = vmatmul.mubr.bf16.gmra.mrb[0].mxu0 %v8562
      %v10213 = vpop.f32.mrb[0].mxu0
      %v10214 = vadd.f32 0.0, %v10213
      %v10215 = vpop.f32.mrb[0].mxu0
      %v10216 = vpop.f32.mrb[0].mxu0
      %v10217 = vadd.f32 0.0, %v10216
      %v10218 = vpop.f32.mrb[0].mxu0
      %10219 = vmatprep.mubr.bf16.mxu0 0
      %10220 = vmatmul.mubr.bf16.gmra.mrb[0].mxu0 %v8569
      %v10221 = vpop.f32.mrb[0].mxu0
      %v10222 = vadd.f32 0.0, %v10221
      %v10223 = vpop.f32.mrb[0].mxu0
      %v10224 = vpop.f32.mrb[0].mxu0
      %v10225 = vadd.f32 0.0, %v10224
      %v10226 = vpop.f32.mrb[0].mxu0
      %10227 = vmatprep.mubr.bf16.mxu0 0
      %10228 = vmatmul.mubr.bf16.gmra.mrb[0].mxu0 %v8576
      %v10229 = vpop.f32.mrb[0].mxu0
      %v10230 = vadd.f32 0.0, %v10229
      %v10231 = vpop.f32.mrb[0].mxu0
      %v10232 = vpop.f32.mrb[0].mxu0
      %v10233 = vadd.f32 0.0, %v10232
      %v10234 = vpop.f32.mrb[0].mxu0
      %10235 = vmatprep.mubr.bf16.mxu0 0
      %10236 = vmatmul.mubr.bf16.gmra.mrb[0].mxu0 %v8583
      %v10237 = vpop.f32.mrb[0].mxu0
      %v10238 = vadd.f32 0.0, %v10237
      %v10239 = vpop.f32.mrb[0].mxu0
      %v10240 = vpop.f32.mrb[0].mxu0
      %v10241 = vadd.f32 0.0, %v10240
      %v10242 = vpop.f32.mrb[0].mxu0
      %10243 = vmatprep.mubr.bf16.mxu0 0
      %10244 = vmatmul.mubr.bf16.gmra.mrb[0].mxu0 %v8590
      %v10245 = vpop.f32.mrb[0].mxu0
      %v10246 = vadd.f32 0.0, %v10245
      %v10247 = vpop.f32.mrb[0].mxu0
      %v10248 = vpop.f32.mrb[0].mxu0
      %v10249 = vadd.f32 0.0, %v10248
      %v10250 = vpop.f32.mrb[0].mxu0
      %10251 = vmatprep.mubr.bf16.mxu0 0
      %10252 = vmatmul.mubr.bf16.gmra.mrb[0].mxu0 %v8597
      %v10253 = vpop.f32.mrb[0].mxu0
      %v10254 = vadd.f32 0.0, %v10253
      %v10255 = vpop.f32.mrb[0].mxu0
      %v10256 = vpop.f32.mrb[0].mxu0
      %v10257 = vadd.f32 0.0, %v10256
      %v10258 = vpop.f32.mrb[0].mxu0
      %10259 = vmatprep.mubr.bf16.mxu0 0
      %10260 = vmatmul.mubr.bf16.gmra.mrb[0].mxu0 %v8604
      %v10261 = vpop.f32.mrb[0].mxu0
      %v10262 = vadd.f32 0.0, %v10261
      %v10263 = vpop.f32.mrb[0].mxu0
      %v10264 = vpop.f32.mrb[0].mxu0
      %v10265 = vadd.f32 0.0, %v10264
      %v10266 = vpop.f32.mrb[0].mxu0
      %10267 = vmatprep.mubr.bf16.mxu0 0
      %10268 = vmatmul.mubr.bf16.gmra.mrb[0].mxu0 %v8611
      %v10269 = vpop.f32.mrb[0].mxu0
      %v10270 = vadd.f32 0.0, %v10269
      %v10271 = vpop.f32.mrb[0].mxu0
      %v10272 = vpop.f32.mrb[0].mxu0
      %v10273 = vadd.f32 0.0, %v10272
      %v10274 = vpop.f32.mrb[0].mxu0
      %10275 = vmatprep.mubr.bf16.mxu0 0
      %10276 = vmatmul.mubr.bf16.gmra.mrb[0].mxu0 %v8618
      %v10277 = vpop.f32.mrb[0].mxu0
      %v10278 = vadd.f32 0.0, %v10277
      %v10279 = vpop.f32.mrb[0].mxu0
      %v10280 = vpop.f32.mrb[0].mxu0
      %v10281 = vadd.f32 0.0, %v10280
      %v10282 = vpop.f32.mrb[0].mxu0
      %10283 = vmatprep.mubr.bf16.mxu0 0
      %10284 = vmatmul.mubr.bf16.gmra.mrb[0].mxu0 %v8625
      %v10285 = vpop.f32.mrb[0].mxu0
      %v10286 = vadd.f32 0.0, %v10285
      %v10287 = vpop.f32.mrb[0].mxu0
      %v10288 = vpop.f32.mrb[0].mxu0
      %v10289 = vadd.f32 0.0, %v10288
      %v10290 = vpop.f32.mrb[0].mxu0
      %10291 = vmatprep.mubr.bf16.mxu0 0
      %10292 = vmatmul.mubr.bf16.gmra.mrb[0].mxu0 %v8632
      %v10293 = vpop.f32.mrb[0].mxu0
      %v10294 = vadd.f32 0.0, %v10293
      %v10295 = vpop.f32.mrb[0].mxu0
      %v10296 = vpop.f32.mrb[0].mxu0
      %v10297 = vadd.f32 0.0, %v10296
      %v10298 = vpop.f32.mrb[0].mxu0
      %10299 = vmatprep.mubr.bf16.mxu0 0
      %10300 = vmatmul.mubr.bf16.gmra.mrb[0].mxu0 %v8639
      %v10301 = vpop.f32.mrb[0].mxu0
      %v10302 = vadd.f32 0.0, %v10301
      %v10303 = vpop.f32.mrb[0].mxu0
      %v10304 = vpop.f32.mrb[0].mxu0
      %v10305 = vadd.f32 0.0, %v10304
      %v10306 = vpop.f32.mrb[0].mxu0
      %10307 = vmatprep.mubr.bf16.mxu0 0
      %10308 = vmatmul.mubr.bf16.gmra.mrb[0].mxu0 %v8646
      %v10309 = vpop.f32.mrb[0].mxu0
      %v10310 = vadd.f32 0.0, %v10309
      %v10311 = vpop.f32.mrb[0].mxu0
      %v10312 = vpop.f32.mrb[0].mxu0
      %v10313 = vadd.f32 0.0, %v10312
      %v10314 = vpop.f32.mrb[0].mxu0
      %10315 = vmatprep.mubr.bf16.mxu0 0
      %10316 = vmatmul.mubr.bf16.gmra.mrb[0].mxu0 %v8653
      %v10317 = vpop.f32.mrb[0].mxu0
      %v10318 = vadd.f32 0.0, %v10317
      %v10319 = vpop.f32.mrb[0].mxu0
      %v10320 = vpop.f32.mrb[0].mxu0
      %v10321 = vadd.f32 0.0, %v10320
      %v10322 = vpop.f32.mrb[0].mxu0
      %10323 = vmatprep.mubr.bf16.mxu0 0
      %10324 = vmatmul.mubr.bf16.gmra.mrb[0].mxu0 %v8660
      %v10325 = vpop.f32.mrb[0].mxu0
      %v10326 = vadd.f32 0.0, %v10325
      %v10327 = vpop.f32.mrb[0].mxu0
      %v10328 = vpop.f32.mrb[0].mxu0
      %v10329 = vadd.f32 0.0, %v10328
      %v10330 = vpop.f32.mrb[0].mxu0
      %10331 = vmatprep.mubr.bf16.mxu0 0
      %10332 = vmatmul.mubr.bf16.gmra.mrb[0].mxu0 %v8667
      %v10333 = vpop.f32.mrb[0].mxu0
      %v10334 = vadd.f32 0.0, %v10333
      %v10335 = vpop.f32.mrb[0].mxu0
      %v10336 = vpop.f32.mrb[0].mxu0
      %v10337 = vadd.f32 0.0, %v10336
      %v10338 = vpop.f32.mrb[0].mxu0
      %10339 = vmatprep.mubr.bf16.mxu0 0
      %10340 = vmatmul.mubr.bf16.gmra.mrb[0].mxu0 %v8674
      %v10341 = vpop.f32.mrb[0].mxu0
      %v10342 = vadd.f32 0.0, %v10341
      %v10343 = vpop.f32.mrb[0].mxu0
      %v10344 = vpop.f32.mrb[0].mxu0
      %v10345 = vadd.f32 0.0, %v10344
      %v10346 = vpop.f32.mrb[0].mxu0
      %10347 = vmatprep.mubr.bf16.mxu0 0
      %10348 = vmatmul.mubr.bf16.gmra.mrb[0].mxu0 %v9430
      %v10349 = vpop.f32.mrb[0].mxu0
      %v10350 = vadd.f32 0.0, %v10349
      %v10351 = vpop.f32.mrb[0].mxu0
      %v10352 = vpop.f32.mrb[0].mxu0
      %v10353 = vadd.f32 0.0, %v10352
      %v10354 = vpop.f32.mrb[0].mxu0
      %10355 = vmatprep.mubr.bf16.mxu0 0
      %10356 = vmatmul.mubr.bf16.gmra.mrb[0].mxu0 %v10167
      %v10357 = vpop.f32.mrb[0].mxu0
      %v10358 = vadd.f32 0.0, %v10357
      %v10359 = vpop.f32.mrb[0].mxu0
      %v10360 = vpop.f32.mrb[0].mxu0
      %v10361 = vadd.f32 0.0, %v10360
      %v10362 = vpop.f32.mrb[0].mxu0
      %10363 = vdwg.mxu0
      %v10364 = vadd.f32 %v10121, %v10206
      %v10365 = vadd.f32 %v10122, %v10209
      %v10366 = vadd.f32 %v10123, %v10214
      %v10367 = vadd.f32 %v10124, %v10217
      %v10368 = vadd.f32 %v10125, %v10222
      %v10369 = vadd.f32 %v10126, %v10225
      %v10370 = vadd.f32 %v10127, %v10230
      %v10371 = vadd.f32 %v10128, %v10233
      %v10372 = vadd.f32 %v10129, %v10238
      %v10373 = vadd.f32 %v10130, %v10241
      %v10374 = vadd.f32 %v10131, %v10246
      %v10375 = vadd.f32 %v10132, %v10249
      %v10376 = vadd.f32 %v10133, %v10254
      %v10377 = vadd.f32 %v10134, %v10257
      %v10378 = vadd.f32 %v10135, %v10262
      %v10379 = vadd.f32 %v10136, %v10265
      %v10380 = vadd.f32 %v10137, %v10270
      %v10381 = vadd.f32 %v10138, %v10273
      %v10382 = vadd.f32 %v10139, %v10278
      %v10383 = vadd.f32 %v10140, %v10281
      %v10384 = vadd.f32 %v10141, %v10286
      %v10385 = vadd.f32 %v10142, %v10289
      %v10386 = vadd.f32 %v10143, %v10294
      %v10387 = vadd.f32 %v10144, %v10297
      %v10388 = vadd.f32 %v10145, %v10302
      %v10389 = vadd.f32 %v10146, %v10305
      %v10390 = vadd.f32 %v10147, %v10310
      %v10391 = vadd.f32 %v10148, %v10313
      %v10392 = vadd.f32 %v10149, %v10318
      %v10393 = vadd.f32 %v10150, %v10321
      %v10394 = vadd.f32 %v10151, %v10326
      %v10395 = vadd.f32 %v10152, %v10329
      %v10396 = vadd.f32 %v10153, %v10334
      %v10397 = vadd.f32 %v10154, %v10337
      %v10398 = vadd.f32 %v10155, %v10342
      %v10399 = vadd.f32 %v10156, %v10345
      %v10400 = vadd.f32 %v10157, %v10350
      %v10401 = vadd.f32 %v10158, %v10353
      %v10402 = vadd.f32 %v10159, %v10358
      %v10403 = vadd.f32 %v10160, %v10361
      %10444 = vrot.lane.b32.xlu0 %v10364, 12
      %v10445 = vpop.permute.xlu0 %10444
      %10446 = vrot.lane.b32.xlu0 %v10365, 12
      %v10447 = vpop.permute.xlu0 %10446
      %10448 = vrot.lane.b32.xlu0 %v10366, 12
      %v10449 = vpop.permute.xlu0 %10448
      %10450 = vrot.lane.b32.xlu0 %v10367, 12
      %v10451 = vpop.permute.xlu0 %10450
      %10452 = vrot.lane.b32.xlu0 %v10368, 12
      %v10453 = vpop.permute.xlu0 %10452
      %10454 = vrot.lane.b32.xlu0 %v10369, 12
      %v10455 = vpop.permute.xlu0 %10454
      %10456 = vrot.lane.b32.xlu0 %v10370, 12
      %v10457 = vpop.permute.xlu0 %10456
      %10458 = vrot.lane.b32.xlu0 %v10371, 12
      %v10459 = vpop.permute.xlu0 %10458
      %10460 = vrot.lane.b32.xlu0 %v10372, 12
      %v10461 = vpop.permute.xlu0 %10460
      %10462 = vrot.lane.b32.xlu0 %v10373, 12
      %v10463 = vpop.permute.xlu0 %10462
      %10464 = vrot.lane.b32.xlu0 %v10374, 12
      %v10465 = vpop.permute.xlu0 %10464
      %10466 = vrot.lane.b32.xlu0 %v10375, 12
      %v10467 = vpop.permute.xlu0 %10466
      %10468 = vrot.lane.b32.xlu0 %v10376, 12
      %v10469 = vpop.permute.xlu0 %10468
      %10470 = vrot.lane.b32.xlu0 %v10377, 12
      %v10471 = vpop.permute.xlu0 %10470
      %10472 = vrot.lane.b32.xlu0 %v10378, 12
      %v10473 = vpop.permute.xlu0 %10472
      %10474 = vrot.lane.b32.xlu0 %v10379, 12
      %v10475 = vpop.permute.xlu0 %10474
      %10476 = vrot.lane.b32.xlu0 %v10380, 12
      %v10477 = vpop.permute.xlu0 %10476
      %10478 = vrot.lane.b32.xlu0 %v10381, 12
      %v10479 = vpop.permute.xlu0 %10478
      %10480 = vrot.lane.b32.xlu0 %v10382, 12
      %v10481 = vpop.permute.xlu0 %10480
      %10482 = vrot.lane.b32.xlu0 %v10383, 12
      %v10483 = vpop.permute.xlu0 %10482
      %10484 = vrot.lane.b32.xlu0 %v10384, 12
      %v10485 = vpop.permute.xlu0 %10484
      %10486 = vrot.lane.b32.xlu0 %v10385, 12
      %v10487 = vpop.permute.xlu0 %10486
      %10488 = vrot.lane.b32.xlu0 %v10386, 12
      %v10489 = vpop.permute.xlu0 %10488
      %10490 = vrot.lane.b32.xlu0 %v10387, 12
      %v10491 = vpop.permute.xlu0 %10490
      %10492 = vrot.lane.b32.xlu0 %v10388, 12
      %v10493 = vpop.permute.xlu0 %10492
      %10494 = vrot.lane.b32.xlu0 %v10389, 12
      %v10495 = vpop.permute.xlu0 %10494
      %10496 = vrot.lane.b32.xlu0 %v10390, 12
      %v10497 = vpop.permute.xlu0 %10496
      %10498 = vrot.lane.b32.xlu0 %v10391, 12
      %v10499 = vpop.permute.xlu0 %10498
      %10500 = vrot.lane.b32.xlu0 %v10392, 12
      %v10501 = vpop.permute.xlu0 %10500
      %10502 = vrot.lane.b32.xlu0 %v10393, 12
      %v10503 = vpop.permute.xlu0 %10502
      %10504 = vrot.lane.b32.xlu0 %v10394, 12
      %v10505 = vpop.permute.xlu0 %10504
      %10506 = vrot.lane.b32.xlu0 %v10395, 12
      %v10507 = vpop.permute.xlu0 %10506
      %10508 = vrot.lane.b32.xlu0 %v10396, 12
      %v10509 = vpop.permute.xlu0 %10508
      %10510 = vrot.lane.b32.xlu0 %v10397, 12
      %v10511 = vpop.permute.xlu0 %10510
      %10512 = vrot.lane.b32.xlu0 %v10398, 12
      %v10513 = vpop.permute.xlu0 %10512
      %10514 = vrot.lane.b32.xlu0 %v10399, 12
      %v10515 = vpop.permute.xlu0 %10514
      %10516 = vrot.lane.b32.xlu0 %v10400, 12
      %v10517 = vpop.permute.xlu0 %10516
      %10518 = vrot.lane.b32.xlu0 %v10401, 12
      %v10519 = vpop.permute.xlu0 %10518
      %10520 = vrot.lane.b32.xlu0 %v10402, 12
      %v10521 = vpop.permute.xlu0 %10520
      %10522 = vrot.lane.b32.xlu0 %v10403, 12
      %v10523 = vpop.permute.xlu0 %10522
      %vm10564 = vcmask 130144
      %10565 = vst.msk [vmem:[%s3710 + $0x8] sm:$0xff] %vm10564, %v10445
      %10566 = vst.msk [vmem:[%s3710 + $0x10] sm:$0xff] %vm10564, %v10447
      %10567 = vst.msk [vmem:[%s3710 + $0x28] sm:$0xff] %vm10564, %v10449
      %10568 = vst.msk [vmem:[%s3710 + $0x30] sm:$0xff] %vm10564, %v10451
      %10569 = vst.msk [vmem:[%s3710 + $0x48] sm:$0xff] %vm10564, %v10453
      %10570 = vst.msk [vmem:[%s3710 + $0x50] sm:$0xff] %vm10564, %v10455
      %10571 = vst.msk [vmem:[%s3710 + $0x68] sm:$0xff] %vm10564, %v10457
      %10572 = vst.msk [vmem:[%s3710 + $0x70] sm:$0xff] %vm10564, %v10459
      %10573 = vst.msk [vmem:[%s3710 + $0x88] sm:$0xff] %vm10564, %v10461
      %10574 = vst.msk [vmem:[%s3710 + $0x90] sm:$0xff] %vm10564, %v10463
      %10575 = vst.msk [vmem:[%s3710 + $0xa8] sm:$0xff] %vm10564, %v10465
      %10576 = vst.msk [vmem:[%s3710 + $0xb0] sm:$0xff] %vm10564, %v10467
      %10577 = vst.msk [vmem:[%s3710 + $0xc8] sm:$0xff] %vm10564, %v10469
      %10578 = vst.msk [vmem:[%s3710 + $0xd0] sm:$0xff] %vm10564, %v10471
      %10579 = vst.msk [vmem:[%s3710 + $0xe8] sm:$0xff] %vm10564, %v10473
      %10580 = vst.msk [vmem:[%s3710 + $0xf0] sm:$0xff] %vm10564, %v10475
      %10581 = vst.msk [vmem:[%s3710 + $0x108] sm:$0xff] %vm10564, %v10477
      %10582 = vst.msk [vmem:[%s3710 + $0x110] sm:$0xff] %vm10564, %v10479
      %10583 = vst.msk [vmem:[%s3710 + $0x128] sm:$0xff] %vm10564, %v10481
      %10584 = vst.msk [vmem:[%s3710 + $0x130] sm:$0xff] %vm10564, %v10483
      %10585 = vst.msk [vmem:[%s3710 + $0x148] sm:$0xff] %vm10564, %v10485
      %10586 = vst.msk [vmem:[%s3710 + $0x150] sm:$0xff] %vm10564, %v10487
      %10587 = vst.msk [vmem:[%s3710 + $0x168] sm:$0xff] %vm10564, %v10489
      %10588 = vst.msk [vmem:[%s3710 + $0x170] sm:$0xff] %vm10564, %v10491
      %10589 = vst.msk [vmem:[%s3710 + $0x188] sm:$0xff] %vm10564, %v10493
      %10590 = vst.msk [vmem:[%s3710 + $0x190] sm:$0xff] %vm10564, %v10495
      %10591 = vst.msk [vmem:[%s3710 + $0x1a8] sm:$0xff] %vm10564, %v10497
      %10592 = vst.msk [vmem:[%s3710 + $0x1b0] sm:$0xff] %vm10564, %v10499
      %10593 = vst.msk [vmem:[%s3710 + $0x1c8] sm:$0xff] %vm10564, %v10501
      %10594 = vst.msk [vmem:[%s3710 + $0x1d0] sm:$0xff] %vm10564, %v10503
      %10595 = vst.msk [vmem:[%s3710 + $0x1e8] sm:$0xff] %vm10564, %v10505
      %10596 = vst.msk [vmem:[%s3710 + $0x1f0] sm:$0xff] %vm10564, %v10507
      %10597 = vst.msk [vmem:[%s3710 + $0x208] sm:$0xff] %vm10564, %v10509
      %10598 = vst.msk [vmem:[%s3710 + $0x210] sm:$0xff] %vm10564, %v10511
      %10599 = vst.msk [vmem:[%s3710 + $0x228] sm:$0xff] %vm10564, %v10513
      %10600 = vst.msk [vmem:[%s3710 + $0x230] sm:$0xff] %vm10564, %v10515
      %10601 = vst.msk [vmem:[%s3710 + $0x248] sm:$0xff] %vm10564, %v10517
      %10602 = vst.msk [vmem:[%s3710 + $0x250] sm:$0xff] %vm10564, %v10519
      %10603 = vst.msk [vmem:[%s3710 + $0x268] sm:$0xff] %vm10564, %v10521
      %10604 = vst.msk [vmem:[%s3710 + $0x270] sm:$0xff] %vm10564, %v10523
      %vm10605 = vcmask 122976
      %10606 = vst.msk [vmem:[%s3710 + $0x7] sm:$0x1] %vm10605, %v10445
      %10607 = vst.msk [vmem:[%s3710 + $0x27] sm:$0x1] %vm10605, %v10449
      %10608 = vst.msk [vmem:[%s3710 + $0x47] sm:$0x1] %vm10605, %v10453
      %10609 = vst.msk [vmem:[%s3710 + $0x67] sm:$0x1] %vm10605, %v10457
      %10610 = vst.msk [vmem:[%s3710 + $0x87] sm:$0x1] %vm10605, %v10461
      %10611 = vst.msk [vmem:[%s3710 + $0xa7] sm:$0x1] %vm10605, %v10465
      %10612 = vst.msk [vmem:[%s3710 + $0xc7] sm:$0x1] %vm10605, %v10469
      %10613 = vst.msk [vmem:[%s3710 + $0xe7] sm:$0x1] %vm10605, %v10473
      %10614 = vst.msk [vmem:[%s3710 + $0x107] sm:$0x1] %vm10605, %v10477
      %10615 = vst.msk [vmem:[%s3710 + $0x127] sm:$0x1] %vm10605, %v10481
      %10616 = vst.msk [vmem:[%s3710 + $0x147] sm:$0x1] %vm10605, %v10485
      %10617 = vst.msk [vmem:[%s3710 + $0x167] sm:$0x1] %vm10605, %v10489
      %10618 = vst.msk [vmem:[%s3710 + $0x187] sm:$0x1] %vm10605, %v10493
      %10619 = vst.msk [vmem:[%s3710 + $0x1a7] sm:$0x1] %vm10605, %v10497
      %10620 = vst.msk [vmem:[%s3710 + $0x1c7] sm:$0x1] %vm10605, %v10501
      %10621 = vst.msk [vmem:[%s3710 + $0x1e7] sm:$0x1] %vm10605, %v10505
      %10622 = vst.msk [vmem:[%s3710 + $0x207] sm:$0x1] %vm10605, %v10509
      %10623 = vst.msk [vmem:[%s3710 + $0x227] sm:$0x1] %vm10605, %v10513
      %10624 = vst.msk [vmem:[%s3710 + $0x247] sm:$0x1] %vm10605, %v10517
      %10625 = vst.msk [vmem:[%s3710 + $0x267] sm:$0x1] %vm10605, %v10521
      %vm10626 = vcmask 130151
      %10627 = vst.msk [vmem:[%s3710 + $0x11] sm:$0x80] %vm10626, %v10447
      %10628 = vst.msk [vmem:[%s3710 + $0x31] sm:$0x80] %vm10626, %v10451
      %10629 = vst.msk [vmem:[%s3710 + $0x51] sm:$0x80] %vm10626, %v10455
      %10630 = vst.msk [vmem:[%s3710 + $0x71] sm:$0x80] %vm10626, %v10459
      %10631 = vst.msk [vmem:[%s3710 + $0x91] sm:$0x80] %vm10626, %v10463
      %10632 = vst.msk [vmem:[%s3710 + $0xb1] sm:$0x80] %vm10626, %v10467
      %10633 = vst.msk [vmem:[%s3710 + $0xd1] sm:$0x80] %vm10626, %v10471
      %10634 = vst.msk [vmem:[%s3710 + $0xf1] sm:$0x80] %vm10626, %v10475
      %10635 = vst.msk [vmem:[%s3710 + $0x111] sm:$0x80] %vm10626, %v10479
      %10636 = vst.msk [vmem:[%s3710 + $0x131] sm:$0x80] %vm10626, %v10483
      %10637 = vst.msk [vmem:[%s3710 + $0x151] sm:$0x80] %vm10626, %v10487
      %10638 = vst.msk [vmem:[%s3710 + $0x171] sm:$0x80] %vm10626, %v10491
      %10639 = vst.msk [vmem:[%s3710 + $0x191] sm:$0x80] %vm10626, %v10495
      %10640 = vst.msk [vmem:[%s3710 + $0x1b1] sm:$0x80] %vm10626, %v10499
      %10641 = vst.msk [vmem:[%s3710 + $0x1d1] sm:$0x80] %vm10626, %v10503
      %10642 = vst.msk [vmem:[%s3710 + $0x1f1] sm:$0x80] %vm10626, %v10507
      %10643 = vst.msk [vmem:[%s3710 + $0x211] sm:$0x80] %vm10626, %v10511
      %10644 = vst.msk [vmem:[%s3710 + $0x231] sm:$0x80] %vm10626, %v10515
      %10645 = vst.msk [vmem:[%s3710 + $0x251] sm:$0x80] %vm10626, %v10519
      %10646 = vst.msk [vmem:[%s3710 + $0x271] sm:$0x80] %vm10626, %v10523
      // Predicated region
      $region75: #{dense_block_forward.1} parent=31 // pred_check
        %p10647 = pneg %p3794
      $region76: #{dense_block_forward.1} parent=31 // pred_check_branch
        %10649 = sbr.rel (%p10647) target = $region78
      $region77: #{dense_block_forward.1} parent=31 // pred_region
        %s10650 = scalar_lea.vmem [#allocation2], 96
        %v10651 = vld [vmem:[%s10650] sm:$0xff]
        %v10652 = vld [vmem:[%s10650 + $0x8] sm:$0xff]
        %v10653 = vld [vmem:[%s10650 + $0x10] sm:$0xff]
        %v10654 = vld [vmem:[%s10650 + $0x18] sm:$0xff]
        %10655 = vst.msk [vmem:[#allocation2] sm:$0xff] %vm10564, %v10651
        %10656 = vst.msk [vmem:[#allocation2 + $0x8] sm:$0xff] %vm10564, %v10652
        %10657 = vst.msk [vmem:[#allocation2 + $0x10] sm:$0xff] %vm10564, %v10653
        %10658 = vst.msk [vmem:[#allocation2 + $0x18] sm:$0xff] %vm10564, %v10654
        %10659 = vst.msk [vmem:[#allocation2 + $0x20] sm:$0xff] %vm10564, %v10651
        %10660 = vst.msk [vmem:[#allocation2 + $0x28] sm:$0xff] %vm10564, %v10652
        %10661 = vst.msk [vmem:[#allocation2 + $0x30] sm:$0xff] %vm10564, %v10653
        %10662 = vst.msk [vmem:[#allocation2 + $0x38] sm:$0xff] %vm10564, %v10654
        %10663 = vst.msk [vmem:[#allocation2 + $0x40] sm:$0xff] %vm10564, %v10651
        %10664 = vst.msk [vmem:[#allocation2 + $0x48] sm:$0xff] %vm10564, %v10652
        %10665 = vst.msk [vmem:[#allocation2 + $0x50] sm:$0xff] %vm10564, %v10653
        %10666 = vst.msk [vmem:[#allocation2 + $0x58] sm:$0xff] %vm10564, %v10654
        %s10667 = scalar_lea.vmem [#allocation2], 576
        %v10668 = vld [vmem:[%s10667] sm:$0xff]
        %v10669 = vld [vmem:[%s10667 + $0x8] sm:$0xff]
        %v10670 = vld [vmem:[%s10667 + $0x10] sm:$0xff]
        %v10671 = vld [vmem:[%s10667 + $0x18] sm:$0xff]
        %s10672 = scalar_lea.vmem [#allocation2], 608
        %10673 = vst.msk [vmem:[%s10672] sm:$0xff] %vm10564, %v10668
        %10674 = vst.msk [vmem:[%s10672 + $0x8] sm:$0xff] %vm10564, %v10669
        %10675 = vst.msk [vmem:[%s10672 + $0x10] sm:$0xff] %vm10564, %v10670
        %10676 = vst.msk [vmem:[%s10672 + $0x18] sm:$0xff] %vm10564, %v10671
        %10677 = vst.msk [vmem:[%s10672 + $0x20] sm:$0xff] %vm10564, %v10668
        %10678 = vst.msk [vmem:[%s10672 + $0x28] sm:$0xff] %vm10564, %v10669
        %10679 = vst.msk [vmem:[%s10672 + $0x30] sm:$0xff] %vm10564, %v10670
        %10680 = vst.msk [vmem:[%s10672 + $0x38] sm:$0xff] %vm10564, %v10671
        %10681 = vst.msk [vmem:[%s10672 + $0x40] sm:$0xff] %vm10564, %v10668
        %10682 = vst.msk [vmem:[%s10672 + $0x48] sm:$0xff] %vm10564, %v10669
        %10683 = vst.msk [vmem:[%s10672 + $0x50] sm:$0xff] %vm10564, %v10670
        %10684 = vst.msk [vmem:[%s10672 + $0x58] sm:$0xff] %vm10564, %v10671
      $region78: #{dense_block_forward.1} parent=31 // pred_fallthru
        _
      %s10685 = scalar_lea.vmem [#allocation2], 96
      %v10686 = vld [vmem:[%s10685 + $0x8] sm:$0xff]
      %v10687 = vld [vmem:[%s10685 + $0x10] sm:$0xff]
      %v10688 = vld [vmem:[%s10685 + $0x28] sm:$0xff]
      %v10689 = vld [vmem:[%s10685 + $0x30] sm:$0xff]
      %v10690 = vld [vmem:[%s10685 + $0x48] sm:$0xff]
      %v10691 = vld [vmem:[%s10685 + $0x50] sm:$0xff]
      %v10692 = vld [vmem:[%s10685 + $0x68] sm:$0xff]
      %v10693 = vld [vmem:[%s10685 + $0x70] sm:$0xff]
      %v10694 = vld [vmem:[%s10685 + $0x88] sm:$0xff]
      %v10695 = vld [vmem:[%s10685 + $0x90] sm:$0xff]
      %v10696 = vld [vmem:[%s10685 + $0xa8] sm:$0xff]
      %v10697 = vld [vmem:[%s10685 + $0xb0] sm:$0xff]
      %v10698 = vld [vmem:[%s10685 + $0xc8] sm:$0xff]
      %v10699 = vld [vmem:[%s10685 + $0xd0] sm:$0xff]
      %v10700 = vld [vmem:[%s10685 + $0xe8] sm:$0xff]
      %v10701 = vld [vmem:[%s10685 + $0xf0] sm:$0xff]
      %v10702 = vld [vmem:[%s10685 + $0x108] sm:$0xff]
      %v10703 = vld [vmem:[%s10685 + $0x110] sm:$0xff]
      %v10704 = vld [vmem:[%s10685 + $0x128] sm:$0xff]
      %v10705 = vld [vmem:[%s10685 + $0x130] sm:$0xff]
      %v10706 = vld [vmem:[%s10685 + $0x148] sm:$0xff]
      %v10707 = vld [vmem:[%s10685 + $0x150] sm:$0xff]
      %v10708 = vld [vmem:[%s10685 + $0x168] sm:$0xff]
      %v10709 = vld [vmem:[%s10685 + $0x170] sm:$0xff]
      %v10710 = vld [vmem:[%s10685 + $0x188] sm:$0xff]
      %v10711 = vld [vmem:[%s10685 + $0x190] sm:$0xff]
      %v10712 = vld [vmem:[%s10685 + $0x1a8] sm:$0xff]
      %v10713 = vld [vmem:[%s10685 + $0x1b0] sm:$0xff]
      %v10714 = vld [vmem:[%s10685 + $0x1c8] sm:$0xff]
      %v10715 = vld [vmem:[%s10685 + $0x1d0] sm:$0xff]
      %v10716 = vld [vmem:[%s10685 + $0x1e8] sm:$0xff]
      %v10717 = vld [vmem:[%s10685 + $0x1f0] sm:$0xff]
      %10718 = vst [vmem:[%s175] sm:$0xff] %v10686
      %10719 = vst [vmem:[%s175 + $0x8] sm:$0xff] %v10687
      %10720 = vst [vmem:[%s175 + $0x10] sm:$0xff] %v10688
      %10721 = vst [vmem:[%s175 + $0x18] sm:$0xff] %v10689
      %10722 = vst [vmem:[%s175 + $0x20] sm:$0xff] %v10690
      %10723 = vst [vmem:[%s175 + $0x28] sm:$0xff] %v10691
      %10724 = vst [vmem:[%s175 + $0x30] sm:$0xff] %v10692
      %10725 = vst [vmem:[%s175 + $0x38] sm:$0xff] %v10693
      %10726 = vst [vmem:[%s175 + $0x40] sm:$0xff] %v10694
      %10727 = vst [vmem:[%s175 + $0x48] sm:$0xff] %v10695
      %10728 = vst [vmem:[%s175 + $0x50] sm:$0xff] %v10696
      %10729 = vst [vmem:[%s175 + $0x58] sm:$0xff] %v10697
      %10730 = vst [vmem:[%s175 + $0x60] sm:$0xff] %v10698
      %10731 = vst [vmem:[%s175 + $0x68] sm:$0xff] %v10699
      %10732 = vst [vmem:[%s175 + $0x70] sm:$0xff] %v10700
      %10733 = vst [vmem:[%s175 + $0x78] sm:$0xff] %v10701
      %10734 = vst [vmem:[%s175 + $0x80] sm:$0xff] %v10702
      %10735 = vst [vmem:[%s175 + $0x88] sm:$0xff] %v10703
      %10736 = vst [vmem:[%s175 + $0x90] sm:$0xff] %v10704
      %10737 = vst [vmem:[%s175 + $0x98] sm:$0xff] %v10705
      %10738 = vst [vmem:[%s175 + $0xa0] sm:$0xff] %v10706
      %10739 = vst [vmem:[%s175 + $0xa8] sm:$0xff] %v10707
      %10740 = vst [vmem:[%s175 + $0xb0] sm:$0xff] %v10708
      %10741 = vst [vmem:[%s175 + $0xb8] sm:$0xff] %v10709
      %10742 = vst [vmem:[%s175 + $0xc0] sm:$0xff] %v10710
      %10743 = vst [vmem:[%s175 + $0xc8] sm:$0xff] %v10711
      %10744 = vst [vmem:[%s175 + $0xd0] sm:$0xff] %v10712
      %10745 = vst [vmem:[%s175 + $0xd8] sm:$0xff] %v10713
      %10746 = vst [vmem:[%s175 + $0xe0] sm:$0xff] %v10714
      %10747 = vst [vmem:[%s175 + $0xe8] sm:$0xff] %v10715
      %10748 = vst [vmem:[%s175 + $0xf0] sm:$0xff] %v10716
      %10749 = vst [vmem:[%s175 + $0xf8] sm:$0xff] %v10717
      %s10750 = smul.u32 16, %s20
      %p10751 = scmp.lt.s32.totalorder %s19, 1
      %s10752 = scalar_select %p10751, %s19, 1
      %p10753 = scmp.lt.s32.totalorder %s10750, 15
      %s10754 = scalar_select %p10753, %s10750, 15
      %s10755 = smul.addr %s10754, 2
      %s10756 = smul.addr %s10752, 32
      %s10757 = sadd.s32 %s10755, %s10756
      %s10758 = smul.addr %s10757, 8
      %s10759 = scalar_lea.vmem %s4, %s10758
      // Predicated region
      $region79: #{dense_block_forward.1} parent=31 // pred_check
        %p10760 = pneg %p110
      $region80: #{dense_block_forward.1} parent=31 // pred_check_branch
        %10762 = sbr.rel (%p10760) target = $region82
      $region81: #{dense_block_forward.1} parent=31 // pred_region
        %s10763 = smul.u32 16, %s20
      $region82: #{dense_block_forward.1} parent=31 // pred_fallthru
        _
    $region32: #{dense_block_forward.1} parent=5 // pred_fallthru
      _
    %p10764 = scmp.le.s32.totalorder 2, %s10
    // Predicated region
    $region83: #{dense_block_forward.1} parent=5 // pred_check
      %p10765 = pneg %p10764
    $region84: #{dense_block_forward.1} parent=5 // pred_check_branch
      %10767 = sbr.rel (%p10765) target = $region86
    $region85: #{dense_block_forward.1} parent=5 // pred_region
      %s10768 = ssub.s32 %s10, 2
      // Predicated region
      $region87: #{dense_block_forward.1} parent=85 // pred_check
        %p10769 = pneg %p116
      $region88: #{dense_block_forward.1} parent=85 // pred_check_branch
        %10771 = sbr.rel (%p10769) target = $region90
      $region89: #{dense_block_forward.1} parent=85 // pred_region
        %s10772 = smul.u32 16, %s22
        %p10773 = scmp.lt.s32.totalorder %s21, 1
        %s10774 = scalar_select %p10773, %s21, 1
        %p10775 = scmp.lt.s32.totalorder %s10772, 15
        %s10776 = scalar_select %p10775, %s10772, 15
        %s10777 = smul.addr %s10776, 2
        %s10778 = smul.addr %s10774, 32
        %s10779 = sadd.s32 %s10777, %s10778
        %s10780 = smul.addr %s10779, 8
        %s10781 = scalar_lea.vmem %s4, %s10780
      $region90: #{dense_block_forward.1} parent=85 // pred_fallthru
        _
    $region86: #{dense_block_forward.1} parent=5 // pred_fallthru
      _
  $region6: #{dense_block_forward.1} parent=0 // loop_footer
    %s14 = sadd.s32 1, %s10
  $region7: #{dense_block_forward.1} parent=0 // loop_footer_branch
    %9 = sbr.rel target = $region3
  $region8: #{dense_block_forward.1} parent=0 // loop_exit
    _
  %10782 = vsyncmov [#allocation3]
  %s10783 = vpop.sfrf %10782
  %p10784 = scmp.eq.s32.totalorder %s10783, 0
  %p10785 = pneg %p10784
  %10787 = shalt.err (%p10785)

</llo_original>
